<compile_context>
chip_gen: v7x
topology: tpu7x:2x2x1
jax: 0.10.0
libtpu: 0.0.40
codegen_flags: <defaults>
</compile_context>

<pallas_src>
import numpy as np
import jax
import jax.numpy as jnp
from jax.experimental import pallas as pl
from jax.experimental.pallas import tpu as pltpu


_COL0 = 8  # sublane-aligned column offset of the real data inside the pad scratch


# ----------------------------- in-kernel helpers -----------------------------

def _pad_into(pad_ref, y):
    """Zero the scratch and place y at row offset 1 / column offset _COL0."""
    Hc, Wc, _ = y.shape
    pad_ref[...] = jnp.zeros(pad_ref.shape, pad_ref.dtype)
    pad_ref[1:Hc + 1, _COL0:_COL0 + Wc, :] = y


def _tap(pad_ref, di, dj, Hc, Wc):
    """Read the (Hc, Wc, C) window of the padded scratch for tap (di, dj)."""
    c0 = _COL0 - 1 + dj
    return pad_ref[di:di + Hc, c0:c0 + Wc, :]


def _dwconv3x3(pad_ref, y, dw_w, dw_b):
    """Depthwise 3x3 conv, stride 1, pad 1, plus bias.  y: (Hc, Wc, C)."""
    Hc, Wc, C = y.shape
    _pad_into(pad_ref, y)
    acc = jnp.zeros((Hc, Wc, C), jnp.float32)
    for di in range(3):
        for dj in range(3):
            acc = acc + _tap(pad_ref, di, dj, Hc, Wc) * dw_w[di * 3 + dj]
    return acc + dw_b


def _pw_bn_relu(y, w, scale, shift):
    """1x1 conv + folded BN + ReLU.  y: (Hc, Wc, Cin) -> (Hc, Wc, Cout)."""
    Hc, Wc, Cin = y.shape
    z = jnp.dot(y.reshape(Hc * Wc, Cin), w, preferred_element_type=jnp.float32)
    z = jnp.maximum(z * scale + shift, 0.0)
    return z.reshape(Hc, Wc, w.shape[1])


# ----------------------------- Kernel A: image path -----------------------------

def _image_path_kernel(ee_ref, eo_ref, oe_ref, oo_ref,
                       w1_ref, s1_ref, b1_ref,
                       dw2w_ref, dw2b_ref, pw2w_ref, s2_ref, b2_ref,
                       dw3w_ref, dw3b_ref, pw3w_ref, s3_ref, b3_ref,
                       o_ref, pad_ref):
    Ho, Wo, C = o_ref.shape
    Cin = ee_ref.shape[-1]
    parity = ((ee_ref, eo_ref), (oe_ref, oo_ref))
    w1 = w1_ref[...]                                      # (9, Cin, C)

    # 3x3 stride-2 conv + BN + ReLU: 9 shifted matmuls on the parity planes.
    acc = jnp.zeros((Ho * Wo, C), jnp.float32)
    for di in range(3):
        for dj in range(3):
            src = parity[di % 2][dj % 2]
            r0, c0 = di // 2, dj // 2
            patch = src[r0:r0 + Ho, c0:c0 + Wo, :].reshape(Ho * Wo, Cin)
            acc = acc + jnp.dot(patch, w1[di * 3 + dj],
                                preferred_element_type=jnp.float32)
    y = jnp.maximum(acc * s1_ref[...] + b1_ref[...], 0.0).reshape(Ho, Wo, C)

    # Two fused XConvBnRelu blocks.
    y = _dwconv3x3(pad_ref, y, dw2w_ref[...], dw2b_ref[...])
    y = _pw_bn_relu(y, pw2w_ref[...], s2_ref[...], b2_ref[...])
    y = _dwconv3x3(pad_ref, y, dw3w_ref[...], dw3b_ref[...])
    y = _pw_bn_relu(y, pw3w_ref[...], s3_ref[...], b3_ref[...])
    o_ref[...] = y


# ------------------- Kernel B: fusion + heads + upsample + blend -------------------

def _fusion_head_kernel(feat_ref, imf_ref, mask_ref, wk1_ref, wk2_ref,
                        wf_ref, sf_ref, bf_ref,
                        dw2w_ref, dw2b_ref, pw2w_ref, s2_ref, b2_ref,
                        dw3w_ref, dw3b_ref, pw3w_ref, s3_ref, b3_ref,
                        wp_ref, bp_ref, wt_ref, bt_ref,
                        pred_ref, tri_ref, pad_ref):
    Ho, Wo, C = imf_ref.shape

    # refine_fusion: 1x1 conv (feat_dims -> mid) + BN + ReLU.
    f = jnp.dot(feat_ref[...], wf_ref[...], preferred_element_type=jnp.float32)
    f = jnp.maximum(f * sf_ref[...] + bf_ref[...], 0.0)               # (hf*wf, C)

    # Bilinear align_corners=True upsample (kron interpolation matrix) + add.
    up = jnp.dot(wk1_ref[...], f, preferred_element_type=jnp.float32)  # (Ho*Wo, C)
    pf = up.reshape(Ho, Wo, C) + imf_ref[...]

    # refine_fusion2 / refine_fusion3 (fused XConvBnRelu).
    pf = _dwconv3x3(pad_ref, pf, dw2w_ref[...], dw2b_ref[...])
    pf = _pw_bn_relu(pf, pw2w_ref[...], s2_ref[...], b2_ref[...])
    pf = _dwconv3x3(pad_ref, pf, dw3w_ref[...], dw3b_ref[...])
    pf = _pw_bn_relu(pf, pw3w_ref[...], s3_ref[...], b3_ref[...])

    # Prediction heads: two 3x3 convs (bias only) sharing the same padded input.
    _pad_into(pad_ref, pf)
    wp = wp_ref[...]                                      # (9, C, nclass)
    wt = wt_ref[...]
    nclass = wp.shape[-1]
    acc_p = jnp.zeros((Ho * Wo, nclass), jnp.float32)
    acc_t = jnp.zeros((Ho * Wo, nclass), jnp.float32)
    for di in range(3):
        for dj in range(3):
            patch = _tap(pad_ref, di, dj, Ho, Wo).reshape(Ho * Wo, C)
            acc_p = acc_p + jnp.dot(patch, wp[di * 3 + dj],
                                    preferred_element_type=jnp.float32)
            acc_t = acc_t + jnp.dot(patch, wt[di * 3 + dj],
                                    preferred_element_type=jnp.float32)
    acc_p = acc_p + bp_ref[...]
    acc_t = acc_t + bt_ref[...]

    # Upsample both heads to full resolution + sigmoid blend with the raw mask.
    wk2 = wk2_ref[...]
    pred_full = jnp.dot(wk2, acc_p, preferred_element_type=jnp.float32)  # (H*W, nc)
    trimap = jnp.dot(wk2, acc_t, preferred_element_type=jnp.float32)
    ts = jax.nn.sigmoid(trimap)
    pred_ref[...] = pred_full * ts + mask_ref[...] * (1.0 - ts)
    tri_ref[...] = trimap


# ----------------------------- host-side helpers -----------------------------

def _fold_bn(bias, gamma, beta, mean, var, eps=1e-5):
    scale = gamma / jnp.sqrt(var + eps)
    shift = beta + (bias - mean) * scale
    return scale.reshape(1, -1), shift.reshape(1, -1)


def _xconv_args(p):
    s, sh = _fold_bn(p["pw_b"], p["bn_g"], p["bn_b"], p["bn_m"], p["bn_v"])
    return [p["dw_w"], p["dw_b"], p["pw_w"], s, sh]


def _interp_matrix(out_size, in_size):
    # F.interpolate(mode='bilinear', align_corners=True), single axis.
    if in_size == 1:
        return np.ones((out_size, 1), np.float32)
    if out_size == 1:
        src = np.zeros((1,), np.float64)
    else:
        src = np.arange(out_size, dtype=np.float64) * (in_size - 1) / (out_size - 1)
    i0 = np.clip(np.floor(src).astype(np.int64), 0, in_size - 2)
    frac = (src - i0).astype(np.float32)
    mat = np.zeros((out_size, in_size), np.float32)
    rows = np.arange(out_size)
    mat[rows, i0] = 1.0 - frac
    mat[rows, i0 + 1] += frac
    return mat


def _bilinear_kron(out_hw, in_hw):
    return jnp.asarray(np.kron(_interp_matrix(out_hw[0], in_hw[0]),
                               _interp_matrix(out_hw[1], in_hw[1])))


def _batch_spec(shape):
    tail = tuple(int(d) for d in shape[1:])
    zeros = (0,) * len(tail)
    return pl.BlockSpec((None,) + tail, lambda b: (b,) + zeros)


def _full_spec(shape):
    shp = tuple(int(d) for d in shape)
    zeros = (0,) * len(shp)
    return pl.BlockSpec(shp, lambda b: zeros)


# ----------------------------- parameters -----------------------------

def init_params(key, input_dims=6, mid=32, feat_dims=96, nclass=1):
    keys = iter(jax.random.split(key, 64))

    def nrm(shape, s=0.1):
        return s * jax.random.normal(next(keys), shape, jnp.float32)

    def bn(c):
        return dict(bn_g=1.0 + nrm((c,)), bn_b=nrm((c,)),
                    bn_m=nrm((c,)), bn_v=1.0 + jnp.abs(nrm((c,))))

    def conv3(cin, cout):                 # 3x3 conv, tap-major weights (9, cin, cout)
        d = dict(w=nrm((9, cin, cout)), b=nrm((cout,))); d.update(bn(cout)); return d

    def conv1(cin, cout):
        d = dict(w=nrm((cin, cout)), b=nrm((cout,))); d.update(bn(cout)); return d

    def xconv(cin, cout):
        d = dict(dw_w=nrm((9, cin)), dw_b=nrm((1, cin)),
                 pw_w=nrm((cin, cout)), pw_b=nrm((cout,)))
        d.update(bn(cout)); return d

    return dict(
        image_conv1=conv3(input_dims, mid),
        image_conv2=xconv(mid, mid),
        image_conv3=xconv(mid, mid),
        refine_fusion=conv1(feat_dims, mid),
        refine_fusion2=xconv(mid, mid),
        refine_fusion3=xconv(mid, mid),
        refine_pred=dict(w=nrm((9, mid, nclass)), b=nrm((1, nclass))),
        refine_trimap=dict(w=nrm((9, mid, nclass)), b=nrm((1, nclass))),
    )


# ----------------------------- forward -----------------------------

def refine_layer_forward(params, input_image, click_map, final_feature, cropped_logits):
    f32 = jnp.float32
    B, _, H, W = input_image.shape
    hf, wf_sp = final_feature.shape[2], final_feature.shape[3]
    mid = params["image_conv2"]["pw_w"].shape[0]
    nclass = params["refine_pred"]["w"].shape[-1]
    assert H % 2 == 0 and W % 2 == 0
    Ho, Wo = H // 2, W // 2

    # ----- tiny XLA-side glue: layout, sigmoid+concat, pad, parity split -----
    x6 = jnp.concatenate(
        [input_image, click_map, jax.nn.sigmoid(cropped_logits)], axis=1)
    x6 = jnp.transpose(x6, (0, 2, 3, 1)).astype(f32)                 # (B,H,W,6)
    xp = jnp.pad(x6, ((0, 0), (1, 1), (1, 1), (0, 0)))
    ee, eo = xp[:, 0::2, 0::2, :], xp[:, 0::2, 1::2, :]
    oe, oo = xp[:, 1::2, 0::2, :], xp[:, 1::2, 1::2, :]

    feat = jnp.transpose(final_feature, (0, 2, 3, 1)).astype(f32)
    feat = feat.reshape(B, hf * wf_sp, feat.shape[-1])               # (B,hf*wf,Cf)
    mask_flat = cropped_logits.astype(f32).reshape(B, H * W, 1)

    # bilinear align_corners=True interpolation matrices (compile-time constants)
    wk1 = _bilinear_kron((Ho, Wo), (hf, wf_sp))                      # (Ho*Wo, hf*wf)
    wk2 = _bilinear_kron((H, W), (Ho, Wo))                           # (H*W, Ho*Wo)

    pad_scratch = pltpu.VMEM((Ho + 2, _COL0 + Wo + 1, mid), f32)
    cparams = pltpu.CompilerParams(dimension_semantics=("parallel",))

    # ----- Kernel A: image path -----
    p1 = params["image_conv1"]
    s1, b1 = _fold_bn(p1["b"], p1["bn_g"], p1["bn_b"], p1["bn_m"], p1["bn_v"])
    a_inputs = ([ee, eo, oe, oo, p1["w"], s1, b1]
                + _xconv_args(params["image_conv2"])
                + _xconv_args(params["image_conv3"]))
    a_specs = ([_batch_spec(x.shape) for x in a_inputs[:4]]
               + [_full_spec(x.shape) for x in a_inputs[4:]])
    imf = pl.pallas_call(
        _image_path_kernel,
        out_shape=jax.ShapeDtypeStruct((B, Ho, Wo, mid), f32),
        grid=(B,),
        in_specs=a_specs,
        out_specs=_batch_spec((B, Ho, Wo, mid)),
        scratch_shapes=[pad_scratch],
        compiler_params=cparams,
    )(*a_inputs)

    # ----- Kernel B: fusion + heads + upsample + blend -----
    pfu = params["refine_fusion"]
    sf, bf = _fold_bn(pfu["b"], pfu["bn_g"], pfu["bn_b"], pfu["bn_m"], pfu["bn_v"])
    b_inputs = ([feat, imf, mask_flat, wk1, wk2, pfu["w"], sf, bf]
                + _xconv_args(params["refine_fusion2"])
                + _xconv_args(params["refine_fusion3"])
                + [params["refine_pred"]["w"], params["refine_pred"]["b"],
                   params["refine_trimap"]["w"], params["refine_trimap"]["b"]])
    b_specs = ([_batch_spec(x.shape) for x in b_inputs[:3]]
               + [_full_spec(x.shape) for x in b_inputs[3:]])
    pred_flat, tri_flat = pl.pallas_call(
        _fusion_head_kernel,
        out_shape=(jax.ShapeDtypeStruct((B, H * W, nclass), f32),
                   jax.ShapeDtypeStruct((B, H * W, nclass), f32)),
        grid=(B,),
        in_specs=b_specs,
        out_specs=(_batch_spec((B, H * W, nclass)),
                   _batch_spec((B, H * W, nclass))),
        scratch_shapes=[pad_scratch],
        compiler_params=cparams,
    )(*b_inputs)

    pred = jnp.transpose(pred_flat.reshape(B, H, W, nclass), (0, 3, 1, 2))
    trimap = jnp.transpose(tri_flat.reshape(B, H, W, nclass), (0, 3, 1, 2))
    return pred, trimap


# ----------------------------- main -----------------------------

if __name__ == "__main__":
    key = jax.random.PRNGKey(0)
    k1, k2, k3, k4, kp = jax.random.split(key, 5)

    B, H, W = 2, 16, 16
    hf, wf = 4, 4            # coarse feature map spatial size

    input_image = jax.random.normal(k1, (B, 3, H, W), jnp.float32)
    click_map = jax.random.normal(k2, (B, 2, H, W), jnp.float32)
    final_feature = jax.random.normal(k3, (B, 96, hf, wf), jnp.float32)
    cropped_logits = jax.random.normal(k4, (B, 1, H, W), jnp.float32)

    params = init_params(kp)

    fwd = jax.jit(refine_layer_forward)
    pred, trimap = fwd(params, input_image, click_map, final_feature, cropped_logits)
    jax.block_until_ready((pred, trimap))

    assert pred.shape == (B, 1, H, W) and trimap.shape == (B, 1, H, W)
    assert bool(jnp.all(jnp.isfinite(pred))) and bool(jnp.all(jnp.isfinite(trimap)))
    print("KERNEL_OK")
</pallas_src>

<mosaic_0001>
module attributes {stable_mosaic.version = 11 : i64} {
  func.func @_image_path_kernel(%arg0: i32, %arg1: memref<1x9x9x6xf32, #tpu.memory_space<vmem>>, %arg2: memref<1x9x9x6xf32, #tpu.memory_space<vmem>>, %arg3: memref<1x9x9x6xf32, #tpu.memory_space<vmem>>, %arg4: memref<1x9x9x6xf32, #tpu.memory_space<vmem>>, %arg5: memref<9x6x32xf32, #tpu.memory_space<vmem>>, %arg6: memref<1x32xf32, #tpu.memory_space<vmem>>, %arg7: memref<1x32xf32, #tpu.memory_space<vmem>>, %arg8: memref<9x32xf32, #tpu.memory_space<vmem>>, %arg9: memref<1x32xf32, #tpu.memory_space<vmem>>, %arg10: memref<32x32xf32, #tpu.memory_space<vmem>>, %arg11: memref<1x32xf32, #tpu.memory_space<vmem>>, %arg12: memref<1x32xf32, #tpu.memory_space<vmem>>, %arg13: memref<9x32xf32, #tpu.memory_space<vmem>>, %arg14: memref<1x32xf32, #tpu.memory_space<vmem>>, %arg15: memref<32x32xf32, #tpu.memory_space<vmem>>, %arg16: memref<1x32xf32, #tpu.memory_space<vmem>>, %arg17: memref<1x32xf32, #tpu.memory_space<vmem>>, %arg18: memref<1x8x8x32xf32, #tpu.memory_space<vmem>>, %arg19: memref<10x17x32xf32, #tpu.memory_space<vmem>>) attributes {dimension_semantics = [#tpu.dimension_semantics<parallel>], iteration_bounds = array<i64: 2>, scalar_prefetch = 0 : i64, scratch_operands = 1 : i64, tpu.core_type = #tpu.core_type<tc>, window_params = [{transform_indices = @transform_0, window_bounds = array<i64: 1, 9, 9, 6>}, {transform_indices = @transform_1, window_bounds = array<i64: 1, 9, 9, 6>}, {transform_indices = @transform_2, window_bounds = array<i64: 1, 9, 9, 6>}, {transform_indices = @transform_3, window_bounds = array<i64: 1, 9, 9, 6>}, {pipeline_mode = #tpu.pipeline_mode<synchronous>, transform_indices = @transform_4, window_bounds = array<i64: 9, 6, 32>}, {pipeline_mode = #tpu.pipeline_mode<synchronous>, transform_indices = @transform_5, window_bounds = array<i64: 1, 32>}, {pipeline_mode = #tpu.pipeline_mode<synchronous>, transform_indices = @transform_6, window_bounds = array<i64: 1, 32>}, {pipeline_mode = #tpu.pipeline_mode<synchronous>, transform_indices = @transform_7, window_bounds = array<i64: 9, 32>}, {pipeline_mode = #tpu.pipeline_mode<synchronous>, transform_indices = @transform_8, window_bounds = array<i64: 1, 32>}, {pipeline_mode = #tpu.pipeline_mode<synchronous>, transform_indices = @transform_9, window_bounds = array<i64: 32, 32>}, {pipeline_mode = #tpu.pipeline_mode<synchronous>, transform_indices = @transform_10, window_bounds = array<i64: 1, 32>}, {pipeline_mode = #tpu.pipeline_mode<synchronous>, transform_indices = @transform_11, window_bounds = array<i64: 1, 32>}, {pipeline_mode = #tpu.pipeline_mode<synchronous>, transform_indices = @transform_12, window_bounds = array<i64: 9, 32>}, {pipeline_mode = #tpu.pipeline_mode<synchronous>, transform_indices = @transform_13, window_bounds = array<i64: 1, 32>}, {pipeline_mode = #tpu.pipeline_mode<synchronous>, transform_indices = @transform_14, window_bounds = array<i64: 32, 32>}, {pipeline_mode = #tpu.pipeline_mode<synchronous>, transform_indices = @transform_15, window_bounds = array<i64: 1, 32>}, {pipeline_mode = #tpu.pipeline_mode<synchronous>, transform_indices = @transform_16, window_bounds = array<i64: 1, 32>}, {transform_indices = @transform_17, window_bounds = array<i64: 1, 8, 8, 32>}]} {
    %c0 = arith.constant 0 : index
    %c0_0 = arith.constant 0 : index
    %c0_1 = arith.constant 0 : index
    %0 = vector.load %arg5[%c0, %c0_0, %c0_1] : memref<9x6x32xf32, #tpu.memory_space<vmem>>, vector<9x6x32xf32>
    %cst = arith.constant 0.000000e+00 : f32
    %1 = vector.broadcast %cst : f32 to vector<64x32xf32>
    %c0_2 = arith.constant 0 : index
    %c0_3 = arith.constant 0 : index
    %c0_4 = arith.constant 0 : index
    %c0_5 = arith.constant 0 : index
    %2 = vector.load %arg1[%c0_2, %c0_3, %c0_4, %c0_5] : memref<1x9x9x6xf32, #tpu.memory_space<vmem>>, vector<1x8x8x6xf32>
    %3 = vector.shape_cast %2 : vector<1x8x8x6xf32> to vector<8x8x6xf32>
    %4 = vector.shape_cast %3 : vector<8x8x6xf32> to vector<64x6xf32>
    %5 = vector.extract_strided_slice %0 {offsets = [0, 0, 0], sizes = [1, 6, 32], strides = [1, 1, 1]} : vector<9x6x32xf32> to vector<1x6x32xf32>
    %6 = vector.shape_cast %5 : vector<1x6x32xf32> to vector<6x32xf32>
    %cst_6 = arith.constant dense<0.000000e+00> : vector<64x32xf32>
    %7 = tpu.matmul %4, %6, %cst_6 {dimension_numbers = #tpu.dot_dimension_numbers<[1], [0], [0], [1], [0, 0, 1, 1], [], []>} : vector<64x6xf32>, vector<6x32xf32>, vector<64x32xf32> -> vector<64x32xf32>
    %8 = arith.addf %1, %7 : vector<64x32xf32>
    %c0_7 = arith.constant 0 : index
    %c0_8 = arith.constant 0 : index
    %c0_9 = arith.constant 0 : index
    %c0_10 = arith.constant 0 : index
    %9 = vector.load %arg2[%c0_7, %c0_8, %c0_9, %c0_10] : memref<1x9x9x6xf32, #tpu.memory_space<vmem>>, vector<1x8x8x6xf32>
    %10 = vector.shape_cast %9 : vector<1x8x8x6xf32> to vector<8x8x6xf32>
    %11 = vector.shape_cast %10 : vector<8x8x6xf32> to vector<64x6xf32>
    %12 = vector.extract_strided_slice %0 {offsets = [1, 0, 0], sizes = [1, 6, 32], strides = [1, 1, 1]} : vector<9x6x32xf32> to vector<1x6x32xf32>
    %13 = vector.shape_cast %12 : vector<1x6x32xf32> to vector<6x32xf32>
    %cst_11 = arith.constant dense<0.000000e+00> : vector<64x32xf32>
    %14 = tpu.matmul %11, %13, %cst_11 {dimension_numbers = #tpu.dot_dimension_numbers<[1], [0], [0], [1], [0, 0, 1, 1], [], []>} : vector<64x6xf32>, vector<6x32xf32>, vector<64x32xf32> -> vector<64x32xf32>
    %15 = arith.addf %8, %14 : vector<64x32xf32>
    %c0_12 = arith.constant 0 : index
    %c0_13 = arith.constant 0 : index
    %c1 = arith.constant 1 : index
    %c0_14 = arith.constant 0 : index
    %16 = vector.load %arg1[%c0_12, %c0_13, %c1, %c0_14] : memref<1x9x9x6xf32, #tpu.memory_space<vmem>>, vector<1x8x8x6xf32>
    %17 = vector.shape_cast %16 : vector<1x8x8x6xf32> to vector<8x8x6xf32>
    %18 = vector.shape_cast %17 : vector<8x8x6xf32> to vector<64x6xf32>
    %19 = vector.extract_strided_slice %0 {offsets = [2, 0, 0], sizes = [1, 6, 32], strides = [1, 1, 1]} : vector<9x6x32xf32> to vector<1x6x32xf32>
    %20 = vector.shape_cast %19 : vector<1x6x32xf32> to vector<6x32xf32>
    %cst_15 = arith.constant dense<0.000000e+00> : vector<64x32xf32>
    %21 = tpu.matmul %18, %20, %cst_15 {dimension_numbers = #tpu.dot_dimension_numbers<[1], [0], [0], [1], [0, 0, 1, 1], [], []>} : vector<64x6xf32>, vector<6x32xf32>, vector<64x32xf32> -> vector<64x32xf32>
    %22 = arith.addf %15, %21 : vector<64x32xf32>
    %c0_16 = arith.constant 0 : index
    %c0_17 = arith.constant 0 : index
    %c0_18 = arith.constant 0 : index
    %c0_19 = arith.constant 0 : index
    %23 = vector.load %arg3[%c0_16, %c0_17, %c0_18, %c0_19] : memref<1x9x9x6xf32, #tpu.memory_space<vmem>>, vector<1x8x8x6xf32>
    %24 = vector.shape_cast %23 : vector<1x8x8x6xf32> to vector<8x8x6xf32>
    %25 = vector.shape_cast %24 : vector<8x8x6xf32> to vector<64x6xf32>
    %26 = vector.extract_strided_slice %0 {offsets = [3, 0, 0], sizes = [1, 6, 32], strides = [1, 1, 1]} : vector<9x6x32xf32> to vector<1x6x32xf32>
    %27 = vector.shape_cast %26 : vector<1x6x32xf32> to vector<6x32xf32>
    %cst_20 = arith.constant dense<0.000000e+00> : vector<64x32xf32>
    %28 = tpu.matmul %25, %27, %cst_20 {dimension_numbers = #tpu.dot_dimension_numbers<[1], [0], [0], [1], [0, 0, 1, 1], [], []>} : vector<64x6xf32>, vector<6x32xf32>, vector<64x32xf32> -> vector<64x32xf32>
    %29 = arith.addf %22, %28 : vector<64x32xf32>
    %c0_21 = arith.constant 0 : index
    %c0_22 = arith.constant 0 : index
    %c0_23 = arith.constant 0 : index
    %c0_24 = arith.constant 0 : index
    %30 = vector.load %arg4[%c0_21, %c0_22, %c0_23, %c0_24] : memref<1x9x9x6xf32, #tpu.memory_space<vmem>>, vector<1x8x8x6xf32>
    %31 = vector.shape_cast %30 : vector<1x8x8x6xf32> to vector<8x8x6xf32>
    %32 = vector.shape_cast %31 : vector<8x8x6xf32> to vector<64x6xf32>
    %33 = vector.extract_strided_slice %0 {offsets = [4, 0, 0], sizes = [1, 6, 32], strides = [1, 1, 1]} : vector<9x6x32xf32> to vector<1x6x32xf32>
    %34 = vector.shape_cast %33 : vector<1x6x32xf32> to vector<6x32xf32>
    %cst_25 = arith.constant dense<0.000000e+00> : vector<64x32xf32>
    %35 = tpu.matmul %32, %34, %cst_25 {dimension_numbers = #tpu.dot_dimension_numbers<[1], [0], [0], [1], [0, 0, 1, 1], [], []>} : vector<64x6xf32>, vector<6x32xf32>, vector<64x32xf32> -> vector<64x32xf32>
    %36 = arith.addf %29, %35 : vector<64x32xf32>
    %c0_26 = arith.constant 0 : index
    %c0_27 = arith.constant 0 : index
    %c1_28 = arith.constant 1 : index
    %c0_29 = arith.constant 0 : index
    %37 = vector.load %arg3[%c0_26, %c0_27, %c1_28, %c0_29] : memref<1x9x9x6xf32, #tpu.memory_space<vmem>>, vector<1x8x8x6xf32>
    %38 = vector.shape_cast %37 : vector<1x8x8x6xf32> to vector<8x8x6xf32>
    %39 = vector.shape_cast %38 : vector<8x8x6xf32> to vector<64x6xf32>
    %40 = vector.extract_strided_slice %0 {offsets = [5, 0, 0], sizes = [1, 6, 32], strides = [1, 1, 1]} : vector<9x6x32xf32> to vector<1x6x32xf32>
    %41 = vector.shape_cast %40 : vector<1x6x32xf32> to vector<6x32xf32>
    %cst_30 = arith.constant dense<0.000000e+00> : vector<64x32xf32>
    %42 = tpu.matmul %39, %41, %cst_30 {dimension_numbers = #tpu.dot_dimension_numbers<[1], [0], [0], [1], [0, 0, 1, 1], [], []>} : vector<64x6xf32>, vector<6x32xf32>, vector<64x32xf32> -> vector<64x32xf32>
    %43 = arith.addf %36, %42 : vector<64x32xf32>
    %c0_31 = arith.constant 0 : index
    %c1_32 = arith.constant 1 : index
    %c0_33 = arith.constant 0 : index
    %c0_34 = arith.constant 0 : index
    %44 = vector.load %arg1[%c0_31, %c1_32, %c0_33, %c0_34] : memref<1x9x9x6xf32, #tpu.memory_space<vmem>>, vector<1x8x8x6xf32>
    %45 = vector.shape_cast %44 : vector<1x8x8x6xf32> to vector<8x8x6xf32>
    %46 = vector.shape_cast %45 : vector<8x8x6xf32> to vector<64x6xf32>
    %47 = vector.extract_strided_slice %0 {offsets = [6, 0, 0], sizes = [1, 6, 32], strides = [1, 1, 1]} : vector<9x6x32xf32> to vector<1x6x32xf32>
    %48 = vector.shape_cast %47 : vector<1x6x32xf32> to vector<6x32xf32>
    %cst_35 = arith.constant dense<0.000000e+00> : vector<64x32xf32>
    %49 = tpu.matmul %46, %48, %cst_35 {dimension_numbers = #tpu.dot_dimension_numbers<[1], [0], [0], [1], [0, 0, 1, 1], [], []>} : vector<64x6xf32>, vector<6x32xf32>, vector<64x32xf32> -> vector<64x32xf32>
    %50 = arith.addf %43, %49 : vector<64x32xf32>
    %c0_36 = arith.constant 0 : index
    %c1_37 = arith.constant 1 : index
    %c0_38 = arith.constant 0 : index
    %c0_39 = arith.constant 0 : index
    %51 = vector.load %arg2[%c0_36, %c1_37, %c0_38, %c0_39] : memref<1x9x9x6xf32, #tpu.memory_space<vmem>>, vector<1x8x8x6xf32>
    %52 = vector.shape_cast %51 : vector<1x8x8x6xf32> to vector<8x8x6xf32>
    %53 = vector.shape_cast %52 : vector<8x8x6xf32> to vector<64x6xf32>
    %54 = vector.extract_strided_slice %0 {offsets = [7, 0, 0], sizes = [1, 6, 32], strides = [1, 1, 1]} : vector<9x6x32xf32> to vector<1x6x32xf32>
    %55 = vector.shape_cast %54 : vector<1x6x32xf32> to vector<6x32xf32>
    %cst_40 = arith.constant dense<0.000000e+00> : vector<64x32xf32>
    %56 = tpu.matmul %53, %55, %cst_40 {dimension_numbers = #tpu.dot_dimension_numbers<[1], [0], [0], [1], [0, 0, 1, 1], [], []>} : vector<64x6xf32>, vector<6x32xf32>, vector<64x32xf32> -> vector<64x32xf32>
    %57 = arith.addf %50, %56 : vector<64x32xf32>
    %c0_41 = arith.constant 0 : index
    %c1_42 = arith.constant 1 : index
    %c1_43 = arith.constant 1 : index
    %c0_44 = arith.constant 0 : index
    %58 = vector.load %arg1[%c0_41, %c1_42, %c1_43, %c0_44] : memref<1x9x9x6xf32, #tpu.memory_space<vmem>>, vector<1x8x8x6xf32>
    %59 = vector.shape_cast %58 : vector<1x8x8x6xf32> to vector<8x8x6xf32>
    %60 = vector.shape_cast %59 : vector<8x8x6xf32> to vector<64x6xf32>
    %61 = vector.extract_strided_slice %0 {offsets = [8, 0, 0], sizes = [1, 6, 32], strides = [1, 1, 1]} : vector<9x6x32xf32> to vector<1x6x32xf32>
    %62 = vector.shape_cast %61 : vector<1x6x32xf32> to vector<6x32xf32>
    %cst_45 = arith.constant dense<0.000000e+00> : vector<64x32xf32>
    %63 = tpu.matmul %60, %62, %cst_45 {dimension_numbers = #tpu.dot_dimension_numbers<[1], [0], [0], [1], [0, 0, 1, 1], [], []>} : vector<64x6xf32>, vector<6x32xf32>, vector<64x32xf32> -> vector<64x32xf32>
    %64 = arith.addf %57, %63 : vector<64x32xf32>
    %c0_46 = arith.constant 0 : index
    %c0_47 = arith.constant 0 : index
    %65 = vector.load %arg6[%c0_46, %c0_47] : memref<1x32xf32, #tpu.memory_space<vmem>>, vector<1x32xf32>
    %66 = vector.broadcast %65 : vector<1x32xf32> to vector<64x32xf32>
    %67 = arith.mulf %64, %66 : vector<64x32xf32>
    %c0_48 = arith.constant 0 : index
    %c0_49 = arith.constant 0 : index
    %68 = vector.load %arg7[%c0_48, %c0_49] : memref<1x32xf32, #tpu.memory_space<vmem>>, vector<1x32xf32>
    %69 = vector.broadcast %68 : vector<1x32xf32> to vector<64x32xf32>
    %70 = arith.addf %67, %69 : vector<64x32xf32>
    %cst_50 = arith.constant 0.000000e+00 : f32
    %71 = vector.broadcast %cst_50 : f32 to vector<64x32xf32>
    %72 = arith.maximumf %70, %71 : vector<64x32xf32>
    %73 = vector.shape_cast %72 : vector<64x32xf32> to vector<8x8x32xf32>
    %c0_51 = arith.constant 0 : index
    %c0_52 = arith.constant 0 : index
    %74 = vector.load %arg8[%c0_51, %c0_52] : memref<9x32xf32, #tpu.memory_space<vmem>>, vector<9x32xf32>
    %c0_53 = arith.constant 0 : index
    %c0_54 = arith.constant 0 : index
    %75 = vector.load %arg9[%c0_53, %c0_54] : memref<1x32xf32, #tpu.memory_space<vmem>>, vector<1x32xf32>
    %cst_55 = arith.constant 0.000000e+00 : f32
    %76 = vector.broadcast %cst_55 : f32 to vector<10x17x32xf32>
    %c0_56 = arith.constant 0 : index
    %c0_57 = arith.constant 0 : index
    %c0_58 = arith.constant 0 : index
    %77 = vector.load %arg19[%c0_56, %c0_57, %c0_58] : memref<10x17x32xf32, #tpu.memory_space<vmem>>, vector<10x17x32xf32>
    tpu.vector_store %arg19[%c0_56, %c0_57, %c0_58], %76 {strides = array<i32>} : memref<10x17x32xf32, #tpu.memory_space<vmem>>, vector<10x17x32xf32>,
    %c1_59 = arith.constant 1 : index
    %c8 = arith.constant 8 : index
    %c0_60 = arith.constant 0 : index
    %78 = vector.load %arg19[%c1_59, %c8, %c0_60] : memref<10x17x32xf32, #tpu.memory_space<vmem>>, vector<8x8x32xf32>
    tpu.vector_store %arg19[%c1_59, %c8, %c0_60], %73 {strides = array<i32>} : memref<10x17x32xf32, #tpu.memory_space<vmem>>, vector<8x8x32xf32>,
    %cst_61 = arith.constant 0.000000e+00 : f32
    %79 = vector.broadcast %cst_61 : f32 to vector<8x8x32xf32>
    %c0_62 = arith.constant 0 : index
    %c7 = arith.constant 7 : index
    %c0_63 = arith.constant 0 : index
    %80 = vector.load %arg19[%c0_62, %c7, %c0_63] : memref<10x17x32xf32, #tpu.memory_space<vmem>>, vector<8x8x32xf32>
    %81 = vector.extract_strided_slice %74 {offsets = [0, 0], sizes = [1, 32], strides = [1, 1]} : vector<9x32xf32> to vector<1x32xf32>
    %82 = vector.shape_cast %81 : vector<1x32xf32> to vector<32xf32>
    %83 = vector.shape_cast %82 : vector<32xf32> to vector<1x1x32xf32>
    %84 = vector.broadcast %83 : vector<1x1x32xf32> to vector<8x8x32xf32>
    %85 = arith.mulf %80, %84 : vector<8x8x32xf32>
    %86 = arith.addf %79, %85 : vector<8x8x32xf32>
    %c0_64 = arith.constant 0 : index
    %c8_65 = arith.constant 8 : index
    %c0_66 = arith.constant 0 : index
    %87 = vector.load %arg19[%c0_64, %c8_65, %c0_66] : memref<10x17x32xf32, #tpu.memory_space<vmem>>, vector<8x8x32xf32>
    %88 = vector.extract_strided_slice %74 {offsets = [1, 0], sizes = [1, 32], strides = [1, 1]} : vector<9x32xf32> to vector<1x32xf32>
    %89 = vector.shape_cast %88 : vector<1x32xf32> to vector<32xf32>
    %90 = vector.shape_cast %89 : vector<32xf32> to vector<1x1x32xf32>
    %91 = vector.broadcast %90 : vector<1x1x32xf32> to vector<8x8x32xf32>
    %92 = arith.mulf %87, %91 : vector<8x8x32xf32>
    %93 = arith.addf %86, %92 : vector<8x8x32xf32>
    %c0_67 = arith.constant 0 : index
    %c9 = arith.constant 9 : index
    %c0_68 = arith.constant 0 : index
    %94 = vector.load %arg19[%c0_67, %c9, %c0_68] : memref<10x17x32xf32, #tpu.memory_space<vmem>>, vector<8x8x32xf32>
    %95 = vector.extract_strided_slice %74 {offsets = [2, 0], sizes = [1, 32], strides = [1, 1]} : vector<9x32xf32> to vector<1x32xf32>
    %96 = vector.shape_cast %95 : vector<1x32xf32> to vector<32xf32>
    %97 = vector.shape_cast %96 : vector<32xf32> to vector<1x1x32xf32>
    %98 = vector.broadcast %97 : vector<1x1x32xf32> to vector<8x8x32xf32>
    %99 = arith.mulf %94, %98 : vector<8x8x32xf32>
    %100 = arith.addf %93, %99 : vector<8x8x32xf32>
    %c1_69 = arith.constant 1 : index
    %c7_70 = arith.constant 7 : index
    %c0_71 = arith.constant 0 : index
    %101 = vector.load %arg19[%c1_69, %c7_70, %c0_71] : memref<10x17x32xf32, #tpu.memory_space<vmem>>, vector<8x8x32xf32>
    %102 = vector.extract_strided_slice %74 {offsets = [3, 0], sizes = [1, 32], strides = [1, 1]} : vector<9x32xf32> to vector<1x32xf32>
    %103 = vector.shape_cast %102 : vector<1x32xf32> to vector<32xf32>
    %104 = vector.shape_cast %103 : vector<32xf32> to vector<1x1x32xf32>
    %105 = vector.broadcast %104 : vector<1x1x32xf32> to vector<8x8x32xf32>
    %106 = arith.mulf %101, %105 : vector<8x8x32xf32>
    %107 = arith.addf %100, %106 : vector<8x8x32xf32>
    %c1_72 = arith.constant 1 : index
    %c8_73 = arith.constant 8 : index
    %c0_74 = arith.constant 0 : index
    %108 = vector.load %arg19[%c1_72, %c8_73, %c0_74] : memref<10x17x32xf32, #tpu.memory_space<vmem>>, vector<8x8x32xf32>
    %109 = vector.extract_strided_slice %74 {offsets = [4, 0], sizes = [1, 32], strides = [1, 1]} : vector<9x32xf32> to vector<1x32xf32>
    %110 = vector.shape_cast %109 : vector<1x32xf32> to vector<32xf32>
    %111 = vector.shape_cast %110 : vector<32xf32> to vector<1x1x32xf32>
    %112 = vector.broadcast %111 : vector<1x1x32xf32> to vector<8x8x32xf32>
    %113 = arith.mulf %108, %112 : vector<8x8x32xf32>
    %114 = arith.addf %107, %113 : vector<8x8x32xf32>
    %c1_75 = arith.constant 1 : index
    %c9_76 = arith.constant 9 : index
    %c0_77 = arith.constant 0 : index
    %115 = vector.load %arg19[%c1_75, %c9_76, %c0_77] : memref<10x17x32xf32, #tpu.memory_space<vmem>>, vector<8x8x32xf32>
    %116 = vector.extract_strided_slice %74 {offsets = [5, 0], sizes = [1, 32], strides = [1, 1]} : vector<9x32xf32> to vector<1x32xf32>
    %117 = vector.shape_cast %116 : vector<1x32xf32> to vector<32xf32>
    %118 = vector.shape_cast %117 : vector<32xf32> to vector<1x1x32xf32>
    %119 = vector.broadcast %118 : vector<1x1x32xf32> to vector<8x8x32xf32>
    %120 = arith.mulf %115, %119 : vector<8x8x32xf32>
    %121 = arith.addf %114, %120 : vector<8x8x32xf32>
    %c2 = arith.constant 2 : index
    %c7_78 = arith.constant 7 : index
    %c0_79 = arith.constant 0 : index
    %122 = vector.load %arg19[%c2, %c7_78, %c0_79] : memref<10x17x32xf32, #tpu.memory_space<vmem>>, vector<8x8x32xf32>
    %123 = vector.extract_strided_slice %74 {offsets = [6, 0], sizes = [1, 32], strides = [1, 1]} : vector<9x32xf32> to vector<1x32xf32>
    %124 = vector.shape_cast %123 : vector<1x32xf32> to vector<32xf32>
    %125 = vector.shape_cast %124 : vector<32xf32> to vector<1x1x32xf32>
    %126 = vector.broadcast %125 : vector<1x1x32xf32> to vector<8x8x32xf32>
    %127 = arith.mulf %122, %126 : vector<8x8x32xf32>
    %128 = arith.addf %121, %127 : vector<8x8x32xf32>
    %c2_80 = arith.constant 2 : index
    %c8_81 = arith.constant 8 : index
    %c0_82 = arith.constant 0 : index
    %129 = vector.load %arg19[%c2_80, %c8_81, %c0_82] : memref<10x17x32xf32, #tpu.memory_space<vmem>>, vector<8x8x32xf32>
    %130 = vector.extract_strided_slice %74 {offsets = [7, 0], sizes = [1, 32], strides = [1, 1]} : vector<9x32xf32> to vector<1x32xf32>
    %131 = vector.shape_cast %130 : vector<1x32xf32> to vector<32xf32>
    %132 = vector.shape_cast %131 : vector<32xf32> to vector<1x1x32xf32>
    %133 = vector.broadcast %132 : vector<1x1x32xf32> to vector<8x8x32xf32>
    %134 = arith.mulf %129, %133 : vector<8x8x32xf32>
    %135 = arith.addf %128, %134 : vector<8x8x32xf32>
    %c2_83 = arith.constant 2 : index
    %c9_84 = arith.constant 9 : index
    %c0_85 = arith.constant 0 : index
    %136 = vector.load %arg19[%c2_83, %c9_84, %c0_85] : memref<10x17x32xf32, #tpu.memory_space<vmem>>, vector<8x8x32xf32>
    %137 = vector.extract_strided_slice %74 {offsets = [8, 0], sizes = [1, 32], strides = [1, 1]} : vector<9x32xf32> to vector<1x32xf32>
    %138 = vector.shape_cast %137 : vector<1x32xf32> to vector<32xf32>
    %139 = vector.shape_cast %138 : vector<32xf32> to vector<1x1x32xf32>
    %140 = vector.broadcast %139 : vector<1x1x32xf32> to vector<8x8x32xf32>
    %141 = arith.mulf %136, %140 : vector<8x8x32xf32>
    %142 = arith.addf %135, %141 : vector<8x8x32xf32>
    %143 = vector.shape_cast %75 : vector<1x32xf32> to vector<1x1x32xf32>
    %144 = vector.broadcast %143 : vector<1x1x32xf32> to vector<8x8x32xf32>
    %145 = arith.addf %142, %144 : vector<8x8x32xf32>
    %c0_86 = arith.constant 0 : index
    %c0_87 = arith.constant 0 : index
    %146 = vector.load %arg10[%c0_86, %c0_87] : memref<32x32xf32, #tpu.memory_space<vmem>>, vector<32x32xf32>
    %c0_88 = arith.constant 0 : index
    %c0_89 = arith.constant 0 : index
    %147 = vector.load %arg11[%c0_88, %c0_89] : memref<1x32xf32, #tpu.memory_space<vmem>>, vector<1x32xf32>
    %c0_90 = arith.constant 0 : index
    %c0_91 = arith.constant 0 : index
    %148 = vector.load %arg12[%c0_90, %c0_91] : memref<1x32xf32, #tpu.memory_space<vmem>>, vector<1x32xf32>
    %149 = vector.shape_cast %145 : vector<8x8x32xf32> to vector<64x32xf32>
    %cst_92 = arith.constant dense<0.000000e+00> : vector<64x32xf32>
    %150 = tpu.matmul %149, %146, %cst_92 {dimension_numbers = #tpu.dot_dimension_numbers<[1], [0], [0], [1], [0, 0, 1, 1], [], []>} : vector<64x32xf32>, vector<32x32xf32>, vector<64x32xf32> -> vector<64x32xf32>
    %151 = vector.broadcast %147 : vector<1x32xf32> to vector<64x32xf32>
    %152 = arith.mulf %150, %151 : vector<64x32xf32>
    %153 = vector.broadcast %148 : vector<1x32xf32> to vector<64x32xf32>
    %154 = arith.addf %152, %153 : vector<64x32xf32>
    %cst_93 = arith.constant 0.000000e+00 : f32
    %155 = vector.broadcast %cst_93 : f32 to vector<64x32xf32>
    %156 = arith.maximumf %154, %155 : vector<64x32xf32>
    %157 = vector.shape_cast %156 : vector<64x32xf32> to vector<8x8x32xf32>
    %c0_94 = arith.constant 0 : index
    %c0_95 = arith.constant 0 : index
    %158 = vector.load %arg13[%c0_94, %c0_95] : memref<9x32xf32, #tpu.memory_space<vmem>>, vector<9x32xf32>
    %c0_96 = arith.constant 0 : index
    %c0_97 = arith.constant 0 : index
    %159 = vector.load %arg14[%c0_96, %c0_97] : memref<1x32xf32, #tpu.memory_space<vmem>>, vector<1x32xf32>
    %cst_98 = arith.constant 0.000000e+00 : f32
    %160 = vector.broadcast %cst_98 : f32 to vector<10x17x32xf32>
    %c0_99 = arith.constant 0 : index
    %c0_100 = arith.constant 0 : index
    %c0_101 = arith.constant 0 : index
    %161 = vector.load %arg19[%c0_99, %c0_100, %c0_101] : memref<10x17x32xf32, #tpu.memory_space<vmem>>, vector<10x17x32xf32>
    tpu.vector_store %arg19[%c0_99, %c0_100, %c0_101], %160 {strides = array<i32>} : memref<10x17x32xf32, #tpu.memory_space<vmem>>, vector<10x17x32xf32>,
    %c1_102 = arith.constant 1 : index
    %c8_103 = arith.constant 8 : index
    %c0_104 = arith.constant 0 : index
    %162 = vector.load %arg19[%c1_102, %c8_103, %c0_104] : memref<10x17x32xf32, #tpu.memory_space<vmem>>, vector<8x8x32xf32>
    tpu.vector_store %arg19[%c1_102, %c8_103, %c0_104], %157 {strides = array<i32>} : memref<10x17x32xf32, #tpu.memory_space<vmem>>, vector<8x8x32xf32>,
    %cst_105 = arith.constant 0.000000e+00 : f32
    %163 = vector.broadcast %cst_105 : f32 to vector<8x8x32xf32>
    %c0_106 = arith.constant 0 : index
    %c7_107 = arith.constant 7 : index
    %c0_108 = arith.constant 0 : index
    %164 = vector.load %arg19[%c0_106, %c7_107, %c0_108] : memref<10x17x32xf32, #tpu.memory_space<vmem>>, vector<8x8x32xf32>
    %165 = vector.extract_strided_slice %158 {offsets = [0, 0], sizes = [1, 32], strides = [1, 1]} : vector<9x32xf32> to vector<1x32xf32>
    %166 = vector.shape_cast %165 : vector<1x32xf32> to vector<32xf32>
    %167 = vector.shape_cast %166 : vector<32xf32> to vector<1x1x32xf32>
    %168 = vector.broadcast %167 : vector<1x1x32xf32> to vector<8x8x32xf32>
    %169 = arith.mulf %164, %168 : vector<8x8x32xf32>
    %170 = arith.addf %163, %169 : vector<8x8x32xf32>
    %c0_109 = arith.constant 0 : index
    %c8_110 = arith.constant 8 : index
    %c0_111 = arith.constant 0 : index
    %171 = vector.load %arg19[%c0_109, %c8_110, %c0_111] : memref<10x17x32xf32, #tpu.memory_space<vmem>>, vector<8x8x32xf32>
    %172 = vector.extract_strided_slice %158 {offsets = [1, 0], sizes = [1, 32], strides = [1, 1]} : vector<9x32xf32> to vector<1x32xf32>
    %173 = vector.shape_cast %172 : vector<1x32xf32> to vector<32xf32>
    %174 = vector.shape_cast %173 : vector<32xf32> to vector<1x1x32xf32>
    %175 = vector.broadcast %174 : vector<1x1x32xf32> to vector<8x8x32xf32>
    %176 = arith.mulf %171, %175 : vector<8x8x32xf32>
    %177 = arith.addf %170, %176 : vector<8x8x32xf32>
    %c0_112 = arith.constant 0 : index
    %c9_113 = arith.constant 9 : index
    %c0_114 = arith.constant 0 : index
    %178 = vector.load %arg19[%c0_112, %c9_113, %c0_114] : memref<10x17x32xf32, #tpu.memory_space<vmem>>, vector<8x8x32xf32>
    %179 = vector.extract_strided_slice %158 {offsets = [2, 0], sizes = [1, 32], strides = [1, 1]} : vector<9x32xf32> to vector<1x32xf32>
    %180 = vector.shape_cast %179 : vector<1x32xf32> to vector<32xf32>
    %181 = vector.shape_cast %180 : vector<32xf32> to vector<1x1x32xf32>
    %182 = vector.broadcast %181 : vector<1x1x32xf32> to vector<8x8x32xf32>
    %183 = arith.mulf %178, %182 : vector<8x8x32xf32>
    %184 = arith.addf %177, %183 : vector<8x8x32xf32>
    %c1_115 = arith.constant 1 : index
    %c7_116 = arith.constant 7 : index
    %c0_117 = arith.constant 0 : index
    %185 = vector.load %arg19[%c1_115, %c7_116, %c0_117] : memref<10x17x32xf32, #tpu.memory_space<vmem>>, vector<8x8x32xf32>
    %186 = vector.extract_strided_slice %158 {offsets = [3, 0], sizes = [1, 32], strides = [1, 1]} : vector<9x32xf32> to vector<1x32xf32>
    %187 = vector.shape_cast %186 : vector<1x32xf32> to vector<32xf32>
    %188 = vector.shape_cast %187 : vector<32xf32> to vector<1x1x32xf32>
    %189 = vector.broadcast %188 : vector<1x1x32xf32> to vector<8x8x32xf32>
    %190 = arith.mulf %185, %189 : vector<8x8x32xf32>
    %191 = arith.addf %184, %190 : vector<8x8x32xf32>
    %c1_118 = arith.constant 1 : index
    %c8_119 = arith.constant 8 : index
    %c0_120 = arith.constant 0 : index
    %192 = vector.load %arg19[%c1_118, %c8_119, %c0_120] : memref<10x17x32xf32, #tpu.memory_space<vmem>>, vector<8x8x32xf32>
    %193 = vector.extract_strided_slice %158 {offsets = [4, 0], sizes = [1, 32], strides = [1, 1]} : vector<9x32xf32> to vector<1x32xf32>
    %194 = vector.shape_cast %193 : vector<1x32xf32> to vector<32xf32>
    %195 = vector.shape_cast %194 : vector<32xf32> to vector<1x1x32xf32>
    %196 = vector.broadcast %195 : vector<1x1x32xf32> to vector<8x8x32xf32>
    %197 = arith.mulf %192, %196 : vector<8x8x32xf32>
    %198 = arith.addf %191, %197 : vector<8x8x32xf32>
    %c1_121 = arith.constant 1 : index
    %c9_122 = arith.constant 9 : index
    %c0_123 = arith.constant 0 : index
    %199 = vector.load %arg19[%c1_121, %c9_122, %c0_123] : memref<10x17x32xf32, #tpu.memory_space<vmem>>, vector<8x8x32xf32>
    %200 = vector.extract_strided_slice %158 {offsets = [5, 0], sizes = [1, 32], strides = [1, 1]} : vector<9x32xf32> to vector<1x32xf32>
    %201 = vector.shape_cast %200 : vector<1x32xf32> to vector<32xf32>
    %202 = vector.shape_cast %201 : vector<32xf32> to vector<1x1x32xf32>
    %203 = vector.broadcast %202 : vector<1x1x32xf32> to vector<8x8x32xf32>
    %204 = arith.mulf %199, %203 : vector<8x8x32xf32>
    %205 = arith.addf %198, %204 : vector<8x8x32xf32>
    %c2_124 = arith.constant 2 : index
    %c7_125 = arith.constant 7 : index
    %c0_126 = arith.constant 0 : index
    %206 = vector.load %arg19[%c2_124, %c7_125, %c0_126] : memref<10x17x32xf32, #tpu.memory_space<vmem>>, vector<8x8x32xf32>
    %207 = vector.extract_strided_slice %158 {offsets = [6, 0], sizes = [1, 32], strides = [1, 1]} : vector<9x32xf32> to vector<1x32xf32>
    %208 = vector.shape_cast %207 : vector<1x32xf32> to vector<32xf32>
    %209 = vector.shape_cast %208 : vector<32xf32> to vector<1x1x32xf32>
    %210 = vector.broadcast %209 : vector<1x1x32xf32> to vector<8x8x32xf32>
    %211 = arith.mulf %206, %210 : vector<8x8x32xf32>
    %212 = arith.addf %205, %211 : vector<8x8x32xf32>
    %c2_127 = arith.constant 2 : index
    %c8_128 = arith.constant 8 : index
    %c0_129 = arith.constant 0 : index
    %213 = vector.load %arg19[%c2_127, %c8_128, %c0_129] : memref<10x17x32xf32, #tpu.memory_space<vmem>>, vector<8x8x32xf32>
    %214 = vector.extract_strided_slice %158 {offsets = [7, 0], sizes = [1, 32], strides = [1, 1]} : vector<9x32xf32> to vector<1x32xf32>
    %215 = vector.shape_cast %214 : vector<1x32xf32> to vector<32xf32>
    %216 = vector.shape_cast %215 : vector<32xf32> to vector<1x1x32xf32>
    %217 = vector.broadcast %216 : vector<1x1x32xf32> to vector<8x8x32xf32>
    %218 = arith.mulf %213, %217 : vector<8x8x32xf32>
    %219 = arith.addf %212, %218 : vector<8x8x32xf32>
    %c2_130 = arith.constant 2 : index
    %c9_131 = arith.constant 9 : index
    %c0_132 = arith.constant 0 : index
    %220 = vector.load %arg19[%c2_130, %c9_131, %c0_132] : memref<10x17x32xf32, #tpu.memory_space<vmem>>, vector<8x8x32xf32>
    %221 = vector.extract_strided_slice %158 {offsets = [8, 0], sizes = [1, 32], strides = [1, 1]} : vector<9x32xf32> to vector<1x32xf32>
    %222 = vector.shape_cast %221 : vector<1x32xf32> to vector<32xf32>
    %223 = vector.shape_cast %222 : vector<32xf32> to vector<1x1x32xf32>
    %224 = vector.broadcast %223 : vector<1x1x32xf32> to vector<8x8x32xf32>
    %225 = arith.mulf %220, %224 : vector<8x8x32xf32>
    %226 = arith.addf %219, %225 : vector<8x8x32xf32>
    %227 = vector.shape_cast %159 : vector<1x32xf32> to vector<1x1x32xf32>
    %228 = vector.broadcast %227 : vector<1x1x32xf32> to vector<8x8x32xf32>
    %229 = arith.addf %226, %228 : vector<8x8x32xf32>
    %c0_133 = arith.constant 0 : index
    %c0_134 = arith.constant 0 : index
    %230 = vector.load %arg15[%c0_133, %c0_134] : memref<32x32xf32, #tpu.memory_space<vmem>>, vector<32x32xf32>
    %c0_135 = arith.constant 0 : index
    %c0_136 = arith.constant 0 : index
    %231 = vector.load %arg16[%c0_135, %c0_136] : memref<1x32xf32, #tpu.memory_space<vmem>>, vector<1x32xf32>
    %c0_137 = arith.constant 0 : index
    %c0_138 = arith.constant 0 : index
    %232 = vector.load %arg17[%c0_137, %c0_138] : memref<1x32xf32, #tpu.memory_space<vmem>>, vector<1x32xf32>
    %233 = vector.shape_cast %229 : vector<8x8x32xf32> to vector<64x32xf32>
    %cst_139 = arith.constant dense<0.000000e+00> : vector<64x32xf32>
    %234 = tpu.matmul %233, %230, %cst_139 {dimension_numbers = #tpu.dot_dimension_numbers<[1], [0], [0], [1], [0, 0, 1, 1], [], []>} : vector<64x32xf32>, vector<32x32xf32>, vector<64x32xf32> -> vector<64x32xf32>
    %235 = vector.broadcast %231 : vector<1x32xf32> to vector<64x32xf32>
    %236 = arith.mulf %234, %235 : vector<64x32xf32>
    %237 = vector.broadcast %232 : vector<1x32xf32> to vector<64x32xf32>
    %238 = arith.addf %236, %237 : vector<64x32xf32>
    %cst_140 = arith.constant 0.000000e+00 : f32
    %239 = vector.broadcast %cst_140 : f32 to vector<64x32xf32>
    %240 = arith.maximumf %238, %239 : vector<64x32xf32>
    %241 = vector.shape_cast %240 : vector<64x32xf32> to vector<8x8x32xf32>
    %c0_141 = arith.constant 0 : index
    %c0_142 = arith.constant 0 : index
    %c0_143 = arith.constant 0 : index
    %c0_144 = arith.constant 0 : index
    %242 = vector.load %arg18[%c0_141, %c0_142, %c0_143, %c0_144] : memref<1x8x8x32xf32, #tpu.memory_space<vmem>>, vector<1x8x8x32xf32>
    %243 = vector.shape_cast %242 : vector<1x8x8x32xf32> to vector<8x8x32xf32>
    %244 = vector.shape_cast %241 : vector<8x8x32xf32> to vector<1x8x8x32xf32>
    tpu.vector_store %arg18[%c0_141, %c0_142, %c0_143, %c0_144], %244 {strides = array<i32>} : memref<1x8x8x32xf32, #tpu.memory_space<vmem>>, vector<1x8x8x32xf32>,
    return
  }
  func.func @transform_0(%arg0: i32) -> (i32, i32, i32, i32) {
    %c0_i32 = arith.constant 0 : i32
    %c0_i32_0 = arith.constant 0 : i32
    %c0_i32_1 = arith.constant 0 : i32
    %c0_i32_2 = arith.constant 0 : i32
    return %arg0, %c0_i32, %c0_i32_0, %c0_i32_1 : i32, i32, i32, i32
  }
  func.func @transform_1(%arg0: i32) -> (i32, i32, i32, i32) {
    %c0_i32 = arith.constant 0 : i32
    %c0_i32_0 = arith.constant 0 : i32
    %c0_i32_1 = arith.constant 0 : i32
    %c0_i32_2 = arith.constant 0 : i32
    return %arg0, %c0_i32, %c0_i32_0, %c0_i32_1 : i32, i32, i32, i32
  }
  func.func @transform_2(%arg0: i32) -> (i32, i32, i32, i32) {
    %c0_i32 = arith.constant 0 : i32
    %c0_i32_0 = arith.constant 0 : i32
    %c0_i32_1 = arith.constant 0 : i32
    %c0_i32_2 = arith.constant 0 : i32
    return %arg0, %c0_i32, %c0_i32_0, %c0_i32_1 : i32, i32, i32, i32
  }
  func.func @transform_3(%arg0: i32) -> (i32, i32, i32, i32) {
    %c0_i32 = arith.constant 0 : i32
    %c0_i32_0 = arith.constant 0 : i32
    %c0_i32_1 = arith.constant 0 : i32
    %c0_i32_2 = arith.constant 0 : i32
    return %arg0, %c0_i32, %c0_i32_0, %c0_i32_1 : i32, i32, i32, i32
  }
  func.func @transform_4(%arg0: i32) -> (i32, i32, i32) {
    %c0_i32 = arith.constant 0 : i32
    %c0_i32_0 = arith.constant 0 : i32
    %c0_i32_1 = arith.constant 0 : i32
    %c0_i32_2 = arith.constant 0 : i32
    return %c0_i32, %c0_i32_0, %c0_i32_1 : i32, i32, i32
  }
  func.func @transform_5(%arg0: i32) -> (i32, i32) {
    %c0_i32 = arith.constant 0 : i32
    %c0_i32_0 = arith.constant 0 : i32
    %c0_i32_1 = arith.constant 0 : i32
    return %c0_i32, %c0_i32_0 : i32, i32
  }
  func.func @transform_6(%arg0: i32) -> (i32, i32) {
    %c0_i32 = arith.constant 0 : i32
    %c0_i32_0 = arith.constant 0 : i32
    %c0_i32_1 = arith.constant 0 : i32
    return %c0_i32, %c0_i32_0 : i32, i32
  }
  func.func @transform_7(%arg0: i32) -> (i32, i32) {
    %c0_i32 = arith.constant 0 : i32
    %c0_i32_0 = arith.constant 0 : i32
    %c0_i32_1 = arith.constant 0 : i32
    return %c0_i32, %c0_i32_0 : i32, i32
  }
  func.func @transform_8(%arg0: i32) -> (i32, i32) {
    %c0_i32 = arith.constant 0 : i32
    %c0_i32_0 = arith.constant 0 : i32
    %c0_i32_1 = arith.constant 0 : i32
    return %c0_i32, %c0_i32_0 : i32, i32
  }
  func.func @transform_9(%arg0: i32) -> (i32, i32) {
    %c0_i32 = arith.constant 0 : i32
    %c0_i32_0 = arith.constant 0 : i32
    %c0_i32_1 = arith.constant 0 : i32
    return %c0_i32, %c0_i32_0 : i32, i32
  }
  func.func @transform_10(%arg0: i32) -> (i32, i32) {
    %c0_i32 = arith.constant 0 : i32
    %c0_i32_0 = arith.constant 0 : i32
    %c0_i32_1 = arith.constant 0 : i32
    return %c0_i32, %c0_i32_0 : i32, i32
  }
  func.func @transform_11(%arg0: i32) -> (i32, i32) {
    %c0_i32 = arith.constant 0 : i32
    %c0_i32_0 = arith.constant 0 : i32
    %c0_i32_1 = arith.constant 0 : i32
    return %c0_i32, %c0_i32_0 : i32, i32
  }
  func.func @transform_12(%arg0: i32) -> (i32, i32) {
    %c0_i32 = arith.constant 0 : i32
    %c0_i32_0 = arith.constant 0 : i32
    %c0_i32_1 = arith.constant 0 : i32
    return %c0_i32, %c0_i32_0 : i32, i32
  }
  func.func @transform_13(%arg0: i32) -> (i32, i32) {
    %c0_i32 = arith.constant 0 : i32
    %c0_i32_0 = arith.constant 0 : i32
    %c0_i32_1 = arith.constant 0 : i32
    return %c0_i32, %c0_i32_0 : i32, i32
  }
  func.func @transform_14(%arg0: i32) -> (i32, i32) {
    %c0_i32 = arith.constant 0 : i32
    %c0_i32_0 = arith.constant 0 : i32
    %c0_i32_1 = arith.constant 0 : i32
    return %c0_i32, %c0_i32_0 : i32, i32
  }
  func.func @transform_15(%arg0: i32) -> (i32, i32) {
    %c0_i32 = arith.constant 0 : i32
    %c0_i32_0 = arith.constant 0 : i32
    %c0_i32_1 = arith.constant 0 : i32
    return %c0_i32, %c0_i32_0 : i32, i32
  }
  func.func @transform_16(%arg0: i32) -> (i32, i32) {
    %c0_i32 = arith.constant 0 : i32
    %c0_i32_0 = arith.constant 0 : i32
    %c0_i32_1 = arith.constant 0 : i32
    return %c0_i32, %c0_i32_0 : i32, i32
  }
  func.func @transform_17(%arg0: i32) -> (i32, i32, i32, i32) {
    %c0_i32 = arith.constant 0 : i32
    %c0_i32_0 = arith.constant 0 : i32
    %c0_i32_1 = arith.constant 0 : i32
    %c0_i32_2 = arith.constant 0 : i32
    return %arg0, %c0_i32, %c0_i32_0, %c0_i32_1 : i32, i32, i32, i32
  }
}

module attributes {stable_mosaic.version = 11 : i64} {
  func.func @_fusion_head_kernel(%arg0: i32, %arg1: memref<1x16x96xf32, #tpu.memory_space<vmem>>, %arg2: memref<1x8x8x32xf32, #tpu.memory_space<vmem>>, %arg3: memref<1x256x1xf32, #tpu.memory_space<vmem>>, %arg4: memref<64x16xf32, #tpu.memory_space<vmem>>, %arg5: memref<256x64xf32, #tpu.memory_space<vmem>>, %arg6: memref<96x32xf32, #tpu.memory_space<vmem>>, %arg7: memref<1x32xf32, #tpu.memory_space<vmem>>, %arg8: memref<1x32xf32, #tpu.memory_space<vmem>>, %arg9: memref<9x32xf32, #tpu.memory_space<vmem>>, %arg10: memref<1x32xf32, #tpu.memory_space<vmem>>, %arg11: memref<32x32xf32, #tpu.memory_space<vmem>>, %arg12: memref<1x32xf32, #tpu.memory_space<vmem>>, %arg13: memref<1x32xf32, #tpu.memory_space<vmem>>, %arg14: memref<9x32xf32, #tpu.memory_space<vmem>>, %arg15: memref<1x32xf32, #tpu.memory_space<vmem>>, %arg16: memref<32x32xf32, #tpu.memory_space<vmem>>, %arg17: memref<1x32xf32, #tpu.memory_space<vmem>>, %arg18: memref<1x32xf32, #tpu.memory_space<vmem>>, %arg19: memref<9x32x1xf32, #tpu.memory_space<vmem>>, %arg20: memref<1x1xf32, #tpu.memory_space<vmem>>, %arg21: memref<9x32x1xf32, #tpu.memory_space<vmem>>, %arg22: memref<1x1xf32, #tpu.memory_space<vmem>>, %arg23: memref<1x256x1xf32, #tpu.memory_space<vmem>>, %arg24: memref<1x256x1xf32, #tpu.memory_space<vmem>>, %arg25: memref<10x17x32xf32, #tpu.memory_space<vmem>>) attributes {dimension_semantics = [#tpu.dimension_semantics<parallel>], iteration_bounds = array<i64: 2>, scalar_prefetch = 0 : i64, scratch_operands = 1 : i64, tpu.core_type = #tpu.core_type<tc>, window_params = [{transform_indices = @transform_0, window_bounds = array<i64: 1, 16, 96>}, {transform_indices = @transform_1, window_bounds = array<i64: 1, 8, 8, 32>}, {transform_indices = @transform_2, window_bounds = array<i64: 1, 256, 1>}, {pipeline_mode = #tpu.pipeline_mode<synchronous>, transform_indices = @transform_3, window_bounds = array<i64: 64, 16>}, {pipeline_mode = #tpu.pipeline_mode<synchronous>, transform_indices = @transform_4, window_bounds = array<i64: 256, 64>}, {pipeline_mode = #tpu.pipeline_mode<synchronous>, transform_indices = @transform_5, window_bounds = array<i64: 96, 32>}, {pipeline_mode = #tpu.pipeline_mode<synchronous>, transform_indices = @transform_6, window_bounds = array<i64: 1, 32>}, {pipeline_mode = #tpu.pipeline_mode<synchronous>, transform_indices = @transform_7, window_bounds = array<i64: 1, 32>}, {pipeline_mode = #tpu.pipeline_mode<synchronous>, transform_indices = @transform_8, window_bounds = array<i64: 9, 32>}, {pipeline_mode = #tpu.pipeline_mode<synchronous>, transform_indices = @transform_9, window_bounds = array<i64: 1, 32>}, {pipeline_mode = #tpu.pipeline_mode<synchronous>, transform_indices = @transform_10, window_bounds = array<i64: 32, 32>}, {pipeline_mode = #tpu.pipeline_mode<synchronous>, transform_indices = @transform_11, window_bounds = array<i64: 1, 32>}, {pipeline_mode = #tpu.pipeline_mode<synchronous>, transform_indices = @transform_12, window_bounds = array<i64: 1, 32>}, {pipeline_mode = #tpu.pipeline_mode<synchronous>, transform_indices = @transform_13, window_bounds = array<i64: 9, 32>}, {pipeline_mode = #tpu.pipeline_mode<synchronous>, transform_indices = @transform_14, window_bounds = array<i64: 1, 32>}, {pipeline_mode = #tpu.pipeline_mode<synchronous>, transform_indices = @transform_15, window_bounds = array<i64: 32, 32>}, {pipeline_mode = #tpu.pipeline_mode<synchronous>, transform_indices = @transform_16, window_bounds = array<i64: 1, 32>}, {pipeline_mode = #tpu.pipeline_mode<synchronous>, transform_indices = @transform_17, window_bounds = array<i64: 1, 32>}, {pipeline_mode = #tpu.pipeline_mode<synchronous>, transform_indices = @transform_18, window_bounds = array<i64: 9, 32, 1>}, {pipeline_mode = #tpu.pipeline_mode<synchronous>, transform_indices = @transform_19, window_bounds = array<i64: 1, 1>}, {pipeline_mode = #tpu.pipeline_mode<synchronous>, transform_indices = @transform_20, window_bounds = array<i64: 9, 32, 1>}, {pipeline_mode = #tpu.pipeline_mode<synchronous>, transform_indices = @transform_21, window_bounds = array<i64: 1, 1>}, {transform_indices = @transform_22, window_bounds = array<i64: 1, 256, 1>}, {transform_indices = @transform_23, window_bounds = array<i64: 1, 256, 1>}]} {
    %c0 = arith.constant 0 : index
    %c0_0 = arith.constant 0 : index
    %c0_1 = arith.constant 0 : index
    %0 = vector.load %arg1[%c0, %c0_0, %c0_1] : memref<1x16x96xf32, #tpu.memory_space<vmem>>, vector<1x16x96xf32>
    %1 = vector.shape_cast %0 : vector<1x16x96xf32> to vector<16x96xf32>
    %c0_2 = arith.constant 0 : index
    %c0_3 = arith.constant 0 : index
    %2 = vector.load %arg6[%c0_2, %c0_3] : memref<96x32xf32, #tpu.memory_space<vmem>>, vector<96x32xf32>
    %cst = arith.constant dense<0.000000e+00> : vector<16x32xf32>
    %3 = tpu.matmul %1, %2, %cst {dimension_numbers = #tpu.dot_dimension_numbers<[1], [0], [0], [1], [0, 0, 1, 1], [], []>} : vector<16x96xf32>, vector<96x32xf32>, vector<16x32xf32> -> vector<16x32xf32>
    %c0_4 = arith.constant 0 : index
    %c0_5 = arith.constant 0 : index
    %4 = vector.load %arg7[%c0_4, %c0_5] : memref<1x32xf32, #tpu.memory_space<vmem>>, vector<1x32xf32>
    %5 = vector.broadcast %4 : vector<1x32xf32> to vector<16x32xf32>
    %6 = arith.mulf %3, %5 : vector<16x32xf32>
    %c0_6 = arith.constant 0 : index
    %c0_7 = arith.constant 0 : index
    %7 = vector.load %arg8[%c0_6, %c0_7] : memref<1x32xf32, #tpu.memory_space<vmem>>, vector<1x32xf32>
    %8 = vector.broadcast %7 : vector<1x32xf32> to vector<16x32xf32>
    %9 = arith.addf %6, %8 : vector<16x32xf32>
    %cst_8 = arith.constant 0.000000e+00 : f32
    %10 = vector.broadcast %cst_8 : f32 to vector<16x32xf32>
    %11 = arith.maximumf %9, %10 : vector<16x32xf32>
    %c0_9 = arith.constant 0 : index
    %c0_10 = arith.constant 0 : index
    %12 = vector.load %arg4[%c0_9, %c0_10] : memref<64x16xf32, #tpu.memory_space<vmem>>, vector<64x16xf32>
    %cst_11 = arith.constant dense<0.000000e+00> : vector<64x32xf32>
    %13 = tpu.matmul %12, %11, %cst_11 {dimension_numbers = #tpu.dot_dimension_numbers<[1], [0], [0], [1], [0, 0, 1, 1], [], []>} : vector<64x16xf32>, vector<16x32xf32>, vector<64x32xf32> -> vector<64x32xf32>
    %14 = vector.shape_cast %13 : vector<64x32xf32> to vector<8x8x32xf32>
    %c0_12 = arith.constant 0 : index
    %c0_13 = arith.constant 0 : index
    %c0_14 = arith.constant 0 : index
    %c0_15 = arith.constant 0 : index
    %15 = vector.load %arg2[%c0_12, %c0_13, %c0_14, %c0_15] : memref<1x8x8x32xf32, #tpu.memory_space<vmem>>, vector<1x8x8x32xf32>
    %16 = vector.shape_cast %15 : vector<1x8x8x32xf32> to vector<8x8x32xf32>
    %17 = arith.addf %14, %16 : vector<8x8x32xf32>
    %c0_16 = arith.constant 0 : index
    %c0_17 = arith.constant 0 : index
    %18 = vector.load %arg9[%c0_16, %c0_17] : memref<9x32xf32, #tpu.memory_space<vmem>>, vector<9x32xf32>
    %c0_18 = arith.constant 0 : index
    %c0_19 = arith.constant 0 : index
    %19 = vector.load %arg10[%c0_18, %c0_19] : memref<1x32xf32, #tpu.memory_space<vmem>>, vector<1x32xf32>
    %cst_20 = arith.constant 0.000000e+00 : f32
    %20 = vector.broadcast %cst_20 : f32 to vector<10x17x32xf32>
    %c0_21 = arith.constant 0 : index
    %c0_22 = arith.constant 0 : index
    %c0_23 = arith.constant 0 : index
    %21 = vector.load %arg25[%c0_21, %c0_22, %c0_23] : memref<10x17x32xf32, #tpu.memory_space<vmem>>, vector<10x17x32xf32>
    tpu.vector_store %arg25[%c0_21, %c0_22, %c0_23], %20 {strides = array<i32>} : memref<10x17x32xf32, #tpu.memory_space<vmem>>, vector<10x17x32xf32>,
    %c1 = arith.constant 1 : index
    %c8 = arith.constant 8 : index
    %c0_24 = arith.constant 0 : index
    %22 = vector.load %arg25[%c1, %c8, %c0_24] : memref<10x17x32xf32, #tpu.memory_space<vmem>>, vector<8x8x32xf32>
    tpu.vector_store %arg25[%c1, %c8, %c0_24], %17 {strides = array<i32>} : memref<10x17x32xf32, #tpu.memory_space<vmem>>, vector<8x8x32xf32>,
    %cst_25 = arith.constant 0.000000e+00 : f32
    %23 = vector.broadcast %cst_25 : f32 to vector<8x8x32xf32>
    %c0_26 = arith.constant 0 : index
    %c7 = arith.constant 7 : index
    %c0_27 = arith.constant 0 : index
    %24 = vector.load %arg25[%c0_26, %c7, %c0_27] : memref<10x17x32xf32, #tpu.memory_space<vmem>>, vector<8x8x32xf32>
    %25 = vector.extract_strided_slice %18 {offsets = [0, 0], sizes = [1, 32], strides = [1, 1]} : vector<9x32xf32> to vector<1x32xf32>
    %26 = vector.shape_cast %25 : vector<1x32xf32> to vector<32xf32>
    %27 = vector.shape_cast %26 : vector<32xf32> to vector<1x1x32xf32>
    %28 = vector.broadcast %27 : vector<1x1x32xf32> to vector<8x8x32xf32>
    %29 = arith.mulf %24, %28 : vector<8x8x32xf32>
    %30 = arith.addf %23, %29 : vector<8x8x32xf32>
    %c0_28 = arith.constant 0 : index
    %c8_29 = arith.constant 8 : index
    %c0_30 = arith.constant 0 : index
    %31 = vector.load %arg25[%c0_28, %c8_29, %c0_30] : memref<10x17x32xf32, #tpu.memory_space<vmem>>, vector<8x8x32xf32>
    %32 = vector.extract_strided_slice %18 {offsets = [1, 0], sizes = [1, 32], strides = [1, 1]} : vector<9x32xf32> to vector<1x32xf32>
    %33 = vector.shape_cast %32 : vector<1x32xf32> to vector<32xf32>
    %34 = vector.shape_cast %33 : vector<32xf32> to vector<1x1x32xf32>
    %35 = vector.broadcast %34 : vector<1x1x32xf32> to vector<8x8x32xf32>
    %36 = arith.mulf %31, %35 : vector<8x8x32xf32>
    %37 = arith.addf %30, %36 : vector<8x8x32xf32>
    %c0_31 = arith.constant 0 : index
    %c9 = arith.constant 9 : index
    %c0_32 = arith.constant 0 : index
    %38 = vector.load %arg25[%c0_31, %c9, %c0_32] : memref<10x17x32xf32, #tpu.memory_space<vmem>>, vector<8x8x32xf32>
    %39 = vector.extract_strided_slice %18 {offsets = [2, 0], sizes = [1, 32], strides = [1, 1]} : vector<9x32xf32> to vector<1x32xf32>
    %40 = vector.shape_cast %39 : vector<1x32xf32> to vector<32xf32>
    %41 = vector.shape_cast %40 : vector<32xf32> to vector<1x1x32xf32>
    %42 = vector.broadcast %41 : vector<1x1x32xf32> to vector<8x8x32xf32>
    %43 = arith.mulf %38, %42 : vector<8x8x32xf32>
    %44 = arith.addf %37, %43 : vector<8x8x32xf32>
    %c1_33 = arith.constant 1 : index
    %c7_34 = arith.constant 7 : index
    %c0_35 = arith.constant 0 : index
    %45 = vector.load %arg25[%c1_33, %c7_34, %c0_35] : memref<10x17x32xf32, #tpu.memory_space<vmem>>, vector<8x8x32xf32>
    %46 = vector.extract_strided_slice %18 {offsets = [3, 0], sizes = [1, 32], strides = [1, 1]} : vector<9x32xf32> to vector<1x32xf32>
    %47 = vector.shape_cast %46 : vector<1x32xf32> to vector<32xf32>
    %48 = vector.shape_cast %47 : vector<32xf32> to vector<1x1x32xf32>
    %49 = vector.broadcast %48 : vector<1x1x32xf32> to vector<8x8x32xf32>
    %50 = arith.mulf %45, %49 : vector<8x8x32xf32>
    %51 = arith.addf %44, %50 : vector<8x8x32xf32>
    %c1_36 = arith.constant 1 : index
    %c8_37 = arith.constant 8 : index
    %c0_38 = arith.constant 0 : index
    %52 = vector.load %arg25[%c1_36, %c8_37, %c0_38] : memref<10x17x32xf32, #tpu.memory_space<vmem>>, vector<8x8x32xf32>
    %53 = vector.extract_strided_slice %18 {offsets = [4, 0], sizes = [1, 32], strides = [1, 1]} : vector<9x32xf32> to vector<1x32xf32>
    %54 = vector.shape_cast %53 : vector<1x32xf32> to vector<32xf32>
    %55 = vector.shape_cast %54 : vector<32xf32> to vector<1x1x32xf32>
    %56 = vector.broadcast %55 : vector<1x1x32xf32> to vector<8x8x32xf32>
    %57 = arith.mulf %52, %56 : vector<8x8x32xf32>
    %58 = arith.addf %51, %57 : vector<8x8x32xf32>
    %c1_39 = arith.constant 1 : index
    %c9_40 = arith.constant 9 : index
    %c0_41 = arith.constant 0 : index
    %59 = vector.load %arg25[%c1_39, %c9_40, %c0_41] : memref<10x17x32xf32, #tpu.memory_space<vmem>>, vector<8x8x32xf32>
    %60 = vector.extract_strided_slice %18 {offsets = [5, 0], sizes = [1, 32], strides = [1, 1]} : vector<9x32xf32> to vector<1x32xf32>
    %61 = vector.shape_cast %60 : vector<1x32xf32> to vector<32xf32>
    %62 = vector.shape_cast %61 : vector<32xf32> to vector<1x1x32xf32>
    %63 = vector.broadcast %62 : vector<1x1x32xf32> to vector<8x8x32xf32>
    %64 = arith.mulf %59, %63 : vector<8x8x32xf32>
    %65 = arith.addf %58, %64 : vector<8x8x32xf32>
    %c2 = arith.constant 2 : index
    %c7_42 = arith.constant 7 : index
    %c0_43 = arith.constant 0 : index
    %66 = vector.load %arg25[%c2, %c7_42, %c0_43] : memref<10x17x32xf32, #tpu.memory_space<vmem>>, vector<8x8x32xf32>
    %67 = vector.extract_strided_slice %18 {offsets = [6, 0], sizes = [1, 32], strides = [1, 1]} : vector<9x32xf32> to vector<1x32xf32>
    %68 = vector.shape_cast %67 : vector<1x32xf32> to vector<32xf32>
    %69 = vector.shape_cast %68 : vector<32xf32> to vector<1x1x32xf32>
    %70 = vector.broadcast %69 : vector<1x1x32xf32> to vector<8x8x32xf32>
    %71 = arith.mulf %66, %70 : vector<8x8x32xf32>
    %72 = arith.addf %65, %71 : vector<8x8x32xf32>
    %c2_44 = arith.constant 2 : index
    %c8_45 = arith.constant 8 : index
    %c0_46 = arith.constant 0 : index
    %73 = vector.load %arg25[%c2_44, %c8_45, %c0_46] : memref<10x17x32xf32, #tpu.memory_space<vmem>>, vector<8x8x32xf32>
    %74 = vector.extract_strided_slice %18 {offsets = [7, 0], sizes = [1, 32], strides = [1, 1]} : vector<9x32xf32> to vector<1x32xf32>
    %75 = vector.shape_cast %74 : vector<1x32xf32> to vector<32xf32>
    %76 = vector.shape_cast %75 : vector<32xf32> to vector<1x1x32xf32>
    %77 = vector.broadcast %76 : vector<1x1x32xf32> to vector<8x8x32xf32>
    %78 = arith.mulf %73, %77 : vector<8x8x32xf32>
    %79 = arith.addf %72, %78 : vector<8x8x32xf32>
    %c2_47 = arith.constant 2 : index
    %c9_48 = arith.constant 9 : index
    %c0_49 = arith.constant 0 : index
    %80 = vector.load %arg25[%c2_47, %c9_48, %c0_49] : memref<10x17x32xf32, #tpu.memory_space<vmem>>, vector<8x8x32xf32>
    %81 = vector.extract_strided_slice %18 {offsets = [8, 0], sizes = [1, 32], strides = [1, 1]} : vector<9x32xf32> to vector<1x32xf32>
    %82 = vector.shape_cast %81 : vector<1x32xf32> to vector<32xf32>
    %83 = vector.shape_cast %82 : vector<32xf32> to vector<1x1x32xf32>
    %84 = vector.broadcast %83 : vector<1x1x32xf32> to vector<8x8x32xf32>
    %85 = arith.mulf %80, %84 : vector<8x8x32xf32>
    %86 = arith.addf %79, %85 : vector<8x8x32xf32>
    %87 = vector.shape_cast %19 : vector<1x32xf32> to vector<1x1x32xf32>
    %88 = vector.broadcast %87 : vector<1x1x32xf32> to vector<8x8x32xf32>
    %89 = arith.addf %86, %88 : vector<8x8x32xf32>
    %c0_50 = arith.constant 0 : index
    %c0_51 = arith.constant 0 : index
    %90 = vector.load %arg11[%c0_50, %c0_51] : memref<32x32xf32, #tpu.memory_space<vmem>>, vector<32x32xf32>
    %c0_52 = arith.constant 0 : index
    %c0_53 = arith.constant 0 : index
    %91 = vector.load %arg12[%c0_52, %c0_53] : memref<1x32xf32, #tpu.memory_space<vmem>>, vector<1x32xf32>
    %c0_54 = arith.constant 0 : index
    %c0_55 = arith.constant 0 : index
    %92 = vector.load %arg13[%c0_54, %c0_55] : memref<1x32xf32, #tpu.memory_space<vmem>>, vector<1x32xf32>
    %93 = vector.shape_cast %89 : vector<8x8x32xf32> to vector<64x32xf32>
    %cst_56 = arith.constant dense<0.000000e+00> : vector<64x32xf32>
    %94 = tpu.matmul %93, %90, %cst_56 {dimension_numbers = #tpu.dot_dimension_numbers<[1], [0], [0], [1], [0, 0, 1, 1], [], []>} : vector<64x32xf32>, vector<32x32xf32>, vector<64x32xf32> -> vector<64x32xf32>
    %95 = vector.broadcast %91 : vector<1x32xf32> to vector<64x32xf32>
    %96 = arith.mulf %94, %95 : vector<64x32xf32>
    %97 = vector.broadcast %92 : vector<1x32xf32> to vector<64x32xf32>
    %98 = arith.addf %96, %97 : vector<64x32xf32>
    %cst_57 = arith.constant 0.000000e+00 : f32
    %99 = vector.broadcast %cst_57 : f32 to vector<64x32xf32>
    %100 = arith.maximumf %98, %99 : vector<64x32xf32>
    %101 = vector.shape_cast %100 : vector<64x32xf32> to vector<8x8x32xf32>
    %c0_58 = arith.constant 0 : index
    %c0_59 = arith.constant 0 : index
    %102 = vector.load %arg14[%c0_58, %c0_59] : memref<9x32xf32, #tpu.memory_space<vmem>>, vector<9x32xf32>
    %c0_60 = arith.constant 0 : index
    %c0_61 = arith.constant 0 : index
    %103 = vector.load %arg15[%c0_60, %c0_61] : memref<1x32xf32, #tpu.memory_space<vmem>>, vector<1x32xf32>
    %cst_62 = arith.constant 0.000000e+00 : f32
    %104 = vector.broadcast %cst_62 : f32 to vector<10x17x32xf32>
    %c0_63 = arith.constant 0 : index
    %c0_64 = arith.constant 0 : index
    %c0_65 = arith.constant 0 : index
    %105 = vector.load %arg25[%c0_63, %c0_64, %c0_65] : memref<10x17x32xf32, #tpu.memory_space<vmem>>, vector<10x17x32xf32>
    tpu.vector_store %arg25[%c0_63, %c0_64, %c0_65], %104 {strides = array<i32>} : memref<10x17x32xf32, #tpu.memory_space<vmem>>, vector<10x17x32xf32>,
    %c1_66 = arith.constant 1 : index
    %c8_67 = arith.constant 8 : index
    %c0_68 = arith.constant 0 : index
    %106 = vector.load %arg25[%c1_66, %c8_67, %c0_68] : memref<10x17x32xf32, #tpu.memory_space<vmem>>, vector<8x8x32xf32>
    tpu.vector_store %arg25[%c1_66, %c8_67, %c0_68], %101 {strides = array<i32>} : memref<10x17x32xf32, #tpu.memory_space<vmem>>, vector<8x8x32xf32>,
    %cst_69 = arith.constant 0.000000e+00 : f32
    %107 = vector.broadcast %cst_69 : f32 to vector<8x8x32xf32>
    %c0_70 = arith.constant 0 : index
    %c7_71 = arith.constant 7 : index
    %c0_72 = arith.constant 0 : index
    %108 = vector.load %arg25[%c0_70, %c7_71, %c0_72] : memref<10x17x32xf32, #tpu.memory_space<vmem>>, vector<8x8x32xf32>
    %109 = vector.extract_strided_slice %102 {offsets = [0, 0], sizes = [1, 32], strides = [1, 1]} : vector<9x32xf32> to vector<1x32xf32>
    %110 = vector.shape_cast %109 : vector<1x32xf32> to vector<32xf32>
    %111 = vector.shape_cast %110 : vector<32xf32> to vector<1x1x32xf32>
    %112 = vector.broadcast %111 : vector<1x1x32xf32> to vector<8x8x32xf32>
    %113 = arith.mulf %108, %112 : vector<8x8x32xf32>
    %114 = arith.addf %107, %113 : vector<8x8x32xf32>
    %c0_73 = arith.constant 0 : index
    %c8_74 = arith.constant 8 : index
    %c0_75 = arith.constant 0 : index
    %115 = vector.load %arg25[%c0_73, %c8_74, %c0_75] : memref<10x17x32xf32, #tpu.memory_space<vmem>>, vector<8x8x32xf32>
    %116 = vector.extract_strided_slice %102 {offsets = [1, 0], sizes = [1, 32], strides = [1, 1]} : vector<9x32xf32> to vector<1x32xf32>
    %117 = vector.shape_cast %116 : vector<1x32xf32> to vector<32xf32>
    %118 = vector.shape_cast %117 : vector<32xf32> to vector<1x1x32xf32>
    %119 = vector.broadcast %118 : vector<1x1x32xf32> to vector<8x8x32xf32>
    %120 = arith.mulf %115, %119 : vector<8x8x32xf32>
    %121 = arith.addf %114, %120 : vector<8x8x32xf32>
    %c0_76 = arith.constant 0 : index
    %c9_77 = arith.constant 9 : index
    %c0_78 = arith.constant 0 : index
    %122 = vector.load %arg25[%c0_76, %c9_77, %c0_78] : memref<10x17x32xf32, #tpu.memory_space<vmem>>, vector<8x8x32xf32>
    %123 = vector.extract_strided_slice %102 {offsets = [2, 0], sizes = [1, 32], strides = [1, 1]} : vector<9x32xf32> to vector<1x32xf32>
    %124 = vector.shape_cast %123 : vector<1x32xf32> to vector<32xf32>
    %125 = vector.shape_cast %124 : vector<32xf32> to vector<1x1x32xf32>
    %126 = vector.broadcast %125 : vector<1x1x32xf32> to vector<8x8x32xf32>
    %127 = arith.mulf %122, %126 : vector<8x8x32xf32>
    %128 = arith.addf %121, %127 : vector<8x8x32xf32>
    %c1_79 = arith.constant 1 : index
    %c7_80 = arith.constant 7 : index
    %c0_81 = arith.constant 0 : index
    %129 = vector.load %arg25[%c1_79, %c7_80, %c0_81] : memref<10x17x32xf32, #tpu.memory_space<vmem>>, vector<8x8x32xf32>
    %130 = vector.extract_strided_slice %102 {offsets = [3, 0], sizes = [1, 32], strides = [1, 1]} : vector<9x32xf32> to vector<1x32xf32>
    %131 = vector.shape_cast %130 : vector<1x32xf32> to vector<32xf32>
    %132 = vector.shape_cast %131 : vector<32xf32> to vector<1x1x32xf32>
    %133 = vector.broadcast %132 : vector<1x1x32xf32> to vector<8x8x32xf32>
    %134 = arith.mulf %129, %133 : vector<8x8x32xf32>
    %135 = arith.addf %128, %134 : vector<8x8x32xf32>
    %c1_82 = arith.constant 1 : index
    %c8_83 = arith.constant 8 : index
    %c0_84 = arith.constant 0 : index
    %136 = vector.load %arg25[%c1_82, %c8_83, %c0_84] : memref<10x17x32xf32, #tpu.memory_space<vmem>>, vector<8x8x32xf32>
    %137 = vector.extract_strided_slice %102 {offsets = [4, 0], sizes = [1, 32], strides = [1, 1]} : vector<9x32xf32> to vector<1x32xf32>
    %138 = vector.shape_cast %137 : vector<1x32xf32> to vector<32xf32>
    %139 = vector.shape_cast %138 : vector<32xf32> to vector<1x1x32xf32>
    %140 = vector.broadcast %139 : vector<1x1x32xf32> to vector<8x8x32xf32>
    %141 = arith.mulf %136, %140 : vector<8x8x32xf32>
    %142 = arith.addf %135, %141 : vector<8x8x32xf32>
    %c1_85 = arith.constant 1 : index
    %c9_86 = arith.constant 9 : index
    %c0_87 = arith.constant 0 : index
    %143 = vector.load %arg25[%c1_85, %c9_86, %c0_87] : memref<10x17x32xf32, #tpu.memory_space<vmem>>, vector<8x8x32xf32>
    %144 = vector.extract_strided_slice %102 {offsets = [5, 0], sizes = [1, 32], strides = [1, 1]} : vector<9x32xf32> to vector<1x32xf32>
    %145 = vector.shape_cast %144 : vector<1x32xf32> to vector<32xf32>
    %146 = vector.shape_cast %145 : vector<32xf32> to vector<1x1x32xf32>
    %147 = vector.broadcast %146 : vector<1x1x32xf32> to vector<8x8x32xf32>
    %148 = arith.mulf %143, %147 : vector<8x8x32xf32>
    %149 = arith.addf %142, %148 : vector<8x8x32xf32>
    %c2_88 = arith.constant 2 : index
    %c7_89 = arith.constant 7 : index
    %c0_90 = arith.constant 0 : index
    %150 = vector.load %arg25[%c2_88, %c7_89, %c0_90] : memref<10x17x32xf32, #tpu.memory_space<vmem>>, vector<8x8x32xf32>
    %151 = vector.extract_strided_slice %102 {offsets = [6, 0], sizes = [1, 32], strides = [1, 1]} : vector<9x32xf32> to vector<1x32xf32>
    %152 = vector.shape_cast %151 : vector<1x32xf32> to vector<32xf32>
    %153 = vector.shape_cast %152 : vector<32xf32> to vector<1x1x32xf32>
    %154 = vector.broadcast %153 : vector<1x1x32xf32> to vector<8x8x32xf32>
    %155 = arith.mulf %150, %154 : vector<8x8x32xf32>
    %156 = arith.addf %149, %155 : vector<8x8x32xf32>
    %c2_91 = arith.constant 2 : index
    %c8_92 = arith.constant 8 : index
    %c0_93 = arith.constant 0 : index
    %157 = vector.load %arg25[%c2_91, %c8_92, %c0_93] : memref<10x17x32xf32, #tpu.memory_space<vmem>>, vector<8x8x32xf32>
    %158 = vector.extract_strided_slice %102 {offsets = [7, 0], sizes = [1, 32], strides = [1, 1]} : vector<9x32xf32> to vector<1x32xf32>
    %159 = vector.shape_cast %158 : vector<1x32xf32> to vector<32xf32>
    %160 = vector.shape_cast %159 : vector<32xf32> to vector<1x1x32xf32>
    %161 = vector.broadcast %160 : vector<1x1x32xf32> to vector<8x8x32xf32>
    %162 = arith.mulf %157, %161 : vector<8x8x32xf32>
    %163 = arith.addf %156, %162 : vector<8x8x32xf32>
    %c2_94 = arith.constant 2 : index
    %c9_95 = arith.constant 9 : index
    %c0_96 = arith.constant 0 : index
    %164 = vector.load %arg25[%c2_94, %c9_95, %c0_96] : memref<10x17x32xf32, #tpu.memory_space<vmem>>, vector<8x8x32xf32>
    %165 = vector.extract_strided_slice %102 {offsets = [8, 0], sizes = [1, 32], strides = [1, 1]} : vector<9x32xf32> to vector<1x32xf32>
    %166 = vector.shape_cast %165 : vector<1x32xf32> to vector<32xf32>
    %167 = vector.shape_cast %166 : vector<32xf32> to vector<1x1x32xf32>
    %168 = vector.broadcast %167 : vector<1x1x32xf32> to vector<8x8x32xf32>
    %169 = arith.mulf %164, %168 : vector<8x8x32xf32>
    %170 = arith.addf %163, %169 : vector<8x8x32xf32>
    %171 = vector.shape_cast %103 : vector<1x32xf32> to vector<1x1x32xf32>
    %172 = vector.broadcast %171 : vector<1x1x32xf32> to vector<8x8x32xf32>
    %173 = arith.addf %170, %172 : vector<8x8x32xf32>
    %c0_97 = arith.constant 0 : index
    %c0_98 = arith.constant 0 : index
    %174 = vector.load %arg16[%c0_97, %c0_98] : memref<32x32xf32, #tpu.memory_space<vmem>>, vector<32x32xf32>
    %c0_99 = arith.constant 0 : index
    %c0_100 = arith.constant 0 : index
    %175 = vector.load %arg17[%c0_99, %c0_100] : memref<1x32xf32, #tpu.memory_space<vmem>>, vector<1x32xf32>
    %c0_101 = arith.constant 0 : index
    %c0_102 = arith.constant 0 : index
    %176 = vector.load %arg18[%c0_101, %c0_102] : memref<1x32xf32, #tpu.memory_space<vmem>>, vector<1x32xf32>
    %177 = vector.shape_cast %173 : vector<8x8x32xf32> to vector<64x32xf32>
    %cst_103 = arith.constant dense<0.000000e+00> : vector<64x32xf32>
    %178 = tpu.matmul %177, %174, %cst_103 {dimension_numbers = #tpu.dot_dimension_numbers<[1], [0], [0], [1], [0, 0, 1, 1], [], []>} : vector<64x32xf32>, vector<32x32xf32>, vector<64x32xf32> -> vector<64x32xf32>
    %179 = vector.broadcast %175 : vector<1x32xf32> to vector<64x32xf32>
    %180 = arith.mulf %178, %179 : vector<64x32xf32>
    %181 = vector.broadcast %176 : vector<1x32xf32> to vector<64x32xf32>
    %182 = arith.addf %180, %181 : vector<64x32xf32>
    %cst_104 = arith.constant 0.000000e+00 : f32
    %183 = vector.broadcast %cst_104 : f32 to vector<64x32xf32>
    %184 = arith.maximumf %182, %183 : vector<64x32xf32>
    %185 = vector.shape_cast %184 : vector<64x32xf32> to vector<8x8x32xf32>
    %cst_105 = arith.constant 0.000000e+00 : f32
    %186 = vector.broadcast %cst_105 : f32 to vector<10x17x32xf32>
    %c0_106 = arith.constant 0 : index
    %c0_107 = arith.constant 0 : index
    %c0_108 = arith.constant 0 : index
    %187 = vector.load %arg25[%c0_106, %c0_107, %c0_108] : memref<10x17x32xf32, #tpu.memory_space<vmem>>, vector<10x17x32xf32>
    tpu.vector_store %arg25[%c0_106, %c0_107, %c0_108], %186 {strides = array<i32>} : memref<10x17x32xf32, #tpu.memory_space<vmem>>, vector<10x17x32xf32>,
    %c1_109 = arith.constant 1 : index
    %c8_110 = arith.constant 8 : index
    %c0_111 = arith.constant 0 : index
    %188 = vector.load %arg25[%c1_109, %c8_110, %c0_111] : memref<10x17x32xf32, #tpu.memory_space<vmem>>, vector<8x8x32xf32>
    tpu.vector_store %arg25[%c1_109, %c8_110, %c0_111], %185 {strides = array<i32>} : memref<10x17x32xf32, #tpu.memory_space<vmem>>, vector<8x8x32xf32>,
    %c0_112 = arith.constant 0 : index
    %c0_113 = arith.constant 0 : index
    %c0_114 = arith.constant 0 : index
    %189 = vector.load %arg19[%c0_112, %c0_113, %c0_114] : memref<9x32x1xf32, #tpu.memory_space<vmem>>, vector<9x32x1xf32>
    %c0_115 = arith.constant 0 : index
    %c0_116 = arith.constant 0 : index
    %c0_117 = arith.constant 0 : index
    %190 = vector.load %arg21[%c0_115, %c0_116, %c0_117] : memref<9x32x1xf32, #tpu.memory_space<vmem>>, vector<9x32x1xf32>
    %cst_118 = arith.constant 0.000000e+00 : f32
    %191 = vector.broadcast %cst_118 : f32 to vector<64x1xf32>
    %cst_119 = arith.constant 0.000000e+00 : f32
    %192 = vector.broadcast %cst_119 : f32 to vector<64x1xf32>
    %c0_120 = arith.constant 0 : index
    %c7_121 = arith.constant 7 : index
    %c0_122 = arith.constant 0 : index
    %193 = vector.load %arg25[%c0_120, %c7_121, %c0_122] : memref<10x17x32xf32, #tpu.memory_space<vmem>>, vector<8x8x32xf32>
    %194 = vector.shape_cast %193 : vector<8x8x32xf32> to vector<64x32xf32>
    %195 = vector.extract_strided_slice %189 {offsets = [0, 0, 0], sizes = [1, 32, 1], strides = [1, 1, 1]} : vector<9x32x1xf32> to vector<1x32x1xf32>
    %196 = vector.shape_cast %195 : vector<1x32x1xf32> to vector<32x1xf32>
    %cst_123 = arith.constant dense<0.000000e+00> : vector<64x1xf32>
    %197 = tpu.matmul %194, %196, %cst_123 {dimension_numbers = #tpu.dot_dimension_numbers<[1], [0], [0], [1], [0, 0, 1, 1], [], []>} : vector<64x32xf32>, vector<32x1xf32>, vector<64x1xf32> -> vector<64x1xf32>
    %198 = arith.addf %191, %197 : vector<64x1xf32>
    %199 = vector.extract_strided_slice %190 {offsets = [0, 0, 0], sizes = [1, 32, 1], strides = [1, 1, 1]} : vector<9x32x1xf32> to vector<1x32x1xf32>
    %200 = vector.shape_cast %199 : vector<1x32x1xf32> to vector<32x1xf32>
    %cst_124 = arith.constant dense<0.000000e+00> : vector<64x1xf32>
    %201 = tpu.matmul %194, %200, %cst_124 {dimension_numbers = #tpu.dot_dimension_numbers<[1], [0], [0], [1], [0, 0, 1, 1], [], []>} : vector<64x32xf32>, vector<32x1xf32>, vector<64x1xf32> -> vector<64x1xf32>
    %202 = arith.addf %192, %201 : vector<64x1xf32>
    %c0_125 = arith.constant 0 : index
    %c8_126 = arith.constant 8 : index
    %c0_127 = arith.constant 0 : index
    %203 = vector.load %arg25[%c0_125, %c8_126, %c0_127] : memref<10x17x32xf32, #tpu.memory_space<vmem>>, vector<8x8x32xf32>
    %204 = vector.shape_cast %203 : vector<8x8x32xf32> to vector<64x32xf32>
    %205 = vector.extract_strided_slice %189 {offsets = [1, 0, 0], sizes = [1, 32, 1], strides = [1, 1, 1]} : vector<9x32x1xf32> to vector<1x32x1xf32>
    %206 = vector.shape_cast %205 : vector<1x32x1xf32> to vector<32x1xf32>
    %cst_128 = arith.constant dense<0.000000e+00> : vector<64x1xf32>
    %207 = tpu.matmul %204, %206, %cst_128 {dimension_numbers = #tpu.dot_dimension_numbers<[1], [0], [0], [1], [0, 0, 1, 1], [], []>} : vector<64x32xf32>, vector<32x1xf32>, vector<64x1xf32> -> vector<64x1xf32>
    %208 = arith.addf %198, %207 : vector<64x1xf32>
    %209 = vector.extract_strided_slice %190 {offsets = [1, 0, 0], sizes = [1, 32, 1], strides = [1, 1, 1]} : vector<9x32x1xf32> to vector<1x32x1xf32>
    %210 = vector.shape_cast %209 : vector<1x32x1xf32> to vector<32x1xf32>
    %cst_129 = arith.constant dense<0.000000e+00> : vector<64x1xf32>
    %211 = tpu.matmul %204, %210, %cst_129 {dimension_numbers = #tpu.dot_dimension_numbers<[1], [0], [0], [1], [0, 0, 1, 1], [], []>} : vector<64x32xf32>, vector<32x1xf32>, vector<64x1xf32> -> vector<64x1xf32>
    %212 = arith.addf %202, %211 : vector<64x1xf32>
    %c0_130 = arith.constant 0 : index
    %c9_131 = arith.constant 9 : index
    %c0_132 = arith.constant 0 : index
    %213 = vector.load %arg25[%c0_130, %c9_131, %c0_132] : memref<10x17x32xf32, #tpu.memory_space<vmem>>, vector<8x8x32xf32>
    %214 = vector.shape_cast %213 : vector<8x8x32xf32> to vector<64x32xf32>
    %215 = vector.extract_strided_slice %189 {offsets = [2, 0, 0], sizes = [1, 32, 1], strides = [1, 1, 1]} : vector<9x32x1xf32> to vector<1x32x1xf32>
    %216 = vector.shape_cast %215 : vector<1x32x1xf32> to vector<32x1xf32>
    %cst_133 = arith.constant dense<0.000000e+00> : vector<64x1xf32>
    %217 = tpu.matmul %214, %216, %cst_133 {dimension_numbers = #tpu.dot_dimension_numbers<[1], [0], [0], [1], [0, 0, 1, 1], [], []>} : vector<64x32xf32>, vector<32x1xf32>, vector<64x1xf32> -> vector<64x1xf32>
    %218 = arith.addf %208, %217 : vector<64x1xf32>
    %219 = vector.extract_strided_slice %190 {offsets = [2, 0, 0], sizes = [1, 32, 1], strides = [1, 1, 1]} : vector<9x32x1xf32> to vector<1x32x1xf32>
    %220 = vector.shape_cast %219 : vector<1x32x1xf32> to vector<32x1xf32>
    %cst_134 = arith.constant dense<0.000000e+00> : vector<64x1xf32>
    %221 = tpu.matmul %214, %220, %cst_134 {dimension_numbers = #tpu.dot_dimension_numbers<[1], [0], [0], [1], [0, 0, 1, 1], [], []>} : vector<64x32xf32>, vector<32x1xf32>, vector<64x1xf32> -> vector<64x1xf32>
    %222 = arith.addf %212, %221 : vector<64x1xf32>
    %c1_135 = arith.constant 1 : index
    %c7_136 = arith.constant 7 : index
    %c0_137 = arith.constant 0 : index
    %223 = vector.load %arg25[%c1_135, %c7_136, %c0_137] : memref<10x17x32xf32, #tpu.memory_space<vmem>>, vector<8x8x32xf32>
    %224 = vector.shape_cast %223 : vector<8x8x32xf32> to vector<64x32xf32>
    %225 = vector.extract_strided_slice %189 {offsets = [3, 0, 0], sizes = [1, 32, 1], strides = [1, 1, 1]} : vector<9x32x1xf32> to vector<1x32x1xf32>
    %226 = vector.shape_cast %225 : vector<1x32x1xf32> to vector<32x1xf32>
    %cst_138 = arith.constant dense<0.000000e+00> : vector<64x1xf32>
    %227 = tpu.matmul %224, %226, %cst_138 {dimension_numbers = #tpu.dot_dimension_numbers<[1], [0], [0], [1], [0, 0, 1, 1], [], []>} : vector<64x32xf32>, vector<32x1xf32>, vector<64x1xf32> -> vector<64x1xf32>
    %228 = arith.addf %218, %227 : vector<64x1xf32>
    %229 = vector.extract_strided_slice %190 {offsets = [3, 0, 0], sizes = [1, 32, 1], strides = [1, 1, 1]} : vector<9x32x1xf32> to vector<1x32x1xf32>
    %230 = vector.shape_cast %229 : vector<1x32x1xf32> to vector<32x1xf32>
    %cst_139 = arith.constant dense<0.000000e+00> : vector<64x1xf32>
    %231 = tpu.matmul %224, %230, %cst_139 {dimension_numbers = #tpu.dot_dimension_numbers<[1], [0], [0], [1], [0, 0, 1, 1], [], []>} : vector<64x32xf32>, vector<32x1xf32>, vector<64x1xf32> -> vector<64x1xf32>
    %232 = arith.addf %222, %231 : vector<64x1xf32>
    %c1_140 = arith.constant 1 : index
    %c8_141 = arith.constant 8 : index
    %c0_142 = arith.constant 0 : index
    %233 = vector.load %arg25[%c1_140, %c8_141, %c0_142] : memref<10x17x32xf32, #tpu.memory_space<vmem>>, vector<8x8x32xf32>
    %234 = vector.shape_cast %233 : vector<8x8x32xf32> to vector<64x32xf32>
    %235 = vector.extract_strided_slice %189 {offsets = [4, 0, 0], sizes = [1, 32, 1], strides = [1, 1, 1]} : vector<9x32x1xf32> to vector<1x32x1xf32>
    %236 = vector.shape_cast %235 : vector<1x32x1xf32> to vector<32x1xf32>
    %cst_143 = arith.constant dense<0.000000e+00> : vector<64x1xf32>
    %237 = tpu.matmul %234, %236, %cst_143 {dimension_numbers = #tpu.dot_dimension_numbers<[1], [0], [0], [1], [0, 0, 1, 1], [], []>} : vector<64x32xf32>, vector<32x1xf32>, vector<64x1xf32> -> vector<64x1xf32>
    %238 = arith.addf %228, %237 : vector<64x1xf32>
    %239 = vector.extract_strided_slice %190 {offsets = [4, 0, 0], sizes = [1, 32, 1], strides = [1, 1, 1]} : vector<9x32x1xf32> to vector<1x32x1xf32>
    %240 = vector.shape_cast %239 : vector<1x32x1xf32> to vector<32x1xf32>
    %cst_144 = arith.constant dense<0.000000e+00> : vector<64x1xf32>
    %241 = tpu.matmul %234, %240, %cst_144 {dimension_numbers = #tpu.dot_dimension_numbers<[1], [0], [0], [1], [0, 0, 1, 1], [], []>} : vector<64x32xf32>, vector<32x1xf32>, vector<64x1xf32> -> vector<64x1xf32>
    %242 = arith.addf %232, %241 : vector<64x1xf32>
    %c1_145 = arith.constant 1 : index
    %c9_146 = arith.constant 9 : index
    %c0_147 = arith.constant 0 : index
    %243 = vector.load %arg25[%c1_145, %c9_146, %c0_147] : memref<10x17x32xf32, #tpu.memory_space<vmem>>, vector<8x8x32xf32>
    %244 = vector.shape_cast %243 : vector<8x8x32xf32> to vector<64x32xf32>
    %245 = vector.extract_strided_slice %189 {offsets = [5, 0, 0], sizes = [1, 32, 1], strides = [1, 1, 1]} : vector<9x32x1xf32> to vector<1x32x1xf32>
    %246 = vector.shape_cast %245 : vector<1x32x1xf32> to vector<32x1xf32>
    %cst_148 = arith.constant dense<0.000000e+00> : vector<64x1xf32>
    %247 = tpu.matmul %244, %246, %cst_148 {dimension_numbers = #tpu.dot_dimension_numbers<[1], [0], [0], [1], [0, 0, 1, 1], [], []>} : vector<64x32xf32>, vector<32x1xf32>, vector<64x1xf32> -> vector<64x1xf32>
    %248 = arith.addf %238, %247 : vector<64x1xf32>
    %249 = vector.extract_strided_slice %190 {offsets = [5, 0, 0], sizes = [1, 32, 1], strides = [1, 1, 1]} : vector<9x32x1xf32> to vector<1x32x1xf32>
    %250 = vector.shape_cast %249 : vector<1x32x1xf32> to vector<32x1xf32>
    %cst_149 = arith.constant dense<0.000000e+00> : vector<64x1xf32>
    %251 = tpu.matmul %244, %250, %cst_149 {dimension_numbers = #tpu.dot_dimension_numbers<[1], [0], [0], [1], [0, 0, 1, 1], [], []>} : vector<64x32xf32>, vector<32x1xf32>, vector<64x1xf32> -> vector<64x1xf32>
    %252 = arith.addf %242, %251 : vector<64x1xf32>
    %c2_150 = arith.constant 2 : index
    %c7_151 = arith.constant 7 : index
    %c0_152 = arith.constant 0 : index
    %253 = vector.load %arg25[%c2_150, %c7_151, %c0_152] : memref<10x17x32xf32, #tpu.memory_space<vmem>>, vector<8x8x32xf32>
    %254 = vector.shape_cast %253 : vector<8x8x32xf32> to vector<64x32xf32>
    %255 = vector.extract_strided_slice %189 {offsets = [6, 0, 0], sizes = [1, 32, 1], strides = [1, 1, 1]} : vector<9x32x1xf32> to vector<1x32x1xf32>
    %256 = vector.shape_cast %255 : vector<1x32x1xf32> to vector<32x1xf32>
    %cst_153 = arith.constant dense<0.000000e+00> : vector<64x1xf32>
    %257 = tpu.matmul %254, %256, %cst_153 {dimension_numbers = #tpu.dot_dimension_numbers<[1], [0], [0], [1], [0, 0, 1, 1], [], []>} : vector<64x32xf32>, vector<32x1xf32>, vector<64x1xf32> -> vector<64x1xf32>
    %258 = arith.addf %248, %257 : vector<64x1xf32>
    %259 = vector.extract_strided_slice %190 {offsets = [6, 0, 0], sizes = [1, 32, 1], strides = [1, 1, 1]} : vector<9x32x1xf32> to vector<1x32x1xf32>
    %260 = vector.shape_cast %259 : vector<1x32x1xf32> to vector<32x1xf32>
    %cst_154 = arith.constant dense<0.000000e+00> : vector<64x1xf32>
    %261 = tpu.matmul %254, %260, %cst_154 {dimension_numbers = #tpu.dot_dimension_numbers<[1], [0], [0], [1], [0, 0, 1, 1], [], []>} : vector<64x32xf32>, vector<32x1xf32>, vector<64x1xf32> -> vector<64x1xf32>
    %262 = arith.addf %252, %261 : vector<64x1xf32>
    %c2_155 = arith.constant 2 : index
    %c8_156 = arith.constant 8 : index
    %c0_157 = arith.constant 0 : index
    %263 = vector.load %arg25[%c2_155, %c8_156, %c0_157] : memref<10x17x32xf32, #tpu.memory_space<vmem>>, vector<8x8x32xf32>
    %264 = vector.shape_cast %263 : vector<8x8x32xf32> to vector<64x32xf32>
    %265 = vector.extract_strided_slice %189 {offsets = [7, 0, 0], sizes = [1, 32, 1], strides = [1, 1, 1]} : vector<9x32x1xf32> to vector<1x32x1xf32>
    %266 = vector.shape_cast %265 : vector<1x32x1xf32> to vector<32x1xf32>
    %cst_158 = arith.constant dense<0.000000e+00> : vector<64x1xf32>
    %267 = tpu.matmul %264, %266, %cst_158 {dimension_numbers = #tpu.dot_dimension_numbers<[1], [0], [0], [1], [0, 0, 1, 1], [], []>} : vector<64x32xf32>, vector<32x1xf32>, vector<64x1xf32> -> vector<64x1xf32>
    %268 = arith.addf %258, %267 : vector<64x1xf32>
    %269 = vector.extract_strided_slice %190 {offsets = [7, 0, 0], sizes = [1, 32, 1], strides = [1, 1, 1]} : vector<9x32x1xf32> to vector<1x32x1xf32>
    %270 = vector.shape_cast %269 : vector<1x32x1xf32> to vector<32x1xf32>
    %cst_159 = arith.constant dense<0.000000e+00> : vector<64x1xf32>
    %271 = tpu.matmul %264, %270, %cst_159 {dimension_numbers = #tpu.dot_dimension_numbers<[1], [0], [0], [1], [0, 0, 1, 1], [], []>} : vector<64x32xf32>, vector<32x1xf32>, vector<64x1xf32> -> vector<64x1xf32>
    %272 = arith.addf %262, %271 : vector<64x1xf32>
    %c2_160 = arith.constant 2 : index
    %c9_161 = arith.constant 9 : index
    %c0_162 = arith.constant 0 : index
    %273 = vector.load %arg25[%c2_160, %c9_161, %c0_162] : memref<10x17x32xf32, #tpu.memory_space<vmem>>, vector<8x8x32xf32>
    %274 = vector.shape_cast %273 : vector<8x8x32xf32> to vector<64x32xf32>
    %275 = vector.extract_strided_slice %189 {offsets = [8, 0, 0], sizes = [1, 32, 1], strides = [1, 1, 1]} : vector<9x32x1xf32> to vector<1x32x1xf32>
    %276 = vector.shape_cast %275 : vector<1x32x1xf32> to vector<32x1xf32>
    %cst_163 = arith.constant dense<0.000000e+00> : vector<64x1xf32>
    %277 = tpu.matmul %274, %276, %cst_163 {dimension_numbers = #tpu.dot_dimension_numbers<[1], [0], [0], [1], [0, 0, 1, 1], [], []>} : vector<64x32xf32>, vector<32x1xf32>, vector<64x1xf32> -> vector<64x1xf32>
    %278 = arith.addf %268, %277 : vector<64x1xf32>
    %279 = vector.extract_strided_slice %190 {offsets = [8, 0, 0], sizes = [1, 32, 1], strides = [1, 1, 1]} : vector<9x32x1xf32> to vector<1x32x1xf32>
    %280 = vector.shape_cast %279 : vector<1x32x1xf32> to vector<32x1xf32>
    %cst_164 = arith.constant dense<0.000000e+00> : vector<64x1xf32>
    %281 = tpu.matmul %274, %280, %cst_164 {dimension_numbers = #tpu.dot_dimension_numbers<[1], [0], [0], [1], [0, 0, 1, 1], [], []>} : vector<64x32xf32>, vector<32x1xf32>, vector<64x1xf32> -> vector<64x1xf32>
    %282 = arith.addf %272, %281 : vector<64x1xf32>
    %c0_165 = arith.constant 0 : index
    %c0_166 = arith.constant 0 : index
    %283 = vector.load %arg20[%c0_165, %c0_166] : memref<1x1xf32, #tpu.memory_space<vmem>>, vector<1x1xf32>
    %284 = vector.broadcast %283 : vector<1x1xf32> to vector<64x1xf32>
    %285 = arith.addf %278, %284 : vector<64x1xf32>
    %c0_167 = arith.constant 0 : index
    %c0_168 = arith.constant 0 : index
    %286 = vector.load %arg22[%c0_167, %c0_168] : memref<1x1xf32, #tpu.memory_space<vmem>>, vector<1x1xf32>
    %287 = vector.broadcast %286 : vector<1x1xf32> to vector<64x1xf32>
    %288 = arith.addf %282, %287 : vector<64x1xf32>
    %c0_169 = arith.constant 0 : index
    %c0_170 = arith.constant 0 : index
    %289 = vector.load %arg5[%c0_169, %c0_170] : memref<256x64xf32, #tpu.memory_space<vmem>>, vector<256x64xf32>
    %cst_171 = arith.constant dense<0.000000e+00> : vector<256x1xf32>
    %290 = tpu.matmul %289, %285, %cst_171 {dimension_numbers = #tpu.dot_dimension_numbers<[1], [0], [0], [1], [0, 0, 1, 1], [], []>} : vector<256x64xf32>, vector<64x1xf32>, vector<256x1xf32> -> vector<256x1xf32>
    %cst_172 = arith.constant dense<0.000000e+00> : vector<256x1xf32>
    %291 = tpu.matmul %289, %288, %cst_172 {dimension_numbers = #tpu.dot_dimension_numbers<[1], [0], [0], [1], [0, 0, 1, 1], [], []>} : vector<256x64xf32>, vector<64x1xf32>, vector<256x1xf32> -> vector<256x1xf32>
    %292 = arith.negf %291 : vector<256x1xf32>
    %293 = math.exp %292 : vector<256x1xf32>
    %cst_173 = arith.constant 1.000000e+00 : f32
    %294 = vector.broadcast %cst_173 : f32 to vector<256x1xf32>
    %295 = arith.addf %294, %293 : vector<256x1xf32>
    %296 = arith.divf %294, %295 : vector<256x1xf32>
    %297 = arith.mulf %290, %296 : vector<256x1xf32>
    %c0_174 = arith.constant 0 : index
    %c0_175 = arith.constant 0 : index
    %c0_176 = arith.constant 0 : index
    %298 = vector.load %arg3[%c0_174, %c0_175, %c0_176] : memref<1x256x1xf32, #tpu.memory_space<vmem>>, vector<1x256x1xf32>
    %299 = vector.shape_cast %298 : vector<1x256x1xf32> to vector<256x1xf32>
    %cst_177 = arith.constant 1.000000e+00 : f32
    %300 = vector.broadcast %cst_177 : f32 to vector<256x1xf32>
    %301 = arith.subf %300, %296 : vector<256x1xf32>
    %302 = arith.mulf %299, %301 : vector<256x1xf32>
    %303 = arith.addf %297, %302 : vector<256x1xf32>
    %c0_178 = arith.constant 0 : index
    %c0_179 = arith.constant 0 : index
    %c0_180 = arith.constant 0 : index
    %304 = vector.load %arg23[%c0_178, %c0_179, %c0_180] : memref<1x256x1xf32, #tpu.memory_space<vmem>>, vector<1x256x1xf32>
    %305 = vector.shape_cast %304 : vector<1x256x1xf32> to vector<256x1xf32>
    %306 = vector.shape_cast %303 : vector<256x1xf32> to vector<1x256x1xf32>
    tpu.vector_store %arg23[%c0_178, %c0_179, %c0_180], %306 {strides = array<i32>} : memref<1x256x1xf32, #tpu.memory_space<vmem>>, vector<1x256x1xf32>,
    %c0_181 = arith.constant 0 : index
    %c0_182 = arith.constant 0 : index
    %c0_183 = arith.constant 0 : index
    %307 = vector.load %arg24[%c0_181, %c0_182, %c0_183] : memref<1x256x1xf32, #tpu.memory_space<vmem>>, vector<1x256x1xf32>
    %308 = vector.shape_cast %307 : vector<1x256x1xf32> to vector<256x1xf32>
    %309 = vector.shape_cast %291 : vector<256x1xf32> to vector<1x256x1xf32>
    tpu.vector_store %arg24[%c0_181, %c0_182, %c0_183], %309 {strides = array<i32>} : memref<1x256x1xf32, #tpu.memory_space<vmem>>, vector<1x256x1xf32>,
    return
  }
  func.func @transform_0(%arg0: i32) -> (i32, i32, i32) {
    %c0_i32 = arith.constant 0 : i32
    %c0_i32_0 = arith.constant 0 : i32
    %c0_i32_1 = arith.constant 0 : i32
    return %arg0, %c0_i32, %c0_i32_0 : i32, i32, i32
  }
  func.func @transform_1(%arg0: i32) -> (i32, i32, i32, i32) {
    %c0_i32 = arith.constant 0 : i32
    %c0_i32_0 = arith.constant 0 : i32
    %c0_i32_1 = arith.constant 0 : i32
    %c0_i32_2 = arith.constant 0 : i32
    return %arg0, %c0_i32, %c0_i32_0, %c0_i32_1 : i32, i32, i32, i32
  }
  func.func @transform_2(%arg0: i32) -> (i32, i32, i32) {
    %c0_i32 = arith.constant 0 : i32
    %c0_i32_0 = arith.constant 0 : i32
    %c0_i32_1 = arith.constant 0 : i32
    return %arg0, %c0_i32, %c0_i32_0 : i32, i32, i32
  }
  func.func @transform_3(%arg0: i32) -> (i32, i32) {
    %c0_i32 = arith.constant 0 : i32
    %c0_i32_0 = arith.constant 0 : i32
    %c0_i32_1 = arith.constant 0 : i32
    return %c0_i32, %c0_i32_0 : i32, i32
  }
  func.func @transform_4(%arg0: i32) -> (i32, i32) {
    %c0_i32 = arith.constant 0 : i32
    %c0_i32_0 = arith.constant 0 : i32
    %c0_i32_1 = arith.constant 0 : i32
    return %c0_i32, %c0_i32_0 : i32, i32
  }
  func.func @transform_5(%arg0: i32) -> (i32, i32) {
    %c0_i32 = arith.constant 0 : i32
    %c0_i32_0 = arith.constant 0 : i32
    %c0_i32_1 = arith.constant 0 : i32
    return %c0_i32, %c0_i32_0 : i32, i32
  }
  func.func @transform_6(%arg0: i32) -> (i32, i32) {
    %c0_i32 = arith.constant 0 : i32
    %c0_i32_0 = arith.constant 0 : i32
    %c0_i32_1 = arith.constant 0 : i32
    return %c0_i32, %c0_i32_0 : i32, i32
  }
  func.func @transform_7(%arg0: i32) -> (i32, i32) {
    %c0_i32 = arith.constant 0 : i32
    %c0_i32_0 = arith.constant 0 : i32
    %c0_i32_1 = arith.constant 0 : i32
    return %c0_i32, %c0_i32_0 : i32, i32
  }
  func.func @transform_8(%arg0: i32) -> (i32, i32) {
    %c0_i32 = arith.constant 0 : i32
    %c0_i32_0 = arith.constant 0 : i32
    %c0_i32_1 = arith.constant 0 : i32
    return %c0_i32, %c0_i32_0 : i32, i32
  }
  func.func @transform_9(%arg0: i32) -> (i32, i32) {
    %c0_i32 = arith.constant 0 : i32
    %c0_i32_0 = arith.constant 0 : i32
    %c0_i32_1 = arith.constant 0 : i32
    return %c0_i32, %c0_i32_0 : i32, i32
  }
  func.func @transform_10(%arg0: i32) -> (i32, i32) {
    %c0_i32 = arith.constant 0 : i32
    %c0_i32_0 = arith.constant 0 : i32
    %c0_i32_1 = arith.constant 0 : i32
    return %c0_i32, %c0_i32_0 : i32, i32
  }
  func.func @transform_11(%arg0: i32) -> (i32, i32) {
    %c0_i32 = arith.constant 0 : i32
    %c0_i32_0 = arith.constant 0 : i32
    %c0_i32_1 = arith.constant 0 : i32
    return %c0_i32, %c0_i32_0 : i32, i32
  }
  func.func @transform_12(%arg0: i32) -> (i32, i32) {
    %c0_i32 = arith.constant 0 : i32
    %c0_i32_0 = arith.constant 0 : i32
    %c0_i32_1 = arith.constant 0 : i32
    return %c0_i32, %c0_i32_0 : i32, i32
  }
  func.func @transform_13(%arg0: i32) -> (i32, i32) {
    %c0_i32 = arith.constant 0 : i32
    %c0_i32_0 = arith.constant 0 : i32
    %c0_i32_1 = arith.constant 0 : i32
    return %c0_i32, %c0_i32_0 : i32, i32
  }
  func.func @transform_14(%arg0: i32) -> (i32, i32) {
    %c0_i32 = arith.constant 0 : i32
    %c0_i32_0 = arith.constant 0 : i32
    %c0_i32_1 = arith.constant 0 : i32
    return %c0_i32, %c0_i32_0 : i32, i32
  }
  func.func @transform_15(%arg0: i32) -> (i32, i32) {
    %c0_i32 = arith.constant 0 : i32
    %c0_i32_0 = arith.constant 0 : i32
    %c0_i32_1 = arith.constant 0 : i32
    return %c0_i32, %c0_i32_0 : i32, i32
  }
  func.func @transform_16(%arg0: i32) -> (i32, i32) {
    %c0_i32 = arith.constant 0 : i32
    %c0_i32_0 = arith.constant 0 : i32
    %c0_i32_1 = arith.constant 0 : i32
    return %c0_i32, %c0_i32_0 : i32, i32
  }
  func.func @transform_17(%arg0: i32) -> (i32, i32) {
    %c0_i32 = arith.constant 0 : i32
    %c0_i32_0 = arith.constant 0 : i32
    %c0_i32_1 = arith.constant 0 : i32
    return %c0_i32, %c0_i32_0 : i32, i32
  }
  func.func @transform_18(%arg0: i32) -> (i32, i32, i32) {
    %c0_i32 = arith.constant 0 : i32
    %c0_i32_0 = arith.constant 0 : i32
    %c0_i32_1 = arith.constant 0 : i32
    %c0_i32_2 = arith.constant 0 : i32
    return %c0_i32, %c0_i32_0, %c0_i32_1 : i32, i32, i32
  }
  func.func @transform_19(%arg0: i32) -> (i32, i32) {
    %c0_i32 = arith.constant 0 : i32
    %c0_i32_0 = arith.constant 0 : i32
    %c0_i32_1 = arith.constant 0 : i32
    return %c0_i32, %c0_i32_0 : i32, i32
  }
  func.func @transform_20(%arg0: i32) -> (i32, i32, i32) {
    %c0_i32 = arith.constant 0 : i32
    %c0_i32_0 = arith.constant 0 : i32
    %c0_i32_1 = arith.constant 0 : i32
    %c0_i32_2 = arith.constant 0 : i32
    return %c0_i32, %c0_i32_0, %c0_i32_1 : i32, i32, i32
  }
  func.func @transform_21(%arg0: i32) -> (i32, i32) {
    %c0_i32 = arith.constant 0 : i32
    %c0_i32_0 = arith.constant 0 : i32
    %c0_i32_1 = arith.constant 0 : i32
    return %c0_i32, %c0_i32_0 : i32, i32
  }
  func.func @transform_22(%arg0: i32) -> (i32, i32, i32) {
    %c0_i32 = arith.constant 0 : i32
    %c0_i32_0 = arith.constant 0 : i32
    %c0_i32_1 = arith.constant 0 : i32
    return %arg0, %c0_i32, %c0_i32_0 : i32, i32, i32
  }
  func.func @transform_23(%arg0: i32) -> (i32, i32, i32) {
    %c0_i32 = arith.constant 0 : i32
    %c0_i32_0 = arith.constant 0 : i32
    %c0_i32_1 = arith.constant 0 : i32
    return %arg0, %c0_i32, %c0_i32_0 : i32, i32, i32
  }
}

</mosaic_0001>

<llo_original>
// kernel: refine_layer_forward.2
$region0: #{refine_layer_forward.2}
  #allocation0 [shape = 'u32[]', space=smem, size = 0x4, offset = 0x4, fixed_abs, tag = 'smem constant byte address 0x4 - core index']
  #allocation1 [shape = 'u32[144,128]{1,0:T(1,128)}', space=vmem, size = 0x12000, scoped, tag = 'internal scratch']
  #allocation2 [shape = 'f32[10,17,32]{2,1,0:T(8,128)}', space=vmem, size = 0x1e000, scoped, tag = 'scratch operand']
  %s0 = inlined_call_operand.vmem [shape: f32[2,9,9,6], index: 0, kind: input, shape index: {}]
  %s1 = inlined_call_operand.vmem [shape: f32[2,9,9,6], index: 1, kind: input, shape index: {}]
  %s2 = inlined_call_operand.vmem [shape: f32[2,9,9,6], index: 2, kind: input, shape index: {}]
  %s3 = inlined_call_operand.vmem [shape: f32[2,9,9,6], index: 3, kind: input, shape index: {}]
  %s4 = inlined_call_operand.vmem [shape: f32[9,6,32], index: 4, kind: input, shape index: {}]
  %s5 = inlined_call_operand.vmem [shape: f32[1,32], index: 5, kind: input, shape index: {}]
  %s6 = inlined_call_operand.vmem [shape: f32[1,32], index: 6, kind: input, shape index: {}]
  %s7 = inlined_call_operand.vmem [shape: f32[9,32], index: 7, kind: input, shape index: {}]
  %s8 = inlined_call_operand.vmem [shape: f32[1,32], index: 8, kind: input, shape index: {}]
  %s9 = inlined_call_operand.vmem [shape: f32[32,32], index: 9, kind: input, shape index: {}]
  %s10 = inlined_call_operand.vmem [shape: f32[1,32], index: 10, kind: input, shape index: {}]
  %s11 = inlined_call_operand.vmem [shape: f32[1,32], index: 11, kind: input, shape index: {}]
  %s12 = inlined_call_operand.vmem [shape: f32[9,32], index: 12, kind: input, shape index: {}]
  %s13 = inlined_call_operand.vmem [shape: f32[1,32], index: 13, kind: input, shape index: {}]
  %s14 = inlined_call_operand.vmem [shape: f32[32,32], index: 14, kind: input, shape index: {}]
  %s15 = inlined_call_operand.vmem [shape: f32[1,32], index: 15, kind: input, shape index: {}]
  %s16 = inlined_call_operand.vmem [shape: f32[1,32], index: 16, kind: input, shape index: {}]
  %s17 = inlined_call_operand.vmem [shape: f32[2,8,8,32], index: 17, kind: output, shape index: {}]
  %s18 = sld [smem:[#allocation0]]
  $region101: #{refine_layer_forward.2} parent=0
    _
  %s20 = ssub.s32 1, %s18
  %s21 = scalar_select 0, %s20, %s18
  loop: start=0, step=1, limit=4
  $region2: #{refine_layer_forward.2} parent=0 // loop_pre_header
    _
  $region3: #{refine_layer_forward.2} parent=0 // loop_header
    %s23 = sphi 0, %s27
    %p24 = scmp.ge.s32.totalorder %s23, 4
    %s33 = sphi 0, %s35
    %s36 = sphi 0, %s33
    %s37 = sphi 0, %s36
    %s53 = sphi 0, %s37
    %s59 = sphi 0, %s61
    %s62 = sphi 0, %s59
    %s63 = sphi 0, %s62
    %s79 = sphi 0, %s63
    %s85 = sphi 0, %s87
    %s88 = sphi 0, %s85
    %s89 = sphi 0, %s88
    %s105 = sphi 0, %s89
    %s111 = sphi 0, %s113
    %s114 = sphi 0, %s111
    %s115 = sphi 0, %s114
    %s131 = sphi 0, %s115
    %s135 = sphi 0, %s135
    %s137 = sphi 0, %s135
    %s138 = sphi 0, %s137
    %s152 = sphi 0, %s138
    %s156 = sphi 0, %s156
    %s158 = sphi 0, %s156
    %s159 = sphi 0, %s158
    %s173 = sphi 0, %s159
    %s177 = sphi 0, %s177
    %s179 = sphi 0, %s177
    %s180 = sphi 0, %s179
    %s194 = sphi 0, %s180
    %s198 = sphi 0, %s198
    %s200 = sphi 0, %s198
    %s201 = sphi 0, %s200
    %s215 = sphi 0, %s201
    %s219 = sphi 0, %s219
    %s221 = sphi 0, %s219
    %s222 = sphi 0, %s221
    %s236 = sphi 0, %s222
    %s240 = sphi 0, %s240
    %s242 = sphi 0, %s240
    %s243 = sphi 0, %s242
    %s257 = sphi 0, %s243
    %s261 = sphi 0, %s261
    %s263 = sphi 0, %s261
    %s264 = sphi 0, %s263
    %s278 = sphi 0, %s264
    %s282 = sphi 0, %s282
    %s284 = sphi 0, %s282
    %s285 = sphi 0, %s284
    %s299 = sphi 0, %s285
    %s303 = sphi 0, %s303
    %s305 = sphi 0, %s303
    %s306 = sphi 0, %s305
    %s320 = sphi 0, %s306
    %s324 = sphi 0, %s324
    %s326 = sphi 0, %s324
    %s327 = sphi 0, %s326
    %s341 = sphi 0, %s327
    %s345 = sphi 0, %s345
    %s347 = sphi 0, %s345
    %s348 = sphi 0, %s347
    %s362 = sphi 0, %s348
    %s366 = sphi 0, %s366
    %s368 = sphi 0, %s366
    %s369 = sphi 0, %s368
    %s383 = sphi 0, %s369
    %s387 = sphi 0, %s387
    %s389 = sphi 0, %s387
    %s390 = sphi 0, %s389
    %s404 = sphi 0, %s390
    %s410 = sphi 0, %s412
    %s413 = sphi 0, %s410
    %s414 = sphi 0, %s413
    %s430 = sphi 0, %s414
  $region4: #{refine_layer_forward.2} parent=0 // loop_header_branch
    %26 = sbr.rel (%p24) target = $region8
  $region5: #{refine_layer_forward.2} parent=0 // loop_body
    %s28 = ssub.s32 %s23, 1
    %s29 = ssub.s32 %s23, 2
    %s30 = sadd.s32 %s23, 1
    %s31 = ssub.s32 %s23, %s30
    %p32 = scmp.eq.s32.totalorder %s31, 0
    %s34 = sadd.s32 %s33, 1
    %s35 = scalar_select %p32, %s33, %s34
    %p38 = pneg %p32
    %p39 = scmp.eq.s32.totalorder %s23, 1
    %p40 = por %p38, %p39
    %p41 = scmp.ne.s32.totalorder %s33, %s36
    %p42 = scmp.eq.s32.totalorder %s23, 0
    %p43 = por %p41, %p42
    %p44 = scmp.ne.s32.totalorder %s33, %s36
    %p45 = scmp.eq.s32.totalorder %s28, 1
    %p46 = por %p44, %p45
    %p47 = scmp.ne.s32.totalorder %s36, %s37
    %p48 = scmp.eq.s32.totalorder %s28, 0
    %p49 = por %p47, %p48
    %p50 = scmp.ne.s32.totalorder %s36, %s37
    %p51 = scmp.eq.s32.totalorder %s29, 1
    %p52 = por %p50, %p51
    %p54 = scmp.ne.s32.totalorder %s37, %s53
    %p55 = scmp.eq.s32.totalorder %s29, 0
    %p56 = por %p54, %p55
    %s57 = ssub.s32 %s23, %s30
    %p58 = scmp.eq.s32.totalorder %s57, 0
    %s60 = sadd.s32 %s59, 1
    %s61 = scalar_select %p58, %s59, %s60
    %p64 = pneg %p58
    %p65 = scmp.eq.s32.totalorder %s23, 1
    %p66 = por %p64, %p65
    %p67 = scmp.ne.s32.totalorder %s59, %s62
    %p68 = scmp.eq.s32.totalorder %s23, 0
    %p69 = por %p67, %p68
    %p70 = scmp.ne.s32.totalorder %s59, %s62
    %p71 = scmp.eq.s32.totalorder %s28, 1
    %p72 = por %p70, %p71
    %p73 = scmp.ne.s32.totalorder %s62, %s63
    %p74 = scmp.eq.s32.totalorder %s28, 0
    %p75 = por %p73, %p74
    %p76 = scmp.ne.s32.totalorder %s62, %s63
    %p77 = scmp.eq.s32.totalorder %s29, 1
    %p78 = por %p76, %p77
    %p80 = scmp.ne.s32.totalorder %s63, %s79
    %p81 = scmp.eq.s32.totalorder %s29, 0
    %p82 = por %p80, %p81
    %s83 = ssub.s32 %s23, %s30
    %p84 = scmp.eq.s32.totalorder %s83, 0
    %s86 = sadd.s32 %s85, 1
    %s87 = scalar_select %p84, %s85, %s86
    %p90 = pneg %p84
    %p91 = scmp.eq.s32.totalorder %s23, 1
    %p92 = por %p90, %p91
    %p93 = scmp.ne.s32.totalorder %s85, %s88
    %p94 = scmp.eq.s32.totalorder %s23, 0
    %p95 = por %p93, %p94
    %p96 = scmp.ne.s32.totalorder %s85, %s88
    %p97 = scmp.eq.s32.totalorder %s28, 1
    %p98 = por %p96, %p97
    %p99 = scmp.ne.s32.totalorder %s88, %s89
    %p100 = scmp.eq.s32.totalorder %s28, 0
    %p101 = por %p99, %p100
    %p102 = scmp.ne.s32.totalorder %s88, %s89
    %p103 = scmp.eq.s32.totalorder %s29, 1
    %p104 = por %p102, %p103
    %p106 = scmp.ne.s32.totalorder %s89, %s105
    %p107 = scmp.eq.s32.totalorder %s29, 0
    %p108 = por %p106, %p107
    %s109 = ssub.s32 %s23, %s30
    %p110 = scmp.eq.s32.totalorder %s109, 0
    %s112 = sadd.s32 %s111, 1
    %s113 = scalar_select %p110, %s111, %s112
    %p116 = pneg %p110
    %p117 = scmp.eq.s32.totalorder %s23, 1
    %p118 = por %p116, %p117
    %p119 = scmp.ne.s32.totalorder %s111, %s114
    %p120 = scmp.eq.s32.totalorder %s23, 0
    %p121 = por %p119, %p120
    %p122 = scmp.ne.s32.totalorder %s111, %s114
    %p123 = scmp.eq.s32.totalorder %s28, 1
    %p124 = por %p122, %p123
    %p125 = scmp.ne.s32.totalorder %s114, %s115
    %p126 = scmp.eq.s32.totalorder %s28, 0
    %p127 = por %p125, %p126
    %p128 = scmp.ne.s32.totalorder %s114, %s115
    %p129 = scmp.eq.s32.totalorder %s29, 1
    %p130 = por %p128, %p129
    %p132 = scmp.ne.s32.totalorder %s115, %s131
    %p133 = scmp.eq.s32.totalorder %s29, 0
    %p134 = por %p132, %p133
    %s136 = sadd.s32 %s135, 1
    %p139 = scmp.eq.s32.totalorder %s23, 1
    %p140 = scmp.ne.s32.totalorder %s135, %s137
    %p141 = scmp.eq.s32.totalorder %s23, 0
    %p142 = por %p140, %p141
    %p143 = scmp.ne.s32.totalorder %s135, %s137
    %p144 = scmp.eq.s32.totalorder %s28, 1
    %p145 = por %p143, %p144
    %p146 = scmp.ne.s32.totalorder %s137, %s138
    %p147 = scmp.eq.s32.totalorder %s28, 0
    %p148 = por %p146, %p147
    %p149 = scmp.ne.s32.totalorder %s137, %s138
    %p150 = scmp.eq.s32.totalorder %s29, 1
    %p151 = por %p149, %p150
    %p153 = scmp.ne.s32.totalorder %s138, %s152
    %p154 = scmp.eq.s32.totalorder %s29, 0
    %p155 = por %p153, %p154
    %s157 = sadd.s32 %s156, 1
    %p160 = scmp.eq.s32.totalorder %s23, 1
    %p161 = scmp.ne.s32.totalorder %s156, %s158
    %p162 = scmp.eq.s32.totalorder %s23, 0
    %p163 = por %p161, %p162
    %p164 = scmp.ne.s32.totalorder %s156, %s158
    %p165 = scmp.eq.s32.totalorder %s28, 1
    %p166 = por %p164, %p165
    %p167 = scmp.ne.s32.totalorder %s158, %s159
    %p168 = scmp.eq.s32.totalorder %s28, 0
    %p169 = por %p167, %p168
    %p170 = scmp.ne.s32.totalorder %s158, %s159
    %p171 = scmp.eq.s32.totalorder %s29, 1
    %p172 = por %p170, %p171
    %p174 = scmp.ne.s32.totalorder %s159, %s173
    %p175 = scmp.eq.s32.totalorder %s29, 0
    %p176 = por %p174, %p175
    %s178 = sadd.s32 %s177, 1
    %p181 = scmp.eq.s32.totalorder %s23, 1
    %p182 = scmp.ne.s32.totalorder %s177, %s179
    %p183 = scmp.eq.s32.totalorder %s23, 0
    %p184 = por %p182, %p183
    %p185 = scmp.ne.s32.totalorder %s177, %s179
    %p186 = scmp.eq.s32.totalorder %s28, 1
    %p187 = por %p185, %p186
    %p188 = scmp.ne.s32.totalorder %s179, %s180
    %p189 = scmp.eq.s32.totalorder %s28, 0
    %p190 = por %p188, %p189
    %p191 = scmp.ne.s32.totalorder %s179, %s180
    %p192 = scmp.eq.s32.totalorder %s29, 1
    %p193 = por %p191, %p192
    %p195 = scmp.ne.s32.totalorder %s180, %s194
    %p196 = scmp.eq.s32.totalorder %s29, 0
    %p197 = por %p195, %p196
    %s199 = sadd.s32 %s198, 1
    %p202 = scmp.eq.s32.totalorder %s23, 1
    %p203 = scmp.ne.s32.totalorder %s198, %s200
    %p204 = scmp.eq.s32.totalorder %s23, 0
    %p205 = por %p203, %p204
    %p206 = scmp.ne.s32.totalorder %s198, %s200
    %p207 = scmp.eq.s32.totalorder %s28, 1
    %p208 = por %p206, %p207
    %p209 = scmp.ne.s32.totalorder %s200, %s201
    %p210 = scmp.eq.s32.totalorder %s28, 0
    %p211 = por %p209, %p210
    %p212 = scmp.ne.s32.totalorder %s200, %s201
    %p213 = scmp.eq.s32.totalorder %s29, 1
    %p214 = por %p212, %p213
    %p216 = scmp.ne.s32.totalorder %s201, %s215
    %p217 = scmp.eq.s32.totalorder %s29, 0
    %p218 = por %p216, %p217
    %s220 = sadd.s32 %s219, 1
    %p223 = scmp.eq.s32.totalorder %s23, 1
    %p224 = scmp.ne.s32.totalorder %s219, %s221
    %p225 = scmp.eq.s32.totalorder %s23, 0
    %p226 = por %p224, %p225
    %p227 = scmp.ne.s32.totalorder %s219, %s221
    %p228 = scmp.eq.s32.totalorder %s28, 1
    %p229 = por %p227, %p228
    %p230 = scmp.ne.s32.totalorder %s221, %s222
    %p231 = scmp.eq.s32.totalorder %s28, 0
    %p232 = por %p230, %p231
    %p233 = scmp.ne.s32.totalorder %s221, %s222
    %p234 = scmp.eq.s32.totalorder %s29, 1
    %p235 = por %p233, %p234
    %p237 = scmp.ne.s32.totalorder %s222, %s236
    %p238 = scmp.eq.s32.totalorder %s29, 0
    %p239 = por %p237, %p238
    %s241 = sadd.s32 %s240, 1
    %p244 = scmp.eq.s32.totalorder %s23, 1
    %p245 = scmp.ne.s32.totalorder %s240, %s242
    %p246 = scmp.eq.s32.totalorder %s23, 0
    %p247 = por %p245, %p246
    %p248 = scmp.ne.s32.totalorder %s240, %s242
    %p249 = scmp.eq.s32.totalorder %s28, 1
    %p250 = por %p248, %p249
    %p251 = scmp.ne.s32.totalorder %s242, %s243
    %p252 = scmp.eq.s32.totalorder %s28, 0
    %p253 = por %p251, %p252
    %p254 = scmp.ne.s32.totalorder %s242, %s243
    %p255 = scmp.eq.s32.totalorder %s29, 1
    %p256 = por %p254, %p255
    %p258 = scmp.ne.s32.totalorder %s243, %s257
    %p259 = scmp.eq.s32.totalorder %s29, 0
    %p260 = por %p258, %p259
    %s262 = sadd.s32 %s261, 1
    %p265 = scmp.eq.s32.totalorder %s23, 1
    %p266 = scmp.ne.s32.totalorder %s261, %s263
    %p267 = scmp.eq.s32.totalorder %s23, 0
    %p268 = por %p266, %p267
    %p269 = scmp.ne.s32.totalorder %s261, %s263
    %p270 = scmp.eq.s32.totalorder %s28, 1
    %p271 = por %p269, %p270
    %p272 = scmp.ne.s32.totalorder %s263, %s264
    %p273 = scmp.eq.s32.totalorder %s28, 0
    %p274 = por %p272, %p273
    %p275 = scmp.ne.s32.totalorder %s263, %s264
    %p276 = scmp.eq.s32.totalorder %s29, 1
    %p277 = por %p275, %p276
    %p279 = scmp.ne.s32.totalorder %s264, %s278
    %p280 = scmp.eq.s32.totalorder %s29, 0
    %p281 = por %p279, %p280
    %s283 = sadd.s32 %s282, 1
    %p286 = scmp.eq.s32.totalorder %s23, 1
    %p287 = scmp.ne.s32.totalorder %s282, %s284
    %p288 = scmp.eq.s32.totalorder %s23, 0
    %p289 = por %p287, %p288
    %p290 = scmp.ne.s32.totalorder %s282, %s284
    %p291 = scmp.eq.s32.totalorder %s28, 1
    %p292 = por %p290, %p291
    %p293 = scmp.ne.s32.totalorder %s284, %s285
    %p294 = scmp.eq.s32.totalorder %s28, 0
    %p295 = por %p293, %p294
    %p296 = scmp.ne.s32.totalorder %s284, %s285
    %p297 = scmp.eq.s32.totalorder %s29, 1
    %p298 = por %p296, %p297
    %p300 = scmp.ne.s32.totalorder %s285, %s299
    %p301 = scmp.eq.s32.totalorder %s29, 0
    %p302 = por %p300, %p301
    %s304 = sadd.s32 %s303, 1
    %p307 = scmp.eq.s32.totalorder %s23, 1
    %p308 = scmp.ne.s32.totalorder %s303, %s305
    %p309 = scmp.eq.s32.totalorder %s23, 0
    %p310 = por %p308, %p309
    %p311 = scmp.ne.s32.totalorder %s303, %s305
    %p312 = scmp.eq.s32.totalorder %s28, 1
    %p313 = por %p311, %p312
    %p314 = scmp.ne.s32.totalorder %s305, %s306
    %p315 = scmp.eq.s32.totalorder %s28, 0
    %p316 = por %p314, %p315
    %p317 = scmp.ne.s32.totalorder %s305, %s306
    %p318 = scmp.eq.s32.totalorder %s29, 1
    %p319 = por %p317, %p318
    %p321 = scmp.ne.s32.totalorder %s306, %s320
    %p322 = scmp.eq.s32.totalorder %s29, 0
    %p323 = por %p321, %p322
    %s325 = sadd.s32 %s324, 1
    %p328 = scmp.eq.s32.totalorder %s23, 1
    %p329 = scmp.ne.s32.totalorder %s324, %s326
    %p330 = scmp.eq.s32.totalorder %s23, 0
    %p331 = por %p329, %p330
    %p332 = scmp.ne.s32.totalorder %s324, %s326
    %p333 = scmp.eq.s32.totalorder %s28, 1
    %p334 = por %p332, %p333
    %p335 = scmp.ne.s32.totalorder %s326, %s327
    %p336 = scmp.eq.s32.totalorder %s28, 0
    %p337 = por %p335, %p336
    %p338 = scmp.ne.s32.totalorder %s326, %s327
    %p339 = scmp.eq.s32.totalorder %s29, 1
    %p340 = por %p338, %p339
    %p342 = scmp.ne.s32.totalorder %s327, %s341
    %p343 = scmp.eq.s32.totalorder %s29, 0
    %p344 = por %p342, %p343
    %s346 = sadd.s32 %s345, 1
    %p349 = scmp.eq.s32.totalorder %s23, 1
    %p350 = scmp.ne.s32.totalorder %s345, %s347
    %p351 = scmp.eq.s32.totalorder %s23, 0
    %p352 = por %p350, %p351
    %p353 = scmp.ne.s32.totalorder %s345, %s347
    %p354 = scmp.eq.s32.totalorder %s28, 1
    %p355 = por %p353, %p354
    %p356 = scmp.ne.s32.totalorder %s347, %s348
    %p357 = scmp.eq.s32.totalorder %s28, 0
    %p358 = por %p356, %p357
    %p359 = scmp.ne.s32.totalorder %s347, %s348
    %p360 = scmp.eq.s32.totalorder %s29, 1
    %p361 = por %p359, %p360
    %p363 = scmp.ne.s32.totalorder %s348, %s362
    %p364 = scmp.eq.s32.totalorder %s29, 0
    %p365 = por %p363, %p364
    %s367 = sadd.s32 %s366, 1
    %p370 = scmp.eq.s32.totalorder %s23, 1
    %p371 = scmp.ne.s32.totalorder %s366, %s368
    %p372 = scmp.eq.s32.totalorder %s23, 0
    %p373 = por %p371, %p372
    %p374 = scmp.ne.s32.totalorder %s366, %s368
    %p375 = scmp.eq.s32.totalorder %s28, 1
    %p376 = por %p374, %p375
    %p377 = scmp.ne.s32.totalorder %s368, %s369
    %p378 = scmp.eq.s32.totalorder %s28, 0
    %p379 = por %p377, %p378
    %p380 = scmp.ne.s32.totalorder %s368, %s369
    %p381 = scmp.eq.s32.totalorder %s29, 1
    %p382 = por %p380, %p381
    %p384 = scmp.ne.s32.totalorder %s369, %s383
    %p385 = scmp.eq.s32.totalorder %s29, 0
    %p386 = por %p384, %p385
    %s388 = sadd.s32 %s387, 1
    %p391 = scmp.eq.s32.totalorder %s23, 1
    %p392 = scmp.ne.s32.totalorder %s387, %s389
    %p393 = scmp.eq.s32.totalorder %s23, 0
    %p394 = por %p392, %p393
    %p395 = scmp.ne.s32.totalorder %s387, %s389
    %p396 = scmp.eq.s32.totalorder %s28, 1
    %p397 = por %p395, %p396
    %p398 = scmp.ne.s32.totalorder %s389, %s390
    %p399 = scmp.eq.s32.totalorder %s28, 0
    %p400 = por %p398, %p399
    %p401 = scmp.ne.s32.totalorder %s389, %s390
    %p402 = scmp.eq.s32.totalorder %s29, 1
    %p403 = por %p401, %p402
    %p405 = scmp.ne.s32.totalorder %s390, %s404
    %p406 = scmp.eq.s32.totalorder %s29, 0
    %p407 = por %p405, %p406
    %s408 = ssub.s32 %s23, %s30
    %p409 = scmp.eq.s32.totalorder %s408, 0
    %s411 = sadd.s32 %s410, 1
    %s412 = scalar_select %p409, %s410, %s411
    %p415 = pneg %p409
    %p416 = scmp.eq.s32.totalorder %s23, 1
    %p417 = por %p415, %p416
    %p418 = scmp.ne.s32.totalorder %s410, %s413
    %p419 = scmp.eq.s32.totalorder %s23, 0
    %p420 = por %p418, %p419
    %p421 = scmp.ne.s32.totalorder %s410, %s413
    %p422 = scmp.eq.s32.totalorder %s28, 1
    %p423 = por %p421, %p422
    %p424 = scmp.ne.s32.totalorder %s413, %s414
    %p425 = scmp.eq.s32.totalorder %s28, 0
    %p426 = por %p424, %p425
    %p427 = scmp.ne.s32.totalorder %s413, %s414
    %p428 = scmp.eq.s32.totalorder %s29, 1
    %p429 = por %p427, %p428
    %p431 = scmp.ne.s32.totalorder %s414, %s430
    %p432 = scmp.eq.s32.totalorder %s29, 0
    %p433 = por %p431, %p432
    %p434 = scmp.le.s32.totalorder 1, %s23
    %p435 = scmp.lt.s32.totalorder %s23, 3
    %p436 = pnand %p434, %p435
    %p437 = pneg %p436
    // Predicated region
    $region9: #{refine_layer_forward.2} parent=5 // pred_check
      _
    $region10: #{refine_layer_forward.2} parent=5 // pred_check_branch
      %439 = sbr.rel (%p436) target = $region12
    $region11: #{refine_layer_forward.2} parent=5 // pred_region
      %s440 = ssub.s32 %s23, 1
      // Predicated region
      $region13: #{refine_layer_forward.2} parent=11 // pred_check
        %p441 = pneg %p148
      $region14: #{refine_layer_forward.2} parent=11 // pred_check_branch
        %443 = sbr.rel (%p441) target = $region16
      $region15: #{refine_layer_forward.2} parent=11 // pred_region
        _
      $region16: #{refine_layer_forward.2} parent=11 // pred_fallthru
        _
      // Predicated region
      $region17: #{refine_layer_forward.2} parent=11 // pred_check
        %p444 = pneg %p169
      $region18: #{refine_layer_forward.2} parent=11 // pred_check_branch
        %446 = sbr.rel (%p444) target = $region20
      $region19: #{refine_layer_forward.2} parent=11 // pred_region
        _
      $region20: #{refine_layer_forward.2} parent=11 // pred_fallthru
        _
      // Predicated region
      $region21: #{refine_layer_forward.2} parent=11 // pred_check
        %p447 = pneg %p190
      $region22: #{refine_layer_forward.2} parent=11 // pred_check_branch
        %449 = sbr.rel (%p447) target = $region24
      $region23: #{refine_layer_forward.2} parent=11 // pred_region
        _
      $region24: #{refine_layer_forward.2} parent=11 // pred_fallthru
        _
      // Predicated region
      $region25: #{refine_layer_forward.2} parent=11 // pred_check
        %p450 = pneg %p211
      $region26: #{refine_layer_forward.2} parent=11 // pred_check_branch
        %452 = sbr.rel (%p450) target = $region28
      $region27: #{refine_layer_forward.2} parent=11 // pred_region
        _
      $region28: #{refine_layer_forward.2} parent=11 // pred_fallthru
        _
      // Predicated region
      $region29: #{refine_layer_forward.2} parent=11 // pred_check
        %p453 = pneg %p232
      $region30: #{refine_layer_forward.2} parent=11 // pred_check_branch
        %455 = sbr.rel (%p453) target = $region32
      $region31: #{refine_layer_forward.2} parent=11 // pred_region
        _
      $region32: #{refine_layer_forward.2} parent=11 // pred_fallthru
        _
      // Predicated region
      $region33: #{refine_layer_forward.2} parent=11 // pred_check
        %p456 = pneg %p253
      $region34: #{refine_layer_forward.2} parent=11 // pred_check_branch
        %458 = sbr.rel (%p456) target = $region36
      $region35: #{refine_layer_forward.2} parent=11 // pred_region
        _
      $region36: #{refine_layer_forward.2} parent=11 // pred_fallthru
        _
      // Predicated region
      $region37: #{refine_layer_forward.2} parent=11 // pred_check
        %p459 = pneg %p274
      $region38: #{refine_layer_forward.2} parent=11 // pred_check_branch
        %461 = sbr.rel (%p459) target = $region40
      $region39: #{refine_layer_forward.2} parent=11 // pred_region
        _
      $region40: #{refine_layer_forward.2} parent=11 // pred_fallthru
        _
      // Predicated region
      $region41: #{refine_layer_forward.2} parent=11 // pred_check
        %p462 = pneg %p295
      $region42: #{refine_layer_forward.2} parent=11 // pred_check_branch
        %464 = sbr.rel (%p462) target = $region44
      $region43: #{refine_layer_forward.2} parent=11 // pred_region
        _
      $region44: #{refine_layer_forward.2} parent=11 // pred_fallthru
        _
      // Predicated region
      $region45: #{refine_layer_forward.2} parent=11 // pred_check
        %p465 = pneg %p316
      $region46: #{refine_layer_forward.2} parent=11 // pred_check_branch
        %467 = sbr.rel (%p465) target = $region48
      $region47: #{refine_layer_forward.2} parent=11 // pred_region
        _
      $region48: #{refine_layer_forward.2} parent=11 // pred_fallthru
        _
      // Predicated region
      $region49: #{refine_layer_forward.2} parent=11 // pred_check
        %p468 = pneg %p337
      $region50: #{refine_layer_forward.2} parent=11 // pred_check_branch
        %470 = sbr.rel (%p468) target = $region52
      $region51: #{refine_layer_forward.2} parent=11 // pred_region
        _
      $region52: #{refine_layer_forward.2} parent=11 // pred_fallthru
        _
      // Predicated region
      $region53: #{refine_layer_forward.2} parent=11 // pred_check
        %p471 = pneg %p358
      $region54: #{refine_layer_forward.2} parent=11 // pred_check_branch
        %473 = sbr.rel (%p471) target = $region56
      $region55: #{refine_layer_forward.2} parent=11 // pred_region
        _
      $region56: #{refine_layer_forward.2} parent=11 // pred_fallthru
        _
      // Predicated region
      $region57: #{refine_layer_forward.2} parent=11 // pred_check
        %p474 = pneg %p379
      $region58: #{refine_layer_forward.2} parent=11 // pred_check_branch
        %476 = sbr.rel (%p474) target = $region60
      $region59: #{refine_layer_forward.2} parent=11 // pred_region
        _
      $region60: #{refine_layer_forward.2} parent=11 // pred_fallthru
        _
      // Predicated region
      $region61: #{refine_layer_forward.2} parent=11 // pred_check
        %p477 = pneg %p400
      $region62: #{refine_layer_forward.2} parent=11 // pred_check_branch
        %479 = sbr.rel (%p477) target = $region64
      $region63: #{refine_layer_forward.2} parent=11 // pred_region
        _
      $region64: #{refine_layer_forward.2} parent=11 // pred_fallthru
        _
    $region12: #{refine_layer_forward.2} parent=5 // pred_fallthru
      _
    %p480 = scmp.lt.s32.totalorder %s23, 2
    // Predicated region
    $region65: #{refine_layer_forward.2} parent=5 // pred_check
      %p481 = pneg %p480
    $region66: #{refine_layer_forward.2} parent=5 // pred_check_branch
      %483 = sbr.rel (%p481) target = $region68
    $region67: #{refine_layer_forward.2} parent=5 // pred_region
      // Predicated region
      $region69: #{refine_layer_forward.2} parent=67 // pred_check
        %p484 = pneg %p43
      $region70: #{refine_layer_forward.2} parent=67 // pred_check_branch
        %486 = sbr.rel (%p484) target = $region72
      $region71: #{refine_layer_forward.2} parent=67 // pred_region
        %p487 = scmp.lt.s32.totalorder %s23, 1
        %s488 = scalar_select %p487, %s23, 1
        %s489 = smul.addr %s488, 18
        %s490 = smul.addr %s489, 8
        %s491 = scalar_lea.vmem %s0, %s490
      $region72: #{refine_layer_forward.2} parent=67 // pred_fallthru
        _
      // Predicated region
      $region73: #{refine_layer_forward.2} parent=67 // pred_check
        %p492 = pneg %p69
      $region74: #{refine_layer_forward.2} parent=67 // pred_check_branch
        %494 = sbr.rel (%p492) target = $region76
      $region75: #{refine_layer_forward.2} parent=67 // pred_region
        %p495 = scmp.lt.s32.totalorder %s23, 1
        %s496 = scalar_select %p495, %s23, 1
        %s497 = smul.addr %s496, 18
        %s498 = smul.addr %s497, 8
        %s499 = scalar_lea.vmem %s1, %s498
      $region76: #{refine_layer_forward.2} parent=67 // pred_fallthru
        _
      // Predicated region
      $region77: #{refine_layer_forward.2} parent=67 // pred_check
        %p500 = pneg %p95
      $region78: #{refine_layer_forward.2} parent=67 // pred_check_branch
        %502 = sbr.rel (%p500) target = $region80
      $region79: #{refine_layer_forward.2} parent=67 // pred_region
        %p503 = scmp.lt.s32.totalorder %s23, 1
        %s504 = scalar_select %p503, %s23, 1
        %s505 = smul.addr %s504, 18
        %s506 = smul.addr %s505, 8
        %s507 = scalar_lea.vmem %s2, %s506
      $region80: #{refine_layer_forward.2} parent=67 // pred_fallthru
        _
      // Predicated region
      $region81: #{refine_layer_forward.2} parent=67 // pred_check
        %p508 = pneg %p121
      $region82: #{refine_layer_forward.2} parent=67 // pred_check_branch
        %510 = sbr.rel (%p508) target = $region84
      $region83: #{refine_layer_forward.2} parent=67 // pred_region
        %p511 = scmp.lt.s32.totalorder %s23, 1
        %s512 = scalar_select %p511, %s23, 1
        %s513 = smul.addr %s512, 18
        %s514 = smul.addr %s513, 8
        %s515 = scalar_lea.vmem %s3, %s514
      $region84: #{refine_layer_forward.2} parent=67 // pred_fallthru
        _
    $region68: #{refine_layer_forward.2} parent=5 // pred_fallthru
      _
    %p516 = scmp.le.s32.totalorder 1, %s23
    %p517 = scmp.lt.s32.totalorder %s23, 3
    %p518 = pnand %p516, %p517
    %p519 = pneg %p518
    // Predicated region
    $region85: #{refine_layer_forward.2} parent=5 // pred_check
      _
    $region86: #{refine_layer_forward.2} parent=5 // pred_check_branch
      %521 = sbr.rel (%p518) target = $region88
    $region87: #{refine_layer_forward.2} parent=5 // pred_region
      %s522 = ssub.s32 %s23, 1
      %p523 = scmp.lt.s32.totalorder %s28, 1
      %s524 = scalar_select %p523, %s28, 1
      %s525 = smul.addr %s524, 18
      %s526 = smul.addr %s525, 8
      %s527 = scalar_lea.vmem %s0, %s526
      %p528 = pneg %p49
      %p529 = pneg %p46
      %p530 = scmp.lt.s32.totalorder %s28, 1
      %s531 = scalar_select %p530, %s28, 1
      %s532 = smul.addr %s531, 18
      %s533 = smul.addr %s532, 8
      %s534 = scalar_lea.vmem %s1, %s533
      %p535 = pneg %p75
      %p536 = pneg %p72
      %p537 = scmp.lt.s32.totalorder %s28, 1
      %s538 = scalar_select %p537, %s28, 1
      %s539 = smul.addr %s538, 18
      %s540 = smul.addr %s539, 8
      %s541 = scalar_lea.vmem %s2, %s540
      %p542 = pneg %p101
      %p543 = pneg %p98
      %p544 = scmp.lt.s32.totalorder %s28, 1
      %s545 = scalar_select %p544, %s28, 1
      %s546 = smul.addr %s545, 18
      %s547 = smul.addr %s546, 8
      %s548 = scalar_lea.vmem %s3, %s547
      %p549 = pneg %p127
      %p550 = pneg %p124
      %p551 = pneg %p148
      %p552 = pneg %p145
      %p553 = pneg %p169
      %p554 = pneg %p166
      %p555 = pneg %p190
      %p556 = pneg %p187
      %p557 = pneg %p211
      %p558 = pneg %p208
      %p559 = pneg %p232
      %p560 = pneg %p229
      %p561 = pneg %p253
      %p562 = pneg %p250
      %p563 = pneg %p274
      %p564 = pneg %p271
      %p565 = pneg %p295
      %p566 = pneg %p292
      %p567 = pneg %p316
      %p568 = pneg %p313
      %p569 = pneg %p337
      %p570 = pneg %p334
      %p571 = pneg %p358
      %p572 = pneg %p355
      %p573 = pneg %p379
      %p574 = pneg %p376
      %p575 = pneg %p400
      %p576 = pneg %p397
      %p577 = pneg %p426
      %p578 = pneg %p423
      %p579 = scmp.lt.s32.totalorder %s28, 1
      %s580 = scalar_select %p579, %s28, 1
      %s581 = smul.addr %s580, 8
      %s582 = smul.addr %s581, 8
      %s583 = scalar_lea.vmem %s17, %s582
      %p584 = scmp.lt.s32.totalorder %s28, 1
      %s585 = scalar_select %p584, %s28, 1
      %s586 = smul.addr %s585, 18
      %s587 = smul.addr %s586, 8
      %s588 = scalar_lea.vmem %s0, %s587
      %p589 = scmp.lt.s32.totalorder %s28, 1
      %s590 = scalar_select %p589, %s28, 1
      %s591 = smul.addr %s590, 18
      %s592 = smul.addr %s591, 8
      %s593 = scalar_lea.vmem %s1, %s592
      %p594 = scmp.lt.s32.totalorder %s28, 1
      %s595 = scalar_select %p594, %s28, 1
      %s596 = smul.addr %s595, 18
      %s597 = smul.addr %s596, 8
      %s598 = scalar_lea.vmem %s2, %s597
      %p599 = scmp.lt.s32.totalorder %s28, 1
      %s600 = scalar_select %p599, %s28, 1
      %s601 = smul.addr %s600, 18
      %s602 = smul.addr %s601, 8
      %s603 = scalar_lea.vmem %s3, %s602
      %p604 = scmp.lt.s32.totalorder %s28, 1
      %s605 = scalar_select %p604, %s28, 1
      %s606 = smul.addr %s605, 8
      %s607 = smul.addr %s606, 8
      %s608 = scalar_lea.vmem %s17, %s607
      %v609 = vld [vmem:[%s4] sm:$0x3f]
      %v610 = vld [vmem:[%s4 + $0x8] sm:$0x3f]
      %v611 = vld [vmem:[%s4 + $0x10] sm:$0x3f]
      %v612 = vld [vmem:[%s4 + $0x18] sm:$0x3f]
      %v613 = vld [vmem:[%s4 + $0x20] sm:$0x3f]
      %v614 = vld [vmem:[%s4 + $0x28] sm:$0x3f]
      %v615 = vld [vmem:[%s4 + $0x30] sm:$0x3f]
      %v616 = vld [vmem:[%s4 + $0x38] sm:$0x3f]
      %v617 = vld [vmem:[%s4 + $0x40] sm:$0x3f]
      %v618 = vld [vmem:[%s588] sm:$0xff]
      %v619 = vld [vmem:[%s588 + $0x10] sm:$0xff]
      %v620 = vld [vmem:[%s588 + $0x20] sm:$0xff]
      %v621 = vld [vmem:[%s588 + $0x30] sm:$0xff]
      %v622 = vld [vmem:[%s588 + $0x40] sm:$0xff]
      %v623 = vld [vmem:[%s588 + $0x50] sm:$0xff]
      %v624 = vld [vmem:[%s588 + $0x60] sm:$0xff]
      %v625 = vld [vmem:[%s588 + $0x70] sm:$0xff]
      %v626 = vld [vmem:[%s593] sm:$0xff]
      %v627 = vld [vmem:[%s593 + $0x10] sm:$0xff]
      %v628 = vld [vmem:[%s593 + $0x20] sm:$0xff]
      %v629 = vld [vmem:[%s593 + $0x30] sm:$0xff]
      %v630 = vld [vmem:[%s593 + $0x40] sm:$0xff]
      %v631 = vld [vmem:[%s593 + $0x50] sm:$0xff]
      %v632 = vld [vmem:[%s593 + $0x60] sm:$0xff]
      %v633 = vld [vmem:[%s593 + $0x70] sm:$0xff]
      %vm634 = vcmask 48128
      %v636 = vsel %vm634, %v626, 0
      %v639 = vsel %vm634, %v627, 0
      %v642 = vsel %vm634, %v628, 0
      %v645 = vsel %vm634, %v629, 0
      %v648 = vsel %vm634, %v630, 0
      %v651 = vsel %vm634, %v631, 0
      %v654 = vsel %vm634, %v632, 0
      %v657 = vsel %vm634, %v633, 0
      %vm659 = vcmask 1045504
      %v661 = vsel %vm659, %v610, 0
      %663 = vmatprep.subr.mxu0 0.0
      %664 = vmatpush1.msra.mxu0 %v661
      %665 = vmatprep.subr.mxu0 0.0
      %666 = vmatpush1.msra.mxu0 0.0
      %667 = vmatprep.subr.mxu0 0.0
      %668 = vmatpush1.msra.mxu0 0.0
      %669 = vmatprep.subr.mxu0 0.0
      %670 = vmatpush1.msra.mxu0 0.0
      %671 = vmatprep.subr.mxu0 0.0
      %672 = vmatpush1.msra.mxu0 0.0
      %673 = vmatprep.subr.mxu0 0.0
      %674 = vmatpush1.msra.mxu0 0.0
      %675 = vmatprep.subr.mxu0 0.0
      %676 = vmatpush1.msra.mxu0 0.0
      %677 = vmatprep.subr.mxu0 0.0
      %678 = vmatpush1.msra.mxu0 0.0
      %679 = vmatprep.subr.mxu0 0.0
      %680 = vmatpush1.msra.mxu0 0.0
      %681 = vmatprep.subr.mxu0 0.0
      %682 = vmatpush1.msra.mxu0 0.0
      %683 = vmatprep.subr.mxu0 0.0
      %684 = vmatpush1.msra.mxu0 0.0
      %685 = vmatprep.subr.mxu0 0.0
      %686 = vmatpush1.msra.mxu0 0.0
      %687 = vmatprep.subr.mxu0 0.0
      %688 = vmatpush1.msra.mxu0 0.0
      %689 = vmatprep.subr.mxu0 0.0
      %690 = vmatpush1.msra.mxu0 0.0
      %691 = vmatprep.subr.mxu0 0.0
      %692 = vmatpush1.msra.mxu0 0.0
      %693 = vmatprep.subr.mxu0 0.0
      %694 = vmatpush1.msra.mxu0 0.0
      %695 = vmatprep.subr.mxu0 0.0
      %696 = vmatpush1.msra.mxu0 0.0
      %697 = vmatprep.subr.mxu0 0.0
      %698 = vmatpush1.msra.mxu0 0.0
      %699 = vmatprep.subr.mxu0 0.0
      %700 = vmatpush1.msra.mxu0 0.0
      %701 = vmatprep.subr.mxu0 0.0
      %702 = vmatpush1.msra.mxu0 0.0
      %703 = vmatprep.subr.mxu0 0.0
      %704 = vmatpush1.msra.mxu0 0.0
      %705 = vmatprep.subr.mxu0 0.0
      %706 = vmatpush1.msra.mxu0 0.0
      %707 = vmatprep.subr.mxu0 0.0
      %708 = vmatpush1.msra.mxu0 0.0
      %709 = vmatprep.subr.mxu0 0.0
      %710 = vmatpush1.msra.mxu0 0.0
      %711 = vmatprep.subr.mxu0 0.0
      %712 = vmatpush1.msra.mxu0 0.0
      %713 = vmatprep.subr.mxu0 0.0
      %714 = vmatpush1.msra.mxu0 0.0
      %715 = vmatprep.subr.mxu0 0.0
      %716 = vmatpush1.msra.mxu0 0.0
      %717 = vmatprep.subr.mxu0 0.0
      %718 = vmatpush1.msra.mxu0 0.0
      %719 = vmatprep.subr.mxu0 0.0
      %720 = vmatpush1.msra.mxu0 0.0
      %721 = vmatprep.subr.mxu0 0.0
      %722 = vmatpush1.msra.mxu0 0.0
      %723 = vmatprep.subr.mxu0 0.0
      %724 = vmatpush1.msra.mxu0 0.0
      %725 = vmatprep.subr.mxu0 0.0
      %726 = vmatpush1.msra.mxu0 0.0
      %727 = vmatprep.mubr.f32.mxu0 0.0
      %728 = vmatmul.mubr.f32.gmra.mrb[0].mxu0 %v636
      %v729 = vpop.f32.mrb[0].mxu0
      %v730 = vadd.f32 0.0, %v729
      %v731 = vpop.f32.mrb[0].mxu0
      %732 = vmatprep.mubr.f32.mxu0 0.0
      %733 = vmatmul.mubr.f32.gmra.mrb[0].mxu0 %v639
      %v734 = vpop.f32.mrb[0].mxu0
      %v735 = vadd.f32 0.0, %v734
      %v736 = vpop.f32.mrb[0].mxu0
      %737 = vmatprep.mubr.f32.mxu0 0.0
      %738 = vmatmul.mubr.f32.gmra.mrb[0].mxu0 %v642
      %v739 = vpop.f32.mrb[0].mxu0
      %v740 = vadd.f32 0.0, %v739
      %v741 = vpop.f32.mrb[0].mxu0
      %742 = vmatprep.mubr.f32.mxu0 0.0
      %743 = vmatmul.mubr.f32.gmra.mrb[0].mxu0 %v645
      %v744 = vpop.f32.mrb[0].mxu0
      %v745 = vadd.f32 0.0, %v744
      %v746 = vpop.f32.mrb[0].mxu0
      %747 = vmatprep.mubr.f32.mxu0 0.0
      %748 = vmatmul.mubr.f32.gmra.mrb[0].mxu0 %v648
      %v749 = vpop.f32.mrb[0].mxu0
      %v750 = vadd.f32 0.0, %v749
      %v751 = vpop.f32.mrb[0].mxu0
      %752 = vmatprep.mubr.f32.mxu0 0.0
      %753 = vmatmul.mubr.f32.gmra.mrb[0].mxu0 %v651
      %v754 = vpop.f32.mrb[0].mxu0
      %v755 = vadd.f32 0.0, %v754
      %v756 = vpop.f32.mrb[0].mxu0
      %757 = vmatprep.mubr.f32.mxu0 0.0
      %758 = vmatmul.mubr.f32.gmra.mrb[0].mxu0 %v654
      %v759 = vpop.f32.mrb[0].mxu0
      %v760 = vadd.f32 0.0, %v759
      %v761 = vpop.f32.mrb[0].mxu0
      %762 = vmatprep.mubr.f32.mxu0 0.0
      %763 = vmatmul.mubr.f32.gmra.mrb[0].mxu0 %v657
      %v764 = vpop.f32.mrb[0].mxu0
      %v765 = vadd.f32 0.0, %v764
      %v766 = vpop.f32.mrb[0].mxu0
      %767 = vdwg.mxu0
      %v769 = vsel %vm634, %v618, 0
      %v772 = vsel %vm634, %v619, 0
      %v775 = vsel %vm634, %v620, 0
      %v778 = vsel %vm634, %v621, 0
      %v781 = vsel %vm634, %v622, 0
      %v784 = vsel %vm634, %v623, 0
      %v787 = vsel %vm634, %v624, 0
      %v790 = vsel %vm634, %v625, 0
      %v793 = vsel %vm659, %v609, 0
      %795 = vmatprep.subr.mxu0 0.0
      %796 = vmatpush1.msra.mxu0 %v793
      %797 = vmatprep.subr.mxu0 0.0
      %798 = vmatpush1.msra.mxu0 0.0
      %799 = vmatprep.subr.mxu0 0.0
      %800 = vmatpush1.msra.mxu0 0.0
      %801 = vmatprep.subr.mxu0 0.0
      %802 = vmatpush1.msra.mxu0 0.0
      %803 = vmatprep.subr.mxu0 0.0
      %804 = vmatpush1.msra.mxu0 0.0
      %805 = vmatprep.subr.mxu0 0.0
      %806 = vmatpush1.msra.mxu0 0.0
      %807 = vmatprep.subr.mxu0 0.0
      %808 = vmatpush1.msra.mxu0 0.0
      %809 = vmatprep.subr.mxu0 0.0
      %810 = vmatpush1.msra.mxu0 0.0
      %811 = vmatprep.subr.mxu0 0.0
      %812 = vmatpush1.msra.mxu0 0.0
      %813 = vmatprep.subr.mxu0 0.0
      %814 = vmatpush1.msra.mxu0 0.0
      %815 = vmatprep.subr.mxu0 0.0
      %816 = vmatpush1.msra.mxu0 0.0
      %817 = vmatprep.subr.mxu0 0.0
      %818 = vmatpush1.msra.mxu0 0.0
      %819 = vmatprep.subr.mxu0 0.0
      %820 = vmatpush1.msra.mxu0 0.0
      %821 = vmatprep.subr.mxu0 0.0
      %822 = vmatpush1.msra.mxu0 0.0
      %823 = vmatprep.subr.mxu0 0.0
      %824 = vmatpush1.msra.mxu0 0.0
      %825 = vmatprep.subr.mxu0 0.0
      %826 = vmatpush1.msra.mxu0 0.0
      %827 = vmatprep.subr.mxu0 0.0
      %828 = vmatpush1.msra.mxu0 0.0
      %829 = vmatprep.subr.mxu0 0.0
      %830 = vmatpush1.msra.mxu0 0.0
      %831 = vmatprep.subr.mxu0 0.0
      %832 = vmatpush1.msra.mxu0 0.0
      %833 = vmatprep.subr.mxu0 0.0
      %834 = vmatpush1.msra.mxu0 0.0
      %835 = vmatprep.subr.mxu0 0.0
      %836 = vmatpush1.msra.mxu0 0.0
      %837 = vmatprep.subr.mxu0 0.0
      %838 = vmatpush1.msra.mxu0 0.0
      %839 = vmatprep.subr.mxu0 0.0
      %840 = vmatpush1.msra.mxu0 0.0
      %841 = vmatprep.subr.mxu0 0.0
      %842 = vmatpush1.msra.mxu0 0.0
      %843 = vmatprep.subr.mxu0 0.0
      %844 = vmatpush1.msra.mxu0 0.0
      %845 = vmatprep.subr.mxu0 0.0
      %846 = vmatpush1.msra.mxu0 0.0
      %847 = vmatprep.subr.mxu0 0.0
      %848 = vmatpush1.msra.mxu0 0.0
      %849 = vmatprep.subr.mxu0 0.0
      %850 = vmatpush1.msra.mxu0 0.0
      %851 = vmatprep.subr.mxu0 0.0
      %852 = vmatpush1.msra.mxu0 0.0
      %853 = vmatprep.subr.mxu0 0.0
      %854 = vmatpush1.msra.mxu0 0.0
      %855 = vmatprep.subr.mxu0 0.0
      %856 = vmatpush1.msra.mxu0 0.0
      %857 = vmatprep.subr.mxu0 0.0
      %858 = vmatpush1.msra.mxu0 0.0
      %859 = vmatprep.mubr.f32.mxu0 0.0
      %860 = vmatmul.mubr.f32.gmra.mrb[0].mxu0 %v769
      %v861 = vpop.f32.mrb[0].mxu0
      %v862 = vadd.f32 %v730, %v861
      %v863 = vpop.f32.mrb[0].mxu0
      %864 = vmatprep.mubr.f32.mxu0 0.0
      %865 = vmatmul.mubr.f32.gmra.mrb[0].mxu0 %v772
      %v866 = vpop.f32.mrb[0].mxu0
      %v867 = vadd.f32 %v735, %v866
      %v868 = vpop.f32.mrb[0].mxu0
      %869 = vmatprep.mubr.f32.mxu0 0.0
      %870 = vmatmul.mubr.f32.gmra.mrb[0].mxu0 %v775
      %v871 = vpop.f32.mrb[0].mxu0
      %v872 = vadd.f32 %v740, %v871
      %v873 = vpop.f32.mrb[0].mxu0
      %874 = vmatprep.mubr.f32.mxu0 0.0
      %875 = vmatmul.mubr.f32.gmra.mrb[0].mxu0 %v778
      %v876 = vpop.f32.mrb[0].mxu0
      %v877 = vadd.f32 %v745, %v876
      %v878 = vpop.f32.mrb[0].mxu0
      %879 = vmatprep.mubr.f32.mxu0 0.0
      %880 = vmatmul.mubr.f32.gmra.mrb[0].mxu0 %v781
      %v881 = vpop.f32.mrb[0].mxu0
      %v882 = vadd.f32 %v750, %v881
      %v883 = vpop.f32.mrb[0].mxu0
      %884 = vmatprep.mubr.f32.mxu0 0.0
      %885 = vmatmul.mubr.f32.gmra.mrb[0].mxu0 %v784
      %v886 = vpop.f32.mrb[0].mxu0
      %v887 = vadd.f32 %v755, %v886
      %v888 = vpop.f32.mrb[0].mxu0
      %889 = vmatprep.mubr.f32.mxu0 0.0
      %890 = vmatmul.mubr.f32.gmra.mrb[0].mxu0 %v787
      %v891 = vpop.f32.mrb[0].mxu0
      %v892 = vadd.f32 %v760, %v891
      %v893 = vpop.f32.mrb[0].mxu0
      %894 = vmatprep.mubr.f32.mxu0 0.0
      %895 = vmatmul.mubr.f32.gmra.mrb[0].mxu0 %v790
      %v896 = vpop.f32.mrb[0].mxu0
      %v897 = vadd.f32 %v765, %v896
      %v898 = vpop.f32.mrb[0].mxu0
      %899 = vdwg.mxu0
      %v900 = vld [vmem:[%s588 + $0x1] sm:$0xff]
      %v901 = vld [vmem:[%s588 + $0x11] sm:$0xff]
      %v902 = vld [vmem:[%s588 + $0x21] sm:$0xff]
      %v903 = vld [vmem:[%s588 + $0x31] sm:$0xff]
      %v904 = vld [vmem:[%s588 + $0x41] sm:$0xff]
      %v905 = vld [vmem:[%s588 + $0x51] sm:$0xff]
      %v906 = vld [vmem:[%s588 + $0x61] sm:$0xff]
      %v907 = vld [vmem:[%s588 + $0x71] sm:$0xff]
      %v909 = vsel %vm634, %v900, 0
      %v912 = vsel %vm634, %v901, 0
      %v915 = vsel %vm634, %v902, 0
      %v918 = vsel %vm634, %v903, 0
      %v921 = vsel %vm634, %v904, 0
      %v924 = vsel %vm634, %v905, 0
      %v927 = vsel %vm634, %v906, 0
      %v930 = vsel %vm634, %v907, 0
      %v933 = vsel %vm659, %v611, 0
      %935 = vmatprep.subr.mxu0 0.0
      %936 = vmatpush1.msra.mxu0 %v933
      %937 = vmatprep.subr.mxu0 0.0
      %938 = vmatpush1.msra.mxu0 0.0
      %939 = vmatprep.subr.mxu0 0.0
      %940 = vmatpush1.msra.mxu0 0.0
      %941 = vmatprep.subr.mxu0 0.0
      %942 = vmatpush1.msra.mxu0 0.0
      %943 = vmatprep.subr.mxu0 0.0
      %944 = vmatpush1.msra.mxu0 0.0
      %945 = vmatprep.subr.mxu0 0.0
      %946 = vmatpush1.msra.mxu0 0.0
      %947 = vmatprep.subr.mxu0 0.0
      %948 = vmatpush1.msra.mxu0 0.0
      %949 = vmatprep.subr.mxu0 0.0
      %950 = vmatpush1.msra.mxu0 0.0
      %951 = vmatprep.subr.mxu0 0.0
      %952 = vmatpush1.msra.mxu0 0.0
      %953 = vmatprep.subr.mxu0 0.0
      %954 = vmatpush1.msra.mxu0 0.0
      %955 = vmatprep.subr.mxu0 0.0
      %956 = vmatpush1.msra.mxu0 0.0
      %957 = vmatprep.subr.mxu0 0.0
      %958 = vmatpush1.msra.mxu0 0.0
      %959 = vmatprep.subr.mxu0 0.0
      %960 = vmatpush1.msra.mxu0 0.0
      %961 = vmatprep.subr.mxu0 0.0
      %962 = vmatpush1.msra.mxu0 0.0
      %963 = vmatprep.subr.mxu0 0.0
      %964 = vmatpush1.msra.mxu0 0.0
      %965 = vmatprep.subr.mxu0 0.0
      %966 = vmatpush1.msra.mxu0 0.0
      %967 = vmatprep.subr.mxu0 0.0
      %968 = vmatpush1.msra.mxu0 0.0
      %969 = vmatprep.subr.mxu0 0.0
      %970 = vmatpush1.msra.mxu0 0.0
      %971 = vmatprep.subr.mxu0 0.0
      %972 = vmatpush1.msra.mxu0 0.0
      %973 = vmatprep.subr.mxu0 0.0
      %974 = vmatpush1.msra.mxu0 0.0
      %975 = vmatprep.subr.mxu0 0.0
      %976 = vmatpush1.msra.mxu0 0.0
      %977 = vmatprep.subr.mxu0 0.0
      %978 = vmatpush1.msra.mxu0 0.0
      %979 = vmatprep.subr.mxu0 0.0
      %980 = vmatpush1.msra.mxu0 0.0
      %981 = vmatprep.subr.mxu0 0.0
      %982 = vmatpush1.msra.mxu0 0.0
      %983 = vmatprep.subr.mxu0 0.0
      %984 = vmatpush1.msra.mxu0 0.0
      %985 = vmatprep.subr.mxu0 0.0
      %986 = vmatpush1.msra.mxu0 0.0
      %987 = vmatprep.subr.mxu0 0.0
      %988 = vmatpush1.msra.mxu0 0.0
      %989 = vmatprep.subr.mxu0 0.0
      %990 = vmatpush1.msra.mxu0 0.0
      %991 = vmatprep.subr.mxu0 0.0
      %992 = vmatpush1.msra.mxu0 0.0
      %993 = vmatprep.subr.mxu0 0.0
      %994 = vmatpush1.msra.mxu0 0.0
      %995 = vmatprep.subr.mxu0 0.0
      %996 = vmatpush1.msra.mxu0 0.0
      %997 = vmatprep.subr.mxu0 0.0
      %998 = vmatpush1.msra.mxu0 0.0
      %999 = vmatprep.mubr.f32.mxu0 0.0
      %1000 = vmatmul.mubr.f32.gmra.mrb[0].mxu0 %v909
      %v1001 = vpop.f32.mrb[0].mxu0
      %v1002 = vadd.f32 0.0, %v1001
      %v1003 = vpop.f32.mrb[0].mxu0
      %1004 = vmatprep.mubr.f32.mxu0 0.0
      %1005 = vmatmul.mubr.f32.gmra.mrb[0].mxu0 %v912
      %v1006 = vpop.f32.mrb[0].mxu0
      %v1007 = vadd.f32 0.0, %v1006
      %v1008 = vpop.f32.mrb[0].mxu0
      %1009 = vmatprep.mubr.f32.mxu0 0.0
      %1010 = vmatmul.mubr.f32.gmra.mrb[0].mxu0 %v915
      %v1011 = vpop.f32.mrb[0].mxu0
      %v1012 = vadd.f32 0.0, %v1011
      %v1013 = vpop.f32.mrb[0].mxu0
      %1014 = vmatprep.mubr.f32.mxu0 0.0
      %1015 = vmatmul.mubr.f32.gmra.mrb[0].mxu0 %v918
      %v1016 = vpop.f32.mrb[0].mxu0
      %v1017 = vadd.f32 0.0, %v1016
      %v1018 = vpop.f32.mrb[0].mxu0
      %1019 = vmatprep.mubr.f32.mxu0 0.0
      %1020 = vmatmul.mubr.f32.gmra.mrb[0].mxu0 %v921
      %v1021 = vpop.f32.mrb[0].mxu0
      %v1022 = vadd.f32 0.0, %v1021
      %v1023 = vpop.f32.mrb[0].mxu0
      %1024 = vmatprep.mubr.f32.mxu0 0.0
      %1025 = vmatmul.mubr.f32.gmra.mrb[0].mxu0 %v924
      %v1026 = vpop.f32.mrb[0].mxu0
      %v1027 = vadd.f32 0.0, %v1026
      %v1028 = vpop.f32.mrb[0].mxu0
      %1029 = vmatprep.mubr.f32.mxu0 0.0
      %1030 = vmatmul.mubr.f32.gmra.mrb[0].mxu0 %v927
      %v1031 = vpop.f32.mrb[0].mxu0
      %v1032 = vadd.f32 0.0, %v1031
      %v1033 = vpop.f32.mrb[0].mxu0
      %1034 = vmatprep.mubr.f32.mxu0 0.0
      %1035 = vmatmul.mubr.f32.gmra.mrb[0].mxu0 %v930
      %v1036 = vpop.f32.mrb[0].mxu0
      %v1037 = vadd.f32 0.0, %v1036
      %v1038 = vpop.f32.mrb[0].mxu0
      %1039 = vdwg.mxu0
      %v1040 = vadd.f32 %v862, %v1002
      %v1041 = vadd.f32 %v867, %v1007
      %v1042 = vadd.f32 %v872, %v1012
      %v1043 = vadd.f32 %v877, %v1017
      %v1044 = vadd.f32 %v882, %v1022
      %v1045 = vadd.f32 %v887, %v1027
      %v1046 = vadd.f32 %v892, %v1032
      %v1047 = vadd.f32 %v897, %v1037
      %v1048 = vld [vmem:[%s598] sm:$0xff]
      %v1049 = vld [vmem:[%s598 + $0x10] sm:$0xff]
      %v1050 = vld [vmem:[%s598 + $0x20] sm:$0xff]
      %v1051 = vld [vmem:[%s598 + $0x30] sm:$0xff]
      %v1052 = vld [vmem:[%s598 + $0x40] sm:$0xff]
      %v1053 = vld [vmem:[%s598 + $0x50] sm:$0xff]
      %v1054 = vld [vmem:[%s598 + $0x60] sm:$0xff]
      %v1055 = vld [vmem:[%s598 + $0x70] sm:$0xff]
      %v1057 = vsel %vm634, %v1048, 0
      %v1060 = vsel %vm634, %v1049, 0
      %v1063 = vsel %vm634, %v1050, 0
      %v1066 = vsel %vm634, %v1051, 0
      %v1069 = vsel %vm634, %v1052, 0
      %v1072 = vsel %vm634, %v1053, 0
      %v1075 = vsel %vm634, %v1054, 0
      %v1078 = vsel %vm634, %v1055, 0
      %v1081 = vsel %vm659, %v612, 0
      %1083 = vmatprep.subr.mxu0 0.0
      %1084 = vmatpush1.msra.mxu0 %v1081
      %1085 = vmatprep.subr.mxu0 0.0
      %1086 = vmatpush1.msra.mxu0 0.0
      %1087 = vmatprep.subr.mxu0 0.0
      %1088 = vmatpush1.msra.mxu0 0.0
      %1089 = vmatprep.subr.mxu0 0.0
      %1090 = vmatpush1.msra.mxu0 0.0
      %1091 = vmatprep.subr.mxu0 0.0
      %1092 = vmatpush1.msra.mxu0 0.0
      %1093 = vmatprep.subr.mxu0 0.0
      %1094 = vmatpush1.msra.mxu0 0.0
      %1095 = vmatprep.subr.mxu0 0.0
      %1096 = vmatpush1.msra.mxu0 0.0
      %1097 = vmatprep.subr.mxu0 0.0
      %1098 = vmatpush1.msra.mxu0 0.0
      %1099 = vmatprep.subr.mxu0 0.0
      %1100 = vmatpush1.msra.mxu0 0.0
      %1101 = vmatprep.subr.mxu0 0.0
      %1102 = vmatpush1.msra.mxu0 0.0
      %1103 = vmatprep.subr.mxu0 0.0
      %1104 = vmatpush1.msra.mxu0 0.0
      %1105 = vmatprep.subr.mxu0 0.0
      %1106 = vmatpush1.msra.mxu0 0.0
      %1107 = vmatprep.subr.mxu0 0.0
      %1108 = vmatpush1.msra.mxu0 0.0
      %1109 = vmatprep.subr.mxu0 0.0
      %1110 = vmatpush1.msra.mxu0 0.0
      %1111 = vmatprep.subr.mxu0 0.0
      %1112 = vmatpush1.msra.mxu0 0.0
      %1113 = vmatprep.subr.mxu0 0.0
      %1114 = vmatpush1.msra.mxu0 0.0
      %1115 = vmatprep.subr.mxu0 0.0
      %1116 = vmatpush1.msra.mxu0 0.0
      %1117 = vmatprep.subr.mxu0 0.0
      %1118 = vmatpush1.msra.mxu0 0.0
      %1119 = vmatprep.subr.mxu0 0.0
      %1120 = vmatpush1.msra.mxu0 0.0
      %1121 = vmatprep.subr.mxu0 0.0
      %1122 = vmatpush1.msra.mxu0 0.0
      %1123 = vmatprep.subr.mxu0 0.0
      %1124 = vmatpush1.msra.mxu0 0.0
      %1125 = vmatprep.subr.mxu0 0.0
      %1126 = vmatpush1.msra.mxu0 0.0
      %1127 = vmatprep.subr.mxu0 0.0
      %1128 = vmatpush1.msra.mxu0 0.0
      %1129 = vmatprep.subr.mxu0 0.0
      %1130 = vmatpush1.msra.mxu0 0.0
      %1131 = vmatprep.subr.mxu0 0.0
      %1132 = vmatpush1.msra.mxu0 0.0
      %1133 = vmatprep.subr.mxu0 0.0
      %1134 = vmatpush1.msra.mxu0 0.0
      %1135 = vmatprep.subr.mxu0 0.0
      %1136 = vmatpush1.msra.mxu0 0.0
      %1137 = vmatprep.subr.mxu0 0.0
      %1138 = vmatpush1.msra.mxu0 0.0
      %1139 = vmatprep.subr.mxu0 0.0
      %1140 = vmatpush1.msra.mxu0 0.0
      %1141 = vmatprep.subr.mxu0 0.0
      %1142 = vmatpush1.msra.mxu0 0.0
      %1143 = vmatprep.subr.mxu0 0.0
      %1144 = vmatpush1.msra.mxu0 0.0
      %1145 = vmatprep.subr.mxu0 0.0
      %1146 = vmatpush1.msra.mxu0 0.0
      %1147 = vmatprep.mubr.f32.mxu0 0.0
      %1148 = vmatmul.mubr.f32.gmra.mrb[0].mxu0 %v1057
      %v1149 = vpop.f32.mrb[0].mxu0
      %v1150 = vadd.f32 0.0, %v1149
      %v1151 = vpop.f32.mrb[0].mxu0
      %1152 = vmatprep.mubr.f32.mxu0 0.0
      %1153 = vmatmul.mubr.f32.gmra.mrb[0].mxu0 %v1060
      %v1154 = vpop.f32.mrb[0].mxu0
      %v1155 = vadd.f32 0.0, %v1154
      %v1156 = vpop.f32.mrb[0].mxu0
      %1157 = vmatprep.mubr.f32.mxu0 0.0
      %1158 = vmatmul.mubr.f32.gmra.mrb[0].mxu0 %v1063
      %v1159 = vpop.f32.mrb[0].mxu0
      %v1160 = vadd.f32 0.0, %v1159
      %v1161 = vpop.f32.mrb[0].mxu0
      %1162 = vmatprep.mubr.f32.mxu0 0.0
      %1163 = vmatmul.mubr.f32.gmra.mrb[0].mxu0 %v1066
      %v1164 = vpop.f32.mrb[0].mxu0
      %v1165 = vadd.f32 0.0, %v1164
      %v1166 = vpop.f32.mrb[0].mxu0
      %1167 = vmatprep.mubr.f32.mxu0 0.0
      %1168 = vmatmul.mubr.f32.gmra.mrb[0].mxu0 %v1069
      %v1169 = vpop.f32.mrb[0].mxu0
      %v1170 = vadd.f32 0.0, %v1169
      %v1171 = vpop.f32.mrb[0].mxu0
      %1172 = vmatprep.mubr.f32.mxu0 0.0
      %1173 = vmatmul.mubr.f32.gmra.mrb[0].mxu0 %v1072
      %v1174 = vpop.f32.mrb[0].mxu0
      %v1175 = vadd.f32 0.0, %v1174
      %v1176 = vpop.f32.mrb[0].mxu0
      %1177 = vmatprep.mubr.f32.mxu0 0.0
      %1178 = vmatmul.mubr.f32.gmra.mrb[0].mxu0 %v1075
      %v1179 = vpop.f32.mrb[0].mxu0
      %v1180 = vadd.f32 0.0, %v1179
      %v1181 = vpop.f32.mrb[0].mxu0
      %1182 = vmatprep.mubr.f32.mxu0 0.0
      %1183 = vmatmul.mubr.f32.gmra.mrb[0].mxu0 %v1078
      %v1184 = vpop.f32.mrb[0].mxu0
      %v1185 = vadd.f32 0.0, %v1184
      %v1186 = vpop.f32.mrb[0].mxu0
      %1187 = vdwg.mxu0
      %v1188 = vadd.f32 %v1040, %v1150
      %v1189 = vadd.f32 %v1041, %v1155
      %v1190 = vadd.f32 %v1042, %v1160
      %v1191 = vadd.f32 %v1043, %v1165
      %v1192 = vadd.f32 %v1044, %v1170
      %v1193 = vadd.f32 %v1045, %v1175
      %v1194 = vadd.f32 %v1046, %v1180
      %v1195 = vadd.f32 %v1047, %v1185
      %v1196 = vld [vmem:[%s603] sm:$0xff]
      %v1197 = vld [vmem:[%s603 + $0x10] sm:$0xff]
      %v1198 = vld [vmem:[%s603 + $0x20] sm:$0xff]
      %v1199 = vld [vmem:[%s603 + $0x30] sm:$0xff]
      %v1200 = vld [vmem:[%s603 + $0x40] sm:$0xff]
      %v1201 = vld [vmem:[%s603 + $0x50] sm:$0xff]
      %v1202 = vld [vmem:[%s603 + $0x60] sm:$0xff]
      %v1203 = vld [vmem:[%s603 + $0x70] sm:$0xff]
      %v1205 = vsel %vm634, %v1196, 0
      %v1208 = vsel %vm634, %v1197, 0
      %v1211 = vsel %vm634, %v1198, 0
      %v1214 = vsel %vm634, %v1199, 0
      %v1217 = vsel %vm634, %v1200, 0
      %v1220 = vsel %vm634, %v1201, 0
      %v1223 = vsel %vm634, %v1202, 0
      %v1226 = vsel %vm634, %v1203, 0
      %v1229 = vsel %vm659, %v613, 0
      %1231 = vmatprep.subr.mxu0 0.0
      %1232 = vmatpush1.msra.mxu0 %v1229
      %1233 = vmatprep.subr.mxu0 0.0
      %1234 = vmatpush1.msra.mxu0 0.0
      %1235 = vmatprep.subr.mxu0 0.0
      %1236 = vmatpush1.msra.mxu0 0.0
      %1237 = vmatprep.subr.mxu0 0.0
      %1238 = vmatpush1.msra.mxu0 0.0
      %1239 = vmatprep.subr.mxu0 0.0
      %1240 = vmatpush1.msra.mxu0 0.0
      %1241 = vmatprep.subr.mxu0 0.0
      %1242 = vmatpush1.msra.mxu0 0.0
      %1243 = vmatprep.subr.mxu0 0.0
      %1244 = vmatpush1.msra.mxu0 0.0
      %1245 = vmatprep.subr.mxu0 0.0
      %1246 = vmatpush1.msra.mxu0 0.0
      %1247 = vmatprep.subr.mxu0 0.0
      %1248 = vmatpush1.msra.mxu0 0.0
      %1249 = vmatprep.subr.mxu0 0.0
      %1250 = vmatpush1.msra.mxu0 0.0
      %1251 = vmatprep.subr.mxu0 0.0
      %1252 = vmatpush1.msra.mxu0 0.0
      %1253 = vmatprep.subr.mxu0 0.0
      %1254 = vmatpush1.msra.mxu0 0.0
      %1255 = vmatprep.subr.mxu0 0.0
      %1256 = vmatpush1.msra.mxu0 0.0
      %1257 = vmatprep.subr.mxu0 0.0
      %1258 = vmatpush1.msra.mxu0 0.0
      %1259 = vmatprep.subr.mxu0 0.0
      %1260 = vmatpush1.msra.mxu0 0.0
      %1261 = vmatprep.subr.mxu0 0.0
      %1262 = vmatpush1.msra.mxu0 0.0
      %1263 = vmatprep.subr.mxu0 0.0
      %1264 = vmatpush1.msra.mxu0 0.0
      %1265 = vmatprep.subr.mxu0 0.0
      %1266 = vmatpush1.msra.mxu0 0.0
      %1267 = vmatprep.subr.mxu0 0.0
      %1268 = vmatpush1.msra.mxu0 0.0
      %1269 = vmatprep.subr.mxu0 0.0
      %1270 = vmatpush1.msra.mxu0 0.0
      %1271 = vmatprep.subr.mxu0 0.0
      %1272 = vmatpush1.msra.mxu0 0.0
      %1273 = vmatprep.subr.mxu0 0.0
      %1274 = vmatpush1.msra.mxu0 0.0
      %1275 = vmatprep.subr.mxu0 0.0
      %1276 = vmatpush1.msra.mxu0 0.0
      %1277 = vmatprep.subr.mxu0 0.0
      %1278 = vmatpush1.msra.mxu0 0.0
      %1279 = vmatprep.subr.mxu0 0.0
      %1280 = vmatpush1.msra.mxu0 0.0
      %1281 = vmatprep.subr.mxu0 0.0
      %1282 = vmatpush1.msra.mxu0 0.0
      %1283 = vmatprep.subr.mxu0 0.0
      %1284 = vmatpush1.msra.mxu0 0.0
      %1285 = vmatprep.subr.mxu0 0.0
      %1286 = vmatpush1.msra.mxu0 0.0
      %1287 = vmatprep.subr.mxu0 0.0
      %1288 = vmatpush1.msra.mxu0 0.0
      %1289 = vmatprep.subr.mxu0 0.0
      %1290 = vmatpush1.msra.mxu0 0.0
      %1291 = vmatprep.subr.mxu0 0.0
      %1292 = vmatpush1.msra.mxu0 0.0
      %1293 = vmatprep.subr.mxu0 0.0
      %1294 = vmatpush1.msra.mxu0 0.0
      %1295 = vmatprep.mubr.f32.mxu0 0.0
      %1296 = vmatmul.mubr.f32.gmra.mrb[0].mxu0 %v1205
      %v1297 = vpop.f32.mrb[0].mxu0
      %v1298 = vadd.f32 0.0, %v1297
      %v1299 = vpop.f32.mrb[0].mxu0
      %1300 = vmatprep.mubr.f32.mxu0 0.0
      %1301 = vmatmul.mubr.f32.gmra.mrb[0].mxu0 %v1208
      %v1302 = vpop.f32.mrb[0].mxu0
      %v1303 = vadd.f32 0.0, %v1302
      %v1304 = vpop.f32.mrb[0].mxu0
      %1305 = vmatprep.mubr.f32.mxu0 0.0
      %1306 = vmatmul.mubr.f32.gmra.mrb[0].mxu0 %v1211
      %v1307 = vpop.f32.mrb[0].mxu0
      %v1308 = vadd.f32 0.0, %v1307
      %v1309 = vpop.f32.mrb[0].mxu0
      %1310 = vmatprep.mubr.f32.mxu0 0.0
      %1311 = vmatmul.mubr.f32.gmra.mrb[0].mxu0 %v1214
      %v1312 = vpop.f32.mrb[0].mxu0
      %v1313 = vadd.f32 0.0, %v1312
      %v1314 = vpop.f32.mrb[0].mxu0
      %1315 = vmatprep.mubr.f32.mxu0 0.0
      %1316 = vmatmul.mubr.f32.gmra.mrb[0].mxu0 %v1217
      %v1317 = vpop.f32.mrb[0].mxu0
      %v1318 = vadd.f32 0.0, %v1317
      %v1319 = vpop.f32.mrb[0].mxu0
      %1320 = vmatprep.mubr.f32.mxu0 0.0
      %1321 = vmatmul.mubr.f32.gmra.mrb[0].mxu0 %v1220
      %v1322 = vpop.f32.mrb[0].mxu0
      %v1323 = vadd.f32 0.0, %v1322
      %v1324 = vpop.f32.mrb[0].mxu0
      %1325 = vmatprep.mubr.f32.mxu0 0.0
      %1326 = vmatmul.mubr.f32.gmra.mrb[0].mxu0 %v1223
      %v1327 = vpop.f32.mrb[0].mxu0
      %v1328 = vadd.f32 0.0, %v1327
      %v1329 = vpop.f32.mrb[0].mxu0
      %1330 = vmatprep.mubr.f32.mxu0 0.0
      %1331 = vmatmul.mubr.f32.gmra.mrb[0].mxu0 %v1226
      %v1332 = vpop.f32.mrb[0].mxu0
      %v1333 = vadd.f32 0.0, %v1332
      %v1334 = vpop.f32.mrb[0].mxu0
      %1335 = vdwg.mxu0
      %v1336 = vadd.f32 %v1188, %v1298
      %v1337 = vadd.f32 %v1189, %v1303
      %v1338 = vadd.f32 %v1190, %v1308
      %v1339 = vadd.f32 %v1191, %v1313
      %v1340 = vadd.f32 %v1192, %v1318
      %v1341 = vadd.f32 %v1193, %v1323
      %v1342 = vadd.f32 %v1194, %v1328
      %v1343 = vadd.f32 %v1195, %v1333
      %v1344 = vld [vmem:[%s598 + $0x1] sm:$0xff]
      %v1345 = vld [vmem:[%s598 + $0x11] sm:$0xff]
      %v1346 = vld [vmem:[%s598 + $0x21] sm:$0xff]
      %v1347 = vld [vmem:[%s598 + $0x31] sm:$0xff]
      %v1348 = vld [vmem:[%s598 + $0x41] sm:$0xff]
      %v1349 = vld [vmem:[%s598 + $0x51] sm:$0xff]
      %v1350 = vld [vmem:[%s598 + $0x61] sm:$0xff]
      %v1351 = vld [vmem:[%s598 + $0x71] sm:$0xff]
      %v1353 = vsel %vm634, %v1344, 0
      %v1356 = vsel %vm634, %v1345, 0
      %v1359 = vsel %vm634, %v1346, 0
      %v1362 = vsel %vm634, %v1347, 0
      %v1365 = vsel %vm634, %v1348, 0
      %v1368 = vsel %vm634, %v1349, 0
      %v1371 = vsel %vm634, %v1350, 0
      %v1374 = vsel %vm634, %v1351, 0
      %v1377 = vsel %vm659, %v614, 0
      %1379 = vmatprep.subr.mxu0 0.0
      %1380 = vmatpush1.msra.mxu0 %v1377
      %1381 = vmatprep.subr.mxu0 0.0
      %1382 = vmatpush1.msra.mxu0 0.0
      %1383 = vmatprep.subr.mxu0 0.0
      %1384 = vmatpush1.msra.mxu0 0.0
      %1385 = vmatprep.subr.mxu0 0.0
      %1386 = vmatpush1.msra.mxu0 0.0
      %1387 = vmatprep.subr.mxu0 0.0
      %1388 = vmatpush1.msra.mxu0 0.0
      %1389 = vmatprep.subr.mxu0 0.0
      %1390 = vmatpush1.msra.mxu0 0.0
      %1391 = vmatprep.subr.mxu0 0.0
      %1392 = vmatpush1.msra.mxu0 0.0
      %1393 = vmatprep.subr.mxu0 0.0
      %1394 = vmatpush1.msra.mxu0 0.0
      %1395 = vmatprep.subr.mxu0 0.0
      %1396 = vmatpush1.msra.mxu0 0.0
      %1397 = vmatprep.subr.mxu0 0.0
      %1398 = vmatpush1.msra.mxu0 0.0
      %1399 = vmatprep.subr.mxu0 0.0
      %1400 = vmatpush1.msra.mxu0 0.0
      %1401 = vmatprep.subr.mxu0 0.0
      %1402 = vmatpush1.msra.mxu0 0.0
      %1403 = vmatprep.subr.mxu0 0.0
      %1404 = vmatpush1.msra.mxu0 0.0
      %1405 = vmatprep.subr.mxu0 0.0
      %1406 = vmatpush1.msra.mxu0 0.0
      %1407 = vmatprep.subr.mxu0 0.0
      %1408 = vmatpush1.msra.mxu0 0.0
      %1409 = vmatprep.subr.mxu0 0.0
      %1410 = vmatpush1.msra.mxu0 0.0
      %1411 = vmatprep.subr.mxu0 0.0
      %1412 = vmatpush1.msra.mxu0 0.0
      %1413 = vmatprep.subr.mxu0 0.0
      %1414 = vmatpush1.msra.mxu0 0.0
      %1415 = vmatprep.subr.mxu0 0.0
      %1416 = vmatpush1.msra.mxu0 0.0
      %1417 = vmatprep.subr.mxu0 0.0
      %1418 = vmatpush1.msra.mxu0 0.0
      %1419 = vmatprep.subr.mxu0 0.0
      %1420 = vmatpush1.msra.mxu0 0.0
      %1421 = vmatprep.subr.mxu0 0.0
      %1422 = vmatpush1.msra.mxu0 0.0
      %1423 = vmatprep.subr.mxu0 0.0
      %1424 = vmatpush1.msra.mxu0 0.0
      %1425 = vmatprep.subr.mxu0 0.0
      %1426 = vmatpush1.msra.mxu0 0.0
      %1427 = vmatprep.subr.mxu0 0.0
      %1428 = vmatpush1.msra.mxu0 0.0
      %1429 = vmatprep.subr.mxu0 0.0
      %1430 = vmatpush1.msra.mxu0 0.0
      %1431 = vmatprep.subr.mxu0 0.0
      %1432 = vmatpush1.msra.mxu0 0.0
      %1433 = vmatprep.subr.mxu0 0.0
      %1434 = vmatpush1.msra.mxu0 0.0
      %1435 = vmatprep.subr.mxu0 0.0
      %1436 = vmatpush1.msra.mxu0 0.0
      %1437 = vmatprep.subr.mxu0 0.0
      %1438 = vmatpush1.msra.mxu0 0.0
      %1439 = vmatprep.subr.mxu0 0.0
      %1440 = vmatpush1.msra.mxu0 0.0
      %1441 = vmatprep.subr.mxu0 0.0
      %1442 = vmatpush1.msra.mxu0 0.0
      %1443 = vmatprep.mubr.f32.mxu0 0.0
      %1444 = vmatmul.mubr.f32.gmra.mrb[0].mxu0 %v1353
      %v1445 = vpop.f32.mrb[0].mxu0
      %v1446 = vadd.f32 0.0, %v1445
      %v1447 = vpop.f32.mrb[0].mxu0
      %1448 = vmatprep.mubr.f32.mxu0 0.0
      %1449 = vmatmul.mubr.f32.gmra.mrb[0].mxu0 %v1356
      %v1450 = vpop.f32.mrb[0].mxu0
      %v1451 = vadd.f32 0.0, %v1450
      %v1452 = vpop.f32.mrb[0].mxu0
      %1453 = vmatprep.mubr.f32.mxu0 0.0
      %1454 = vmatmul.mubr.f32.gmra.mrb[0].mxu0 %v1359
      %v1455 = vpop.f32.mrb[0].mxu0
      %v1456 = vadd.f32 0.0, %v1455
      %v1457 = vpop.f32.mrb[0].mxu0
      %1458 = vmatprep.mubr.f32.mxu0 0.0
      %1459 = vmatmul.mubr.f32.gmra.mrb[0].mxu0 %v1362
      %v1460 = vpop.f32.mrb[0].mxu0
      %v1461 = vadd.f32 0.0, %v1460
      %v1462 = vpop.f32.mrb[0].mxu0
      %1463 = vmatprep.mubr.f32.mxu0 0.0
      %1464 = vmatmul.mubr.f32.gmra.mrb[0].mxu0 %v1365
      %v1465 = vpop.f32.mrb[0].mxu0
      %v1466 = vadd.f32 0.0, %v1465
      %v1467 = vpop.f32.mrb[0].mxu0
      %1468 = vmatprep.mubr.f32.mxu0 0.0
      %1469 = vmatmul.mubr.f32.gmra.mrb[0].mxu0 %v1368
      %v1470 = vpop.f32.mrb[0].mxu0
      %v1471 = vadd.f32 0.0, %v1470
      %v1472 = vpop.f32.mrb[0].mxu0
      %1473 = vmatprep.mubr.f32.mxu0 0.0
      %1474 = vmatmul.mubr.f32.gmra.mrb[0].mxu0 %v1371
      %v1475 = vpop.f32.mrb[0].mxu0
      %v1476 = vadd.f32 0.0, %v1475
      %v1477 = vpop.f32.mrb[0].mxu0
      %1478 = vmatprep.mubr.f32.mxu0 0.0
      %1479 = vmatmul.mubr.f32.gmra.mrb[0].mxu0 %v1374
      %v1480 = vpop.f32.mrb[0].mxu0
      %v1481 = vadd.f32 0.0, %v1480
      %v1482 = vpop.f32.mrb[0].mxu0
      %1483 = vdwg.mxu0
      %v1484 = vadd.f32 %v1336, %v1446
      %v1485 = vadd.f32 %v1337, %v1451
      %v1486 = vadd.f32 %v1338, %v1456
      %v1487 = vadd.f32 %v1339, %v1461
      %v1488 = vadd.f32 %v1340, %v1466
      %v1489 = vadd.f32 %v1341, %v1471
      %v1490 = vadd.f32 %v1342, %v1476
      %v1491 = vadd.f32 %v1343, %v1481
      %s1492 = scalar_lea.vmem %s588, 16
      %v1493 = vld [vmem:[%s1492] sm:$0xff]
      %v1494 = vld [vmem:[%s1492 + $0x10] sm:$0xff]
      %v1495 = vld [vmem:[%s1492 + $0x20] sm:$0xff]
      %v1496 = vld [vmem:[%s1492 + $0x30] sm:$0xff]
      %v1497 = vld [vmem:[%s1492 + $0x40] sm:$0xff]
      %v1498 = vld [vmem:[%s1492 + $0x50] sm:$0xff]
      %v1499 = vld [vmem:[%s1492 + $0x60] sm:$0xff]
      %v1500 = vld [vmem:[%s1492 + $0x70] sm:$0xff]
      %v1502 = vsel %vm634, %v1493, 0
      %v1505 = vsel %vm634, %v1494, 0
      %v1508 = vsel %vm634, %v1495, 0
      %v1511 = vsel %vm634, %v1496, 0
      %v1514 = vsel %vm634, %v1497, 0
      %v1517 = vsel %vm634, %v1498, 0
      %v1520 = vsel %vm634, %v1499, 0
      %v1523 = vsel %vm634, %v1500, 0
      %v1526 = vsel %vm659, %v615, 0
      %1528 = vmatprep.subr.mxu0 0.0
      %1529 = vmatpush1.msra.mxu0 %v1526
      %1530 = vmatprep.subr.mxu0 0.0
      %1531 = vmatpush1.msra.mxu0 0.0
      %1532 = vmatprep.subr.mxu0 0.0
      %1533 = vmatpush1.msra.mxu0 0.0
      %1534 = vmatprep.subr.mxu0 0.0
      %1535 = vmatpush1.msra.mxu0 0.0
      %1536 = vmatprep.subr.mxu0 0.0
      %1537 = vmatpush1.msra.mxu0 0.0
      %1538 = vmatprep.subr.mxu0 0.0
      %1539 = vmatpush1.msra.mxu0 0.0
      %1540 = vmatprep.subr.mxu0 0.0
      %1541 = vmatpush1.msra.mxu0 0.0
      %1542 = vmatprep.subr.mxu0 0.0
      %1543 = vmatpush1.msra.mxu0 0.0
      %1544 = vmatprep.subr.mxu0 0.0
      %1545 = vmatpush1.msra.mxu0 0.0
      %1546 = vmatprep.subr.mxu0 0.0
      %1547 = vmatpush1.msra.mxu0 0.0
      %1548 = vmatprep.subr.mxu0 0.0
      %1549 = vmatpush1.msra.mxu0 0.0
      %1550 = vmatprep.subr.mxu0 0.0
      %1551 = vmatpush1.msra.mxu0 0.0
      %1552 = vmatprep.subr.mxu0 0.0
      %1553 = vmatpush1.msra.mxu0 0.0
      %1554 = vmatprep.subr.mxu0 0.0
      %1555 = vmatpush1.msra.mxu0 0.0
      %1556 = vmatprep.subr.mxu0 0.0
      %1557 = vmatpush1.msra.mxu0 0.0
      %1558 = vmatprep.subr.mxu0 0.0
      %1559 = vmatpush1.msra.mxu0 0.0
      %1560 = vmatprep.subr.mxu0 0.0
      %1561 = vmatpush1.msra.mxu0 0.0
      %1562 = vmatprep.subr.mxu0 0.0
      %1563 = vmatpush1.msra.mxu0 0.0
      %1564 = vmatprep.subr.mxu0 0.0
      %1565 = vmatpush1.msra.mxu0 0.0
      %1566 = vmatprep.subr.mxu0 0.0
      %1567 = vmatpush1.msra.mxu0 0.0
      %1568 = vmatprep.subr.mxu0 0.0
      %1569 = vmatpush1.msra.mxu0 0.0
      %1570 = vmatprep.subr.mxu0 0.0
      %1571 = vmatpush1.msra.mxu0 0.0
      %1572 = vmatprep.subr.mxu0 0.0
      %1573 = vmatpush1.msra.mxu0 0.0
      %1574 = vmatprep.subr.mxu0 0.0
      %1575 = vmatpush1.msra.mxu0 0.0
      %1576 = vmatprep.subr.mxu0 0.0
      %1577 = vmatpush1.msra.mxu0 0.0
      %1578 = vmatprep.subr.mxu0 0.0
      %1579 = vmatpush1.msra.mxu0 0.0
      %1580 = vmatprep.subr.mxu0 0.0
      %1581 = vmatpush1.msra.mxu0 0.0
      %1582 = vmatprep.subr.mxu0 0.0
      %1583 = vmatpush1.msra.mxu0 0.0
      %1584 = vmatprep.subr.mxu0 0.0
      %1585 = vmatpush1.msra.mxu0 0.0
      %1586 = vmatprep.subr.mxu0 0.0
      %1587 = vmatpush1.msra.mxu0 0.0
      %1588 = vmatprep.subr.mxu0 0.0
      %1589 = vmatpush1.msra.mxu0 0.0
      %1590 = vmatprep.subr.mxu0 0.0
      %1591 = vmatpush1.msra.mxu0 0.0
      %1592 = vmatprep.mubr.f32.mxu0 0.0
      %1593 = vmatmul.mubr.f32.gmra.mrb[0].mxu0 %v1502
      %v1594 = vpop.f32.mrb[0].mxu0
      %v1595 = vadd.f32 0.0, %v1594
      %v1596 = vpop.f32.mrb[0].mxu0
      %1597 = vmatprep.mubr.f32.mxu0 0.0
      %1598 = vmatmul.mubr.f32.gmra.mrb[0].mxu0 %v1505
      %v1599 = vpop.f32.mrb[0].mxu0
      %v1600 = vadd.f32 0.0, %v1599
      %v1601 = vpop.f32.mrb[0].mxu0
      %1602 = vmatprep.mubr.f32.mxu0 0.0
      %1603 = vmatmul.mubr.f32.gmra.mrb[0].mxu0 %v1508
      %v1604 = vpop.f32.mrb[0].mxu0
      %v1605 = vadd.f32 0.0, %v1604
      %v1606 = vpop.f32.mrb[0].mxu0
      %1607 = vmatprep.mubr.f32.mxu0 0.0
      %1608 = vmatmul.mubr.f32.gmra.mrb[0].mxu0 %v1511
      %v1609 = vpop.f32.mrb[0].mxu0
      %v1610 = vadd.f32 0.0, %v1609
      %v1611 = vpop.f32.mrb[0].mxu0
      %1612 = vmatprep.mubr.f32.mxu0 0.0
      %1613 = vmatmul.mubr.f32.gmra.mrb[0].mxu0 %v1514
      %v1614 = vpop.f32.mrb[0].mxu0
      %v1615 = vadd.f32 0.0, %v1614
      %v1616 = vpop.f32.mrb[0].mxu0
      %1617 = vmatprep.mubr.f32.mxu0 0.0
      %1618 = vmatmul.mubr.f32.gmra.mrb[0].mxu0 %v1517
      %v1619 = vpop.f32.mrb[0].mxu0
      %v1620 = vadd.f32 0.0, %v1619
      %v1621 = vpop.f32.mrb[0].mxu0
      %1622 = vmatprep.mubr.f32.mxu0 0.0
      %1623 = vmatmul.mubr.f32.gmra.mrb[0].mxu0 %v1520
      %v1624 = vpop.f32.mrb[0].mxu0
      %v1625 = vadd.f32 0.0, %v1624
      %v1626 = vpop.f32.mrb[0].mxu0
      %1627 = vmatprep.mubr.f32.mxu0 0.0
      %1628 = vmatmul.mubr.f32.gmra.mrb[0].mxu0 %v1523
      %v1629 = vpop.f32.mrb[0].mxu0
      %v1630 = vadd.f32 0.0, %v1629
      %v1631 = vpop.f32.mrb[0].mxu0
      %1632 = vdwg.mxu0
      %v1633 = vadd.f32 %v1484, %v1595
      %v1634 = vadd.f32 %v1485, %v1600
      %v1635 = vadd.f32 %v1486, %v1605
      %v1636 = vadd.f32 %v1487, %v1610
      %v1637 = vadd.f32 %v1488, %v1615
      %v1638 = vadd.f32 %v1489, %v1620
      %v1639 = vadd.f32 %v1490, %v1625
      %v1640 = vadd.f32 %v1491, %v1630
      %s1641 = scalar_lea.vmem %s593, 16
      %v1642 = vld [vmem:[%s1641] sm:$0xff]
      %v1643 = vld [vmem:[%s1641 + $0x10] sm:$0xff]
      %v1644 = vld [vmem:[%s1641 + $0x20] sm:$0xff]
      %v1645 = vld [vmem:[%s1641 + $0x30] sm:$0xff]
      %v1646 = vld [vmem:[%s1641 + $0x40] sm:$0xff]
      %v1647 = vld [vmem:[%s1641 + $0x50] sm:$0xff]
      %v1648 = vld [vmem:[%s1641 + $0x60] sm:$0xff]
      %v1649 = vld [vmem:[%s1641 + $0x70] sm:$0xff]
      %v1651 = vsel %vm634, %v1642, 0
      %v1654 = vsel %vm634, %v1643, 0
      %v1657 = vsel %vm634, %v1644, 0
      %v1660 = vsel %vm634, %v1645, 0
      %v1663 = vsel %vm634, %v1646, 0
      %v1666 = vsel %vm634, %v1647, 0
      %v1669 = vsel %vm634, %v1648, 0
      %v1672 = vsel %vm634, %v1649, 0
      %v1675 = vsel %vm659, %v616, 0
      %1677 = vmatprep.subr.mxu0 0.0
      %1678 = vmatpush1.msra.mxu0 %v1675
      %1679 = vmatprep.subr.mxu0 0.0
      %1680 = vmatpush1.msra.mxu0 0.0
      %1681 = vmatprep.subr.mxu0 0.0
      %1682 = vmatpush1.msra.mxu0 0.0
      %1683 = vmatprep.subr.mxu0 0.0
      %1684 = vmatpush1.msra.mxu0 0.0
      %1685 = vmatprep.subr.mxu0 0.0
      %1686 = vmatpush1.msra.mxu0 0.0
      %1687 = vmatprep.subr.mxu0 0.0
      %1688 = vmatpush1.msra.mxu0 0.0
      %1689 = vmatprep.subr.mxu0 0.0
      %1690 = vmatpush1.msra.mxu0 0.0
      %1691 = vmatprep.subr.mxu0 0.0
      %1692 = vmatpush1.msra.mxu0 0.0
      %1693 = vmatprep.subr.mxu0 0.0
      %1694 = vmatpush1.msra.mxu0 0.0
      %1695 = vmatprep.subr.mxu0 0.0
      %1696 = vmatpush1.msra.mxu0 0.0
      %1697 = vmatprep.subr.mxu0 0.0
      %1698 = vmatpush1.msra.mxu0 0.0
      %1699 = vmatprep.subr.mxu0 0.0
      %1700 = vmatpush1.msra.mxu0 0.0
      %1701 = vmatprep.subr.mxu0 0.0
      %1702 = vmatpush1.msra.mxu0 0.0
      %1703 = vmatprep.subr.mxu0 0.0
      %1704 = vmatpush1.msra.mxu0 0.0
      %1705 = vmatprep.subr.mxu0 0.0
      %1706 = vmatpush1.msra.mxu0 0.0
      %1707 = vmatprep.subr.mxu0 0.0
      %1708 = vmatpush1.msra.mxu0 0.0
      %1709 = vmatprep.subr.mxu0 0.0
      %1710 = vmatpush1.msra.mxu0 0.0
      %1711 = vmatprep.subr.mxu0 0.0
      %1712 = vmatpush1.msra.mxu0 0.0
      %1713 = vmatprep.subr.mxu0 0.0
      %1714 = vmatpush1.msra.mxu0 0.0
      %1715 = vmatprep.subr.mxu0 0.0
      %1716 = vmatpush1.msra.mxu0 0.0
      %1717 = vmatprep.subr.mxu0 0.0
      %1718 = vmatpush1.msra.mxu0 0.0
      %1719 = vmatprep.subr.mxu0 0.0
      %1720 = vmatpush1.msra.mxu0 0.0
      %1721 = vmatprep.subr.mxu0 0.0
      %1722 = vmatpush1.msra.mxu0 0.0
      %1723 = vmatprep.subr.mxu0 0.0
      %1724 = vmatpush1.msra.mxu0 0.0
      %1725 = vmatprep.subr.mxu0 0.0
      %1726 = vmatpush1.msra.mxu0 0.0
      %1727 = vmatprep.subr.mxu0 0.0
      %1728 = vmatpush1.msra.mxu0 0.0
      %1729 = vmatprep.subr.mxu0 0.0
      %1730 = vmatpush1.msra.mxu0 0.0
      %1731 = vmatprep.subr.mxu0 0.0
      %1732 = vmatpush1.msra.mxu0 0.0
      %1733 = vmatprep.subr.mxu0 0.0
      %1734 = vmatpush1.msra.mxu0 0.0
      %1735 = vmatprep.subr.mxu0 0.0
      %1736 = vmatpush1.msra.mxu0 0.0
      %1737 = vmatprep.subr.mxu0 0.0
      %1738 = vmatpush1.msra.mxu0 0.0
      %1739 = vmatprep.subr.mxu0 0.0
      %1740 = vmatpush1.msra.mxu0 0.0
      %1741 = vmatprep.mubr.f32.mxu0 0.0
      %1742 = vmatmul.mubr.f32.gmra.mrb[0].mxu0 %v1651
      %v1743 = vpop.f32.mrb[0].mxu0
      %v1744 = vadd.f32 0.0, %v1743
      %v1745 = vpop.f32.mrb[0].mxu0
      %1746 = vmatprep.mubr.f32.mxu0 0.0
      %1747 = vmatmul.mubr.f32.gmra.mrb[0].mxu0 %v1654
      %v1748 = vpop.f32.mrb[0].mxu0
      %v1749 = vadd.f32 0.0, %v1748
      %v1750 = vpop.f32.mrb[0].mxu0
      %1751 = vmatprep.mubr.f32.mxu0 0.0
      %1752 = vmatmul.mubr.f32.gmra.mrb[0].mxu0 %v1657
      %v1753 = vpop.f32.mrb[0].mxu0
      %v1754 = vadd.f32 0.0, %v1753
      %v1755 = vpop.f32.mrb[0].mxu0
      %1756 = vmatprep.mubr.f32.mxu0 0.0
      %1757 = vmatmul.mubr.f32.gmra.mrb[0].mxu0 %v1660
      %v1758 = vpop.f32.mrb[0].mxu0
      %v1759 = vadd.f32 0.0, %v1758
      %v1760 = vpop.f32.mrb[0].mxu0
      %1761 = vmatprep.mubr.f32.mxu0 0.0
      %1762 = vmatmul.mubr.f32.gmra.mrb[0].mxu0 %v1663
      %v1763 = vpop.f32.mrb[0].mxu0
      %v1764 = vadd.f32 0.0, %v1763
      %v1765 = vpop.f32.mrb[0].mxu0
      %1766 = vmatprep.mubr.f32.mxu0 0.0
      %1767 = vmatmul.mubr.f32.gmra.mrb[0].mxu0 %v1666
      %v1768 = vpop.f32.mrb[0].mxu0
      %v1769 = vadd.f32 0.0, %v1768
      %v1770 = vpop.f32.mrb[0].mxu0
      %1771 = vmatprep.mubr.f32.mxu0 0.0
      %1772 = vmatmul.mubr.f32.gmra.mrb[0].mxu0 %v1669
      %v1773 = vpop.f32.mrb[0].mxu0
      %v1774 = vadd.f32 0.0, %v1773
      %v1775 = vpop.f32.mrb[0].mxu0
      %1776 = vmatprep.mubr.f32.mxu0 0.0
      %1777 = vmatmul.mubr.f32.gmra.mrb[0].mxu0 %v1672
      %v1778 = vpop.f32.mrb[0].mxu0
      %v1779 = vadd.f32 0.0, %v1778
      %v1780 = vpop.f32.mrb[0].mxu0
      %1781 = vdwg.mxu0
      %v1782 = vadd.f32 %v1633, %v1744
      %v1783 = vadd.f32 %v1634, %v1749
      %v1784 = vadd.f32 %v1635, %v1754
      %v1785 = vadd.f32 %v1636, %v1759
      %v1786 = vadd.f32 %v1637, %v1764
      %v1787 = vadd.f32 %v1638, %v1769
      %v1788 = vadd.f32 %v1639, %v1774
      %v1789 = vadd.f32 %v1640, %v1779
      %v1790 = vld [vmem:[%s1492 + $0x1] sm:$0xff]
      %v1791 = vld [vmem:[%s1492 + $0x11] sm:$0xff]
      %v1792 = vld [vmem:[%s1492 + $0x21] sm:$0xff]
      %v1793 = vld [vmem:[%s1492 + $0x31] sm:$0xff]
      %v1794 = vld [vmem:[%s1492 + $0x41] sm:$0xff]
      %v1795 = vld [vmem:[%s1492 + $0x51] sm:$0xff]
      %v1796 = vld [vmem:[%s1492 + $0x61] sm:$0xff]
      %v1797 = vld [vmem:[%s1492 + $0x71] sm:$0xff]
      %v1799 = vsel %vm634, %v1790, 0
      %v1802 = vsel %vm634, %v1791, 0
      %v1805 = vsel %vm634, %v1792, 0
      %v1808 = vsel %vm634, %v1793, 0
      %v1811 = vsel %vm634, %v1794, 0
      %v1814 = vsel %vm634, %v1795, 0
      %v1817 = vsel %vm634, %v1796, 0
      %v1820 = vsel %vm634, %v1797, 0
      %v1823 = vsel %vm659, %v617, 0
      %1825 = vmatprep.subr.mxu0 0.0
      %1826 = vmatpush1.msra.mxu0 %v1823
      %1827 = vmatprep.subr.mxu0 0.0
      %1828 = vmatpush1.msra.mxu0 0.0
      %1829 = vmatprep.subr.mxu0 0.0
      %1830 = vmatpush1.msra.mxu0 0.0
      %1831 = vmatprep.subr.mxu0 0.0
      %1832 = vmatpush1.msra.mxu0 0.0
      %1833 = vmatprep.subr.mxu0 0.0
      %1834 = vmatpush1.msra.mxu0 0.0
      %1835 = vmatprep.subr.mxu0 0.0
      %1836 = vmatpush1.msra.mxu0 0.0
      %1837 = vmatprep.subr.mxu0 0.0
      %1838 = vmatpush1.msra.mxu0 0.0
      %1839 = vmatprep.subr.mxu0 0.0
      %1840 = vmatpush1.msra.mxu0 0.0
      %1841 = vmatprep.subr.mxu0 0.0
      %1842 = vmatpush1.msra.mxu0 0.0
      %1843 = vmatprep.subr.mxu0 0.0
      %1844 = vmatpush1.msra.mxu0 0.0
      %1845 = vmatprep.subr.mxu0 0.0
      %1846 = vmatpush1.msra.mxu0 0.0
      %1847 = vmatprep.subr.mxu0 0.0
      %1848 = vmatpush1.msra.mxu0 0.0
      %1849 = vmatprep.subr.mxu0 0.0
      %1850 = vmatpush1.msra.mxu0 0.0
      %1851 = vmatprep.subr.mxu0 0.0
      %1852 = vmatpush1.msra.mxu0 0.0
      %1853 = vmatprep.subr.mxu0 0.0
      %1854 = vmatpush1.msra.mxu0 0.0
      %1855 = vmatprep.subr.mxu0 0.0
      %1856 = vmatpush1.msra.mxu0 0.0
      %1857 = vmatprep.subr.mxu0 0.0
      %1858 = vmatpush1.msra.mxu0 0.0
      %1859 = vmatprep.subr.mxu0 0.0
      %1860 = vmatpush1.msra.mxu0 0.0
      %1861 = vmatprep.subr.mxu0 0.0
      %1862 = vmatpush1.msra.mxu0 0.0
      %1863 = vmatprep.subr.mxu0 0.0
      %1864 = vmatpush1.msra.mxu0 0.0
      %1865 = vmatprep.subr.mxu0 0.0
      %1866 = vmatpush1.msra.mxu0 0.0
      %1867 = vmatprep.subr.mxu0 0.0
      %1868 = vmatpush1.msra.mxu0 0.0
      %1869 = vmatprep.subr.mxu0 0.0
      %1870 = vmatpush1.msra.mxu0 0.0
      %1871 = vmatprep.subr.mxu0 0.0
      %1872 = vmatpush1.msra.mxu0 0.0
      %1873 = vmatprep.subr.mxu0 0.0
      %1874 = vmatpush1.msra.mxu0 0.0
      %1875 = vmatprep.subr.mxu0 0.0
      %1876 = vmatpush1.msra.mxu0 0.0
      %1877 = vmatprep.subr.mxu0 0.0
      %1878 = vmatpush1.msra.mxu0 0.0
      %1879 = vmatprep.subr.mxu0 0.0
      %1880 = vmatpush1.msra.mxu0 0.0
      %1881 = vmatprep.subr.mxu0 0.0
      %1882 = vmatpush1.msra.mxu0 0.0
      %1883 = vmatprep.subr.mxu0 0.0
      %1884 = vmatpush1.msra.mxu0 0.0
      %1885 = vmatprep.subr.mxu0 0.0
      %1886 = vmatpush1.msra.mxu0 0.0
      %1887 = vmatprep.subr.mxu0 0.0
      %1888 = vmatpush1.msra.mxu0 0.0
      %1889 = vmatprep.mubr.f32.mxu0 0.0
      %1890 = vmatmul.mubr.f32.gmra.mrb[0].mxu0 %v1799
      %v1891 = vpop.f32.mrb[0].mxu0
      %v1892 = vadd.f32 0.0, %v1891
      %v1893 = vpop.f32.mrb[0].mxu0
      %1894 = vmatprep.mubr.f32.mxu0 0.0
      %1895 = vmatmul.mubr.f32.gmra.mrb[0].mxu0 %v1802
      %v1896 = vpop.f32.mrb[0].mxu0
      %v1897 = vadd.f32 0.0, %v1896
      %v1898 = vpop.f32.mrb[0].mxu0
      %1899 = vmatprep.mubr.f32.mxu0 0.0
      %1900 = vmatmul.mubr.f32.gmra.mrb[0].mxu0 %v1805
      %v1901 = vpop.f32.mrb[0].mxu0
      %v1902 = vadd.f32 0.0, %v1901
      %v1903 = vpop.f32.mrb[0].mxu0
      %1904 = vmatprep.mubr.f32.mxu0 0.0
      %1905 = vmatmul.mubr.f32.gmra.mrb[0].mxu0 %v1808
      %v1906 = vpop.f32.mrb[0].mxu0
      %v1907 = vadd.f32 0.0, %v1906
      %v1908 = vpop.f32.mrb[0].mxu0
      %1909 = vmatprep.mubr.f32.mxu0 0.0
      %1910 = vmatmul.mubr.f32.gmra.mrb[0].mxu0 %v1811
      %v1911 = vpop.f32.mrb[0].mxu0
      %v1912 = vadd.f32 0.0, %v1911
      %v1913 = vpop.f32.mrb[0].mxu0
      %1914 = vmatprep.mubr.f32.mxu0 0.0
      %1915 = vmatmul.mubr.f32.gmra.mrb[0].mxu0 %v1814
      %v1916 = vpop.f32.mrb[0].mxu0
      %v1917 = vadd.f32 0.0, %v1916
      %v1918 = vpop.f32.mrb[0].mxu0
      %1919 = vmatprep.mubr.f32.mxu0 0.0
      %1920 = vmatmul.mubr.f32.gmra.mrb[0].mxu0 %v1817
      %v1921 = vpop.f32.mrb[0].mxu0
      %v1922 = vadd.f32 0.0, %v1921
      %v1923 = vpop.f32.mrb[0].mxu0
      %1924 = vmatprep.mubr.f32.mxu0 0.0
      %1925 = vmatmul.mubr.f32.gmra.mrb[0].mxu0 %v1820
      %v1926 = vpop.f32.mrb[0].mxu0
      %v1927 = vadd.f32 0.0, %v1926
      %v1928 = vpop.f32.mrb[0].mxu0
      %1929 = vdwg.mxu0
      %v1930 = vadd.f32 %v1782, %v1892
      %v1931 = vadd.f32 %v1783, %v1897
      %v1932 = vadd.f32 %v1784, %v1902
      %v1933 = vadd.f32 %v1785, %v1907
      %v1934 = vadd.f32 %v1786, %v1912
      %v1935 = vadd.f32 %v1787, %v1917
      %v1936 = vadd.f32 %v1788, %v1922
      %v1937 = vadd.f32 %v1789, %v1927
      %v1938 = vld [vmem:[%s5] sm:$0x1]
      %v1940 = vlaneseq
      %v1941 = vshrl.u32 %v1940, 7
      %v1942 = vsub.s32 0, %v1941
      %v1943 = vrot.slane %v1938, %v1942
      %v1945 = vmul.f32 %v1930, %v1943
      %v1946 = vmul.f32 %v1931, %v1943
      %v1947 = vmul.f32 %v1932, %v1943
      %v1948 = vmul.f32 %v1933, %v1943
      %v1949 = vmul.f32 %v1934, %v1943
      %v1950 = vmul.f32 %v1935, %v1943
      %v1951 = vmul.f32 %v1936, %v1943
      %v1952 = vmul.f32 %v1937, %v1943
      %v1953 = vld [vmem:[%s6] sm:$0x1]
      %v1955 = vlaneseq
      %v1956 = vshrl.u32 %v1955, 7
      %v1957 = vsub.s32 0, %v1956
      %v1958 = vrot.slane %v1953, %v1957
      %v1960 = vadd.f32 %v1945, %v1958
      %v1961 = vadd.f32 %v1946, %v1958
      %v1962 = vadd.f32 %v1947, %v1958
      %v1963 = vadd.f32 %v1948, %v1958
      %v1964 = vadd.f32 %v1949, %v1958
      %v1965 = vadd.f32 %v1950, %v1958
      %v1966 = vadd.f32 %v1951, %v1958
      %v1967 = vadd.f32 %v1952, %v1958
      %v1968 = vmax.f32 %v1960, 0.0
      %v1969 = vmax.f32 %v1961, 0.0
      %v1970 = vmax.f32 %v1962, 0.0
      %v1971 = vmax.f32 %v1963, 0.0
      %v1972 = vmax.f32 %v1964, 0.0
      %v1973 = vmax.f32 %v1965, 0.0
      %v1974 = vmax.f32 %v1966, 0.0
      %v1975 = vmax.f32 %v1967, 0.0
      %v1976 = vld [vmem:[%s7] sm:$0xff]
      %v1977 = vld [vmem:[%s7 + $0x8] sm:$0x1]
      %v1978 = vld [vmem:[%s8] sm:$0x1]
      %vm1979 = vcmask 261120
      %1980 = vst.msk [vmem:[#allocation2] sm:$0xff] %vm1979, 0.0
      %1981 = vst.msk [vmem:[#allocation2 + $0x8] sm:$0xff] %vm1979, 0.0
      %vm1982 = vcmask 253952
      %1983 = vst.msk [vmem:[#allocation2 + $0x10] sm:$0x1] %vm1982, 0.0
      %1984 = vst.msk [vmem:[#allocation2 + $0x18] sm:$0xff] %vm1979, 0.0
      %1985 = vst.msk [vmem:[#allocation2 + $0x20] sm:$0xff] %vm1979, 0.0
      %1986 = vst.msk [vmem:[#allocation2 + $0x28] sm:$0x1] %vm1982, 0.0
      %1987 = vst.msk [vmem:[#allocation2 + $0x30] sm:$0xff] %vm1979, 0.0
      %1988 = vst.msk [vmem:[#allocation2 + $0x38] sm:$0xff] %vm1979, 0.0
      %1989 = vst.msk [vmem:[#allocation2 + $0x40] sm:$0x1] %vm1982, 0.0
      %1990 = vst.msk [vmem:[#allocation2 + $0x48] sm:$0xff] %vm1979, 0.0
      %1991 = vst.msk [vmem:[#allocation2 + $0x50] sm:$0xff] %vm1979, 0.0
      %1992 = vst.msk [vmem:[#allocation2 + $0x58] sm:$0x1] %vm1982, 0.0
      %1993 = vst.msk [vmem:[#allocation2 + $0x60] sm:$0xff] %vm1979, 0.0
      %1994 = vst.msk [vmem:[#allocation2 + $0x68] sm:$0xff] %vm1979, 0.0
      %1995 = vst.msk [vmem:[#allocation2 + $0x70] sm:$0x1] %vm1982, 0.0
      %1996 = vst.msk [vmem:[#allocation2 + $0x78] sm:$0xff] %vm1979, 0.0
      %1997 = vst.msk [vmem:[#allocation2 + $0x80] sm:$0xff] %vm1979, 0.0
      %1998 = vst.msk [vmem:[#allocation2 + $0x88] sm:$0x1] %vm1982, 0.0
      %1999 = vst.msk [vmem:[#allocation2 + $0x90] sm:$0xff] %vm1979, 0.0
      %2000 = vst.msk [vmem:[#allocation2 + $0x98] sm:$0xff] %vm1979, 0.0
      %2001 = vst.msk [vmem:[#allocation2 + $0xa0] sm:$0x1] %vm1982, 0.0
      %2002 = vst.msk [vmem:[#allocation2 + $0xa8] sm:$0xff] %vm1979, 0.0
      %2003 = vst.msk [vmem:[#allocation2 + $0xb0] sm:$0xff] %vm1979, 0.0
      %2004 = vst.msk [vmem:[#allocation2 + $0xb8] sm:$0x1] %vm1982, 0.0
      %2005 = vst.msk [vmem:[#allocation2 + $0xc0] sm:$0xff] %vm1979, 0.0
      %2006 = vst.msk [vmem:[#allocation2 + $0xc8] sm:$0xff] %vm1979, 0.0
      %2007 = vst.msk [vmem:[#allocation2 + $0xd0] sm:$0x1] %vm1982, 0.0
      %2008 = vst.msk [vmem:[#allocation2 + $0xd8] sm:$0xff] %vm1979, 0.0
      %2009 = vst.msk [vmem:[#allocation2 + $0xe0] sm:$0xff] %vm1979, 0.0
      %2010 = vst.msk [vmem:[#allocation2 + $0xe8] sm:$0x1] %vm1982, 0.0
      %s2011 = scalar_lea.vmem [#allocation2], 24
      %2012 = vst.msk [vmem:[%s2011 + $0x8] sm:$0xff] %vm1979, %v1968
      %2013 = vst.msk [vmem:[%s2011 + $0x20] sm:$0xff] %vm1979, %v1969
      %2014 = vst.msk [vmem:[%s2011 + $0x38] sm:$0xff] %vm1979, %v1970
      %2015 = vst.msk [vmem:[%s2011 + $0x50] sm:$0xff] %vm1979, %v1971
      %2016 = vst.msk [vmem:[%s2011 + $0x68] sm:$0xff] %vm1979, %v1972
      %2017 = vst.msk [vmem:[%s2011 + $0x80] sm:$0xff] %vm1979, %v1973
      %2018 = vst.msk [vmem:[%s2011 + $0x98] sm:$0xff] %vm1979, %v1974
      %2019 = vst.msk [vmem:[%s2011 + $0xb0] sm:$0xff] %vm1979, %v1975
      %v2020 = vld [vmem:[#allocation2 + $0x7] sm:$0xff]
      %v2021 = vld [vmem:[#allocation2 + $0x1f] sm:$0xff]
      %v2022 = vld [vmem:[#allocation2 + $0x37] sm:$0xff]
      %v2023 = vld [vmem:[#allocation2 + $0x4f] sm:$0xff]
      %v2024 = vld [vmem:[#allocation2 + $0x67] sm:$0xff]
      %v2025 = vld [vmem:[#allocation2 + $0x7f] sm:$0xff]
      %v2026 = vld [vmem:[#allocation2 + $0x97] sm:$0xff]
      %v2027 = vld [vmem:[#allocation2 + $0xaf] sm:$0xff]
      %v2028 = vlaneseq
      %v2029 = vshrl.u32 %v2028, 7
      %v2030 = vsub.s32 0, %v2029
      %v2031 = vrot.slane %v1976, %v2030
      %v2032 = vmul.f32 %v2020, %v2031
      %v2033 = vmul.f32 %v2021, %v2031
      %v2034 = vmul.f32 %v2022, %v2031
      %v2035 = vmul.f32 %v2023, %v2031
      %v2036 = vmul.f32 %v2024, %v2031
      %v2037 = vmul.f32 %v2025, %v2031
      %v2038 = vmul.f32 %v2026, %v2031
      %v2039 = vmul.f32 %v2027, %v2031
      %v2040 = vadd.f32 %v2032, 0.0
      %v2041 = vadd.f32 %v2033, 0.0
      %v2042 = vadd.f32 %v2034, 0.0
      %v2043 = vadd.f32 %v2035, 0.0
      %v2044 = vadd.f32 %v2036, 0.0
      %v2045 = vadd.f32 %v2037, 0.0
      %v2046 = vadd.f32 %v2038, 0.0
      %v2047 = vadd.f32 %v2039, 0.0
      %v2048 = vld [vmem:[#allocation2 + $0x8] sm:$0xff]
      %v2049 = vld [vmem:[#allocation2 + $0x20] sm:$0xff]
      %v2050 = vld [vmem:[#allocation2 + $0x38] sm:$0xff]
      %v2051 = vld [vmem:[#allocation2 + $0x50] sm:$0xff]
      %v2052 = vld [vmem:[#allocation2 + $0x68] sm:$0xff]
      %v2053 = vld [vmem:[#allocation2 + $0x80] sm:$0xff]
      %v2054 = vld [vmem:[#allocation2 + $0x98] sm:$0xff]
      %v2055 = vld [vmem:[#allocation2 + $0xb0] sm:$0xff]
      %v2056 = vlaneseq
      %v2057 = vshrl.u32 %v2056, 7
      %v2058 = vsub.s32 1, %v2057
      %v2059 = vrot.slane %v1976, %v2058
      %v2060 = vmul.f32 %v2048, %v2059
      %v2061 = vmul.f32 %v2049, %v2059
      %v2062 = vmul.f32 %v2050, %v2059
      %v2063 = vmul.f32 %v2051, %v2059
      %v2064 = vmul.f32 %v2052, %v2059
      %v2065 = vmul.f32 %v2053, %v2059
      %v2066 = vmul.f32 %v2054, %v2059
      %v2067 = vmul.f32 %v2055, %v2059
      %v2068 = vadd.f32 %v2040, %v2060
      %v2069 = vadd.f32 %v2041, %v2061
      %v2070 = vadd.f32 %v2042, %v2062
      %v2071 = vadd.f32 %v2043, %v2063
      %v2072 = vadd.f32 %v2044, %v2064
      %v2073 = vadd.f32 %v2045, %v2065
      %v2074 = vadd.f32 %v2046, %v2066
      %v2075 = vadd.f32 %v2047, %v2067
      %v2076 = vld [vmem:[#allocation2 + $0x9] sm:$0xff]
      %v2077 = vld [vmem:[#allocation2 + $0x21] sm:$0xff]
      %v2078 = vld [vmem:[#allocation2 + $0x39] sm:$0xff]
      %v2079 = vld [vmem:[#allocation2 + $0x51] sm:$0xff]
      %v2080 = vld [vmem:[#allocation2 + $0x69] sm:$0xff]
      %v2081 = vld [vmem:[#allocation2 + $0x81] sm:$0xff]
      %v2082 = vld [vmem:[#allocation2 + $0x99] sm:$0xff]
      %v2083 = vld [vmem:[#allocation2 + $0xb1] sm:$0xff]
      %v2084 = vlaneseq
      %v2085 = vshrl.u32 %v2084, 7
      %v2086 = vsub.s32 2, %v2085
      %v2087 = vrot.slane %v1976, %v2086
      %v2088 = vmul.f32 %v2076, %v2087
      %v2089 = vmul.f32 %v2077, %v2087
      %v2090 = vmul.f32 %v2078, %v2087
      %v2091 = vmul.f32 %v2079, %v2087
      %v2092 = vmul.f32 %v2080, %v2087
      %v2093 = vmul.f32 %v2081, %v2087
      %v2094 = vmul.f32 %v2082, %v2087
      %v2095 = vmul.f32 %v2083, %v2087
      %v2096 = vadd.f32 %v2068, %v2088
      %v2097 = vadd.f32 %v2069, %v2089
      %v2098 = vadd.f32 %v2070, %v2090
      %v2099 = vadd.f32 %v2071, %v2091
      %v2100 = vadd.f32 %v2072, %v2092
      %v2101 = vadd.f32 %v2073, %v2093
      %v2102 = vadd.f32 %v2074, %v2094
      %v2103 = vadd.f32 %v2075, %v2095
      %v2104 = vld [vmem:[%s2011 + $0x7] sm:$0xff]
      %v2105 = vld [vmem:[%s2011 + $0x1f] sm:$0xff]
      %v2106 = vld [vmem:[%s2011 + $0x37] sm:$0xff]
      %v2107 = vld [vmem:[%s2011 + $0x4f] sm:$0xff]
      %v2108 = vld [vmem:[%s2011 + $0x67] sm:$0xff]
      %v2109 = vld [vmem:[%s2011 + $0x7f] sm:$0xff]
      %v2110 = vld [vmem:[%s2011 + $0x97] sm:$0xff]
      %v2111 = vld [vmem:[%s2011 + $0xaf] sm:$0xff]
      %v2112 = vlaneseq
      %v2113 = vshrl.u32 %v2112, 7
      %v2114 = vsub.s32 3, %v2113
      %v2115 = vrot.slane %v1976, %v2114
      %v2116 = vmul.f32 %v2104, %v2115
      %v2117 = vmul.f32 %v2105, %v2115
      %v2118 = vmul.f32 %v2106, %v2115
      %v2119 = vmul.f32 %v2107, %v2115
      %v2120 = vmul.f32 %v2108, %v2115
      %v2121 = vmul.f32 %v2109, %v2115
      %v2122 = vmul.f32 %v2110, %v2115
      %v2123 = vmul.f32 %v2111, %v2115
      %v2124 = vadd.f32 %v2096, %v2116
      %v2125 = vadd.f32 %v2097, %v2117
      %v2126 = vadd.f32 %v2098, %v2118
      %v2127 = vadd.f32 %v2099, %v2119
      %v2128 = vadd.f32 %v2100, %v2120
      %v2129 = vadd.f32 %v2101, %v2121
      %v2130 = vadd.f32 %v2102, %v2122
      %v2131 = vadd.f32 %v2103, %v2123
      %v2132 = vld [vmem:[%s2011 + $0x8] sm:$0xff]
      %v2133 = vld [vmem:[%s2011 + $0x20] sm:$0xff]
      %v2134 = vld [vmem:[%s2011 + $0x38] sm:$0xff]
      %v2135 = vld [vmem:[%s2011 + $0x50] sm:$0xff]
      %v2136 = vld [vmem:[%s2011 + $0x68] sm:$0xff]
      %v2137 = vld [vmem:[%s2011 + $0x80] sm:$0xff]
      %v2138 = vld [vmem:[%s2011 + $0x98] sm:$0xff]
      %v2139 = vld [vmem:[%s2011 + $0xb0] sm:$0xff]
      %v2140 = vlaneseq
      %v2141 = vshrl.u32 %v2140, 7
      %v2142 = vsub.s32 4, %v2141
      %v2143 = vrot.slane %v1976, %v2142
      %v2144 = vmul.f32 %v2132, %v2143
      %v2145 = vmul.f32 %v2133, %v2143
      %v2146 = vmul.f32 %v2134, %v2143
      %v2147 = vmul.f32 %v2135, %v2143
      %v2148 = vmul.f32 %v2136, %v2143
      %v2149 = vmul.f32 %v2137, %v2143
      %v2150 = vmul.f32 %v2138, %v2143
      %v2151 = vmul.f32 %v2139, %v2143
      %v2152 = vadd.f32 %v2124, %v2144
      %v2153 = vadd.f32 %v2125, %v2145
      %v2154 = vadd.f32 %v2126, %v2146
      %v2155 = vadd.f32 %v2127, %v2147
      %v2156 = vadd.f32 %v2128, %v2148
      %v2157 = vadd.f32 %v2129, %v2149
      %v2158 = vadd.f32 %v2130, %v2150
      %v2159 = vadd.f32 %v2131, %v2151
      %v2160 = vld [vmem:[%s2011 + $0x9] sm:$0xff]
      %v2161 = vld [vmem:[%s2011 + $0x21] sm:$0xff]
      %v2162 = vld [vmem:[%s2011 + $0x39] sm:$0xff]
      %v2163 = vld [vmem:[%s2011 + $0x51] sm:$0xff]
      %v2164 = vld [vmem:[%s2011 + $0x69] sm:$0xff]
      %v2165 = vld [vmem:[%s2011 + $0x81] sm:$0xff]
      %v2166 = vld [vmem:[%s2011 + $0x99] sm:$0xff]
      %v2167 = vld [vmem:[%s2011 + $0xb1] sm:$0xff]
      %v2168 = vlaneseq
      %v2169 = vshrl.u32 %v2168, 7
      %v2170 = vsub.s32 5, %v2169
      %v2171 = vrot.slane %v1976, %v2170
      %v2172 = vmul.f32 %v2160, %v2171
      %v2173 = vmul.f32 %v2161, %v2171
      %v2174 = vmul.f32 %v2162, %v2171
      %v2175 = vmul.f32 %v2163, %v2171
      %v2176 = vmul.f32 %v2164, %v2171
      %v2177 = vmul.f32 %v2165, %v2171
      %v2178 = vmul.f32 %v2166, %v2171
      %v2179 = vmul.f32 %v2167, %v2171
      %v2180 = vadd.f32 %v2152, %v2172
      %v2181 = vadd.f32 %v2153, %v2173
      %v2182 = vadd.f32 %v2154, %v2174
      %v2183 = vadd.f32 %v2155, %v2175
      %v2184 = vadd.f32 %v2156, %v2176
      %v2185 = vadd.f32 %v2157, %v2177
      %v2186 = vadd.f32 %v2158, %v2178
      %v2187 = vadd.f32 %v2159, %v2179
      %s2188 = scalar_lea.vmem [#allocation2], 48
      %v2189 = vld [vmem:[%s2188 + $0x7] sm:$0xff]
      %v2190 = vld [vmem:[%s2188 + $0x1f] sm:$0xff]
      %v2191 = vld [vmem:[%s2188 + $0x37] sm:$0xff]
      %v2192 = vld [vmem:[%s2188 + $0x4f] sm:$0xff]
      %v2193 = vld [vmem:[%s2188 + $0x67] sm:$0xff]
      %v2194 = vld [vmem:[%s2188 + $0x7f] sm:$0xff]
      %v2195 = vld [vmem:[%s2188 + $0x97] sm:$0xff]
      %v2196 = vld [vmem:[%s2188 + $0xaf] sm:$0xff]
      %v2197 = vlaneseq
      %v2198 = vshrl.u32 %v2197, 7
      %v2199 = vsub.s32 6, %v2198
      %v2200 = vrot.slane %v1976, %v2199
      %v2201 = vmul.f32 %v2189, %v2200
      %v2202 = vmul.f32 %v2190, %v2200
      %v2203 = vmul.f32 %v2191, %v2200
      %v2204 = vmul.f32 %v2192, %v2200
      %v2205 = vmul.f32 %v2193, %v2200
      %v2206 = vmul.f32 %v2194, %v2200
      %v2207 = vmul.f32 %v2195, %v2200
      %v2208 = vmul.f32 %v2196, %v2200
      %v2209 = vadd.f32 %v2180, %v2201
      %v2210 = vadd.f32 %v2181, %v2202
      %v2211 = vadd.f32 %v2182, %v2203
      %v2212 = vadd.f32 %v2183, %v2204
      %v2213 = vadd.f32 %v2184, %v2205
      %v2214 = vadd.f32 %v2185, %v2206
      %v2215 = vadd.f32 %v2186, %v2207
      %v2216 = vadd.f32 %v2187, %v2208
      %v2217 = vld [vmem:[%s2188 + $0x8] sm:$0xff]
      %v2218 = vld [vmem:[%s2188 + $0x20] sm:$0xff]
      %v2219 = vld [vmem:[%s2188 + $0x38] sm:$0xff]
      %v2220 = vld [vmem:[%s2188 + $0x50] sm:$0xff]
      %v2221 = vld [vmem:[%s2188 + $0x68] sm:$0xff]
      %v2222 = vld [vmem:[%s2188 + $0x80] sm:$0xff]
      %v2223 = vld [vmem:[%s2188 + $0x98] sm:$0xff]
      %v2224 = vld [vmem:[%s2188 + $0xb0] sm:$0xff]
      %v2225 = vlaneseq
      %v2226 = vshrl.u32 %v2225, 7
      %v2227 = vsub.s32 7, %v2226
      %v2228 = vrot.slane %v1976, %v2227
      %v2229 = vmul.f32 %v2217, %v2228
      %v2230 = vmul.f32 %v2218, %v2228
      %v2231 = vmul.f32 %v2219, %v2228
      %v2232 = vmul.f32 %v2220, %v2228
      %v2233 = vmul.f32 %v2221, %v2228
      %v2234 = vmul.f32 %v2222, %v2228
      %v2235 = vmul.f32 %v2223, %v2228
      %v2236 = vmul.f32 %v2224, %v2228
      %v2237 = vadd.f32 %v2209, %v2229
      %v2238 = vadd.f32 %v2210, %v2230
      %v2239 = vadd.f32 %v2211, %v2231
      %v2240 = vadd.f32 %v2212, %v2232
      %v2241 = vadd.f32 %v2213, %v2233
      %v2242 = vadd.f32 %v2214, %v2234
      %v2243 = vadd.f32 %v2215, %v2235
      %v2244 = vadd.f32 %v2216, %v2236
      %v2245 = vld [vmem:[%s2188 + $0x9] sm:$0xff]
      %v2246 = vld [vmem:[%s2188 + $0x21] sm:$0xff]
      %v2247 = vld [vmem:[%s2188 + $0x39] sm:$0xff]
      %v2248 = vld [vmem:[%s2188 + $0x51] sm:$0xff]
      %v2249 = vld [vmem:[%s2188 + $0x69] sm:$0xff]
      %v2250 = vld [vmem:[%s2188 + $0x81] sm:$0xff]
      %v2251 = vld [vmem:[%s2188 + $0x99] sm:$0xff]
      %v2252 = vld [vmem:[%s2188 + $0xb1] sm:$0xff]
      %v2253 = vlaneseq
      %v2254 = vshrl.u32 %v2253, 7
      %v2255 = vsub.s32 0, %v2254
      %v2256 = vrot.slane %v1977, %v2255
      %v2257 = vmul.f32 %v2245, %v2256
      %v2258 = vmul.f32 %v2246, %v2256
      %v2259 = vmul.f32 %v2247, %v2256
      %v2260 = vmul.f32 %v2248, %v2256
      %v2261 = vmul.f32 %v2249, %v2256
      %v2262 = vmul.f32 %v2250, %v2256
      %v2263 = vmul.f32 %v2251, %v2256
      %v2264 = vmul.f32 %v2252, %v2256
      %v2265 = vadd.f32 %v2237, %v2257
      %v2266 = vadd.f32 %v2238, %v2258
      %v2267 = vadd.f32 %v2239, %v2259
      %v2268 = vadd.f32 %v2240, %v2260
      %v2269 = vadd.f32 %v2241, %v2261
      %v2270 = vadd.f32 %v2242, %v2262
      %v2271 = vadd.f32 %v2243, %v2263
      %v2272 = vadd.f32 %v2244, %v2264
      %v2274 = vlaneseq
      %v2275 = vshrl.u32 %v2274, 7
      %v2276 = vsub.s32 0, %v2275
      %v2277 = vrot.slane %v1978, %v2276
      %v2279 = vadd.f32 %v2265, %v2277
      %v2280 = vadd.f32 %v2266, %v2277
      %v2281 = vadd.f32 %v2267, %v2277
      %v2282 = vadd.f32 %v2268, %v2277
      %v2283 = vadd.f32 %v2269, %v2277
      %v2284 = vadd.f32 %v2270, %v2277
      %v2285 = vadd.f32 %v2271, %v2277
      %v2286 = vadd.f32 %v2272, %v2277
      %v2287 = vld [vmem:[%s9] sm:$0xff]
      %v2288 = vld [vmem:[%s9 + $0x8] sm:$0xff]
      %v2289 = vld [vmem:[%s9 + $0x10] sm:$0xff]
      %v2290 = vld [vmem:[%s9 + $0x18] sm:$0xff]
      %v2291 = vld [vmem:[%s10] sm:$0x1]
      %v2292 = vld [vmem:[%s11] sm:$0x1]
      %v2294 = vsel %vm1979, %v2279, 0
      %v2297 = vsel %vm1979, %v2280, 0
      %v2300 = vsel %vm1979, %v2281, 0
      %v2303 = vsel %vm1979, %v2282, 0
      %v2306 = vsel %vm1979, %v2283, 0
      %v2309 = vsel %vm1979, %v2284, 0
      %v2312 = vsel %vm1979, %v2285, 0
      %v2315 = vsel %vm1979, %v2286, 0
      %2317 = vmatprep.subr.mxu0 0.0
      %2318 = vmatpush1.msra.mxu0 %v2287
      %2319 = vmatprep.subr.mxu0 0.0
      %2320 = vmatpush1.msra.mxu0 %v2288
      %2321 = vmatprep.subr.mxu0 0.0
      %2322 = vmatpush1.msra.mxu0 %v2289
      %2323 = vmatprep.subr.mxu0 0.0
      %2324 = vmatpush1.msra.mxu0 %v2290
      %2325 = vmatprep.subr.mxu0 0.0
      %2326 = vmatpush1.msra.mxu0 0.0
      %2327 = vmatprep.subr.mxu0 0.0
      %2328 = vmatpush1.msra.mxu0 0.0
      %2329 = vmatprep.subr.mxu0 0.0
      %2330 = vmatpush1.msra.mxu0 0.0
      %2331 = vmatprep.subr.mxu0 0.0
      %2332 = vmatpush1.msra.mxu0 0.0
      %2333 = vmatprep.subr.mxu0 0.0
      %2334 = vmatpush1.msra.mxu0 0.0
      %2335 = vmatprep.subr.mxu0 0.0
      %2336 = vmatpush1.msra.mxu0 0.0
      %2337 = vmatprep.subr.mxu0 0.0
      %2338 = vmatpush1.msra.mxu0 0.0
      %2339 = vmatprep.subr.mxu0 0.0
      %2340 = vmatpush1.msra.mxu0 0.0
      %2341 = vmatprep.subr.mxu0 0.0
      %2342 = vmatpush1.msra.mxu0 0.0
      %2343 = vmatprep.subr.mxu0 0.0
      %2344 = vmatpush1.msra.mxu0 0.0
      %2345 = vmatprep.subr.mxu0 0.0
      %2346 = vmatpush1.msra.mxu0 0.0
      %2347 = vmatprep.subr.mxu0 0.0
      %2348 = vmatpush1.msra.mxu0 0.0
      %2349 = vmatprep.subr.mxu0 0.0
      %2350 = vmatpush1.msra.mxu0 0.0
      %2351 = vmatprep.subr.mxu0 0.0
      %2352 = vmatpush1.msra.mxu0 0.0
      %2353 = vmatprep.subr.mxu0 0.0
      %2354 = vmatpush1.msra.mxu0 0.0
      %2355 = vmatprep.subr.mxu0 0.0
      %2356 = vmatpush1.msra.mxu0 0.0
      %2357 = vmatprep.subr.mxu0 0.0
      %2358 = vmatpush1.msra.mxu0 0.0
      %2359 = vmatprep.subr.mxu0 0.0
      %2360 = vmatpush1.msra.mxu0 0.0
      %2361 = vmatprep.subr.mxu0 0.0
      %2362 = vmatpush1.msra.mxu0 0.0
      %2363 = vmatprep.subr.mxu0 0.0
      %2364 = vmatpush1.msra.mxu0 0.0
      %2365 = vmatprep.subr.mxu0 0.0
      %2366 = vmatpush1.msra.mxu0 0.0
      %2367 = vmatprep.subr.mxu0 0.0
      %2368 = vmatpush1.msra.mxu0 0.0
      %2369 = vmatprep.subr.mxu0 0.0
      %2370 = vmatpush1.msra.mxu0 0.0
      %2371 = vmatprep.subr.mxu0 0.0
      %2372 = vmatpush1.msra.mxu0 0.0
      %2373 = vmatprep.subr.mxu0 0.0
      %2374 = vmatpush1.msra.mxu0 0.0
      %2375 = vmatprep.subr.mxu0 0.0
      %2376 = vmatpush1.msra.mxu0 0.0
      %2377 = vmatprep.subr.mxu0 0.0
      %2378 = vmatpush1.msra.mxu0 0.0
      %2379 = vmatprep.subr.mxu0 0.0
      %2380 = vmatpush1.msra.mxu0 0.0
      %2381 = vmatprep.mubr.f32.mxu0 0.0
      %2382 = vmatmul.mubr.f32.gmra.mrb[0].mxu0 %v2294
      %v2383 = vpop.f32.mrb[0].mxu0
      %v2384 = vadd.f32 0.0, %v2383
      %v2385 = vpop.f32.mrb[0].mxu0
      %2386 = vmatprep.mubr.f32.mxu0 0.0
      %2387 = vmatmul.mubr.f32.gmra.mrb[0].mxu0 %v2297
      %v2388 = vpop.f32.mrb[0].mxu0
      %v2389 = vadd.f32 0.0, %v2388
      %v2390 = vpop.f32.mrb[0].mxu0
      %2391 = vmatprep.mubr.f32.mxu0 0.0
      %2392 = vmatmul.mubr.f32.gmra.mrb[0].mxu0 %v2300
      %v2393 = vpop.f32.mrb[0].mxu0
      %v2394 = vadd.f32 0.0, %v2393
      %v2395 = vpop.f32.mrb[0].mxu0
      %2396 = vmatprep.mubr.f32.mxu0 0.0
      %2397 = vmatmul.mubr.f32.gmra.mrb[0].mxu0 %v2303
      %v2398 = vpop.f32.mrb[0].mxu0
      %v2399 = vadd.f32 0.0, %v2398
      %v2400 = vpop.f32.mrb[0].mxu0
      %2401 = vmatprep.mubr.f32.mxu0 0.0
      %2402 = vmatmul.mubr.f32.gmra.mrb[0].mxu0 %v2306
      %v2403 = vpop.f32.mrb[0].mxu0
      %v2404 = vadd.f32 0.0, %v2403
      %v2405 = vpop.f32.mrb[0].mxu0
      %2406 = vmatprep.mubr.f32.mxu0 0.0
      %2407 = vmatmul.mubr.f32.gmra.mrb[0].mxu0 %v2309
      %v2408 = vpop.f32.mrb[0].mxu0
      %v2409 = vadd.f32 0.0, %v2408
      %v2410 = vpop.f32.mrb[0].mxu0
      %2411 = vmatprep.mubr.f32.mxu0 0.0
      %2412 = vmatmul.mubr.f32.gmra.mrb[0].mxu0 %v2312
      %v2413 = vpop.f32.mrb[0].mxu0
      %v2414 = vadd.f32 0.0, %v2413
      %v2415 = vpop.f32.mrb[0].mxu0
      %2416 = vmatprep.mubr.f32.mxu0 0.0
      %2417 = vmatmul.mubr.f32.gmra.mrb[0].mxu0 %v2315
      %v2418 = vpop.f32.mrb[0].mxu0
      %v2419 = vadd.f32 0.0, %v2418
      %v2420 = vpop.f32.mrb[0].mxu0
      %2421 = vdwg.mxu0
      %v2423 = vlaneseq
      %v2424 = vshrl.u32 %v2423, 7
      %v2425 = vsub.s32 0, %v2424
      %v2426 = vrot.slane %v2291, %v2425
      %v2428 = vmul.f32 %v2384, %v2426
      %v2429 = vmul.f32 %v2389, %v2426
      %v2430 = vmul.f32 %v2394, %v2426
      %v2431 = vmul.f32 %v2399, %v2426
      %v2432 = vmul.f32 %v2404, %v2426
      %v2433 = vmul.f32 %v2409, %v2426
      %v2434 = vmul.f32 %v2414, %v2426
      %v2435 = vmul.f32 %v2419, %v2426
      %v2437 = vlaneseq
      %v2438 = vshrl.u32 %v2437, 7
      %v2439 = vsub.s32 0, %v2438
      %v2440 = vrot.slane %v2292, %v2439
      %v2442 = vadd.f32 %v2428, %v2440
      %v2443 = vadd.f32 %v2429, %v2440
      %v2444 = vadd.f32 %v2430, %v2440
      %v2445 = vadd.f32 %v2431, %v2440
      %v2446 = vadd.f32 %v2432, %v2440
      %v2447 = vadd.f32 %v2433, %v2440
      %v2448 = vadd.f32 %v2434, %v2440
      %v2449 = vadd.f32 %v2435, %v2440
      %v2450 = vmax.f32 %v2442, 0.0
      %v2451 = vmax.f32 %v2443, 0.0
      %v2452 = vmax.f32 %v2444, 0.0
      %v2453 = vmax.f32 %v2445, 0.0
      %v2454 = vmax.f32 %v2446, 0.0
      %v2455 = vmax.f32 %v2447, 0.0
      %v2456 = vmax.f32 %v2448, 0.0
      %v2457 = vmax.f32 %v2449, 0.0
      %v2458 = vld [vmem:[%s12] sm:$0xff]
      %v2459 = vld [vmem:[%s12 + $0x8] sm:$0x1]
      %v2460 = vld [vmem:[%s13] sm:$0x1]
      %2461 = vst.msk [vmem:[#allocation2] sm:$0xff] %vm1979, 0.0
      %2462 = vst.msk [vmem:[#allocation2 + $0x8] sm:$0xff] %vm1979, 0.0
      %2463 = vst.msk [vmem:[#allocation2 + $0x10] sm:$0x1] %vm1982, 0.0
      %2464 = vst.msk [vmem:[#allocation2 + $0x18] sm:$0xff] %vm1979, 0.0
      %2465 = vst.msk [vmem:[#allocation2 + $0x20] sm:$0xff] %vm1979, 0.0
      %2466 = vst.msk [vmem:[#allocation2 + $0x28] sm:$0x1] %vm1982, 0.0
      %2467 = vst.msk [vmem:[#allocation2 + $0x30] sm:$0xff] %vm1979, 0.0
      %2468 = vst.msk [vmem:[#allocation2 + $0x38] sm:$0xff] %vm1979, 0.0
      %2469 = vst.msk [vmem:[#allocation2 + $0x40] sm:$0x1] %vm1982, 0.0
      %2470 = vst.msk [vmem:[#allocation2 + $0x48] sm:$0xff] %vm1979, 0.0
      %2471 = vst.msk [vmem:[#allocation2 + $0x50] sm:$0xff] %vm1979, 0.0
      %2472 = vst.msk [vmem:[#allocation2 + $0x58] sm:$0x1] %vm1982, 0.0
      %2473 = vst.msk [vmem:[#allocation2 + $0x60] sm:$0xff] %vm1979, 0.0
      %2474 = vst.msk [vmem:[#allocation2 + $0x68] sm:$0xff] %vm1979, 0.0
      %2475 = vst.msk [vmem:[#allocation2 + $0x70] sm:$0x1] %vm1982, 0.0
      %2476 = vst.msk [vmem:[#allocation2 + $0x78] sm:$0xff] %vm1979, 0.0
      %2477 = vst.msk [vmem:[#allocation2 + $0x80] sm:$0xff] %vm1979, 0.0
      %2478 = vst.msk [vmem:[#allocation2 + $0x88] sm:$0x1] %vm1982, 0.0
      %2479 = vst.msk [vmem:[#allocation2 + $0x90] sm:$0xff] %vm1979, 0.0
      %2480 = vst.msk [vmem:[#allocation2 + $0x98] sm:$0xff] %vm1979, 0.0
      %2481 = vst.msk [vmem:[#allocation2 + $0xa0] sm:$0x1] %vm1982, 0.0
      %2482 = vst.msk [vmem:[#allocation2 + $0xa8] sm:$0xff] %vm1979, 0.0
      %2483 = vst.msk [vmem:[#allocation2 + $0xb0] sm:$0xff] %vm1979, 0.0
      %2484 = vst.msk [vmem:[#allocation2 + $0xb8] sm:$0x1] %vm1982, 0.0
      %2485 = vst.msk [vmem:[#allocation2 + $0xc0] sm:$0xff] %vm1979, 0.0
      %2486 = vst.msk [vmem:[#allocation2 + $0xc8] sm:$0xff] %vm1979, 0.0
      %2487 = vst.msk [vmem:[#allocation2 + $0xd0] sm:$0x1] %vm1982, 0.0
      %2488 = vst.msk [vmem:[#allocation2 + $0xd8] sm:$0xff] %vm1979, 0.0
      %2489 = vst.msk [vmem:[#allocation2 + $0xe0] sm:$0xff] %vm1979, 0.0
      %2490 = vst.msk [vmem:[#allocation2 + $0xe8] sm:$0x1] %vm1982, 0.0
      %2491 = vst.msk [vmem:[%s2011 + $0x8] sm:$0xff] %vm1979, %v2450
      %2492 = vst.msk [vmem:[%s2011 + $0x20] sm:$0xff] %vm1979, %v2451
      %2493 = vst.msk [vmem:[%s2011 + $0x38] sm:$0xff] %vm1979, %v2452
      %2494 = vst.msk [vmem:[%s2011 + $0x50] sm:$0xff] %vm1979, %v2453
      %2495 = vst.msk [vmem:[%s2011 + $0x68] sm:$0xff] %vm1979, %v2454
      %2496 = vst.msk [vmem:[%s2011 + $0x80] sm:$0xff] %vm1979, %v2455
      %2497 = vst.msk [vmem:[%s2011 + $0x98] sm:$0xff] %vm1979, %v2456
      %2498 = vst.msk [vmem:[%s2011 + $0xb0] sm:$0xff] %vm1979, %v2457
      %v2499 = vld [vmem:[#allocation2 + $0x7] sm:$0xff]
      %v2500 = vld [vmem:[#allocation2 + $0x1f] sm:$0xff]
      %v2501 = vld [vmem:[#allocation2 + $0x37] sm:$0xff]
      %v2502 = vld [vmem:[#allocation2 + $0x4f] sm:$0xff]
      %v2503 = vld [vmem:[#allocation2 + $0x67] sm:$0xff]
      %v2504 = vld [vmem:[#allocation2 + $0x7f] sm:$0xff]
      %v2505 = vld [vmem:[#allocation2 + $0x97] sm:$0xff]
      %v2506 = vld [vmem:[#allocation2 + $0xaf] sm:$0xff]
      %v2507 = vlaneseq
      %v2508 = vshrl.u32 %v2507, 7
      %v2509 = vsub.s32 0, %v2508
      %v2510 = vrot.slane %v2458, %v2509
      %v2511 = vmul.f32 %v2499, %v2510
      %v2512 = vmul.f32 %v2500, %v2510
      %v2513 = vmul.f32 %v2501, %v2510
      %v2514 = vmul.f32 %v2502, %v2510
      %v2515 = vmul.f32 %v2503, %v2510
      %v2516 = vmul.f32 %v2504, %v2510
      %v2517 = vmul.f32 %v2505, %v2510
      %v2518 = vmul.f32 %v2506, %v2510
      %v2519 = vadd.f32 %v2511, 0.0
      %v2520 = vadd.f32 %v2512, 0.0
      %v2521 = vadd.f32 %v2513, 0.0
      %v2522 = vadd.f32 %v2514, 0.0
      %v2523 = vadd.f32 %v2515, 0.0
      %v2524 = vadd.f32 %v2516, 0.0
      %v2525 = vadd.f32 %v2517, 0.0
      %v2526 = vadd.f32 %v2518, 0.0
      %v2527 = vld [vmem:[#allocation2 + $0x8] sm:$0xff]
      %v2528 = vld [vmem:[#allocation2 + $0x20] sm:$0xff]
      %v2529 = vld [vmem:[#allocation2 + $0x38] sm:$0xff]
      %v2530 = vld [vmem:[#allocation2 + $0x50] sm:$0xff]
      %v2531 = vld [vmem:[#allocation2 + $0x68] sm:$0xff]
      %v2532 = vld [vmem:[#allocation2 + $0x80] sm:$0xff]
      %v2533 = vld [vmem:[#allocation2 + $0x98] sm:$0xff]
      %v2534 = vld [vmem:[#allocation2 + $0xb0] sm:$0xff]
      %v2535 = vlaneseq
      %v2536 = vshrl.u32 %v2535, 7
      %v2537 = vsub.s32 1, %v2536
      %v2538 = vrot.slane %v2458, %v2537
      %v2539 = vmul.f32 %v2527, %v2538
      %v2540 = vmul.f32 %v2528, %v2538
      %v2541 = vmul.f32 %v2529, %v2538
      %v2542 = vmul.f32 %v2530, %v2538
      %v2543 = vmul.f32 %v2531, %v2538
      %v2544 = vmul.f32 %v2532, %v2538
      %v2545 = vmul.f32 %v2533, %v2538
      %v2546 = vmul.f32 %v2534, %v2538
      %v2547 = vadd.f32 %v2519, %v2539
      %v2548 = vadd.f32 %v2520, %v2540
      %v2549 = vadd.f32 %v2521, %v2541
      %v2550 = vadd.f32 %v2522, %v2542
      %v2551 = vadd.f32 %v2523, %v2543
      %v2552 = vadd.f32 %v2524, %v2544
      %v2553 = vadd.f32 %v2525, %v2545
      %v2554 = vadd.f32 %v2526, %v2546
      %v2555 = vld [vmem:[#allocation2 + $0x9] sm:$0xff]
      %v2556 = vld [vmem:[#allocation2 + $0x21] sm:$0xff]
      %v2557 = vld [vmem:[#allocation2 + $0x39] sm:$0xff]
      %v2558 = vld [vmem:[#allocation2 + $0x51] sm:$0xff]
      %v2559 = vld [vmem:[#allocation2 + $0x69] sm:$0xff]
      %v2560 = vld [vmem:[#allocation2 + $0x81] sm:$0xff]
      %v2561 = vld [vmem:[#allocation2 + $0x99] sm:$0xff]
      %v2562 = vld [vmem:[#allocation2 + $0xb1] sm:$0xff]
      %v2563 = vlaneseq
      %v2564 = vshrl.u32 %v2563, 7
      %v2565 = vsub.s32 2, %v2564
      %v2566 = vrot.slane %v2458, %v2565
      %v2567 = vmul.f32 %v2555, %v2566
      %v2568 = vmul.f32 %v2556, %v2566
      %v2569 = vmul.f32 %v2557, %v2566
      %v2570 = vmul.f32 %v2558, %v2566
      %v2571 = vmul.f32 %v2559, %v2566
      %v2572 = vmul.f32 %v2560, %v2566
      %v2573 = vmul.f32 %v2561, %v2566
      %v2574 = vmul.f32 %v2562, %v2566
      %v2575 = vadd.f32 %v2547, %v2567
      %v2576 = vadd.f32 %v2548, %v2568
      %v2577 = vadd.f32 %v2549, %v2569
      %v2578 = vadd.f32 %v2550, %v2570
      %v2579 = vadd.f32 %v2551, %v2571
      %v2580 = vadd.f32 %v2552, %v2572
      %v2581 = vadd.f32 %v2553, %v2573
      %v2582 = vadd.f32 %v2554, %v2574
      %v2583 = vld [vmem:[%s2011 + $0x7] sm:$0xff]
      %v2584 = vld [vmem:[%s2011 + $0x1f] sm:$0xff]
      %v2585 = vld [vmem:[%s2011 + $0x37] sm:$0xff]
      %v2586 = vld [vmem:[%s2011 + $0x4f] sm:$0xff]
      %v2587 = vld [vmem:[%s2011 + $0x67] sm:$0xff]
      %v2588 = vld [vmem:[%s2011 + $0x7f] sm:$0xff]
      %v2589 = vld [vmem:[%s2011 + $0x97] sm:$0xff]
      %v2590 = vld [vmem:[%s2011 + $0xaf] sm:$0xff]
      %v2591 = vlaneseq
      %v2592 = vshrl.u32 %v2591, 7
      %v2593 = vsub.s32 3, %v2592
      %v2594 = vrot.slane %v2458, %v2593
      %v2595 = vmul.f32 %v2583, %v2594
      %v2596 = vmul.f32 %v2584, %v2594
      %v2597 = vmul.f32 %v2585, %v2594
      %v2598 = vmul.f32 %v2586, %v2594
      %v2599 = vmul.f32 %v2587, %v2594
      %v2600 = vmul.f32 %v2588, %v2594
      %v2601 = vmul.f32 %v2589, %v2594
      %v2602 = vmul.f32 %v2590, %v2594
      %v2603 = vadd.f32 %v2575, %v2595
      %v2604 = vadd.f32 %v2576, %v2596
      %v2605 = vadd.f32 %v2577, %v2597
      %v2606 = vadd.f32 %v2578, %v2598
      %v2607 = vadd.f32 %v2579, %v2599
      %v2608 = vadd.f32 %v2580, %v2600
      %v2609 = vadd.f32 %v2581, %v2601
      %v2610 = vadd.f32 %v2582, %v2602
      %v2611 = vld [vmem:[%s2011 + $0x8] sm:$0xff]
      %v2612 = vld [vmem:[%s2011 + $0x20] sm:$0xff]
      %v2613 = vld [vmem:[%s2011 + $0x38] sm:$0xff]
      %v2614 = vld [vmem:[%s2011 + $0x50] sm:$0xff]
      %v2615 = vld [vmem:[%s2011 + $0x68] sm:$0xff]
      %v2616 = vld [vmem:[%s2011 + $0x80] sm:$0xff]
      %v2617 = vld [vmem:[%s2011 + $0x98] sm:$0xff]
      %v2618 = vld [vmem:[%s2011 + $0xb0] sm:$0xff]
      %v2619 = vlaneseq
      %v2620 = vshrl.u32 %v2619, 7
      %v2621 = vsub.s32 4, %v2620
      %v2622 = vrot.slane %v2458, %v2621
      %v2623 = vmul.f32 %v2611, %v2622
      %v2624 = vmul.f32 %v2612, %v2622
      %v2625 = vmul.f32 %v2613, %v2622
      %v2626 = vmul.f32 %v2614, %v2622
      %v2627 = vmul.f32 %v2615, %v2622
      %v2628 = vmul.f32 %v2616, %v2622
      %v2629 = vmul.f32 %v2617, %v2622
      %v2630 = vmul.f32 %v2618, %v2622
      %v2631 = vadd.f32 %v2603, %v2623
      %v2632 = vadd.f32 %v2604, %v2624
      %v2633 = vadd.f32 %v2605, %v2625
      %v2634 = vadd.f32 %v2606, %v2626
      %v2635 = vadd.f32 %v2607, %v2627
      %v2636 = vadd.f32 %v2608, %v2628
      %v2637 = vadd.f32 %v2609, %v2629
      %v2638 = vadd.f32 %v2610, %v2630
      %v2639 = vld [vmem:[%s2011 + $0x9] sm:$0xff]
      %v2640 = vld [vmem:[%s2011 + $0x21] sm:$0xff]
      %v2641 = vld [vmem:[%s2011 + $0x39] sm:$0xff]
      %v2642 = vld [vmem:[%s2011 + $0x51] sm:$0xff]
      %v2643 = vld [vmem:[%s2011 + $0x69] sm:$0xff]
      %v2644 = vld [vmem:[%s2011 + $0x81] sm:$0xff]
      %v2645 = vld [vmem:[%s2011 + $0x99] sm:$0xff]
      %v2646 = vld [vmem:[%s2011 + $0xb1] sm:$0xff]
      %v2647 = vlaneseq
      %v2648 = vshrl.u32 %v2647, 7
      %v2649 = vsub.s32 5, %v2648
      %v2650 = vrot.slane %v2458, %v2649
      %v2651 = vmul.f32 %v2639, %v2650
      %v2652 = vmul.f32 %v2640, %v2650
      %v2653 = vmul.f32 %v2641, %v2650
      %v2654 = vmul.f32 %v2642, %v2650
      %v2655 = vmul.f32 %v2643, %v2650
      %v2656 = vmul.f32 %v2644, %v2650
      %v2657 = vmul.f32 %v2645, %v2650
      %v2658 = vmul.f32 %v2646, %v2650
      %v2659 = vadd.f32 %v2631, %v2651
      %v2660 = vadd.f32 %v2632, %v2652
      %v2661 = vadd.f32 %v2633, %v2653
      %v2662 = vadd.f32 %v2634, %v2654
      %v2663 = vadd.f32 %v2635, %v2655
      %v2664 = vadd.f32 %v2636, %v2656
      %v2665 = vadd.f32 %v2637, %v2657
      %v2666 = vadd.f32 %v2638, %v2658
      %v2667 = vld [vmem:[%s2188 + $0x7] sm:$0xff]
      %v2668 = vld [vmem:[%s2188 + $0x1f] sm:$0xff]
      %v2669 = vld [vmem:[%s2188 + $0x37] sm:$0xff]
      %v2670 = vld [vmem:[%s2188 + $0x4f] sm:$0xff]
      %v2671 = vld [vmem:[%s2188 + $0x67] sm:$0xff]
      %v2672 = vld [vmem:[%s2188 + $0x7f] sm:$0xff]
      %v2673 = vld [vmem:[%s2188 + $0x97] sm:$0xff]
      %v2674 = vld [vmem:[%s2188 + $0xaf] sm:$0xff]
      %v2675 = vlaneseq
      %v2676 = vshrl.u32 %v2675, 7
      %v2677 = vsub.s32 6, %v2676
      %v2678 = vrot.slane %v2458, %v2677
      %v2679 = vmul.f32 %v2667, %v2678
      %v2680 = vmul.f32 %v2668, %v2678
      %v2681 = vmul.f32 %v2669, %v2678
      %v2682 = vmul.f32 %v2670, %v2678
      %v2683 = vmul.f32 %v2671, %v2678
      %v2684 = vmul.f32 %v2672, %v2678
      %v2685 = vmul.f32 %v2673, %v2678
      %v2686 = vmul.f32 %v2674, %v2678
      %v2687 = vadd.f32 %v2659, %v2679
      %v2688 = vadd.f32 %v2660, %v2680
      %v2689 = vadd.f32 %v2661, %v2681
      %v2690 = vadd.f32 %v2662, %v2682
      %v2691 = vadd.f32 %v2663, %v2683
      %v2692 = vadd.f32 %v2664, %v2684
      %v2693 = vadd.f32 %v2665, %v2685
      %v2694 = vadd.f32 %v2666, %v2686
      %v2695 = vld [vmem:[%s2188 + $0x8] sm:$0xff]
      %v2696 = vld [vmem:[%s2188 + $0x20] sm:$0xff]
      %v2697 = vld [vmem:[%s2188 + $0x38] sm:$0xff]
      %v2698 = vld [vmem:[%s2188 + $0x50] sm:$0xff]
      %v2699 = vld [vmem:[%s2188 + $0x68] sm:$0xff]
      %v2700 = vld [vmem:[%s2188 + $0x80] sm:$0xff]
      %v2701 = vld [vmem:[%s2188 + $0x98] sm:$0xff]
      %v2702 = vld [vmem:[%s2188 + $0xb0] sm:$0xff]
      %v2703 = vlaneseq
      %v2704 = vshrl.u32 %v2703, 7
      %v2705 = vsub.s32 7, %v2704
      %v2706 = vrot.slane %v2458, %v2705
      %v2707 = vmul.f32 %v2695, %v2706
      %v2708 = vmul.f32 %v2696, %v2706
      %v2709 = vmul.f32 %v2697, %v2706
      %v2710 = vmul.f32 %v2698, %v2706
      %v2711 = vmul.f32 %v2699, %v2706
      %v2712 = vmul.f32 %v2700, %v2706
      %v2713 = vmul.f32 %v2701, %v2706
      %v2714 = vmul.f32 %v2702, %v2706
      %v2715 = vadd.f32 %v2687, %v2707
      %v2716 = vadd.f32 %v2688, %v2708
      %v2717 = vadd.f32 %v2689, %v2709
      %v2718 = vadd.f32 %v2690, %v2710
      %v2719 = vadd.f32 %v2691, %v2711
      %v2720 = vadd.f32 %v2692, %v2712
      %v2721 = vadd.f32 %v2693, %v2713
      %v2722 = vadd.f32 %v2694, %v2714
      %v2723 = vld [vmem:[%s2188 + $0x9] sm:$0xff]
      %v2724 = vld [vmem:[%s2188 + $0x21] sm:$0xff]
      %v2725 = vld [vmem:[%s2188 + $0x39] sm:$0xff]
      %v2726 = vld [vmem:[%s2188 + $0x51] sm:$0xff]
      %v2727 = vld [vmem:[%s2188 + $0x69] sm:$0xff]
      %v2728 = vld [vmem:[%s2188 + $0x81] sm:$0xff]
      %v2729 = vld [vmem:[%s2188 + $0x99] sm:$0xff]
      %v2730 = vld [vmem:[%s2188 + $0xb1] sm:$0xff]
      %v2731 = vlaneseq
      %v2732 = vshrl.u32 %v2731, 7
      %v2733 = vsub.s32 0, %v2732
      %v2734 = vrot.slane %v2459, %v2733
      %v2735 = vmul.f32 %v2723, %v2734
      %v2736 = vmul.f32 %v2724, %v2734
      %v2737 = vmul.f32 %v2725, %v2734
      %v2738 = vmul.f32 %v2726, %v2734
      %v2739 = vmul.f32 %v2727, %v2734
      %v2740 = vmul.f32 %v2728, %v2734
      %v2741 = vmul.f32 %v2729, %v2734
      %v2742 = vmul.f32 %v2730, %v2734
      %v2743 = vadd.f32 %v2715, %v2735
      %v2744 = vadd.f32 %v2716, %v2736
      %v2745 = vadd.f32 %v2717, %v2737
      %v2746 = vadd.f32 %v2718, %v2738
      %v2747 = vadd.f32 %v2719, %v2739
      %v2748 = vadd.f32 %v2720, %v2740
      %v2749 = vadd.f32 %v2721, %v2741
      %v2750 = vadd.f32 %v2722, %v2742
      %v2752 = vlaneseq
      %v2753 = vshrl.u32 %v2752, 7
      %v2754 = vsub.s32 0, %v2753
      %v2755 = vrot.slane %v2460, %v2754
      %v2757 = vadd.f32 %v2743, %v2755
      %v2758 = vadd.f32 %v2744, %v2755
      %v2759 = vadd.f32 %v2745, %v2755
      %v2760 = vadd.f32 %v2746, %v2755
      %v2761 = vadd.f32 %v2747, %v2755
      %v2762 = vadd.f32 %v2748, %v2755
      %v2763 = vadd.f32 %v2749, %v2755
      %v2764 = vadd.f32 %v2750, %v2755
      %v2765 = vld [vmem:[%s14] sm:$0xff]
      %v2766 = vld [vmem:[%s14 + $0x8] sm:$0xff]
      %v2767 = vld [vmem:[%s14 + $0x10] sm:$0xff]
      %v2768 = vld [vmem:[%s14 + $0x18] sm:$0xff]
      %v2769 = vld [vmem:[%s15] sm:$0x1]
      %v2770 = vld [vmem:[%s16] sm:$0x1]
      %v2772 = vsel %vm1979, %v2757, 0
      %v2775 = vsel %vm1979, %v2758, 0
      %v2778 = vsel %vm1979, %v2759, 0
      %v2781 = vsel %vm1979, %v2760, 0
      %v2784 = vsel %vm1979, %v2761, 0
      %v2787 = vsel %vm1979, %v2762, 0
      %v2790 = vsel %vm1979, %v2763, 0
      %v2793 = vsel %vm1979, %v2764, 0
      %2795 = vmatprep.subr.mxu0 0.0
      %2796 = vmatpush1.msra.mxu0 %v2765
      %2797 = vmatprep.subr.mxu0 0.0
      %2798 = vmatpush1.msra.mxu0 %v2766
      %2799 = vmatprep.subr.mxu0 0.0
      %2800 = vmatpush1.msra.mxu0 %v2767
      %2801 = vmatprep.subr.mxu0 0.0
      %2802 = vmatpush1.msra.mxu0 %v2768
      %2803 = vmatprep.subr.mxu0 0.0
      %2804 = vmatpush1.msra.mxu0 0.0
      %2805 = vmatprep.subr.mxu0 0.0
      %2806 = vmatpush1.msra.mxu0 0.0
      %2807 = vmatprep.subr.mxu0 0.0
      %2808 = vmatpush1.msra.mxu0 0.0
      %2809 = vmatprep.subr.mxu0 0.0
      %2810 = vmatpush1.msra.mxu0 0.0
      %2811 = vmatprep.subr.mxu0 0.0
      %2812 = vmatpush1.msra.mxu0 0.0
      %2813 = vmatprep.subr.mxu0 0.0
      %2814 = vmatpush1.msra.mxu0 0.0
      %2815 = vmatprep.subr.mxu0 0.0
      %2816 = vmatpush1.msra.mxu0 0.0
      %2817 = vmatprep.subr.mxu0 0.0
      %2818 = vmatpush1.msra.mxu0 0.0
      %2819 = vmatprep.subr.mxu0 0.0
      %2820 = vmatpush1.msra.mxu0 0.0
      %2821 = vmatprep.subr.mxu0 0.0
      %2822 = vmatpush1.msra.mxu0 0.0
      %2823 = vmatprep.subr.mxu0 0.0
      %2824 = vmatpush1.msra.mxu0 0.0
      %2825 = vmatprep.subr.mxu0 0.0
      %2826 = vmatpush1.msra.mxu0 0.0
      %2827 = vmatprep.subr.mxu0 0.0
      %2828 = vmatpush1.msra.mxu0 0.0
      %2829 = vmatprep.subr.mxu0 0.0
      %2830 = vmatpush1.msra.mxu0 0.0
      %2831 = vmatprep.subr.mxu0 0.0
      %2832 = vmatpush1.msra.mxu0 0.0
      %2833 = vmatprep.subr.mxu0 0.0
      %2834 = vmatpush1.msra.mxu0 0.0
      %2835 = vmatprep.subr.mxu0 0.0
      %2836 = vmatpush1.msra.mxu0 0.0
      %2837 = vmatprep.subr.mxu0 0.0
      %2838 = vmatpush1.msra.mxu0 0.0
      %2839 = vmatprep.subr.mxu0 0.0
      %2840 = vmatpush1.msra.mxu0 0.0
      %2841 = vmatprep.subr.mxu0 0.0
      %2842 = vmatpush1.msra.mxu0 0.0
      %2843 = vmatprep.subr.mxu0 0.0
      %2844 = vmatpush1.msra.mxu0 0.0
      %2845 = vmatprep.subr.mxu0 0.0
      %2846 = vmatpush1.msra.mxu0 0.0
      %2847 = vmatprep.subr.mxu0 0.0
      %2848 = vmatpush1.msra.mxu0 0.0
      %2849 = vmatprep.subr.mxu0 0.0
      %2850 = vmatpush1.msra.mxu0 0.0
      %2851 = vmatprep.subr.mxu0 0.0
      %2852 = vmatpush1.msra.mxu0 0.0
      %2853 = vmatprep.subr.mxu0 0.0
      %2854 = vmatpush1.msra.mxu0 0.0
      %2855 = vmatprep.subr.mxu0 0.0
      %2856 = vmatpush1.msra.mxu0 0.0
      %2857 = vmatprep.subr.mxu0 0.0
      %2858 = vmatpush1.msra.mxu0 0.0
      %2859 = vmatprep.mubr.f32.mxu0 0.0
      %2860 = vmatmul.mubr.f32.gmra.mrb[0].mxu0 %v2772
      %v2861 = vpop.f32.mrb[0].mxu0
      %v2862 = vadd.f32 0.0, %v2861
      %v2863 = vpop.f32.mrb[0].mxu0
      %2864 = vmatprep.mubr.f32.mxu0 0.0
      %2865 = vmatmul.mubr.f32.gmra.mrb[0].mxu0 %v2775
      %v2866 = vpop.f32.mrb[0].mxu0
      %v2867 = vadd.f32 0.0, %v2866
      %v2868 = vpop.f32.mrb[0].mxu0
      %2869 = vmatprep.mubr.f32.mxu0 0.0
      %2870 = vmatmul.mubr.f32.gmra.mrb[0].mxu0 %v2778
      %v2871 = vpop.f32.mrb[0].mxu0
      %v2872 = vadd.f32 0.0, %v2871
      %v2873 = vpop.f32.mrb[0].mxu0
      %2874 = vmatprep.mubr.f32.mxu0 0.0
      %2875 = vmatmul.mubr.f32.gmra.mrb[0].mxu0 %v2781
      %v2876 = vpop.f32.mrb[0].mxu0
      %v2877 = vadd.f32 0.0, %v2876
      %v2878 = vpop.f32.mrb[0].mxu0
      %2879 = vmatprep.mubr.f32.mxu0 0.0
      %2880 = vmatmul.mubr.f32.gmra.mrb[0].mxu0 %v2784
      %v2881 = vpop.f32.mrb[0].mxu0
      %v2882 = vadd.f32 0.0, %v2881
      %v2883 = vpop.f32.mrb[0].mxu0
      %2884 = vmatprep.mubr.f32.mxu0 0.0
      %2885 = vmatmul.mubr.f32.gmra.mrb[0].mxu0 %v2787
      %v2886 = vpop.f32.mrb[0].mxu0
      %v2887 = vadd.f32 0.0, %v2886
      %v2888 = vpop.f32.mrb[0].mxu0
      %2889 = vmatprep.mubr.f32.mxu0 0.0
      %2890 = vmatmul.mubr.f32.gmra.mrb[0].mxu0 %v2790
      %v2891 = vpop.f32.mrb[0].mxu0
      %v2892 = vadd.f32 0.0, %v2891
      %v2893 = vpop.f32.mrb[0].mxu0
      %2894 = vmatprep.mubr.f32.mxu0 0.0
      %2895 = vmatmul.mubr.f32.gmra.mrb[0].mxu0 %v2793
      %v2896 = vpop.f32.mrb[0].mxu0
      %v2897 = vadd.f32 0.0, %v2896
      %v2898 = vpop.f32.mrb[0].mxu0
      %2899 = vdwg.mxu0
      %v2901 = vlaneseq
      %v2902 = vshrl.u32 %v2901, 7
      %v2903 = vsub.s32 0, %v2902
      %v2904 = vrot.slane %v2769, %v2903
      %v2906 = vmul.f32 %v2862, %v2904
      %v2907 = vmul.f32 %v2867, %v2904
      %v2908 = vmul.f32 %v2872, %v2904
      %v2909 = vmul.f32 %v2877, %v2904
      %v2910 = vmul.f32 %v2882, %v2904
      %v2911 = vmul.f32 %v2887, %v2904
      %v2912 = vmul.f32 %v2892, %v2904
      %v2913 = vmul.f32 %v2897, %v2904
      %v2915 = vlaneseq
      %v2916 = vshrl.u32 %v2915, 7
      %v2917 = vsub.s32 0, %v2916
      %v2918 = vrot.slane %v2770, %v2917
      %v2920 = vadd.f32 %v2906, %v2918
      %v2921 = vadd.f32 %v2907, %v2918
      %v2922 = vadd.f32 %v2908, %v2918
      %v2923 = vadd.f32 %v2909, %v2918
      %v2924 = vadd.f32 %v2910, %v2918
      %v2925 = vadd.f32 %v2911, %v2918
      %v2926 = vadd.f32 %v2912, %v2918
      %v2927 = vadd.f32 %v2913, %v2918
      %v2928 = vmax.f32 %v2920, 0.0
      %v2929 = vmax.f32 %v2921, 0.0
      %v2930 = vmax.f32 %v2922, 0.0
      %v2931 = vmax.f32 %v2923, 0.0
      %v2932 = vmax.f32 %v2924, 0.0
      %v2933 = vmax.f32 %v2925, 0.0
      %v2934 = vmax.f32 %v2926, 0.0
      %v2935 = vmax.f32 %v2927, 0.0
      %2936 = vst.msk [vmem:[%s608] sm:$0xff] %vm1979, %v2928
      %2937 = vst.msk [vmem:[%s608 + $0x8] sm:$0xff] %vm1979, %v2929
      %2938 = vst.msk [vmem:[%s608 + $0x10] sm:$0xff] %vm1979, %v2930
      %2939 = vst.msk [vmem:[%s608 + $0x18] sm:$0xff] %vm1979, %v2931
      %2940 = vst.msk [vmem:[%s608 + $0x20] sm:$0xff] %vm1979, %v2932
      %2941 = vst.msk [vmem:[%s608 + $0x28] sm:$0xff] %vm1979, %v2933
      %2942 = vst.msk [vmem:[%s608 + $0x30] sm:$0xff] %vm1979, %v2934
      %2943 = vst.msk [vmem:[%s608 + $0x38] sm:$0xff] %vm1979, %v2935
      %p2944 = scmp.lt.s32.totalorder %s28, 1
      %s2945 = scalar_select %p2944, %s28, 1
      %s2946 = smul.addr %s2945, 8
      %s2947 = smul.addr %s2946, 8
      %s2948 = scalar_lea.vmem %s17, %s2947
      // Predicated region
      $region89: #{refine_layer_forward.2} parent=87 // pred_check
        %p2949 = pneg %p423
      $region90: #{refine_layer_forward.2} parent=87 // pred_check_branch
        %2951 = sbr.rel (%p2949) target = $region92
      $region91: #{refine_layer_forward.2} parent=87 // pred_region
        _
      $region92: #{refine_layer_forward.2} parent=87 // pred_fallthru
        _
    $region88: #{refine_layer_forward.2} parent=5 // pred_fallthru
      _
    %p2952 = scmp.le.s32.totalorder 2, %s23
    // Predicated region
    $region93: #{refine_layer_forward.2} parent=5 // pred_check
      %p2953 = pneg %p2952
    $region94: #{refine_layer_forward.2} parent=5 // pred_check_branch
      %2955 = sbr.rel (%p2953) target = $region96
    $region95: #{refine_layer_forward.2} parent=5 // pred_region
      %s2956 = ssub.s32 %s23, 2
      // Predicated region
      $region97: #{refine_layer_forward.2} parent=95 // pred_check
        %p2957 = pneg %p429
      $region98: #{refine_layer_forward.2} parent=95 // pred_check_branch
        %2959 = sbr.rel (%p2957) target = $region100
      $region99: #{refine_layer_forward.2} parent=95 // pred_region
        %p2960 = scmp.lt.s32.totalorder %s29, 1
        %s2961 = scalar_select %p2960, %s29, 1
        %s2962 = smul.addr %s2961, 8
        %s2963 = smul.addr %s2962, 8
        %s2964 = scalar_lea.vmem %s17, %s2963
      $region100: #{refine_layer_forward.2} parent=95 // pred_fallthru
        _
    $region96: #{refine_layer_forward.2} parent=5 // pred_fallthru
      _
  $region6: #{refine_layer_forward.2} parent=0 // loop_footer
    %s27 = sadd.s32 1, %s23
  $region7: #{refine_layer_forward.2} parent=0 // loop_footer_branch
    %22 = sbr.rel target = $region3
  $region8: #{refine_layer_forward.2} parent=0 // loop_exit
    _

// kernel: refine_layer_forward.3
$region0: #{refine_layer_forward.3}
  #allocation0 [shape = 'u32[]', space=smem, size = 0x4, offset = 0x4, fixed_abs, tag = 'smem constant byte address 0x4 - core index']
  #allocation1 [shape = 'u32[144,128]{1,0:T(1,128)}', space=vmem, size = 0x12000, scoped, tag = 'internal scratch']
  #allocation2 [shape = 'f32[10,17,32]{2,1,0:T(8,128)}', space=vmem, size = 0x1e000, scoped, tag = 'scratch operand']
  #allocation3 [shape = 'f32[1,1]{1,0:T(1,128)S(1)}', space=vmem, size = 0x200, scoped, tag = 'scoped memory for refine_layer_forward.3']
  #allocation4 [shape = 'f32[1,1]{1,0:T(1,128)S(1)}', space=vmem, size = 0x200, scoped, tag = 'scoped memory for refine_layer_forward.3']
  %s0 = inlined_call_operand.vmem [shape: f32[2,16,96], index: 0, kind: input, shape index: {}]
  %s1 = inlined_call_operand.vmem [shape: f32[2,8,8,32], index: 1, kind: input, shape index: {}]
  %s2 = inlined_call_operand.vmem [shape: f32[2,256,1], index: 2, kind: input, shape index: {}]
  %s3 = inlined_call_operand.vmem [shape: f32[64,16], index: 3, kind: input, shape index: {}]
  %s4 = inlined_call_operand.vmem [shape: f32[256,64], index: 4, kind: input, shape index: {}]
  %s5 = inlined_call_operand.vmem [shape: f32[96,32], index: 5, kind: input, shape index: {}]
  %s6 = inlined_call_operand.vmem [shape: f32[1,32], index: 6, kind: input, shape index: {}]
  %s7 = inlined_call_operand.vmem [shape: f32[1,32], index: 7, kind: input, shape index: {}]
  %s8 = inlined_call_operand.vmem [shape: f32[9,32], index: 8, kind: input, shape index: {}]
  %s9 = inlined_call_operand.vmem [shape: f32[1,32], index: 9, kind: input, shape index: {}]
  %s10 = inlined_call_operand.vmem [shape: f32[32,32], index: 10, kind: input, shape index: {}]
  %s11 = inlined_call_operand.vmem [shape: f32[1,32], index: 11, kind: input, shape index: {}]
  %s12 = inlined_call_operand.vmem [shape: f32[1,32], index: 12, kind: input, shape index: {}]
  %s13 = inlined_call_operand.vmem [shape: f32[9,32], index: 13, kind: input, shape index: {}]
  %s14 = inlined_call_operand.vmem [shape: f32[1,32], index: 14, kind: input, shape index: {}]
  %s15 = inlined_call_operand.vmem [shape: f32[32,32], index: 15, kind: input, shape index: {}]
  %s16 = inlined_call_operand.vmem [shape: f32[1,32], index: 16, kind: input, shape index: {}]
  %s17 = inlined_call_operand.vmem [shape: f32[1,32], index: 17, kind: input, shape index: {}]
  %s18 = inlined_call_operand.vmem [shape: f32[9,32,1], index: 18, kind: input, shape index: {}]
  %s19 = inlined_call_operand.<no memory space> [shape: f32[1,1], index: 19, kind: input, shape index: {}]
  %s20 = inlined_call_operand.vmem [shape: f32[9,32,1], index: 20, kind: input, shape index: {}]
  %s21 = inlined_call_operand.<no memory space> [shape: f32[1,1], index: 21, kind: input, shape index: {}]
  %s22 = inlined_call_operand.vmem [shape: f32[2,256,1], index: 22, kind: output, shape index: {0}]
  %s23 = inlined_call_operand.vmem [shape: f32[2,256,1], index: 23, kind: output, shape index: {1}]
  %24 = xla_tuple %s22, %s23
  %s25 = sld [smem:[#allocation0]]
  $region129: #{refine_layer_forward.3} parent=0
    _
  %s27 = ssub.s32 1, %s25
  %s28 = scalar_select 0, %s27, %s25
  %v29 = vstv %s19
  %30 = vst [vmem:[#allocation3] sm:$0x1] %v29
  %v31 = vstv %s21
  %32 = vst [vmem:[#allocation4] sm:$0x1] %v31
  loop: start=0, step=1, limit=4
  $region2: #{refine_layer_forward.3} parent=0 // loop_pre_header
    _
  $region3: #{refine_layer_forward.3} parent=0 // loop_header
    %s34 = sphi 0, %s38
    %p35 = scmp.ge.s32.totalorder %s34, 4
    %s44 = sphi 0, %s46
    %s47 = sphi 0, %s44
    %s48 = sphi 0, %s47
    %s64 = sphi 0, %s48
    %s70 = sphi 0, %s72
    %s73 = sphi 0, %s70
    %s74 = sphi 0, %s73
    %s90 = sphi 0, %s74
    %s96 = sphi 0, %s98
    %s99 = sphi 0, %s96
    %s100 = sphi 0, %s99
    %s116 = sphi 0, %s100
    %s120 = sphi 0, %s120
    %s122 = sphi 0, %s120
    %s123 = sphi 0, %s122
    %s137 = sphi 0, %s123
    %s141 = sphi 0, %s141
    %s143 = sphi 0, %s141
    %s144 = sphi 0, %s143
    %s158 = sphi 0, %s144
    %s162 = sphi 0, %s162
    %s164 = sphi 0, %s162
    %s165 = sphi 0, %s164
    %s179 = sphi 0, %s165
    %s183 = sphi 0, %s183
    %s185 = sphi 0, %s183
    %s186 = sphi 0, %s185
    %s200 = sphi 0, %s186
    %s204 = sphi 0, %s204
    %s206 = sphi 0, %s204
    %s207 = sphi 0, %s206
    %s221 = sphi 0, %s207
    %s225 = sphi 0, %s225
    %s227 = sphi 0, %s225
    %s228 = sphi 0, %s227
    %s242 = sphi 0, %s228
    %s246 = sphi 0, %s246
    %s248 = sphi 0, %s246
    %s249 = sphi 0, %s248
    %s263 = sphi 0, %s249
    %s267 = sphi 0, %s267
    %s269 = sphi 0, %s267
    %s270 = sphi 0, %s269
    %s284 = sphi 0, %s270
    %s288 = sphi 0, %s288
    %s290 = sphi 0, %s288
    %s291 = sphi 0, %s290
    %s305 = sphi 0, %s291
    %s309 = sphi 0, %s309
    %s311 = sphi 0, %s309
    %s312 = sphi 0, %s311
    %s326 = sphi 0, %s312
    %s330 = sphi 0, %s330
    %s332 = sphi 0, %s330
    %s333 = sphi 0, %s332
    %s347 = sphi 0, %s333
    %s351 = sphi 0, %s351
    %s353 = sphi 0, %s351
    %s354 = sphi 0, %s353
    %s368 = sphi 0, %s354
    %s372 = sphi 0, %s372
    %s374 = sphi 0, %s372
    %s375 = sphi 0, %s374
    %s389 = sphi 0, %s375
    %s393 = sphi 0, %s393
    %s395 = sphi 0, %s393
    %s396 = sphi 0, %s395
    %s410 = sphi 0, %s396
    %s414 = sphi 0, %s414
    %s416 = sphi 0, %s414
    %s417 = sphi 0, %s416
    %s431 = sphi 0, %s417
    %s435 = sphi 0, %s435
    %s437 = sphi 0, %s435
    %s438 = sphi 0, %s437
    %s452 = sphi 0, %s438
    %s456 = sphi 0, %s456
    %s458 = sphi 0, %s456
    %s459 = sphi 0, %s458
    %s473 = sphi 0, %s459
    %s477 = sphi 0, %s477
    %s479 = sphi 0, %s477
    %s480 = sphi 0, %s479
    %s494 = sphi 0, %s480
    %s498 = sphi 0, %s498
    %s500 = sphi 0, %s498
    %s501 = sphi 0, %s500
    %s515 = sphi 0, %s501
    %s521 = sphi 0, %s523
    %s524 = sphi 0, %s521
    %s525 = sphi 0, %s524
    %s541 = sphi 0, %s525
    %s547 = sphi 0, %s549
    %s550 = sphi 0, %s547
    %s551 = sphi 0, %s550
    %s567 = sphi 0, %s551
  $region4: #{refine_layer_forward.3} parent=0 // loop_header_branch
    %37 = sbr.rel (%p35) target = $region8
  $region5: #{refine_layer_forward.3} parent=0 // loop_body
    %s39 = ssub.s32 %s34, 1
    %s40 = ssub.s32 %s34, 2
    %s41 = sadd.s32 %s34, 1
    %s42 = ssub.s32 %s34, %s41
    %p43 = scmp.eq.s32.totalorder %s42, 0
    %s45 = sadd.s32 %s44, 1
    %s46 = scalar_select %p43, %s44, %s45
    %p49 = pneg %p43
    %p50 = scmp.eq.s32.totalorder %s34, 1
    %p51 = por %p49, %p50
    %p52 = scmp.ne.s32.totalorder %s44, %s47
    %p53 = scmp.eq.s32.totalorder %s34, 0
    %p54 = por %p52, %p53
    %p55 = scmp.ne.s32.totalorder %s44, %s47
    %p56 = scmp.eq.s32.totalorder %s39, 1
    %p57 = por %p55, %p56
    %p58 = scmp.ne.s32.totalorder %s47, %s48
    %p59 = scmp.eq.s32.totalorder %s39, 0
    %p60 = por %p58, %p59
    %p61 = scmp.ne.s32.totalorder %s47, %s48
    %p62 = scmp.eq.s32.totalorder %s40, 1
    %p63 = por %p61, %p62
    %p65 = scmp.ne.s32.totalorder %s48, %s64
    %p66 = scmp.eq.s32.totalorder %s40, 0
    %p67 = por %p65, %p66
    %s68 = ssub.s32 %s34, %s41
    %p69 = scmp.eq.s32.totalorder %s68, 0
    %s71 = sadd.s32 %s70, 1
    %s72 = scalar_select %p69, %s70, %s71
    %p75 = pneg %p69
    %p76 = scmp.eq.s32.totalorder %s34, 1
    %p77 = por %p75, %p76
    %p78 = scmp.ne.s32.totalorder %s70, %s73
    %p79 = scmp.eq.s32.totalorder %s34, 0
    %p80 = por %p78, %p79
    %p81 = scmp.ne.s32.totalorder %s70, %s73
    %p82 = scmp.eq.s32.totalorder %s39, 1
    %p83 = por %p81, %p82
    %p84 = scmp.ne.s32.totalorder %s73, %s74
    %p85 = scmp.eq.s32.totalorder %s39, 0
    %p86 = por %p84, %p85
    %p87 = scmp.ne.s32.totalorder %s73, %s74
    %p88 = scmp.eq.s32.totalorder %s40, 1
    %p89 = por %p87, %p88
    %p91 = scmp.ne.s32.totalorder %s74, %s90
    %p92 = scmp.eq.s32.totalorder %s40, 0
    %p93 = por %p91, %p92
    %s94 = ssub.s32 %s34, %s41
    %p95 = scmp.eq.s32.totalorder %s94, 0
    %s97 = sadd.s32 %s96, 1
    %s98 = scalar_select %p95, %s96, %s97
    %p101 = pneg %p95
    %p102 = scmp.eq.s32.totalorder %s34, 1
    %p103 = por %p101, %p102
    %p104 = scmp.ne.s32.totalorder %s96, %s99
    %p105 = scmp.eq.s32.totalorder %s34, 0
    %p106 = por %p104, %p105
    %p107 = scmp.ne.s32.totalorder %s96, %s99
    %p108 = scmp.eq.s32.totalorder %s39, 1
    %p109 = por %p107, %p108
    %p110 = scmp.ne.s32.totalorder %s99, %s100
    %p111 = scmp.eq.s32.totalorder %s39, 0
    %p112 = por %p110, %p111
    %p113 = scmp.ne.s32.totalorder %s99, %s100
    %p114 = scmp.eq.s32.totalorder %s40, 1
    %p115 = por %p113, %p114
    %p117 = scmp.ne.s32.totalorder %s100, %s116
    %p118 = scmp.eq.s32.totalorder %s40, 0
    %p119 = por %p117, %p118
    %s121 = sadd.s32 %s120, 1
    %p124 = scmp.eq.s32.totalorder %s34, 1
    %p125 = scmp.ne.s32.totalorder %s120, %s122
    %p126 = scmp.eq.s32.totalorder %s34, 0
    %p127 = por %p125, %p126
    %p128 = scmp.ne.s32.totalorder %s120, %s122
    %p129 = scmp.eq.s32.totalorder %s39, 1
    %p130 = por %p128, %p129
    %p131 = scmp.ne.s32.totalorder %s122, %s123
    %p132 = scmp.eq.s32.totalorder %s39, 0
    %p133 = por %p131, %p132
    %p134 = scmp.ne.s32.totalorder %s122, %s123
    %p135 = scmp.eq.s32.totalorder %s40, 1
    %p136 = por %p134, %p135
    %p138 = scmp.ne.s32.totalorder %s123, %s137
    %p139 = scmp.eq.s32.totalorder %s40, 0
    %p140 = por %p138, %p139
    %s142 = sadd.s32 %s141, 1
    %p145 = scmp.eq.s32.totalorder %s34, 1
    %p146 = scmp.ne.s32.totalorder %s141, %s143
    %p147 = scmp.eq.s32.totalorder %s34, 0
    %p148 = por %p146, %p147
    %p149 = scmp.ne.s32.totalorder %s141, %s143
    %p150 = scmp.eq.s32.totalorder %s39, 1
    %p151 = por %p149, %p150
    %p152 = scmp.ne.s32.totalorder %s143, %s144
    %p153 = scmp.eq.s32.totalorder %s39, 0
    %p154 = por %p152, %p153
    %p155 = scmp.ne.s32.totalorder %s143, %s144
    %p156 = scmp.eq.s32.totalorder %s40, 1
    %p157 = por %p155, %p156
    %p159 = scmp.ne.s32.totalorder %s144, %s158
    %p160 = scmp.eq.s32.totalorder %s40, 0
    %p161 = por %p159, %p160
    %s163 = sadd.s32 %s162, 1
    %p166 = scmp.eq.s32.totalorder %s34, 1
    %p167 = scmp.ne.s32.totalorder %s162, %s164
    %p168 = scmp.eq.s32.totalorder %s34, 0
    %p169 = por %p167, %p168
    %p170 = scmp.ne.s32.totalorder %s162, %s164
    %p171 = scmp.eq.s32.totalorder %s39, 1
    %p172 = por %p170, %p171
    %p173 = scmp.ne.s32.totalorder %s164, %s165
    %p174 = scmp.eq.s32.totalorder %s39, 0
    %p175 = por %p173, %p174
    %p176 = scmp.ne.s32.totalorder %s164, %s165
    %p177 = scmp.eq.s32.totalorder %s40, 1
    %p178 = por %p176, %p177
    %p180 = scmp.ne.s32.totalorder %s165, %s179
    %p181 = scmp.eq.s32.totalorder %s40, 0
    %p182 = por %p180, %p181
    %s184 = sadd.s32 %s183, 1
    %p187 = scmp.eq.s32.totalorder %s34, 1
    %p188 = scmp.ne.s32.totalorder %s183, %s185
    %p189 = scmp.eq.s32.totalorder %s34, 0
    %p190 = por %p188, %p189
    %p191 = scmp.ne.s32.totalorder %s183, %s185
    %p192 = scmp.eq.s32.totalorder %s39, 1
    %p193 = por %p191, %p192
    %p194 = scmp.ne.s32.totalorder %s185, %s186
    %p195 = scmp.eq.s32.totalorder %s39, 0
    %p196 = por %p194, %p195
    %p197 = scmp.ne.s32.totalorder %s185, %s186
    %p198 = scmp.eq.s32.totalorder %s40, 1
    %p199 = por %p197, %p198
    %p201 = scmp.ne.s32.totalorder %s186, %s200
    %p202 = scmp.eq.s32.totalorder %s40, 0
    %p203 = por %p201, %p202
    %s205 = sadd.s32 %s204, 1
    %p208 = scmp.eq.s32.totalorder %s34, 1
    %p209 = scmp.ne.s32.totalorder %s204, %s206
    %p210 = scmp.eq.s32.totalorder %s34, 0
    %p211 = por %p209, %p210
    %p212 = scmp.ne.s32.totalorder %s204, %s206
    %p213 = scmp.eq.s32.totalorder %s39, 1
    %p214 = por %p212, %p213
    %p215 = scmp.ne.s32.totalorder %s206, %s207
    %p216 = scmp.eq.s32.totalorder %s39, 0
    %p217 = por %p215, %p216
    %p218 = scmp.ne.s32.totalorder %s206, %s207
    %p219 = scmp.eq.s32.totalorder %s40, 1
    %p220 = por %p218, %p219
    %p222 = scmp.ne.s32.totalorder %s207, %s221
    %p223 = scmp.eq.s32.totalorder %s40, 0
    %p224 = por %p222, %p223
    %s226 = sadd.s32 %s225, 1
    %p229 = scmp.eq.s32.totalorder %s34, 1
    %p230 = scmp.ne.s32.totalorder %s225, %s227
    %p231 = scmp.eq.s32.totalorder %s34, 0
    %p232 = por %p230, %p231
    %p233 = scmp.ne.s32.totalorder %s225, %s227
    %p234 = scmp.eq.s32.totalorder %s39, 1
    %p235 = por %p233, %p234
    %p236 = scmp.ne.s32.totalorder %s227, %s228
    %p237 = scmp.eq.s32.totalorder %s39, 0
    %p238 = por %p236, %p237
    %p239 = scmp.ne.s32.totalorder %s227, %s228
    %p240 = scmp.eq.s32.totalorder %s40, 1
    %p241 = por %p239, %p240
    %p243 = scmp.ne.s32.totalorder %s228, %s242
    %p244 = scmp.eq.s32.totalorder %s40, 0
    %p245 = por %p243, %p244
    %s247 = sadd.s32 %s246, 1
    %p250 = scmp.eq.s32.totalorder %s34, 1
    %p251 = scmp.ne.s32.totalorder %s246, %s248
    %p252 = scmp.eq.s32.totalorder %s34, 0
    %p253 = por %p251, %p252
    %p254 = scmp.ne.s32.totalorder %s246, %s248
    %p255 = scmp.eq.s32.totalorder %s39, 1
    %p256 = por %p254, %p255
    %p257 = scmp.ne.s32.totalorder %s248, %s249
    %p258 = scmp.eq.s32.totalorder %s39, 0
    %p259 = por %p257, %p258
    %p260 = scmp.ne.s32.totalorder %s248, %s249
    %p261 = scmp.eq.s32.totalorder %s40, 1
    %p262 = por %p260, %p261
    %p264 = scmp.ne.s32.totalorder %s249, %s263
    %p265 = scmp.eq.s32.totalorder %s40, 0
    %p266 = por %p264, %p265
    %s268 = sadd.s32 %s267, 1
    %p271 = scmp.eq.s32.totalorder %s34, 1
    %p272 = scmp.ne.s32.totalorder %s267, %s269
    %p273 = scmp.eq.s32.totalorder %s34, 0
    %p274 = por %p272, %p273
    %p275 = scmp.ne.s32.totalorder %s267, %s269
    %p276 = scmp.eq.s32.totalorder %s39, 1
    %p277 = por %p275, %p276
    %p278 = scmp.ne.s32.totalorder %s269, %s270
    %p279 = scmp.eq.s32.totalorder %s39, 0
    %p280 = por %p278, %p279
    %p281 = scmp.ne.s32.totalorder %s269, %s270
    %p282 = scmp.eq.s32.totalorder %s40, 1
    %p283 = por %p281, %p282
    %p285 = scmp.ne.s32.totalorder %s270, %s284
    %p286 = scmp.eq.s32.totalorder %s40, 0
    %p287 = por %p285, %p286
    %s289 = sadd.s32 %s288, 1
    %p292 = scmp.eq.s32.totalorder %s34, 1
    %p293 = scmp.ne.s32.totalorder %s288, %s290
    %p294 = scmp.eq.s32.totalorder %s34, 0
    %p295 = por %p293, %p294
    %p296 = scmp.ne.s32.totalorder %s288, %s290
    %p297 = scmp.eq.s32.totalorder %s39, 1
    %p298 = por %p296, %p297
    %p299 = scmp.ne.s32.totalorder %s290, %s291
    %p300 = scmp.eq.s32.totalorder %s39, 0
    %p301 = por %p299, %p300
    %p302 = scmp.ne.s32.totalorder %s290, %s291
    %p303 = scmp.eq.s32.totalorder %s40, 1
    %p304 = por %p302, %p303
    %p306 = scmp.ne.s32.totalorder %s291, %s305
    %p307 = scmp.eq.s32.totalorder %s40, 0
    %p308 = por %p306, %p307
    %s310 = sadd.s32 %s309, 1
    %p313 = scmp.eq.s32.totalorder %s34, 1
    %p314 = scmp.ne.s32.totalorder %s309, %s311
    %p315 = scmp.eq.s32.totalorder %s34, 0
    %p316 = por %p314, %p315
    %p317 = scmp.ne.s32.totalorder %s309, %s311
    %p318 = scmp.eq.s32.totalorder %s39, 1
    %p319 = por %p317, %p318
    %p320 = scmp.ne.s32.totalorder %s311, %s312
    %p321 = scmp.eq.s32.totalorder %s39, 0
    %p322 = por %p320, %p321
    %p323 = scmp.ne.s32.totalorder %s311, %s312
    %p324 = scmp.eq.s32.totalorder %s40, 1
    %p325 = por %p323, %p324
    %p327 = scmp.ne.s32.totalorder %s312, %s326
    %p328 = scmp.eq.s32.totalorder %s40, 0
    %p329 = por %p327, %p328
    %s331 = sadd.s32 %s330, 1
    %p334 = scmp.eq.s32.totalorder %s34, 1
    %p335 = scmp.ne.s32.totalorder %s330, %s332
    %p336 = scmp.eq.s32.totalorder %s34, 0
    %p337 = por %p335, %p336
    %p338 = scmp.ne.s32.totalorder %s330, %s332
    %p339 = scmp.eq.s32.totalorder %s39, 1
    %p340 = por %p338, %p339
    %p341 = scmp.ne.s32.totalorder %s332, %s333
    %p342 = scmp.eq.s32.totalorder %s39, 0
    %p343 = por %p341, %p342
    %p344 = scmp.ne.s32.totalorder %s332, %s333
    %p345 = scmp.eq.s32.totalorder %s40, 1
    %p346 = por %p344, %p345
    %p348 = scmp.ne.s32.totalorder %s333, %s347
    %p349 = scmp.eq.s32.totalorder %s40, 0
    %p350 = por %p348, %p349
    %s352 = sadd.s32 %s351, 1
    %p355 = scmp.eq.s32.totalorder %s34, 1
    %p356 = scmp.ne.s32.totalorder %s351, %s353
    %p357 = scmp.eq.s32.totalorder %s34, 0
    %p358 = por %p356, %p357
    %p359 = scmp.ne.s32.totalorder %s351, %s353
    %p360 = scmp.eq.s32.totalorder %s39, 1
    %p361 = por %p359, %p360
    %p362 = scmp.ne.s32.totalorder %s353, %s354
    %p363 = scmp.eq.s32.totalorder %s39, 0
    %p364 = por %p362, %p363
    %p365 = scmp.ne.s32.totalorder %s353, %s354
    %p366 = scmp.eq.s32.totalorder %s40, 1
    %p367 = por %p365, %p366
    %p369 = scmp.ne.s32.totalorder %s354, %s368
    %p370 = scmp.eq.s32.totalorder %s40, 0
    %p371 = por %p369, %p370
    %s373 = sadd.s32 %s372, 1
    %p376 = scmp.eq.s32.totalorder %s34, 1
    %p377 = scmp.ne.s32.totalorder %s372, %s374
    %p378 = scmp.eq.s32.totalorder %s34, 0
    %p379 = por %p377, %p378
    %p380 = scmp.ne.s32.totalorder %s372, %s374
    %p381 = scmp.eq.s32.totalorder %s39, 1
    %p382 = por %p380, %p381
    %p383 = scmp.ne.s32.totalorder %s374, %s375
    %p384 = scmp.eq.s32.totalorder %s39, 0
    %p385 = por %p383, %p384
    %p386 = scmp.ne.s32.totalorder %s374, %s375
    %p387 = scmp.eq.s32.totalorder %s40, 1
    %p388 = por %p386, %p387
    %p390 = scmp.ne.s32.totalorder %s375, %s389
    %p391 = scmp.eq.s32.totalorder %s40, 0
    %p392 = por %p390, %p391
    %s394 = sadd.s32 %s393, 1
    %p397 = scmp.eq.s32.totalorder %s34, 1
    %p398 = scmp.ne.s32.totalorder %s393, %s395
    %p399 = scmp.eq.s32.totalorder %s34, 0
    %p400 = por %p398, %p399
    %p401 = scmp.ne.s32.totalorder %s393, %s395
    %p402 = scmp.eq.s32.totalorder %s39, 1
    %p403 = por %p401, %p402
    %p404 = scmp.ne.s32.totalorder %s395, %s396
    %p405 = scmp.eq.s32.totalorder %s39, 0
    %p406 = por %p404, %p405
    %p407 = scmp.ne.s32.totalorder %s395, %s396
    %p408 = scmp.eq.s32.totalorder %s40, 1
    %p409 = por %p407, %p408
    %p411 = scmp.ne.s32.totalorder %s396, %s410
    %p412 = scmp.eq.s32.totalorder %s40, 0
    %p413 = por %p411, %p412
    %s415 = sadd.s32 %s414, 1
    %p418 = scmp.eq.s32.totalorder %s34, 1
    %p419 = scmp.ne.s32.totalorder %s414, %s416
    %p420 = scmp.eq.s32.totalorder %s34, 0
    %p421 = por %p419, %p420
    %p422 = scmp.ne.s32.totalorder %s414, %s416
    %p423 = scmp.eq.s32.totalorder %s39, 1
    %p424 = por %p422, %p423
    %p425 = scmp.ne.s32.totalorder %s416, %s417
    %p426 = scmp.eq.s32.totalorder %s39, 0
    %p427 = por %p425, %p426
    %p428 = scmp.ne.s32.totalorder %s416, %s417
    %p429 = scmp.eq.s32.totalorder %s40, 1
    %p430 = por %p428, %p429
    %p432 = scmp.ne.s32.totalorder %s417, %s431
    %p433 = scmp.eq.s32.totalorder %s40, 0
    %p434 = por %p432, %p433
    %s436 = sadd.s32 %s435, 1
    %p439 = scmp.eq.s32.totalorder %s34, 1
    %p440 = scmp.ne.s32.totalorder %s435, %s437
    %p441 = scmp.eq.s32.totalorder %s34, 0
    %p442 = por %p440, %p441
    %p443 = scmp.ne.s32.totalorder %s435, %s437
    %p444 = scmp.eq.s32.totalorder %s39, 1
    %p445 = por %p443, %p444
    %p446 = scmp.ne.s32.totalorder %s437, %s438
    %p447 = scmp.eq.s32.totalorder %s39, 0
    %p448 = por %p446, %p447
    %p449 = scmp.ne.s32.totalorder %s437, %s438
    %p450 = scmp.eq.s32.totalorder %s40, 1
    %p451 = por %p449, %p450
    %p453 = scmp.ne.s32.totalorder %s438, %s452
    %p454 = scmp.eq.s32.totalorder %s40, 0
    %p455 = por %p453, %p454
    %s457 = sadd.s32 %s456, 1
    %p460 = scmp.eq.s32.totalorder %s34, 1
    %p461 = scmp.ne.s32.totalorder %s456, %s458
    %p462 = scmp.eq.s32.totalorder %s34, 0
    %p463 = por %p461, %p462
    %p464 = scmp.ne.s32.totalorder %s456, %s458
    %p465 = scmp.eq.s32.totalorder %s39, 1
    %p466 = por %p464, %p465
    %p467 = scmp.ne.s32.totalorder %s458, %s459
    %p468 = scmp.eq.s32.totalorder %s39, 0
    %p469 = por %p467, %p468
    %p470 = scmp.ne.s32.totalorder %s458, %s459
    %p471 = scmp.eq.s32.totalorder %s40, 1
    %p472 = por %p470, %p471
    %p474 = scmp.ne.s32.totalorder %s459, %s473
    %p475 = scmp.eq.s32.totalorder %s40, 0
    %p476 = por %p474, %p475
    %s478 = sadd.s32 %s477, 1
    %p481 = scmp.eq.s32.totalorder %s34, 1
    %p482 = scmp.ne.s32.totalorder %s477, %s479
    %p483 = scmp.eq.s32.totalorder %s34, 0
    %p484 = por %p482, %p483
    %p485 = scmp.ne.s32.totalorder %s477, %s479
    %p486 = scmp.eq.s32.totalorder %s39, 1
    %p487 = por %p485, %p486
    %p488 = scmp.ne.s32.totalorder %s479, %s480
    %p489 = scmp.eq.s32.totalorder %s39, 0
    %p490 = por %p488, %p489
    %p491 = scmp.ne.s32.totalorder %s479, %s480
    %p492 = scmp.eq.s32.totalorder %s40, 1
    %p493 = por %p491, %p492
    %p495 = scmp.ne.s32.totalorder %s480, %s494
    %p496 = scmp.eq.s32.totalorder %s40, 0
    %p497 = por %p495, %p496
    %s499 = sadd.s32 %s498, 1
    %p502 = scmp.eq.s32.totalorder %s34, 1
    %p503 = scmp.ne.s32.totalorder %s498, %s500
    %p504 = scmp.eq.s32.totalorder %s34, 0
    %p505 = por %p503, %p504
    %p506 = scmp.ne.s32.totalorder %s498, %s500
    %p507 = scmp.eq.s32.totalorder %s39, 1
    %p508 = por %p506, %p507
    %p509 = scmp.ne.s32.totalorder %s500, %s501
    %p510 = scmp.eq.s32.totalorder %s39, 0
    %p511 = por %p509, %p510
    %p512 = scmp.ne.s32.totalorder %s500, %s501
    %p513 = scmp.eq.s32.totalorder %s40, 1
    %p514 = por %p512, %p513
    %p516 = scmp.ne.s32.totalorder %s501, %s515
    %p517 = scmp.eq.s32.totalorder %s40, 0
    %p518 = por %p516, %p517
    %s519 = ssub.s32 %s34, %s41
    %p520 = scmp.eq.s32.totalorder %s519, 0
    %s522 = sadd.s32 %s521, 1
    %s523 = scalar_select %p520, %s521, %s522
    %p526 = pneg %p520
    %p527 = scmp.eq.s32.totalorder %s34, 1
    %p528 = por %p526, %p527
    %p529 = scmp.ne.s32.totalorder %s521, %s524
    %p530 = scmp.eq.s32.totalorder %s34, 0
    %p531 = por %p529, %p530
    %p532 = scmp.ne.s32.totalorder %s521, %s524
    %p533 = scmp.eq.s32.totalorder %s39, 1
    %p534 = por %p532, %p533
    %p535 = scmp.ne.s32.totalorder %s524, %s525
    %p536 = scmp.eq.s32.totalorder %s39, 0
    %p537 = por %p535, %p536
    %p538 = scmp.ne.s32.totalorder %s524, %s525
    %p539 = scmp.eq.s32.totalorder %s40, 1
    %p540 = por %p538, %p539
    %p542 = scmp.ne.s32.totalorder %s525, %s541
    %p543 = scmp.eq.s32.totalorder %s40, 0
    %p544 = por %p542, %p543
    %s545 = ssub.s32 %s34, %s41
    %p546 = scmp.eq.s32.totalorder %s545, 0
    %s548 = sadd.s32 %s547, 1
    %s549 = scalar_select %p546, %s547, %s548
    %p552 = pneg %p546
    %p553 = scmp.eq.s32.totalorder %s34, 1
    %p554 = por %p552, %p553
    %p555 = scmp.ne.s32.totalorder %s547, %s550
    %p556 = scmp.eq.s32.totalorder %s34, 0
    %p557 = por %p555, %p556
    %p558 = scmp.ne.s32.totalorder %s547, %s550
    %p559 = scmp.eq.s32.totalorder %s39, 1
    %p560 = por %p558, %p559
    %p561 = scmp.ne.s32.totalorder %s550, %s551
    %p562 = scmp.eq.s32.totalorder %s39, 0
    %p563 = por %p561, %p562
    %p564 = scmp.ne.s32.totalorder %s550, %s551
    %p565 = scmp.eq.s32.totalorder %s40, 1
    %p566 = por %p564, %p565
    %p568 = scmp.ne.s32.totalorder %s551, %s567
    %p569 = scmp.eq.s32.totalorder %s40, 0
    %p570 = por %p568, %p569
    %p571 = scmp.le.s32.totalorder 1, %s34
    %p572 = scmp.lt.s32.totalorder %s34, 3
    %p573 = pnand %p571, %p572
    %p574 = pneg %p573
    // Predicated region
    $region9: #{refine_layer_forward.3} parent=5 // pred_check
      _
    $region10: #{refine_layer_forward.3} parent=5 // pred_check_branch
      %576 = sbr.rel (%p573) target = $region12
    $region11: #{refine_layer_forward.3} parent=5 // pred_region
      %s577 = ssub.s32 %s34, 1
      // Predicated region
      $region13: #{refine_layer_forward.3} parent=11 // pred_check
        %p578 = pneg %p133
      $region14: #{refine_layer_forward.3} parent=11 // pred_check_branch
        %580 = sbr.rel (%p578) target = $region16
      $region15: #{refine_layer_forward.3} parent=11 // pred_region
        _
      $region16: #{refine_layer_forward.3} parent=11 // pred_fallthru
        _
      // Predicated region
      $region17: #{refine_layer_forward.3} parent=11 // pred_check
        %p581 = pneg %p154
      $region18: #{refine_layer_forward.3} parent=11 // pred_check_branch
        %583 = sbr.rel (%p581) target = $region20
      $region19: #{refine_layer_forward.3} parent=11 // pred_region
        _
      $region20: #{refine_layer_forward.3} parent=11 // pred_fallthru
        _
      // Predicated region
      $region21: #{refine_layer_forward.3} parent=11 // pred_check
        %p584 = pneg %p175
      $region22: #{refine_layer_forward.3} parent=11 // pred_check_branch
        %586 = sbr.rel (%p584) target = $region24
      $region23: #{refine_layer_forward.3} parent=11 // pred_region
        _
      $region24: #{refine_layer_forward.3} parent=11 // pred_fallthru
        _
      // Predicated region
      $region25: #{refine_layer_forward.3} parent=11 // pred_check
        %p587 = pneg %p196
      $region26: #{refine_layer_forward.3} parent=11 // pred_check_branch
        %589 = sbr.rel (%p587) target = $region28
      $region27: #{refine_layer_forward.3} parent=11 // pred_region
        _
      $region28: #{refine_layer_forward.3} parent=11 // pred_fallthru
        _
      // Predicated region
      $region29: #{refine_layer_forward.3} parent=11 // pred_check
        %p590 = pneg %p217
      $region30: #{refine_layer_forward.3} parent=11 // pred_check_branch
        %592 = sbr.rel (%p590) target = $region32
      $region31: #{refine_layer_forward.3} parent=11 // pred_region
        _
      $region32: #{refine_layer_forward.3} parent=11 // pred_fallthru
        _
      // Predicated region
      $region33: #{refine_layer_forward.3} parent=11 // pred_check
        %p593 = pneg %p238
      $region34: #{refine_layer_forward.3} parent=11 // pred_check_branch
        %595 = sbr.rel (%p593) target = $region36
      $region35: #{refine_layer_forward.3} parent=11 // pred_region
        _
      $region36: #{refine_layer_forward.3} parent=11 // pred_fallthru
        _
      // Predicated region
      $region37: #{refine_layer_forward.3} parent=11 // pred_check
        %p596 = pneg %p259
      $region38: #{refine_layer_forward.3} parent=11 // pred_check_branch
        %598 = sbr.rel (%p596) target = $region40
      $region39: #{refine_layer_forward.3} parent=11 // pred_region
        _
      $region40: #{refine_layer_forward.3} parent=11 // pred_fallthru
        _
      // Predicated region
      $region41: #{refine_layer_forward.3} parent=11 // pred_check
        %p599 = pneg %p280
      $region42: #{refine_layer_forward.3} parent=11 // pred_check_branch
        %601 = sbr.rel (%p599) target = $region44
      $region43: #{refine_layer_forward.3} parent=11 // pred_region
        _
      $region44: #{refine_layer_forward.3} parent=11 // pred_fallthru
        _
      // Predicated region
      $region45: #{refine_layer_forward.3} parent=11 // pred_check
        %p602 = pneg %p301
      $region46: #{refine_layer_forward.3} parent=11 // pred_check_branch
        %604 = sbr.rel (%p602) target = $region48
      $region47: #{refine_layer_forward.3} parent=11 // pred_region
        _
      $region48: #{refine_layer_forward.3} parent=11 // pred_fallthru
        _
      // Predicated region
      $region49: #{refine_layer_forward.3} parent=11 // pred_check
        %p605 = pneg %p322
      $region50: #{refine_layer_forward.3} parent=11 // pred_check_branch
        %607 = sbr.rel (%p605) target = $region52
      $region51: #{refine_layer_forward.3} parent=11 // pred_region
        _
      $region52: #{refine_layer_forward.3} parent=11 // pred_fallthru
        _
      // Predicated region
      $region53: #{refine_layer_forward.3} parent=11 // pred_check
        %p608 = pneg %p343
      $region54: #{refine_layer_forward.3} parent=11 // pred_check_branch
        %610 = sbr.rel (%p608) target = $region56
      $region55: #{refine_layer_forward.3} parent=11 // pred_region
        _
      $region56: #{refine_layer_forward.3} parent=11 // pred_fallthru
        _
      // Predicated region
      $region57: #{refine_layer_forward.3} parent=11 // pred_check
        %p611 = pneg %p364
      $region58: #{refine_layer_forward.3} parent=11 // pred_check_branch
        %613 = sbr.rel (%p611) target = $region60
      $region59: #{refine_layer_forward.3} parent=11 // pred_region
        _
      $region60: #{refine_layer_forward.3} parent=11 // pred_fallthru
        _
      // Predicated region
      $region61: #{refine_layer_forward.3} parent=11 // pred_check
        %p614 = pneg %p385
      $region62: #{refine_layer_forward.3} parent=11 // pred_check_branch
        %616 = sbr.rel (%p614) target = $region64
      $region63: #{refine_layer_forward.3} parent=11 // pred_region
        _
      $region64: #{refine_layer_forward.3} parent=11 // pred_fallthru
        _
      // Predicated region
      $region65: #{refine_layer_forward.3} parent=11 // pred_check
        %p617 = pneg %p406
      $region66: #{refine_layer_forward.3} parent=11 // pred_check_branch
        %619 = sbr.rel (%p617) target = $region68
      $region67: #{refine_layer_forward.3} parent=11 // pred_region
        _
      $region68: #{refine_layer_forward.3} parent=11 // pred_fallthru
        _
      // Predicated region
      $region69: #{refine_layer_forward.3} parent=11 // pred_check
        %p620 = pneg %p427
      $region70: #{refine_layer_forward.3} parent=11 // pred_check_branch
        %622 = sbr.rel (%p620) target = $region72
      $region71: #{refine_layer_forward.3} parent=11 // pred_region
        _
      $region72: #{refine_layer_forward.3} parent=11 // pred_fallthru
        _
      // Predicated region
      $region73: #{refine_layer_forward.3} parent=11 // pred_check
        %p623 = pneg %p448
      $region74: #{refine_layer_forward.3} parent=11 // pred_check_branch
        %625 = sbr.rel (%p623) target = $region76
      $region75: #{refine_layer_forward.3} parent=11 // pred_region
        _
      $region76: #{refine_layer_forward.3} parent=11 // pred_fallthru
        _
      // Predicated region
      $region77: #{refine_layer_forward.3} parent=11 // pred_check
        %p626 = pneg %p469
      $region78: #{refine_layer_forward.3} parent=11 // pred_check_branch
        %628 = sbr.rel (%p626) target = $region80
      $region79: #{refine_layer_forward.3} parent=11 // pred_region
        _
      $region80: #{refine_layer_forward.3} parent=11 // pred_fallthru
        _
      // Predicated region
      $region81: #{refine_layer_forward.3} parent=11 // pred_check
        %p629 = pneg %p490
      $region82: #{refine_layer_forward.3} parent=11 // pred_check_branch
        %631 = sbr.rel (%p629) target = $region84
      $region83: #{refine_layer_forward.3} parent=11 // pred_region
        _
      $region84: #{refine_layer_forward.3} parent=11 // pred_fallthru
        _
      // Predicated region
      $region85: #{refine_layer_forward.3} parent=11 // pred_check
        %p632 = pneg %p511
      $region86: #{refine_layer_forward.3} parent=11 // pred_check_branch
        %634 = sbr.rel (%p632) target = $region88
      $region87: #{refine_layer_forward.3} parent=11 // pred_region
        _
      $region88: #{refine_layer_forward.3} parent=11 // pred_fallthru
        _
    $region12: #{refine_layer_forward.3} parent=5 // pred_fallthru
      _
    %p635 = scmp.lt.s32.totalorder %s34, 2
    // Predicated region
    $region89: #{refine_layer_forward.3} parent=5 // pred_check
      %p636 = pneg %p635
    $region90: #{refine_layer_forward.3} parent=5 // pred_check_branch
      %638 = sbr.rel (%p636) target = $region92
    $region91: #{refine_layer_forward.3} parent=5 // pred_region
      // Predicated region
      $region93: #{refine_layer_forward.3} parent=91 // pred_check
        %p639 = pneg %p54
      $region94: #{refine_layer_forward.3} parent=91 // pred_check_branch
        %641 = sbr.rel (%p639) target = $region96
      $region95: #{refine_layer_forward.3} parent=91 // pred_region
        %p642 = scmp.lt.s32.totalorder %s34, 1
        %s643 = scalar_select %p642, %s34, 1
        %s644 = smul.addr %s643, 2
        %s645 = smul.addr %s644, 8
        %s646 = scalar_lea.vmem %s0, %s645
      $region96: #{refine_layer_forward.3} parent=91 // pred_fallthru
        _
      // Predicated region
      $region97: #{refine_layer_forward.3} parent=91 // pred_check
        %p647 = pneg %p80
      $region98: #{refine_layer_forward.3} parent=91 // pred_check_branch
        %649 = sbr.rel (%p647) target = $region100
      $region99: #{refine_layer_forward.3} parent=91 // pred_region
        %p650 = scmp.lt.s32.totalorder %s34, 1
        %s651 = scalar_select %p650, %s34, 1
        %s652 = smul.addr %s651, 8
        %s653 = smul.addr %s652, 8
        %s654 = scalar_lea.vmem %s1, %s653
      $region100: #{refine_layer_forward.3} parent=91 // pred_fallthru
        _
      // Predicated region
      $region101: #{refine_layer_forward.3} parent=91 // pred_check
        %p655 = pneg %p106
      $region102: #{refine_layer_forward.3} parent=91 // pred_check_branch
        %657 = sbr.rel (%p655) target = $region104
      $region103: #{refine_layer_forward.3} parent=91 // pred_region
        %p658 = scmp.lt.s32.totalorder %s34, 1
        %s659 = scalar_select %p658, %s34, 1
        %s660 = smul.addr %s659, 32
        %s661 = smul.addr %s660, 8
        %s662 = scalar_lea.vmem %s2, %s661
      $region104: #{refine_layer_forward.3} parent=91 // pred_fallthru
        _
    $region92: #{refine_layer_forward.3} parent=5 // pred_fallthru
      _
    %p663 = scmp.le.s32.totalorder 1, %s34
    %p664 = scmp.lt.s32.totalorder %s34, 3
    %p665 = pnand %p663, %p664
    %p666 = pneg %p665
    // Predicated region
    $region105: #{refine_layer_forward.3} parent=5 // pred_check
      _
    $region106: #{refine_layer_forward.3} parent=5 // pred_check_branch
      %668 = sbr.rel (%p665) target = $region108
    $region107: #{refine_layer_forward.3} parent=5 // pred_region
      %s669 = ssub.s32 %s34, 1
      %p670 = scmp.lt.s32.totalorder %s39, 1
      %s671 = scalar_select %p670, %s39, 1
      %s672 = smul.addr %s671, 2
      %s673 = smul.addr %s672, 8
      %s674 = scalar_lea.vmem %s0, %s673
      %p675 = pneg %p60
      %p676 = pneg %p57
      %p677 = scmp.lt.s32.totalorder %s39, 1
      %s678 = scalar_select %p677, %s39, 1
      %s679 = smul.addr %s678, 8
      %s680 = smul.addr %s679, 8
      %s681 = scalar_lea.vmem %s1, %s680
      %p682 = pneg %p86
      %p683 = pneg %p83
      %p684 = scmp.lt.s32.totalorder %s39, 1
      %s685 = scalar_select %p684, %s39, 1
      %s686 = smul.addr %s685, 32
      %s687 = smul.addr %s686, 8
      %s688 = scalar_lea.vmem %s2, %s687
      %p689 = pneg %p112
      %p690 = pneg %p109
      %p691 = pneg %p133
      %p692 = pneg %p130
      %p693 = pneg %p154
      %p694 = pneg %p151
      %p695 = pneg %p175
      %p696 = pneg %p172
      %p697 = pneg %p196
      %p698 = pneg %p193
      %p699 = pneg %p217
      %p700 = pneg %p214
      %p701 = pneg %p238
      %p702 = pneg %p235
      %p703 = pneg %p259
      %p704 = pneg %p256
      %p705 = pneg %p280
      %p706 = pneg %p277
      %p707 = pneg %p301
      %p708 = pneg %p298
      %p709 = pneg %p322
      %p710 = pneg %p319
      %p711 = pneg %p343
      %p712 = pneg %p340
      %p713 = pneg %p364
      %p714 = pneg %p361
      %p715 = pneg %p385
      %p716 = pneg %p382
      %p717 = pneg %p406
      %p718 = pneg %p403
      %p719 = pneg %p427
      %p720 = pneg %p424
      %p721 = pneg %p448
      %p722 = pneg %p445
      %p723 = pneg %p469
      %p724 = pneg %p466
      %p725 = pneg %p490
      %p726 = pneg %p487
      %p727 = pneg %p511
      %p728 = pneg %p508
      %p729 = pneg %p537
      %p730 = pneg %p534
      %p731 = scmp.lt.s32.totalorder %s39, 1
      %s732 = scalar_select %p731, %s39, 1
      %s733 = smul.addr %s732, 32
      %s734 = smul.addr %s733, 8
      %s735 = scalar_lea.vmem %s22, %s734
      %p736 = pneg %p563
      %p737 = pneg %p560
      %p738 = scmp.lt.s32.totalorder %s39, 1
      %s739 = scalar_select %p738, %s39, 1
      %s740 = smul.addr %s739, 32
      %s741 = smul.addr %s740, 8
      %s742 = scalar_lea.vmem %s23, %s741
      %p743 = scmp.lt.s32.totalorder %s39, 1
      %s744 = scalar_select %p743, %s39, 1
      %s745 = smul.addr %s744, 2
      %s746 = smul.addr %s745, 8
      %s747 = scalar_lea.vmem %s0, %s746
      %p748 = scmp.lt.s32.totalorder %s39, 1
      %s749 = scalar_select %p748, %s39, 1
      %s750 = smul.addr %s749, 8
      %s751 = smul.addr %s750, 8
      %s752 = scalar_lea.vmem %s1, %s751
      %p753 = scmp.lt.s32.totalorder %s39, 1
      %s754 = scalar_select %p753, %s39, 1
      %s755 = smul.addr %s754, 32
      %s756 = smul.addr %s755, 8
      %s757 = scalar_lea.vmem %s2, %s756
      %p758 = scmp.lt.s32.totalorder %s39, 1
      %s759 = scalar_select %p758, %s39, 1
      %s760 = smul.addr %s759, 32
      %s761 = smul.addr %s760, 8
      %s762 = scalar_lea.vmem %s22, %s761
      %p763 = scmp.lt.s32.totalorder %s39, 1
      %s764 = scalar_select %p763, %s39, 1
      %s765 = smul.addr %s764, 32
      %s766 = smul.addr %s765, 8
      %s767 = scalar_lea.vmem %s23, %s766
      %v768 = vld [vmem:[%s747] sm:$0xff]
      %v769 = vld [vmem:[%s747 + $0x8] sm:$0xff]
      %v770 = vld [vmem:[%s5] sm:$0xff]
      %v771 = vld [vmem:[%s5 + $0x8] sm:$0xff]
      %v772 = vld [vmem:[%s5 + $0x10] sm:$0xff]
      %v773 = vld [vmem:[%s5 + $0x18] sm:$0xff]
      %v774 = vld [vmem:[%s5 + $0x20] sm:$0xff]
      %v775 = vld [vmem:[%s5 + $0x28] sm:$0xff]
      %v776 = vld [vmem:[%s5 + $0x30] sm:$0xff]
      %v777 = vld [vmem:[%s5 + $0x38] sm:$0xff]
      %v778 = vld [vmem:[%s5 + $0x40] sm:$0xff]
      %v779 = vld [vmem:[%s5 + $0x48] sm:$0xff]
      %v780 = vld [vmem:[%s5 + $0x50] sm:$0xff]
      %v781 = vld [vmem:[%s5 + $0x58] sm:$0xff]
      %vm782 = vcmask 785408
      %v784 = vsel %vm782, %v768, 0
      %v787 = vsel %vm782, %v769, 0
      %789 = vmatprep.subr.mxu0 0.0
      %790 = vmatpush1.msra.mxu0 %v770
      %791 = vmatprep.subr.mxu0 0.0
      %792 = vmatpush1.msra.mxu0 %v771
      %793 = vmatprep.subr.mxu0 0.0
      %794 = vmatpush1.msra.mxu0 %v772
      %795 = vmatprep.subr.mxu0 0.0
      %796 = vmatpush1.msra.mxu0 %v773
      %797 = vmatprep.subr.mxu0 0.0
      %798 = vmatpush1.msra.mxu0 %v774
      %799 = vmatprep.subr.mxu0 0.0
      %800 = vmatpush1.msra.mxu0 %v775
      %801 = vmatprep.subr.mxu0 0.0
      %802 = vmatpush1.msra.mxu0 %v776
      %803 = vmatprep.subr.mxu0 0.0
      %804 = vmatpush1.msra.mxu0 %v777
      %805 = vmatprep.subr.mxu0 0.0
      %806 = vmatpush1.msra.mxu0 %v778
      %807 = vmatprep.subr.mxu0 0.0
      %808 = vmatpush1.msra.mxu0 %v779
      %809 = vmatprep.subr.mxu0 0.0
      %810 = vmatpush1.msra.mxu0 %v780
      %811 = vmatprep.subr.mxu0 0.0
      %812 = vmatpush1.msra.mxu0 %v781
      %813 = vmatprep.subr.mxu0 0.0
      %814 = vmatpush1.msra.mxu0 0.0
      %815 = vmatprep.subr.mxu0 0.0
      %816 = vmatpush1.msra.mxu0 0.0
      %817 = vmatprep.subr.mxu0 0.0
      %818 = vmatpush1.msra.mxu0 0.0
      %819 = vmatprep.subr.mxu0 0.0
      %820 = vmatpush1.msra.mxu0 0.0
      %821 = vmatprep.subr.mxu0 0.0
      %822 = vmatpush1.msra.mxu0 0.0
      %823 = vmatprep.subr.mxu0 0.0
      %824 = vmatpush1.msra.mxu0 0.0
      %825 = vmatprep.subr.mxu0 0.0
      %826 = vmatpush1.msra.mxu0 0.0
      %827 = vmatprep.subr.mxu0 0.0
      %828 = vmatpush1.msra.mxu0 0.0
      %829 = vmatprep.subr.mxu0 0.0
      %830 = vmatpush1.msra.mxu0 0.0
      %831 = vmatprep.subr.mxu0 0.0
      %832 = vmatpush1.msra.mxu0 0.0
      %833 = vmatprep.subr.mxu0 0.0
      %834 = vmatpush1.msra.mxu0 0.0
      %835 = vmatprep.subr.mxu0 0.0
      %836 = vmatpush1.msra.mxu0 0.0
      %837 = vmatprep.subr.mxu0 0.0
      %838 = vmatpush1.msra.mxu0 0.0
      %839 = vmatprep.subr.mxu0 0.0
      %840 = vmatpush1.msra.mxu0 0.0
      %841 = vmatprep.subr.mxu0 0.0
      %842 = vmatpush1.msra.mxu0 0.0
      %843 = vmatprep.subr.mxu0 0.0
      %844 = vmatpush1.msra.mxu0 0.0
      %845 = vmatprep.subr.mxu0 0.0
      %846 = vmatpush1.msra.mxu0 0.0
      %847 = vmatprep.subr.mxu0 0.0
      %848 = vmatpush1.msra.mxu0 0.0
      %849 = vmatprep.subr.mxu0 0.0
      %850 = vmatpush1.msra.mxu0 0.0
      %851 = vmatprep.subr.mxu0 0.0
      %852 = vmatpush1.msra.mxu0 0.0
      %853 = vmatprep.mubr.f32.mxu0 0.0
      %854 = vmatmul.mubr.f32.gmra.mrb[0].mxu0 %v784
      %v855 = vpop.f32.mrb[0].mxu0
      %v856 = vadd.f32 0.0, %v855
      %v857 = vpop.f32.mrb[0].mxu0
      %858 = vmatprep.mubr.f32.mxu0 0.0
      %859 = vmatmul.mubr.f32.gmra.mrb[0].mxu0 %v787
      %v860 = vpop.f32.mrb[0].mxu0
      %v861 = vadd.f32 0.0, %v860
      %v862 = vpop.f32.mrb[0].mxu0
      %863 = vdwg.mxu0
      %v864 = vld [vmem:[%s6] sm:$0x1]
      %v866 = vlaneseq
      %v867 = vshrl.u32 %v866, 7
      %v868 = vsub.s32 0, %v867
      %v869 = vrot.slane %v864, %v868
      %v871 = vmul.f32 %v856, %v869
      %v872 = vmul.f32 %v861, %v869
      %v873 = vld [vmem:[%s7] sm:$0x1]
      %v875 = vlaneseq
      %v876 = vshrl.u32 %v875, 7
      %v877 = vsub.s32 0, %v876
      %v878 = vrot.slane %v873, %v877
      %v880 = vadd.f32 %v871, %v878
      %v881 = vadd.f32 %v872, %v878
      %v882 = vmax.f32 %v880, 0.0
      %v883 = vmax.f32 %v881, 0.0
      %v884 = vld [vmem:[%s3] sm:$0xff]
      %v885 = vld [vmem:[%s3 + $0x8] sm:$0xff]
      %v886 = vld [vmem:[%s3 + $0x10] sm:$0xff]
      %v887 = vld [vmem:[%s3 + $0x18] sm:$0xff]
      %v888 = vld [vmem:[%s3 + $0x20] sm:$0xff]
      %v889 = vld [vmem:[%s3 + $0x28] sm:$0xff]
      %v890 = vld [vmem:[%s3 + $0x30] sm:$0xff]
      %v891 = vld [vmem:[%s3 + $0x38] sm:$0xff]
      %vm892 = vcmask 130048
      %v894 = vsel %vm892, %v884, 0
      %v897 = vsel %vm892, %v885, 0
      %v900 = vsel %vm892, %v886, 0
      %v903 = vsel %vm892, %v887, 0
      %v906 = vsel %vm892, %v888, 0
      %v909 = vsel %vm892, %v889, 0
      %v912 = vsel %vm892, %v890, 0
      %v915 = vsel %vm892, %v891, 0
      %917 = vmatprep.subr.mxu0 0.0
      %918 = vmatpush1.msra.mxu0 %v882
      %919 = vmatprep.subr.mxu0 0.0
      %920 = vmatpush1.msra.mxu0 %v883
      %921 = vmatprep.subr.mxu0 0.0
      %922 = vmatpush1.msra.mxu0 0.0
      %923 = vmatprep.subr.mxu0 0.0
      %924 = vmatpush1.msra.mxu0 0.0
      %925 = vmatprep.subr.mxu0 0.0
      %926 = vmatpush1.msra.mxu0 0.0
      %927 = vmatprep.subr.mxu0 0.0
      %928 = vmatpush1.msra.mxu0 0.0
      %929 = vmatprep.subr.mxu0 0.0
      %930 = vmatpush1.msra.mxu0 0.0
      %931 = vmatprep.subr.mxu0 0.0
      %932 = vmatpush1.msra.mxu0 0.0
      %933 = vmatprep.subr.mxu0 0.0
      %934 = vmatpush1.msra.mxu0 0.0
      %935 = vmatprep.subr.mxu0 0.0
      %936 = vmatpush1.msra.mxu0 0.0
      %937 = vmatprep.subr.mxu0 0.0
      %938 = vmatpush1.msra.mxu0 0.0
      %939 = vmatprep.subr.mxu0 0.0
      %940 = vmatpush1.msra.mxu0 0.0
      %941 = vmatprep.subr.mxu0 0.0
      %942 = vmatpush1.msra.mxu0 0.0
      %943 = vmatprep.subr.mxu0 0.0
      %944 = vmatpush1.msra.mxu0 0.0
      %945 = vmatprep.subr.mxu0 0.0
      %946 = vmatpush1.msra.mxu0 0.0
      %947 = vmatprep.subr.mxu0 0.0
      %948 = vmatpush1.msra.mxu0 0.0
      %949 = vmatprep.subr.mxu0 0.0
      %950 = vmatpush1.msra.mxu0 0.0
      %951 = vmatprep.subr.mxu0 0.0
      %952 = vmatpush1.msra.mxu0 0.0
      %953 = vmatprep.subr.mxu0 0.0
      %954 = vmatpush1.msra.mxu0 0.0
      %955 = vmatprep.subr.mxu0 0.0
      %956 = vmatpush1.msra.mxu0 0.0
      %957 = vmatprep.subr.mxu0 0.0
      %958 = vmatpush1.msra.mxu0 0.0
      %959 = vmatprep.subr.mxu0 0.0
      %960 = vmatpush1.msra.mxu0 0.0
      %961 = vmatprep.subr.mxu0 0.0
      %962 = vmatpush1.msra.mxu0 0.0
      %963 = vmatprep.subr.mxu0 0.0
      %964 = vmatpush1.msra.mxu0 0.0
      %965 = vmatprep.subr.mxu0 0.0
      %966 = vmatpush1.msra.mxu0 0.0
      %967 = vmatprep.subr.mxu0 0.0
      %968 = vmatpush1.msra.mxu0 0.0
      %969 = vmatprep.subr.mxu0 0.0
      %970 = vmatpush1.msra.mxu0 0.0
      %971 = vmatprep.subr.mxu0 0.0
      %972 = vmatpush1.msra.mxu0 0.0
      %973 = vmatprep.subr.mxu0 0.0
      %974 = vmatpush1.msra.mxu0 0.0
      %975 = vmatprep.subr.mxu0 0.0
      %976 = vmatpush1.msra.mxu0 0.0
      %977 = vmatprep.subr.mxu0 0.0
      %978 = vmatpush1.msra.mxu0 0.0
      %979 = vmatprep.subr.mxu0 0.0
      %980 = vmatpush1.msra.mxu0 0.0
      %981 = vmatprep.mubr.f32.mxu0 0.0
      %982 = vmatmul.mubr.f32.gmra.mrb[0].mxu0 %v894
      %v983 = vpop.f32.mrb[0].mxu0
      %v984 = vadd.f32 0.0, %v983
      %v985 = vpop.f32.mrb[0].mxu0
      %986 = vmatprep.mubr.f32.mxu0 0.0
      %987 = vmatmul.mubr.f32.gmra.mrb[0].mxu0 %v897
      %v988 = vpop.f32.mrb[0].mxu0
      %v989 = vadd.f32 0.0, %v988
      %v990 = vpop.f32.mrb[0].mxu0
      %991 = vmatprep.mubr.f32.mxu0 0.0
      %992 = vmatmul.mubr.f32.gmra.mrb[0].mxu0 %v900
      %v993 = vpop.f32.mrb[0].mxu0
      %v994 = vadd.f32 0.0, %v993
      %v995 = vpop.f32.mrb[0].mxu0
      %996 = vmatprep.mubr.f32.mxu0 0.0
      %997 = vmatmul.mubr.f32.gmra.mrb[0].mxu0 %v903
      %v998 = vpop.f32.mrb[0].mxu0
      %v999 = vadd.f32 0.0, %v998
      %v1000 = vpop.f32.mrb[0].mxu0
      %1001 = vmatprep.mubr.f32.mxu0 0.0
      %1002 = vmatmul.mubr.f32.gmra.mrb[0].mxu0 %v906
      %v1003 = vpop.f32.mrb[0].mxu0
      %v1004 = vadd.f32 0.0, %v1003
      %v1005 = vpop.f32.mrb[0].mxu0
      %1006 = vmatprep.mubr.f32.mxu0 0.0
      %1007 = vmatmul.mubr.f32.gmra.mrb[0].mxu0 %v909
      %v1008 = vpop.f32.mrb[0].mxu0
      %v1009 = vadd.f32 0.0, %v1008
      %v1010 = vpop.f32.mrb[0].mxu0
      %1011 = vmatprep.mubr.f32.mxu0 0.0
      %1012 = vmatmul.mubr.f32.gmra.mrb[0].mxu0 %v912
      %v1013 = vpop.f32.mrb[0].mxu0
      %v1014 = vadd.f32 0.0, %v1013
      %v1015 = vpop.f32.mrb[0].mxu0
      %1016 = vmatprep.mubr.f32.mxu0 0.0
      %1017 = vmatmul.mubr.f32.gmra.mrb[0].mxu0 %v915
      %v1018 = vpop.f32.mrb[0].mxu0
      %v1019 = vadd.f32 0.0, %v1018
      %v1020 = vpop.f32.mrb[0].mxu0
      %1021 = vdwg.mxu0
      %v1022 = vld [vmem:[%s752] sm:$0xff]
      %v1023 = vld [vmem:[%s752 + $0x8] sm:$0xff]
      %v1024 = vld [vmem:[%s752 + $0x10] sm:$0xff]
      %v1025 = vld [vmem:[%s752 + $0x18] sm:$0xff]
      %v1026 = vld [vmem:[%s752 + $0x20] sm:$0xff]
      %v1027 = vld [vmem:[%s752 + $0x28] sm:$0xff]
      %v1028 = vld [vmem:[%s752 + $0x30] sm:$0xff]
      %v1029 = vld [vmem:[%s752 + $0x38] sm:$0xff]
      %v1030 = vadd.f32 %v984, %v1022
      %v1031 = vadd.f32 %v989, %v1023
      %v1032 = vadd.f32 %v994, %v1024
      %v1033 = vadd.f32 %v999, %v1025
      %v1034 = vadd.f32 %v1004, %v1026
      %v1035 = vadd.f32 %v1009, %v1027
      %v1036 = vadd.f32 %v1014, %v1028
      %v1037 = vadd.f32 %v1019, %v1029
      %v1038 = vld [vmem:[%s8] sm:$0xff]
      %v1039 = vld [vmem:[%s8 + $0x8] sm:$0x1]
      %v1040 = vld [vmem:[%s9] sm:$0x1]
      %vm1041 = vcmask 261120
      %1042 = vst.msk [vmem:[#allocation2] sm:$0xff] %vm1041, 0.0
      %1043 = vst.msk [vmem:[#allocation2 + $0x8] sm:$0xff] %vm1041, 0.0
      %vm1044 = vcmask 253952
      %1045 = vst.msk [vmem:[#allocation2 + $0x10] sm:$0x1] %vm1044, 0.0
      %1046 = vst.msk [vmem:[#allocation2 + $0x18] sm:$0xff] %vm1041, 0.0
      %1047 = vst.msk [vmem:[#allocation2 + $0x20] sm:$0xff] %vm1041, 0.0
      %1048 = vst.msk [vmem:[#allocation2 + $0x28] sm:$0x1] %vm1044, 0.0
      %1049 = vst.msk [vmem:[#allocation2 + $0x30] sm:$0xff] %vm1041, 0.0
      %1050 = vst.msk [vmem:[#allocation2 + $0x38] sm:$0xff] %vm1041, 0.0
      %1051 = vst.msk [vmem:[#allocation2 + $0x40] sm:$0x1] %vm1044, 0.0
      %1052 = vst.msk [vmem:[#allocation2 + $0x48] sm:$0xff] %vm1041, 0.0
      %1053 = vst.msk [vmem:[#allocation2 + $0x50] sm:$0xff] %vm1041, 0.0
      %1054 = vst.msk [vmem:[#allocation2 + $0x58] sm:$0x1] %vm1044, 0.0
      %1055 = vst.msk [vmem:[#allocation2 + $0x60] sm:$0xff] %vm1041, 0.0
      %1056 = vst.msk [vmem:[#allocation2 + $0x68] sm:$0xff] %vm1041, 0.0
      %1057 = vst.msk [vmem:[#allocation2 + $0x70] sm:$0x1] %vm1044, 0.0
      %1058 = vst.msk [vmem:[#allocation2 + $0x78] sm:$0xff] %vm1041, 0.0
      %1059 = vst.msk [vmem:[#allocation2 + $0x80] sm:$0xff] %vm1041, 0.0
      %1060 = vst.msk [vmem:[#allocation2 + $0x88] sm:$0x1] %vm1044, 0.0
      %1061 = vst.msk [vmem:[#allocation2 + $0x90] sm:$0xff] %vm1041, 0.0
      %1062 = vst.msk [vmem:[#allocation2 + $0x98] sm:$0xff] %vm1041, 0.0
      %1063 = vst.msk [vmem:[#allocation2 + $0xa0] sm:$0x1] %vm1044, 0.0
      %1064 = vst.msk [vmem:[#allocation2 + $0xa8] sm:$0xff] %vm1041, 0.0
      %1065 = vst.msk [vmem:[#allocation2 + $0xb0] sm:$0xff] %vm1041, 0.0
      %1066 = vst.msk [vmem:[#allocation2 + $0xb8] sm:$0x1] %vm1044, 0.0
      %1067 = vst.msk [vmem:[#allocation2 + $0xc0] sm:$0xff] %vm1041, 0.0
      %1068 = vst.msk [vmem:[#allocation2 + $0xc8] sm:$0xff] %vm1041, 0.0
      %1069 = vst.msk [vmem:[#allocation2 + $0xd0] sm:$0x1] %vm1044, 0.0
      %1070 = vst.msk [vmem:[#allocation2 + $0xd8] sm:$0xff] %vm1041, 0.0
      %1071 = vst.msk [vmem:[#allocation2 + $0xe0] sm:$0xff] %vm1041, 0.0
      %1072 = vst.msk [vmem:[#allocation2 + $0xe8] sm:$0x1] %vm1044, 0.0
      %s1073 = scalar_lea.vmem [#allocation2], 24
      %1074 = vst.msk [vmem:[%s1073 + $0x8] sm:$0xff] %vm1041, %v1030
      %1075 = vst.msk [vmem:[%s1073 + $0x20] sm:$0xff] %vm1041, %v1031
      %1076 = vst.msk [vmem:[%s1073 + $0x38] sm:$0xff] %vm1041, %v1032
      %1077 = vst.msk [vmem:[%s1073 + $0x50] sm:$0xff] %vm1041, %v1033
      %1078 = vst.msk [vmem:[%s1073 + $0x68] sm:$0xff] %vm1041, %v1034
      %1079 = vst.msk [vmem:[%s1073 + $0x80] sm:$0xff] %vm1041, %v1035
      %1080 = vst.msk [vmem:[%s1073 + $0x98] sm:$0xff] %vm1041, %v1036
      %1081 = vst.msk [vmem:[%s1073 + $0xb0] sm:$0xff] %vm1041, %v1037
      %v1082 = vld [vmem:[#allocation2 + $0x7] sm:$0xff]
      %v1083 = vld [vmem:[#allocation2 + $0x1f] sm:$0xff]
      %v1084 = vld [vmem:[#allocation2 + $0x37] sm:$0xff]
      %v1085 = vld [vmem:[#allocation2 + $0x4f] sm:$0xff]
      %v1086 = vld [vmem:[#allocation2 + $0x67] sm:$0xff]
      %v1087 = vld [vmem:[#allocation2 + $0x7f] sm:$0xff]
      %v1088 = vld [vmem:[#allocation2 + $0x97] sm:$0xff]
      %v1089 = vld [vmem:[#allocation2 + $0xaf] sm:$0xff]
      %v1090 = vlaneseq
      %v1091 = vshrl.u32 %v1090, 7
      %v1092 = vsub.s32 0, %v1091
      %v1093 = vrot.slane %v1038, %v1092
      %v1094 = vmul.f32 %v1082, %v1093
      %v1095 = vmul.f32 %v1083, %v1093
      %v1096 = vmul.f32 %v1084, %v1093
      %v1097 = vmul.f32 %v1085, %v1093
      %v1098 = vmul.f32 %v1086, %v1093
      %v1099 = vmul.f32 %v1087, %v1093
      %v1100 = vmul.f32 %v1088, %v1093
      %v1101 = vmul.f32 %v1089, %v1093
      %v1102 = vadd.f32 %v1094, 0.0
      %v1103 = vadd.f32 %v1095, 0.0
      %v1104 = vadd.f32 %v1096, 0.0
      %v1105 = vadd.f32 %v1097, 0.0
      %v1106 = vadd.f32 %v1098, 0.0
      %v1107 = vadd.f32 %v1099, 0.0
      %v1108 = vadd.f32 %v1100, 0.0
      %v1109 = vadd.f32 %v1101, 0.0
      %v1110 = vld [vmem:[#allocation2 + $0x8] sm:$0xff]
      %v1111 = vld [vmem:[#allocation2 + $0x20] sm:$0xff]
      %v1112 = vld [vmem:[#allocation2 + $0x38] sm:$0xff]
      %v1113 = vld [vmem:[#allocation2 + $0x50] sm:$0xff]
      %v1114 = vld [vmem:[#allocation2 + $0x68] sm:$0xff]
      %v1115 = vld [vmem:[#allocation2 + $0x80] sm:$0xff]
      %v1116 = vld [vmem:[#allocation2 + $0x98] sm:$0xff]
      %v1117 = vld [vmem:[#allocation2 + $0xb0] sm:$0xff]
      %v1118 = vlaneseq
      %v1119 = vshrl.u32 %v1118, 7
      %v1120 = vsub.s32 1, %v1119
      %v1121 = vrot.slane %v1038, %v1120
      %v1122 = vmul.f32 %v1110, %v1121
      %v1123 = vmul.f32 %v1111, %v1121
      %v1124 = vmul.f32 %v1112, %v1121
      %v1125 = vmul.f32 %v1113, %v1121
      %v1126 = vmul.f32 %v1114, %v1121
      %v1127 = vmul.f32 %v1115, %v1121
      %v1128 = vmul.f32 %v1116, %v1121
      %v1129 = vmul.f32 %v1117, %v1121
      %v1130 = vadd.f32 %v1102, %v1122
      %v1131 = vadd.f32 %v1103, %v1123
      %v1132 = vadd.f32 %v1104, %v1124
      %v1133 = vadd.f32 %v1105, %v1125
      %v1134 = vadd.f32 %v1106, %v1126
      %v1135 = vadd.f32 %v1107, %v1127
      %v1136 = vadd.f32 %v1108, %v1128
      %v1137 = vadd.f32 %v1109, %v1129
      %v1138 = vld [vmem:[#allocation2 + $0x9] sm:$0xff]
      %v1139 = vld [vmem:[#allocation2 + $0x21] sm:$0xff]
      %v1140 = vld [vmem:[#allocation2 + $0x39] sm:$0xff]
      %v1141 = vld [vmem:[#allocation2 + $0x51] sm:$0xff]
      %v1142 = vld [vmem:[#allocation2 + $0x69] sm:$0xff]
      %v1143 = vld [vmem:[#allocation2 + $0x81] sm:$0xff]
      %v1144 = vld [vmem:[#allocation2 + $0x99] sm:$0xff]
      %v1145 = vld [vmem:[#allocation2 + $0xb1] sm:$0xff]
      %v1146 = vlaneseq
      %v1147 = vshrl.u32 %v1146, 7
      %v1148 = vsub.s32 2, %v1147
      %v1149 = vrot.slane %v1038, %v1148
      %v1150 = vmul.f32 %v1138, %v1149
      %v1151 = vmul.f32 %v1139, %v1149
      %v1152 = vmul.f32 %v1140, %v1149
      %v1153 = vmul.f32 %v1141, %v1149
      %v1154 = vmul.f32 %v1142, %v1149
      %v1155 = vmul.f32 %v1143, %v1149
      %v1156 = vmul.f32 %v1144, %v1149
      %v1157 = vmul.f32 %v1145, %v1149
      %v1158 = vadd.f32 %v1130, %v1150
      %v1159 = vadd.f32 %v1131, %v1151
      %v1160 = vadd.f32 %v1132, %v1152
      %v1161 = vadd.f32 %v1133, %v1153
      %v1162 = vadd.f32 %v1134, %v1154
      %v1163 = vadd.f32 %v1135, %v1155
      %v1164 = vadd.f32 %v1136, %v1156
      %v1165 = vadd.f32 %v1137, %v1157
      %v1166 = vld [vmem:[%s1073 + $0x7] sm:$0xff]
      %v1167 = vld [vmem:[%s1073 + $0x1f] sm:$0xff]
      %v1168 = vld [vmem:[%s1073 + $0x37] sm:$0xff]
      %v1169 = vld [vmem:[%s1073 + $0x4f] sm:$0xff]
      %v1170 = vld [vmem:[%s1073 + $0x67] sm:$0xff]
      %v1171 = vld [vmem:[%s1073 + $0x7f] sm:$0xff]
      %v1172 = vld [vmem:[%s1073 + $0x97] sm:$0xff]
      %v1173 = vld [vmem:[%s1073 + $0xaf] sm:$0xff]
      %v1174 = vlaneseq
      %v1175 = vshrl.u32 %v1174, 7
      %v1176 = vsub.s32 3, %v1175
      %v1177 = vrot.slane %v1038, %v1176
      %v1178 = vmul.f32 %v1166, %v1177
      %v1179 = vmul.f32 %v1167, %v1177
      %v1180 = vmul.f32 %v1168, %v1177
      %v1181 = vmul.f32 %v1169, %v1177
      %v1182 = vmul.f32 %v1170, %v1177
      %v1183 = vmul.f32 %v1171, %v1177
      %v1184 = vmul.f32 %v1172, %v1177
      %v1185 = vmul.f32 %v1173, %v1177
      %v1186 = vadd.f32 %v1158, %v1178
      %v1187 = vadd.f32 %v1159, %v1179
      %v1188 = vadd.f32 %v1160, %v1180
      %v1189 = vadd.f32 %v1161, %v1181
      %v1190 = vadd.f32 %v1162, %v1182
      %v1191 = vadd.f32 %v1163, %v1183
      %v1192 = vadd.f32 %v1164, %v1184
      %v1193 = vadd.f32 %v1165, %v1185
      %v1194 = vld [vmem:[%s1073 + $0x8] sm:$0xff]
      %v1195 = vld [vmem:[%s1073 + $0x20] sm:$0xff]
      %v1196 = vld [vmem:[%s1073 + $0x38] sm:$0xff]
      %v1197 = vld [vmem:[%s1073 + $0x50] sm:$0xff]
      %v1198 = vld [vmem:[%s1073 + $0x68] sm:$0xff]
      %v1199 = vld [vmem:[%s1073 + $0x80] sm:$0xff]
      %v1200 = vld [vmem:[%s1073 + $0x98] sm:$0xff]
      %v1201 = vld [vmem:[%s1073 + $0xb0] sm:$0xff]
      %v1202 = vlaneseq
      %v1203 = vshrl.u32 %v1202, 7
      %v1204 = vsub.s32 4, %v1203
      %v1205 = vrot.slane %v1038, %v1204
      %v1206 = vmul.f32 %v1194, %v1205
      %v1207 = vmul.f32 %v1195, %v1205
      %v1208 = vmul.f32 %v1196, %v1205
      %v1209 = vmul.f32 %v1197, %v1205
      %v1210 = vmul.f32 %v1198, %v1205
      %v1211 = vmul.f32 %v1199, %v1205
      %v1212 = vmul.f32 %v1200, %v1205
      %v1213 = vmul.f32 %v1201, %v1205
      %v1214 = vadd.f32 %v1186, %v1206
      %v1215 = vadd.f32 %v1187, %v1207
      %v1216 = vadd.f32 %v1188, %v1208
      %v1217 = vadd.f32 %v1189, %v1209
      %v1218 = vadd.f32 %v1190, %v1210
      %v1219 = vadd.f32 %v1191, %v1211
      %v1220 = vadd.f32 %v1192, %v1212
      %v1221 = vadd.f32 %v1193, %v1213
      %v1222 = vld [vmem:[%s1073 + $0x9] sm:$0xff]
      %v1223 = vld [vmem:[%s1073 + $0x21] sm:$0xff]
      %v1224 = vld [vmem:[%s1073 + $0x39] sm:$0xff]
      %v1225 = vld [vmem:[%s1073 + $0x51] sm:$0xff]
      %v1226 = vld [vmem:[%s1073 + $0x69] sm:$0xff]
      %v1227 = vld [vmem:[%s1073 + $0x81] sm:$0xff]
      %v1228 = vld [vmem:[%s1073 + $0x99] sm:$0xff]
      %v1229 = vld [vmem:[%s1073 + $0xb1] sm:$0xff]
      %v1230 = vlaneseq
      %v1231 = vshrl.u32 %v1230, 7
      %v1232 = vsub.s32 5, %v1231
      %v1233 = vrot.slane %v1038, %v1232
      %v1234 = vmul.f32 %v1222, %v1233
      %v1235 = vmul.f32 %v1223, %v1233
      %v1236 = vmul.f32 %v1224, %v1233
      %v1237 = vmul.f32 %v1225, %v1233
      %v1238 = vmul.f32 %v1226, %v1233
      %v1239 = vmul.f32 %v1227, %v1233
      %v1240 = vmul.f32 %v1228, %v1233
      %v1241 = vmul.f32 %v1229, %v1233
      %v1242 = vadd.f32 %v1214, %v1234
      %v1243 = vadd.f32 %v1215, %v1235
      %v1244 = vadd.f32 %v1216, %v1236
      %v1245 = vadd.f32 %v1217, %v1237
      %v1246 = vadd.f32 %v1218, %v1238
      %v1247 = vadd.f32 %v1219, %v1239
      %v1248 = vadd.f32 %v1220, %v1240
      %v1249 = vadd.f32 %v1221, %v1241
      %s1250 = scalar_lea.vmem [#allocation2], 48
      %v1251 = vld [vmem:[%s1250 + $0x7] sm:$0xff]
      %v1252 = vld [vmem:[%s1250 + $0x1f] sm:$0xff]
      %v1253 = vld [vmem:[%s1250 + $0x37] sm:$0xff]
      %v1254 = vld [vmem:[%s1250 + $0x4f] sm:$0xff]
      %v1255 = vld [vmem:[%s1250 + $0x67] sm:$0xff]
      %v1256 = vld [vmem:[%s1250 + $0x7f] sm:$0xff]
      %v1257 = vld [vmem:[%s1250 + $0x97] sm:$0xff]
      %v1258 = vld [vmem:[%s1250 + $0xaf] sm:$0xff]
      %v1259 = vlaneseq
      %v1260 = vshrl.u32 %v1259, 7
      %v1261 = vsub.s32 6, %v1260
      %v1262 = vrot.slane %v1038, %v1261
      %v1263 = vmul.f32 %v1251, %v1262
      %v1264 = vmul.f32 %v1252, %v1262
      %v1265 = vmul.f32 %v1253, %v1262
      %v1266 = vmul.f32 %v1254, %v1262
      %v1267 = vmul.f32 %v1255, %v1262
      %v1268 = vmul.f32 %v1256, %v1262
      %v1269 = vmul.f32 %v1257, %v1262
      %v1270 = vmul.f32 %v1258, %v1262
      %v1271 = vadd.f32 %v1242, %v1263
      %v1272 = vadd.f32 %v1243, %v1264
      %v1273 = vadd.f32 %v1244, %v1265
      %v1274 = vadd.f32 %v1245, %v1266
      %v1275 = vadd.f32 %v1246, %v1267
      %v1276 = vadd.f32 %v1247, %v1268
      %v1277 = vadd.f32 %v1248, %v1269
      %v1278 = vadd.f32 %v1249, %v1270
      %v1279 = vld [vmem:[%s1250 + $0x8] sm:$0xff]
      %v1280 = vld [vmem:[%s1250 + $0x20] sm:$0xff]
      %v1281 = vld [vmem:[%s1250 + $0x38] sm:$0xff]
      %v1282 = vld [vmem:[%s1250 + $0x50] sm:$0xff]
      %v1283 = vld [vmem:[%s1250 + $0x68] sm:$0xff]
      %v1284 = vld [vmem:[%s1250 + $0x80] sm:$0xff]
      %v1285 = vld [vmem:[%s1250 + $0x98] sm:$0xff]
      %v1286 = vld [vmem:[%s1250 + $0xb0] sm:$0xff]
      %v1287 = vlaneseq
      %v1288 = vshrl.u32 %v1287, 7
      %v1289 = vsub.s32 7, %v1288
      %v1290 = vrot.slane %v1038, %v1289
      %v1291 = vmul.f32 %v1279, %v1290
      %v1292 = vmul.f32 %v1280, %v1290
      %v1293 = vmul.f32 %v1281, %v1290
      %v1294 = vmul.f32 %v1282, %v1290
      %v1295 = vmul.f32 %v1283, %v1290
      %v1296 = vmul.f32 %v1284, %v1290
      %v1297 = vmul.f32 %v1285, %v1290
      %v1298 = vmul.f32 %v1286, %v1290
      %v1299 = vadd.f32 %v1271, %v1291
      %v1300 = vadd.f32 %v1272, %v1292
      %v1301 = vadd.f32 %v1273, %v1293
      %v1302 = vadd.f32 %v1274, %v1294
      %v1303 = vadd.f32 %v1275, %v1295
      %v1304 = vadd.f32 %v1276, %v1296
      %v1305 = vadd.f32 %v1277, %v1297
      %v1306 = vadd.f32 %v1278, %v1298
      %v1307 = vld [vmem:[%s1250 + $0x9] sm:$0xff]
      %v1308 = vld [vmem:[%s1250 + $0x21] sm:$0xff]
      %v1309 = vld [vmem:[%s1250 + $0x39] sm:$0xff]
      %v1310 = vld [vmem:[%s1250 + $0x51] sm:$0xff]
      %v1311 = vld [vmem:[%s1250 + $0x69] sm:$0xff]
      %v1312 = vld [vmem:[%s1250 + $0x81] sm:$0xff]
      %v1313 = vld [vmem:[%s1250 + $0x99] sm:$0xff]
      %v1314 = vld [vmem:[%s1250 + $0xb1] sm:$0xff]
      %v1315 = vlaneseq
      %v1316 = vshrl.u32 %v1315, 7
      %v1317 = vsub.s32 0, %v1316
      %v1318 = vrot.slane %v1039, %v1317
      %v1319 = vmul.f32 %v1307, %v1318
      %v1320 = vmul.f32 %v1308, %v1318
      %v1321 = vmul.f32 %v1309, %v1318
      %v1322 = vmul.f32 %v1310, %v1318
      %v1323 = vmul.f32 %v1311, %v1318
      %v1324 = vmul.f32 %v1312, %v1318
      %v1325 = vmul.f32 %v1313, %v1318
      %v1326 = vmul.f32 %v1314, %v1318
      %v1327 = vadd.f32 %v1299, %v1319
      %v1328 = vadd.f32 %v1300, %v1320
      %v1329 = vadd.f32 %v1301, %v1321
      %v1330 = vadd.f32 %v1302, %v1322
      %v1331 = vadd.f32 %v1303, %v1323
      %v1332 = vadd.f32 %v1304, %v1324
      %v1333 = vadd.f32 %v1305, %v1325
      %v1334 = vadd.f32 %v1306, %v1326
      %v1336 = vlaneseq
      %v1337 = vshrl.u32 %v1336, 7
      %v1338 = vsub.s32 0, %v1337
      %v1339 = vrot.slane %v1040, %v1338
      %v1341 = vadd.f32 %v1327, %v1339
      %v1342 = vadd.f32 %v1328, %v1339
      %v1343 = vadd.f32 %v1329, %v1339
      %v1344 = vadd.f32 %v1330, %v1339
      %v1345 = vadd.f32 %v1331, %v1339
      %v1346 = vadd.f32 %v1332, %v1339
      %v1347 = vadd.f32 %v1333, %v1339
      %v1348 = vadd.f32 %v1334, %v1339
      %v1349 = vld [vmem:[%s10] sm:$0xff]
      %v1350 = vld [vmem:[%s10 + $0x8] sm:$0xff]
      %v1351 = vld [vmem:[%s10 + $0x10] sm:$0xff]
      %v1352 = vld [vmem:[%s10 + $0x18] sm:$0xff]
      %v1353 = vld [vmem:[%s11] sm:$0x1]
      %v1354 = vld [vmem:[%s12] sm:$0x1]
      %v1356 = vsel %vm1041, %v1341, 0
      %v1359 = vsel %vm1041, %v1342, 0
      %v1362 = vsel %vm1041, %v1343, 0
      %v1365 = vsel %vm1041, %v1344, 0
      %v1368 = vsel %vm1041, %v1345, 0
      %v1371 = vsel %vm1041, %v1346, 0
      %v1374 = vsel %vm1041, %v1347, 0
      %v1377 = vsel %vm1041, %v1348, 0
      %1379 = vmatprep.subr.mxu0 0.0
      %1380 = vmatpush1.msra.mxu0 %v1349
      %1381 = vmatprep.subr.mxu0 0.0
      %1382 = vmatpush1.msra.mxu0 %v1350
      %1383 = vmatprep.subr.mxu0 0.0
      %1384 = vmatpush1.msra.mxu0 %v1351
      %1385 = vmatprep.subr.mxu0 0.0
      %1386 = vmatpush1.msra.mxu0 %v1352
      %1387 = vmatprep.subr.mxu0 0.0
      %1388 = vmatpush1.msra.mxu0 0.0
      %1389 = vmatprep.subr.mxu0 0.0
      %1390 = vmatpush1.msra.mxu0 0.0
      %1391 = vmatprep.subr.mxu0 0.0
      %1392 = vmatpush1.msra.mxu0 0.0
      %1393 = vmatprep.subr.mxu0 0.0
      %1394 = vmatpush1.msra.mxu0 0.0
      %1395 = vmatprep.subr.mxu0 0.0
      %1396 = vmatpush1.msra.mxu0 0.0
      %1397 = vmatprep.subr.mxu0 0.0
      %1398 = vmatpush1.msra.mxu0 0.0
      %1399 = vmatprep.subr.mxu0 0.0
      %1400 = vmatpush1.msra.mxu0 0.0
      %1401 = vmatprep.subr.mxu0 0.0
      %1402 = vmatpush1.msra.mxu0 0.0
      %1403 = vmatprep.subr.mxu0 0.0
      %1404 = vmatpush1.msra.mxu0 0.0
      %1405 = vmatprep.subr.mxu0 0.0
      %1406 = vmatpush1.msra.mxu0 0.0
      %1407 = vmatprep.subr.mxu0 0.0
      %1408 = vmatpush1.msra.mxu0 0.0
      %1409 = vmatprep.subr.mxu0 0.0
      %1410 = vmatpush1.msra.mxu0 0.0
      %1411 = vmatprep.subr.mxu0 0.0
      %1412 = vmatpush1.msra.mxu0 0.0
      %1413 = vmatprep.subr.mxu0 0.0
      %1414 = vmatpush1.msra.mxu0 0.0
      %1415 = vmatprep.subr.mxu0 0.0
      %1416 = vmatpush1.msra.mxu0 0.0
      %1417 = vmatprep.subr.mxu0 0.0
      %1418 = vmatpush1.msra.mxu0 0.0
      %1419 = vmatprep.subr.mxu0 0.0
      %1420 = vmatpush1.msra.mxu0 0.0
      %1421 = vmatprep.subr.mxu0 0.0
      %1422 = vmatpush1.msra.mxu0 0.0
      %1423 = vmatprep.subr.mxu0 0.0
      %1424 = vmatpush1.msra.mxu0 0.0
      %1425 = vmatprep.subr.mxu0 0.0
      %1426 = vmatpush1.msra.mxu0 0.0
      %1427 = vmatprep.subr.mxu0 0.0
      %1428 = vmatpush1.msra.mxu0 0.0
      %1429 = vmatprep.subr.mxu0 0.0
      %1430 = vmatpush1.msra.mxu0 0.0
      %1431 = vmatprep.subr.mxu0 0.0
      %1432 = vmatpush1.msra.mxu0 0.0
      %1433 = vmatprep.subr.mxu0 0.0
      %1434 = vmatpush1.msra.mxu0 0.0
      %1435 = vmatprep.subr.mxu0 0.0
      %1436 = vmatpush1.msra.mxu0 0.0
      %1437 = vmatprep.subr.mxu0 0.0
      %1438 = vmatpush1.msra.mxu0 0.0
      %1439 = vmatprep.subr.mxu0 0.0
      %1440 = vmatpush1.msra.mxu0 0.0
      %1441 = vmatprep.subr.mxu0 0.0
      %1442 = vmatpush1.msra.mxu0 0.0
      %1443 = vmatprep.mubr.f32.mxu0 0.0
      %1444 = vmatmul.mubr.f32.gmra.mrb[0].mxu0 %v1356
      %v1445 = vpop.f32.mrb[0].mxu0
      %v1446 = vadd.f32 0.0, %v1445
      %v1447 = vpop.f32.mrb[0].mxu0
      %1448 = vmatprep.mubr.f32.mxu0 0.0
      %1449 = vmatmul.mubr.f32.gmra.mrb[0].mxu0 %v1359
      %v1450 = vpop.f32.mrb[0].mxu0
      %v1451 = vadd.f32 0.0, %v1450
      %v1452 = vpop.f32.mrb[0].mxu0
      %1453 = vmatprep.mubr.f32.mxu0 0.0
      %1454 = vmatmul.mubr.f32.gmra.mrb[0].mxu0 %v1362
      %v1455 = vpop.f32.mrb[0].mxu0
      %v1456 = vadd.f32 0.0, %v1455
      %v1457 = vpop.f32.mrb[0].mxu0
      %1458 = vmatprep.mubr.f32.mxu0 0.0
      %1459 = vmatmul.mubr.f32.gmra.mrb[0].mxu0 %v1365
      %v1460 = vpop.f32.mrb[0].mxu0
      %v1461 = vadd.f32 0.0, %v1460
      %v1462 = vpop.f32.mrb[0].mxu0
      %1463 = vmatprep.mubr.f32.mxu0 0.0
      %1464 = vmatmul.mubr.f32.gmra.mrb[0].mxu0 %v1368
      %v1465 = vpop.f32.mrb[0].mxu0
      %v1466 = vadd.f32 0.0, %v1465
      %v1467 = vpop.f32.mrb[0].mxu0
      %1468 = vmatprep.mubr.f32.mxu0 0.0
      %1469 = vmatmul.mubr.f32.gmra.mrb[0].mxu0 %v1371
      %v1470 = vpop.f32.mrb[0].mxu0
      %v1471 = vadd.f32 0.0, %v1470
      %v1472 = vpop.f32.mrb[0].mxu0
      %1473 = vmatprep.mubr.f32.mxu0 0.0
      %1474 = vmatmul.mubr.f32.gmra.mrb[0].mxu0 %v1374
      %v1475 = vpop.f32.mrb[0].mxu0
      %v1476 = vadd.f32 0.0, %v1475
      %v1477 = vpop.f32.mrb[0].mxu0
      %1478 = vmatprep.mubr.f32.mxu0 0.0
      %1479 = vmatmul.mubr.f32.gmra.mrb[0].mxu0 %v1377
      %v1480 = vpop.f32.mrb[0].mxu0
      %v1481 = vadd.f32 0.0, %v1480
      %v1482 = vpop.f32.mrb[0].mxu0
      %1483 = vdwg.mxu0
      %v1485 = vlaneseq
      %v1486 = vshrl.u32 %v1485, 7
      %v1487 = vsub.s32 0, %v1486
      %v1488 = vrot.slane %v1353, %v1487
      %v1490 = vmul.f32 %v1446, %v1488
      %v1491 = vmul.f32 %v1451, %v1488
      %v1492 = vmul.f32 %v1456, %v1488
      %v1493 = vmul.f32 %v1461, %v1488
      %v1494 = vmul.f32 %v1466, %v1488
      %v1495 = vmul.f32 %v1471, %v1488
      %v1496 = vmul.f32 %v1476, %v1488
      %v1497 = vmul.f32 %v1481, %v1488
      %v1499 = vlaneseq
      %v1500 = vshrl.u32 %v1499, 7
      %v1501 = vsub.s32 0, %v1500
      %v1502 = vrot.slane %v1354, %v1501
      %v1504 = vadd.f32 %v1490, %v1502
      %v1505 = vadd.f32 %v1491, %v1502
      %v1506 = vadd.f32 %v1492, %v1502
      %v1507 = vadd.f32 %v1493, %v1502
      %v1508 = vadd.f32 %v1494, %v1502
      %v1509 = vadd.f32 %v1495, %v1502
      %v1510 = vadd.f32 %v1496, %v1502
      %v1511 = vadd.f32 %v1497, %v1502
      %v1512 = vmax.f32 %v1504, 0.0
      %v1513 = vmax.f32 %v1505, 0.0
      %v1514 = vmax.f32 %v1506, 0.0
      %v1515 = vmax.f32 %v1507, 0.0
      %v1516 = vmax.f32 %v1508, 0.0
      %v1517 = vmax.f32 %v1509, 0.0
      %v1518 = vmax.f32 %v1510, 0.0
      %v1519 = vmax.f32 %v1511, 0.0
      %v1520 = vld [vmem:[%s13] sm:$0xff]
      %v1521 = vld [vmem:[%s13 + $0x8] sm:$0x1]
      %v1522 = vld [vmem:[%s14] sm:$0x1]
      %1523 = vst.msk [vmem:[#allocation2] sm:$0xff] %vm1041, 0.0
      %1524 = vst.msk [vmem:[#allocation2 + $0x8] sm:$0xff] %vm1041, 0.0
      %1525 = vst.msk [vmem:[#allocation2 + $0x10] sm:$0x1] %vm1044, 0.0
      %1526 = vst.msk [vmem:[#allocation2 + $0x18] sm:$0xff] %vm1041, 0.0
      %1527 = vst.msk [vmem:[#allocation2 + $0x20] sm:$0xff] %vm1041, 0.0
      %1528 = vst.msk [vmem:[#allocation2 + $0x28] sm:$0x1] %vm1044, 0.0
      %1529 = vst.msk [vmem:[#allocation2 + $0x30] sm:$0xff] %vm1041, 0.0
      %1530 = vst.msk [vmem:[#allocation2 + $0x38] sm:$0xff] %vm1041, 0.0
      %1531 = vst.msk [vmem:[#allocation2 + $0x40] sm:$0x1] %vm1044, 0.0
      %1532 = vst.msk [vmem:[#allocation2 + $0x48] sm:$0xff] %vm1041, 0.0
      %1533 = vst.msk [vmem:[#allocation2 + $0x50] sm:$0xff] %vm1041, 0.0
      %1534 = vst.msk [vmem:[#allocation2 + $0x58] sm:$0x1] %vm1044, 0.0
      %1535 = vst.msk [vmem:[#allocation2 + $0x60] sm:$0xff] %vm1041, 0.0
      %1536 = vst.msk [vmem:[#allocation2 + $0x68] sm:$0xff] %vm1041, 0.0
      %1537 = vst.msk [vmem:[#allocation2 + $0x70] sm:$0x1] %vm1044, 0.0
      %1538 = vst.msk [vmem:[#allocation2 + $0x78] sm:$0xff] %vm1041, 0.0
      %1539 = vst.msk [vmem:[#allocation2 + $0x80] sm:$0xff] %vm1041, 0.0
      %1540 = vst.msk [vmem:[#allocation2 + $0x88] sm:$0x1] %vm1044, 0.0
      %1541 = vst.msk [vmem:[#allocation2 + $0x90] sm:$0xff] %vm1041, 0.0
      %1542 = vst.msk [vmem:[#allocation2 + $0x98] sm:$0xff] %vm1041, 0.0
      %1543 = vst.msk [vmem:[#allocation2 + $0xa0] sm:$0x1] %vm1044, 0.0
      %1544 = vst.msk [vmem:[#allocation2 + $0xa8] sm:$0xff] %vm1041, 0.0
      %1545 = vst.msk [vmem:[#allocation2 + $0xb0] sm:$0xff] %vm1041, 0.0
      %1546 = vst.msk [vmem:[#allocation2 + $0xb8] sm:$0x1] %vm1044, 0.0
      %1547 = vst.msk [vmem:[#allocation2 + $0xc0] sm:$0xff] %vm1041, 0.0
      %1548 = vst.msk [vmem:[#allocation2 + $0xc8] sm:$0xff] %vm1041, 0.0
      %1549 = vst.msk [vmem:[#allocation2 + $0xd0] sm:$0x1] %vm1044, 0.0
      %1550 = vst.msk [vmem:[#allocation2 + $0xd8] sm:$0xff] %vm1041, 0.0
      %1551 = vst.msk [vmem:[#allocation2 + $0xe0] sm:$0xff] %vm1041, 0.0
      %1552 = vst.msk [vmem:[#allocation2 + $0xe8] sm:$0x1] %vm1044, 0.0
      %1553 = vst.msk [vmem:[%s1073 + $0x8] sm:$0xff] %vm1041, %v1512
      %1554 = vst.msk [vmem:[%s1073 + $0x20] sm:$0xff] %vm1041, %v1513
      %1555 = vst.msk [vmem:[%s1073 + $0x38] sm:$0xff] %vm1041, %v1514
      %1556 = vst.msk [vmem:[%s1073 + $0x50] sm:$0xff] %vm1041, %v1515
      %1557 = vst.msk [vmem:[%s1073 + $0x68] sm:$0xff] %vm1041, %v1516
      %1558 = vst.msk [vmem:[%s1073 + $0x80] sm:$0xff] %vm1041, %v1517
      %1559 = vst.msk [vmem:[%s1073 + $0x98] sm:$0xff] %vm1041, %v1518
      %1560 = vst.msk [vmem:[%s1073 + $0xb0] sm:$0xff] %vm1041, %v1519
      %v1561 = vld [vmem:[#allocation2 + $0x7] sm:$0xff]
      %v1562 = vld [vmem:[#allocation2 + $0x1f] sm:$0xff]
      %v1563 = vld [vmem:[#allocation2 + $0x37] sm:$0xff]
      %v1564 = vld [vmem:[#allocation2 + $0x4f] sm:$0xff]
      %v1565 = vld [vmem:[#allocation2 + $0x67] sm:$0xff]
      %v1566 = vld [vmem:[#allocation2 + $0x7f] sm:$0xff]
      %v1567 = vld [vmem:[#allocation2 + $0x97] sm:$0xff]
      %v1568 = vld [vmem:[#allocation2 + $0xaf] sm:$0xff]
      %v1569 = vlaneseq
      %v1570 = vshrl.u32 %v1569, 7
      %v1571 = vsub.s32 0, %v1570
      %v1572 = vrot.slane %v1520, %v1571
      %v1573 = vmul.f32 %v1561, %v1572
      %v1574 = vmul.f32 %v1562, %v1572
      %v1575 = vmul.f32 %v1563, %v1572
      %v1576 = vmul.f32 %v1564, %v1572
      %v1577 = vmul.f32 %v1565, %v1572
      %v1578 = vmul.f32 %v1566, %v1572
      %v1579 = vmul.f32 %v1567, %v1572
      %v1580 = vmul.f32 %v1568, %v1572
      %v1581 = vadd.f32 %v1573, 0.0
      %v1582 = vadd.f32 %v1574, 0.0
      %v1583 = vadd.f32 %v1575, 0.0
      %v1584 = vadd.f32 %v1576, 0.0
      %v1585 = vadd.f32 %v1577, 0.0
      %v1586 = vadd.f32 %v1578, 0.0
      %v1587 = vadd.f32 %v1579, 0.0
      %v1588 = vadd.f32 %v1580, 0.0
      %v1589 = vld [vmem:[#allocation2 + $0x8] sm:$0xff]
      %v1590 = vld [vmem:[#allocation2 + $0x20] sm:$0xff]
      %v1591 = vld [vmem:[#allocation2 + $0x38] sm:$0xff]
      %v1592 = vld [vmem:[#allocation2 + $0x50] sm:$0xff]
      %v1593 = vld [vmem:[#allocation2 + $0x68] sm:$0xff]
      %v1594 = vld [vmem:[#allocation2 + $0x80] sm:$0xff]
      %v1595 = vld [vmem:[#allocation2 + $0x98] sm:$0xff]
      %v1596 = vld [vmem:[#allocation2 + $0xb0] sm:$0xff]
      %v1597 = vlaneseq
      %v1598 = vshrl.u32 %v1597, 7
      %v1599 = vsub.s32 1, %v1598
      %v1600 = vrot.slane %v1520, %v1599
      %v1601 = vmul.f32 %v1589, %v1600
      %v1602 = vmul.f32 %v1590, %v1600
      %v1603 = vmul.f32 %v1591, %v1600
      %v1604 = vmul.f32 %v1592, %v1600
      %v1605 = vmul.f32 %v1593, %v1600
      %v1606 = vmul.f32 %v1594, %v1600
      %v1607 = vmul.f32 %v1595, %v1600
      %v1608 = vmul.f32 %v1596, %v1600
      %v1609 = vadd.f32 %v1581, %v1601
      %v1610 = vadd.f32 %v1582, %v1602
      %v1611 = vadd.f32 %v1583, %v1603
      %v1612 = vadd.f32 %v1584, %v1604
      %v1613 = vadd.f32 %v1585, %v1605
      %v1614 = vadd.f32 %v1586, %v1606
      %v1615 = vadd.f32 %v1587, %v1607
      %v1616 = vadd.f32 %v1588, %v1608
      %v1617 = vld [vmem:[#allocation2 + $0x9] sm:$0xff]
      %v1618 = vld [vmem:[#allocation2 + $0x21] sm:$0xff]
      %v1619 = vld [vmem:[#allocation2 + $0x39] sm:$0xff]
      %v1620 = vld [vmem:[#allocation2 + $0x51] sm:$0xff]
      %v1621 = vld [vmem:[#allocation2 + $0x69] sm:$0xff]
      %v1622 = vld [vmem:[#allocation2 + $0x81] sm:$0xff]
      %v1623 = vld [vmem:[#allocation2 + $0x99] sm:$0xff]
      %v1624 = vld [vmem:[#allocation2 + $0xb1] sm:$0xff]
      %v1625 = vlaneseq
      %v1626 = vshrl.u32 %v1625, 7
      %v1627 = vsub.s32 2, %v1626
      %v1628 = vrot.slane %v1520, %v1627
      %v1629 = vmul.f32 %v1617, %v1628
      %v1630 = vmul.f32 %v1618, %v1628
      %v1631 = vmul.f32 %v1619, %v1628
      %v1632 = vmul.f32 %v1620, %v1628
      %v1633 = vmul.f32 %v1621, %v1628
      %v1634 = vmul.f32 %v1622, %v1628
      %v1635 = vmul.f32 %v1623, %v1628
      %v1636 = vmul.f32 %v1624, %v1628
      %v1637 = vadd.f32 %v1609, %v1629
      %v1638 = vadd.f32 %v1610, %v1630
      %v1639 = vadd.f32 %v1611, %v1631
      %v1640 = vadd.f32 %v1612, %v1632
      %v1641 = vadd.f32 %v1613, %v1633
      %v1642 = vadd.f32 %v1614, %v1634
      %v1643 = vadd.f32 %v1615, %v1635
      %v1644 = vadd.f32 %v1616, %v1636
      %v1645 = vld [vmem:[%s1073 + $0x7] sm:$0xff]
      %v1646 = vld [vmem:[%s1073 + $0x1f] sm:$0xff]
      %v1647 = vld [vmem:[%s1073 + $0x37] sm:$0xff]
      %v1648 = vld [vmem:[%s1073 + $0x4f] sm:$0xff]
      %v1649 = vld [vmem:[%s1073 + $0x67] sm:$0xff]
      %v1650 = vld [vmem:[%s1073 + $0x7f] sm:$0xff]
      %v1651 = vld [vmem:[%s1073 + $0x97] sm:$0xff]
      %v1652 = vld [vmem:[%s1073 + $0xaf] sm:$0xff]
      %v1653 = vlaneseq
      %v1654 = vshrl.u32 %v1653, 7
      %v1655 = vsub.s32 3, %v1654
      %v1656 = vrot.slane %v1520, %v1655
      %v1657 = vmul.f32 %v1645, %v1656
      %v1658 = vmul.f32 %v1646, %v1656
      %v1659 = vmul.f32 %v1647, %v1656
      %v1660 = vmul.f32 %v1648, %v1656
      %v1661 = vmul.f32 %v1649, %v1656
      %v1662 = vmul.f32 %v1650, %v1656
      %v1663 = vmul.f32 %v1651, %v1656
      %v1664 = vmul.f32 %v1652, %v1656
      %v1665 = vadd.f32 %v1637, %v1657
      %v1666 = vadd.f32 %v1638, %v1658
      %v1667 = vadd.f32 %v1639, %v1659
      %v1668 = vadd.f32 %v1640, %v1660
      %v1669 = vadd.f32 %v1641, %v1661
      %v1670 = vadd.f32 %v1642, %v1662
      %v1671 = vadd.f32 %v1643, %v1663
      %v1672 = vadd.f32 %v1644, %v1664
      %v1673 = vld [vmem:[%s1073 + $0x8] sm:$0xff]
      %v1674 = vld [vmem:[%s1073 + $0x20] sm:$0xff]
      %v1675 = vld [vmem:[%s1073 + $0x38] sm:$0xff]
      %v1676 = vld [vmem:[%s1073 + $0x50] sm:$0xff]
      %v1677 = vld [vmem:[%s1073 + $0x68] sm:$0xff]
      %v1678 = vld [vmem:[%s1073 + $0x80] sm:$0xff]
      %v1679 = vld [vmem:[%s1073 + $0x98] sm:$0xff]
      %v1680 = vld [vmem:[%s1073 + $0xb0] sm:$0xff]
      %v1681 = vlaneseq
      %v1682 = vshrl.u32 %v1681, 7
      %v1683 = vsub.s32 4, %v1682
      %v1684 = vrot.slane %v1520, %v1683
      %v1685 = vmul.f32 %v1673, %v1684
      %v1686 = vmul.f32 %v1674, %v1684
      %v1687 = vmul.f32 %v1675, %v1684
      %v1688 = vmul.f32 %v1676, %v1684
      %v1689 = vmul.f32 %v1677, %v1684
      %v1690 = vmul.f32 %v1678, %v1684
      %v1691 = vmul.f32 %v1679, %v1684
      %v1692 = vmul.f32 %v1680, %v1684
      %v1693 = vadd.f32 %v1665, %v1685
      %v1694 = vadd.f32 %v1666, %v1686
      %v1695 = vadd.f32 %v1667, %v1687
      %v1696 = vadd.f32 %v1668, %v1688
      %v1697 = vadd.f32 %v1669, %v1689
      %v1698 = vadd.f32 %v1670, %v1690
      %v1699 = vadd.f32 %v1671, %v1691
      %v1700 = vadd.f32 %v1672, %v1692
      %v1701 = vld [vmem:[%s1073 + $0x9] sm:$0xff]
      %v1702 = vld [vmem:[%s1073 + $0x21] sm:$0xff]
      %v1703 = vld [vmem:[%s1073 + $0x39] sm:$0xff]
      %v1704 = vld [vmem:[%s1073 + $0x51] sm:$0xff]
      %v1705 = vld [vmem:[%s1073 + $0x69] sm:$0xff]
      %v1706 = vld [vmem:[%s1073 + $0x81] sm:$0xff]
      %v1707 = vld [vmem:[%s1073 + $0x99] sm:$0xff]
      %v1708 = vld [vmem:[%s1073 + $0xb1] sm:$0xff]
      %v1709 = vlaneseq
      %v1710 = vshrl.u32 %v1709, 7
      %v1711 = vsub.s32 5, %v1710
      %v1712 = vrot.slane %v1520, %v1711
      %v1713 = vmul.f32 %v1701, %v1712
      %v1714 = vmul.f32 %v1702, %v1712
      %v1715 = vmul.f32 %v1703, %v1712
      %v1716 = vmul.f32 %v1704, %v1712
      %v1717 = vmul.f32 %v1705, %v1712
      %v1718 = vmul.f32 %v1706, %v1712
      %v1719 = vmul.f32 %v1707, %v1712
      %v1720 = vmul.f32 %v1708, %v1712
      %v1721 = vadd.f32 %v1693, %v1713
      %v1722 = vadd.f32 %v1694, %v1714
      %v1723 = vadd.f32 %v1695, %v1715
      %v1724 = vadd.f32 %v1696, %v1716
      %v1725 = vadd.f32 %v1697, %v1717
      %v1726 = vadd.f32 %v1698, %v1718
      %v1727 = vadd.f32 %v1699, %v1719
      %v1728 = vadd.f32 %v1700, %v1720
      %v1729 = vld [vmem:[%s1250 + $0x7] sm:$0xff]
      %v1730 = vld [vmem:[%s1250 + $0x1f] sm:$0xff]
      %v1731 = vld [vmem:[%s1250 + $0x37] sm:$0xff]
      %v1732 = vld [vmem:[%s1250 + $0x4f] sm:$0xff]
      %v1733 = vld [vmem:[%s1250 + $0x67] sm:$0xff]
      %v1734 = vld [vmem:[%s1250 + $0x7f] sm:$0xff]
      %v1735 = vld [vmem:[%s1250 + $0x97] sm:$0xff]
      %v1736 = vld [vmem:[%s1250 + $0xaf] sm:$0xff]
      %v1737 = vlaneseq
      %v1738 = vshrl.u32 %v1737, 7
      %v1739 = vsub.s32 6, %v1738
      %v1740 = vrot.slane %v1520, %v1739
      %v1741 = vmul.f32 %v1729, %v1740
      %v1742 = vmul.f32 %v1730, %v1740
      %v1743 = vmul.f32 %v1731, %v1740
      %v1744 = vmul.f32 %v1732, %v1740
      %v1745 = vmul.f32 %v1733, %v1740
      %v1746 = vmul.f32 %v1734, %v1740
      %v1747 = vmul.f32 %v1735, %v1740
      %v1748 = vmul.f32 %v1736, %v1740
      %v1749 = vadd.f32 %v1721, %v1741
      %v1750 = vadd.f32 %v1722, %v1742
      %v1751 = vadd.f32 %v1723, %v1743
      %v1752 = vadd.f32 %v1724, %v1744
      %v1753 = vadd.f32 %v1725, %v1745
      %v1754 = vadd.f32 %v1726, %v1746
      %v1755 = vadd.f32 %v1727, %v1747
      %v1756 = vadd.f32 %v1728, %v1748
      %v1757 = vld [vmem:[%s1250 + $0x8] sm:$0xff]
      %v1758 = vld [vmem:[%s1250 + $0x20] sm:$0xff]
      %v1759 = vld [vmem:[%s1250 + $0x38] sm:$0xff]
      %v1760 = vld [vmem:[%s1250 + $0x50] sm:$0xff]
      %v1761 = vld [vmem:[%s1250 + $0x68] sm:$0xff]
      %v1762 = vld [vmem:[%s1250 + $0x80] sm:$0xff]
      %v1763 = vld [vmem:[%s1250 + $0x98] sm:$0xff]
      %v1764 = vld [vmem:[%s1250 + $0xb0] sm:$0xff]
      %v1765 = vlaneseq
      %v1766 = vshrl.u32 %v1765, 7
      %v1767 = vsub.s32 7, %v1766
      %v1768 = vrot.slane %v1520, %v1767
      %v1769 = vmul.f32 %v1757, %v1768
      %v1770 = vmul.f32 %v1758, %v1768
      %v1771 = vmul.f32 %v1759, %v1768
      %v1772 = vmul.f32 %v1760, %v1768
      %v1773 = vmul.f32 %v1761, %v1768
      %v1774 = vmul.f32 %v1762, %v1768
      %v1775 = vmul.f32 %v1763, %v1768
      %v1776 = vmul.f32 %v1764, %v1768
      %v1777 = vadd.f32 %v1749, %v1769
      %v1778 = vadd.f32 %v1750, %v1770
      %v1779 = vadd.f32 %v1751, %v1771
      %v1780 = vadd.f32 %v1752, %v1772
      %v1781 = vadd.f32 %v1753, %v1773
      %v1782 = vadd.f32 %v1754, %v1774
      %v1783 = vadd.f32 %v1755, %v1775
      %v1784 = vadd.f32 %v1756, %v1776
      %v1785 = vld [vmem:[%s1250 + $0x9] sm:$0xff]
      %v1786 = vld [vmem:[%s1250 + $0x21] sm:$0xff]
      %v1787 = vld [vmem:[%s1250 + $0x39] sm:$0xff]
      %v1788 = vld [vmem:[%s1250 + $0x51] sm:$0xff]
      %v1789 = vld [vmem:[%s1250 + $0x69] sm:$0xff]
      %v1790 = vld [vmem:[%s1250 + $0x81] sm:$0xff]
      %v1791 = vld [vmem:[%s1250 + $0x99] sm:$0xff]
      %v1792 = vld [vmem:[%s1250 + $0xb1] sm:$0xff]
      %v1793 = vlaneseq
      %v1794 = vshrl.u32 %v1793, 7
      %v1795 = vsub.s32 0, %v1794
      %v1796 = vrot.slane %v1521, %v1795
      %v1797 = vmul.f32 %v1785, %v1796
      %v1798 = vmul.f32 %v1786, %v1796
      %v1799 = vmul.f32 %v1787, %v1796
      %v1800 = vmul.f32 %v1788, %v1796
      %v1801 = vmul.f32 %v1789, %v1796
      %v1802 = vmul.f32 %v1790, %v1796
      %v1803 = vmul.f32 %v1791, %v1796
      %v1804 = vmul.f32 %v1792, %v1796
      %v1805 = vadd.f32 %v1777, %v1797
      %v1806 = vadd.f32 %v1778, %v1798
      %v1807 = vadd.f32 %v1779, %v1799
      %v1808 = vadd.f32 %v1780, %v1800
      %v1809 = vadd.f32 %v1781, %v1801
      %v1810 = vadd.f32 %v1782, %v1802
      %v1811 = vadd.f32 %v1783, %v1803
      %v1812 = vadd.f32 %v1784, %v1804
      %v1814 = vlaneseq
      %v1815 = vshrl.u32 %v1814, 7
      %v1816 = vsub.s32 0, %v1815
      %v1817 = vrot.slane %v1522, %v1816
      %v1819 = vadd.f32 %v1805, %v1817
      %v1820 = vadd.f32 %v1806, %v1817
      %v1821 = vadd.f32 %v1807, %v1817
      %v1822 = vadd.f32 %v1808, %v1817
      %v1823 = vadd.f32 %v1809, %v1817
      %v1824 = vadd.f32 %v1810, %v1817
      %v1825 = vadd.f32 %v1811, %v1817
      %v1826 = vadd.f32 %v1812, %v1817
      %v1827 = vld [vmem:[%s15] sm:$0xff]
      %v1828 = vld [vmem:[%s15 + $0x8] sm:$0xff]
      %v1829 = vld [vmem:[%s15 + $0x10] sm:$0xff]
      %v1830 = vld [vmem:[%s15 + $0x18] sm:$0xff]
      %v1831 = vld [vmem:[%s16] sm:$0x1]
      %v1832 = vld [vmem:[%s17] sm:$0x1]
      %v1834 = vsel %vm1041, %v1819, 0
      %v1837 = vsel %vm1041, %v1820, 0
      %v1840 = vsel %vm1041, %v1821, 0
      %v1843 = vsel %vm1041, %v1822, 0
      %v1846 = vsel %vm1041, %v1823, 0
      %v1849 = vsel %vm1041, %v1824, 0
      %v1852 = vsel %vm1041, %v1825, 0
      %v1855 = vsel %vm1041, %v1826, 0
      %1857 = vmatprep.subr.mxu0 0.0
      %1858 = vmatpush1.msra.mxu0 %v1827
      %1859 = vmatprep.subr.mxu0 0.0
      %1860 = vmatpush1.msra.mxu0 %v1828
      %1861 = vmatprep.subr.mxu0 0.0
      %1862 = vmatpush1.msra.mxu0 %v1829
      %1863 = vmatprep.subr.mxu0 0.0
      %1864 = vmatpush1.msra.mxu0 %v1830
      %1865 = vmatprep.subr.mxu0 0.0
      %1866 = vmatpush1.msra.mxu0 0.0
      %1867 = vmatprep.subr.mxu0 0.0
      %1868 = vmatpush1.msra.mxu0 0.0
      %1869 = vmatprep.subr.mxu0 0.0
      %1870 = vmatpush1.msra.mxu0 0.0
      %1871 = vmatprep.subr.mxu0 0.0
      %1872 = vmatpush1.msra.mxu0 0.0
      %1873 = vmatprep.subr.mxu0 0.0
      %1874 = vmatpush1.msra.mxu0 0.0
      %1875 = vmatprep.subr.mxu0 0.0
      %1876 = vmatpush1.msra.mxu0 0.0
      %1877 = vmatprep.subr.mxu0 0.0
      %1878 = vmatpush1.msra.mxu0 0.0
      %1879 = vmatprep.subr.mxu0 0.0
      %1880 = vmatpush1.msra.mxu0 0.0
      %1881 = vmatprep.subr.mxu0 0.0
      %1882 = vmatpush1.msra.mxu0 0.0
      %1883 = vmatprep.subr.mxu0 0.0
      %1884 = vmatpush1.msra.mxu0 0.0
      %1885 = vmatprep.subr.mxu0 0.0
      %1886 = vmatpush1.msra.mxu0 0.0
      %1887 = vmatprep.subr.mxu0 0.0
      %1888 = vmatpush1.msra.mxu0 0.0
      %1889 = vmatprep.subr.mxu0 0.0
      %1890 = vmatpush1.msra.mxu0 0.0
      %1891 = vmatprep.subr.mxu0 0.0
      %1892 = vmatpush1.msra.mxu0 0.0
      %1893 = vmatprep.subr.mxu0 0.0
      %1894 = vmatpush1.msra.mxu0 0.0
      %1895 = vmatprep.subr.mxu0 0.0
      %1896 = vmatpush1.msra.mxu0 0.0
      %1897 = vmatprep.subr.mxu0 0.0
      %1898 = vmatpush1.msra.mxu0 0.0
      %1899 = vmatprep.subr.mxu0 0.0
      %1900 = vmatpush1.msra.mxu0 0.0
      %1901 = vmatprep.subr.mxu0 0.0
      %1902 = vmatpush1.msra.mxu0 0.0
      %1903 = vmatprep.subr.mxu0 0.0
      %1904 = vmatpush1.msra.mxu0 0.0
      %1905 = vmatprep.subr.mxu0 0.0
      %1906 = vmatpush1.msra.mxu0 0.0
      %1907 = vmatprep.subr.mxu0 0.0
      %1908 = vmatpush1.msra.mxu0 0.0
      %1909 = vmatprep.subr.mxu0 0.0
      %1910 = vmatpush1.msra.mxu0 0.0
      %1911 = vmatprep.subr.mxu0 0.0
      %1912 = vmatpush1.msra.mxu0 0.0
      %1913 = vmatprep.subr.mxu0 0.0
      %1914 = vmatpush1.msra.mxu0 0.0
      %1915 = vmatprep.subr.mxu0 0.0
      %1916 = vmatpush1.msra.mxu0 0.0
      %1917 = vmatprep.subr.mxu0 0.0
      %1918 = vmatpush1.msra.mxu0 0.0
      %1919 = vmatprep.subr.mxu0 0.0
      %1920 = vmatpush1.msra.mxu0 0.0
      %1921 = vmatprep.mubr.f32.mxu0 0.0
      %1922 = vmatmul.mubr.f32.gmra.mrb[0].mxu0 %v1834
      %v1923 = vpop.f32.mrb[0].mxu0
      %v1924 = vadd.f32 0.0, %v1923
      %v1925 = vpop.f32.mrb[0].mxu0
      %1926 = vmatprep.mubr.f32.mxu0 0.0
      %1927 = vmatmul.mubr.f32.gmra.mrb[0].mxu0 %v1837
      %v1928 = vpop.f32.mrb[0].mxu0
      %v1929 = vadd.f32 0.0, %v1928
      %v1930 = vpop.f32.mrb[0].mxu0
      %1931 = vmatprep.mubr.f32.mxu0 0.0
      %1932 = vmatmul.mubr.f32.gmra.mrb[0].mxu0 %v1840
      %v1933 = vpop.f32.mrb[0].mxu0
      %v1934 = vadd.f32 0.0, %v1933
      %v1935 = vpop.f32.mrb[0].mxu0
      %1936 = vmatprep.mubr.f32.mxu0 0.0
      %1937 = vmatmul.mubr.f32.gmra.mrb[0].mxu0 %v1843
      %v1938 = vpop.f32.mrb[0].mxu0
      %v1939 = vadd.f32 0.0, %v1938
      %v1940 = vpop.f32.mrb[0].mxu0
      %1941 = vmatprep.mubr.f32.mxu0 0.0
      %1942 = vmatmul.mubr.f32.gmra.mrb[0].mxu0 %v1846
      %v1943 = vpop.f32.mrb[0].mxu0
      %v1944 = vadd.f32 0.0, %v1943
      %v1945 = vpop.f32.mrb[0].mxu0
      %1946 = vmatprep.mubr.f32.mxu0 0.0
      %1947 = vmatmul.mubr.f32.gmra.mrb[0].mxu0 %v1849
      %v1948 = vpop.f32.mrb[0].mxu0
      %v1949 = vadd.f32 0.0, %v1948
      %v1950 = vpop.f32.mrb[0].mxu0
      %1951 = vmatprep.mubr.f32.mxu0 0.0
      %1952 = vmatmul.mubr.f32.gmra.mrb[0].mxu0 %v1852
      %v1953 = vpop.f32.mrb[0].mxu0
      %v1954 = vadd.f32 0.0, %v1953
      %v1955 = vpop.f32.mrb[0].mxu0
      %1956 = vmatprep.mubr.f32.mxu0 0.0
      %1957 = vmatmul.mubr.f32.gmra.mrb[0].mxu0 %v1855
      %v1958 = vpop.f32.mrb[0].mxu0
      %v1959 = vadd.f32 0.0, %v1958
      %v1960 = vpop.f32.mrb[0].mxu0
      %1961 = vdwg.mxu0
      %v1963 = vlaneseq
      %v1964 = vshrl.u32 %v1963, 7
      %v1965 = vsub.s32 0, %v1964
      %v1966 = vrot.slane %v1831, %v1965
      %v1968 = vmul.f32 %v1924, %v1966
      %v1969 = vmul.f32 %v1929, %v1966
      %v1970 = vmul.f32 %v1934, %v1966
      %v1971 = vmul.f32 %v1939, %v1966
      %v1972 = vmul.f32 %v1944, %v1966
      %v1973 = vmul.f32 %v1949, %v1966
      %v1974 = vmul.f32 %v1954, %v1966
      %v1975 = vmul.f32 %v1959, %v1966
      %v1977 = vlaneseq
      %v1978 = vshrl.u32 %v1977, 7
      %v1979 = vsub.s32 0, %v1978
      %v1980 = vrot.slane %v1832, %v1979
      %v1982 = vadd.f32 %v1968, %v1980
      %v1983 = vadd.f32 %v1969, %v1980
      %v1984 = vadd.f32 %v1970, %v1980
      %v1985 = vadd.f32 %v1971, %v1980
      %v1986 = vadd.f32 %v1972, %v1980
      %v1987 = vadd.f32 %v1973, %v1980
      %v1988 = vadd.f32 %v1974, %v1980
      %v1989 = vadd.f32 %v1975, %v1980
      %v1990 = vmax.f32 %v1982, 0.0
      %v1991 = vmax.f32 %v1983, 0.0
      %v1992 = vmax.f32 %v1984, 0.0
      %v1993 = vmax.f32 %v1985, 0.0
      %v1994 = vmax.f32 %v1986, 0.0
      %v1995 = vmax.f32 %v1987, 0.0
      %v1996 = vmax.f32 %v1988, 0.0
      %v1997 = vmax.f32 %v1989, 0.0
      %1998 = vst.msk [vmem:[#allocation2] sm:$0xff] %vm1041, 0.0
      %1999 = vst.msk [vmem:[#allocation2 + $0x8] sm:$0xff] %vm1041, 0.0
      %2000 = vst.msk [vmem:[#allocation2 + $0x10] sm:$0x1] %vm1044, 0.0
      %2001 = vst.msk [vmem:[#allocation2 + $0x18] sm:$0xff] %vm1041, 0.0
      %2002 = vst.msk [vmem:[#allocation2 + $0x20] sm:$0xff] %vm1041, 0.0
      %2003 = vst.msk [vmem:[#allocation2 + $0x28] sm:$0x1] %vm1044, 0.0
      %2004 = vst.msk [vmem:[#allocation2 + $0x30] sm:$0xff] %vm1041, 0.0
      %2005 = vst.msk [vmem:[#allocation2 + $0x38] sm:$0xff] %vm1041, 0.0
      %2006 = vst.msk [vmem:[#allocation2 + $0x40] sm:$0x1] %vm1044, 0.0
      %2007 = vst.msk [vmem:[#allocation2 + $0x48] sm:$0xff] %vm1041, 0.0
      %2008 = vst.msk [vmem:[#allocation2 + $0x50] sm:$0xff] %vm1041, 0.0
      %2009 = vst.msk [vmem:[#allocation2 + $0x58] sm:$0x1] %vm1044, 0.0
      %2010 = vst.msk [vmem:[#allocation2 + $0x60] sm:$0xff] %vm1041, 0.0
      %2011 = vst.msk [vmem:[#allocation2 + $0x68] sm:$0xff] %vm1041, 0.0
      %2012 = vst.msk [vmem:[#allocation2 + $0x70] sm:$0x1] %vm1044, 0.0
      %2013 = vst.msk [vmem:[#allocation2 + $0x78] sm:$0xff] %vm1041, 0.0
      %2014 = vst.msk [vmem:[#allocation2 + $0x80] sm:$0xff] %vm1041, 0.0
      %2015 = vst.msk [vmem:[#allocation2 + $0x88] sm:$0x1] %vm1044, 0.0
      %2016 = vst.msk [vmem:[#allocation2 + $0x90] sm:$0xff] %vm1041, 0.0
      %2017 = vst.msk [vmem:[#allocation2 + $0x98] sm:$0xff] %vm1041, 0.0
      %2018 = vst.msk [vmem:[#allocation2 + $0xa0] sm:$0x1] %vm1044, 0.0
      %2019 = vst.msk [vmem:[#allocation2 + $0xa8] sm:$0xff] %vm1041, 0.0
      %2020 = vst.msk [vmem:[#allocation2 + $0xb0] sm:$0xff] %vm1041, 0.0
      %2021 = vst.msk [vmem:[#allocation2 + $0xb8] sm:$0x1] %vm1044, 0.0
      %2022 = vst.msk [vmem:[#allocation2 + $0xc0] sm:$0xff] %vm1041, 0.0
      %2023 = vst.msk [vmem:[#allocation2 + $0xc8] sm:$0xff] %vm1041, 0.0
      %2024 = vst.msk [vmem:[#allocation2 + $0xd0] sm:$0x1] %vm1044, 0.0
      %2025 = vst.msk [vmem:[#allocation2 + $0xd8] sm:$0xff] %vm1041, 0.0
      %2026 = vst.msk [vmem:[#allocation2 + $0xe0] sm:$0xff] %vm1041, 0.0
      %2027 = vst.msk [vmem:[#allocation2 + $0xe8] sm:$0x1] %vm1044, 0.0
      %2028 = vst.msk [vmem:[%s1073 + $0x8] sm:$0xff] %vm1041, %v1990
      %2029 = vst.msk [vmem:[%s1073 + $0x20] sm:$0xff] %vm1041, %v1991
      %2030 = vst.msk [vmem:[%s1073 + $0x38] sm:$0xff] %vm1041, %v1992
      %2031 = vst.msk [vmem:[%s1073 + $0x50] sm:$0xff] %vm1041, %v1993
      %2032 = vst.msk [vmem:[%s1073 + $0x68] sm:$0xff] %vm1041, %v1994
      %2033 = vst.msk [vmem:[%s1073 + $0x80] sm:$0xff] %vm1041, %v1995
      %2034 = vst.msk [vmem:[%s1073 + $0x98] sm:$0xff] %vm1041, %v1996
      %2035 = vst.msk [vmem:[%s1073 + $0xb0] sm:$0xff] %vm1041, %v1997
      %v2036 = vld [vmem:[%s18] sm:$0xff]
      %v2037 = vld [vmem:[%s18 + $0x8] sm:$0xff]
      %v2038 = vld [vmem:[%s18 + $0x10] sm:$0xff]
      %v2039 = vld [vmem:[%s18 + $0x18] sm:$0xff]
      %v2040 = vld [vmem:[%s18 + $0x20] sm:$0xff]
      %v2041 = vld [vmem:[%s18 + $0x28] sm:$0xff]
      %v2042 = vld [vmem:[%s18 + $0x30] sm:$0xff]
      %v2043 = vld [vmem:[%s18 + $0x38] sm:$0xff]
      %v2044 = vld [vmem:[%s18 + $0x40] sm:$0xff]
      %v2045 = vld [vmem:[%s18 + $0x48] sm:$0xff]
      %v2046 = vld [vmem:[%s18 + $0x50] sm:$0xff]
      %v2047 = vld [vmem:[%s18 + $0x58] sm:$0xff]
      %v2048 = vld [vmem:[%s18 + $0x60] sm:$0xff]
      %v2049 = vld [vmem:[%s18 + $0x68] sm:$0xff]
      %v2050 = vld [vmem:[%s18 + $0x70] sm:$0xff]
      %v2051 = vld [vmem:[%s18 + $0x78] sm:$0xff]
      %v2052 = vld [vmem:[%s18 + $0x80] sm:$0xff]
      %v2053 = vld [vmem:[%s18 + $0x88] sm:$0xff]
      %v2054 = vld [vmem:[%s18 + $0x90] sm:$0xff]
      %v2055 = vld [vmem:[%s18 + $0x98] sm:$0xff]
      %v2056 = vld [vmem:[%s18 + $0xa0] sm:$0xff]
      %v2057 = vld [vmem:[%s18 + $0xa8] sm:$0xff]
      %v2058 = vld [vmem:[%s18 + $0xb0] sm:$0xff]
      %v2059 = vld [vmem:[%s18 + $0xb8] sm:$0xff]
      %v2060 = vld [vmem:[%s18 + $0xc0] sm:$0xff]
      %v2061 = vld [vmem:[%s18 + $0xc8] sm:$0xff]
      %v2062 = vld [vmem:[%s18 + $0xd0] sm:$0xff]
      %v2063 = vld [vmem:[%s18 + $0xd8] sm:$0xff]
      %v2064 = vld [vmem:[%s18 + $0xe0] sm:$0xff]
      %v2065 = vld [vmem:[%s18 + $0xe8] sm:$0xff]
      %v2066 = vld [vmem:[%s18 + $0xf0] sm:$0xff]
      %v2067 = vld [vmem:[%s18 + $0xf8] sm:$0xff]
      %v2068 = vld [vmem:[%s18 + $0x100] sm:$0xff]
      %v2069 = vld [vmem:[%s18 + $0x108] sm:$0xff]
      %v2070 = vld [vmem:[%s18 + $0x110] sm:$0xff]
      %v2071 = vld [vmem:[%s18 + $0x118] sm:$0xff]
      %v2072 = vld [vmem:[%s20] sm:$0xff]
      %v2073 = vld [vmem:[%s20 + $0x8] sm:$0xff]
      %v2074 = vld [vmem:[%s20 + $0x10] sm:$0xff]
      %v2075 = vld [vmem:[%s20 + $0x18] sm:$0xff]
      %v2076 = vld [vmem:[%s20 + $0x20] sm:$0xff]
      %v2077 = vld [vmem:[%s20 + $0x28] sm:$0xff]
      %v2078 = vld [vmem:[%s20 + $0x30] sm:$0xff]
      %v2079 = vld [vmem:[%s20 + $0x38] sm:$0xff]
      %v2080 = vld [vmem:[%s20 + $0x40] sm:$0xff]
      %v2081 = vld [vmem:[%s20 + $0x48] sm:$0xff]
      %v2082 = vld [vmem:[%s20 + $0x50] sm:$0xff]
      %v2083 = vld [vmem:[%s20 + $0x58] sm:$0xff]
      %v2084 = vld [vmem:[%s20 + $0x60] sm:$0xff]
      %v2085 = vld [vmem:[%s20 + $0x68] sm:$0xff]
      %v2086 = vld [vmem:[%s20 + $0x70] sm:$0xff]
      %v2087 = vld [vmem:[%s20 + $0x78] sm:$0xff]
      %v2088 = vld [vmem:[%s20 + $0x80] sm:$0xff]
      %v2089 = vld [vmem:[%s20 + $0x88] sm:$0xff]
      %v2090 = vld [vmem:[%s20 + $0x90] sm:$0xff]
      %v2091 = vld [vmem:[%s20 + $0x98] sm:$0xff]
      %v2092 = vld [vmem:[%s20 + $0xa0] sm:$0xff]
      %v2093 = vld [vmem:[%s20 + $0xa8] sm:$0xff]
      %v2094 = vld [vmem:[%s20 + $0xb0] sm:$0xff]
      %v2095 = vld [vmem:[%s20 + $0xb8] sm:$0xff]
      %v2096 = vld [vmem:[%s20 + $0xc0] sm:$0xff]
      %v2097 = vld [vmem:[%s20 + $0xc8] sm:$0xff]
      %v2098 = vld [vmem:[%s20 + $0xd0] sm:$0xff]
      %v2099 = vld [vmem:[%s20 + $0xd8] sm:$0xff]
      %v2100 = vld [vmem:[%s20 + $0xe0] sm:$0xff]
      %v2101 = vld [vmem:[%s20 + $0xe8] sm:$0xff]
      %v2102 = vld [vmem:[%s20 + $0xf0] sm:$0xff]
      %v2103 = vld [vmem:[%s20 + $0xf8] sm:$0xff]
      %v2104 = vld [vmem:[%s20 + $0x100] sm:$0xff]
      %v2105 = vld [vmem:[%s20 + $0x108] sm:$0xff]
      %v2106 = vld [vmem:[%s20 + $0x110] sm:$0xff]
      %v2107 = vld [vmem:[%s20 + $0x118] sm:$0xff]
      %v2108 = vld [vmem:[#allocation2 + $0x7] sm:$0xff]
      %v2109 = vld [vmem:[#allocation2 + $0x1f] sm:$0xff]
      %v2110 = vld [vmem:[#allocation2 + $0x37] sm:$0xff]
      %v2111 = vld [vmem:[#allocation2 + $0x4f] sm:$0xff]
      %v2112 = vld [vmem:[#allocation2 + $0x67] sm:$0xff]
      %v2113 = vld [vmem:[#allocation2 + $0x7f] sm:$0xff]
      %v2114 = vld [vmem:[#allocation2 + $0x97] sm:$0xff]
      %v2115 = vld [vmem:[#allocation2 + $0xaf] sm:$0xff]
      %v2116 = vld [vmem:[#allocation2 + $0x8] sm:$0xff]
      %v2117 = vld [vmem:[#allocation2 + $0x20] sm:$0xff]
      %v2118 = vld [vmem:[#allocation2 + $0x38] sm:$0xff]
      %v2119 = vld [vmem:[#allocation2 + $0x50] sm:$0xff]
      %v2120 = vld [vmem:[#allocation2 + $0x68] sm:$0xff]
      %v2121 = vld [vmem:[#allocation2 + $0x80] sm:$0xff]
      %v2122 = vld [vmem:[#allocation2 + $0x98] sm:$0xff]
      %v2123 = vld [vmem:[#allocation2 + $0xb0] sm:$0xff]
      %v2125 = vsel %vm1041, %v2116, 0
      %v2128 = vsel %vm1041, %v2117, 0
      %v2131 = vsel %vm1041, %v2118, 0
      %v2134 = vsel %vm1041, %v2119, 0
      %v2137 = vsel %vm1041, %v2120, 0
      %v2140 = vsel %vm1041, %v2121, 0
      %v2143 = vsel %vm1041, %v2122, 0
      %v2146 = vsel %vm1041, %v2123, 0
      %2148 = vmatprep.subr.mxu0 0.0
      %2149 = vmatpush1.msra.mxu0 %v2040
      %2150 = vmatprep.subr.mxu0 0.0
      %2151 = vmatpush1.msra.mxu0 %v2041
      %2152 = vmatprep.subr.mxu0 0.0
      %2153 = vmatpush1.msra.mxu0 %v2042
      %2154 = vmatprep.subr.mxu0 0.0
      %2155 = vmatpush1.msra.mxu0 %v2043
      %2156 = vmatprep.subr.mxu0 0.0
      %2157 = vmatpush1.msra.mxu0 0.0
      %2158 = vmatprep.subr.mxu0 0.0
      %2159 = vmatpush1.msra.mxu0 0.0
      %2160 = vmatprep.subr.mxu0 0.0
      %2161 = vmatpush1.msra.mxu0 0.0
      %2162 = vmatprep.subr.mxu0 0.0
      %2163 = vmatpush1.msra.mxu0 0.0
      %2164 = vmatprep.subr.mxu0 0.0
      %2165 = vmatpush1.msra.mxu0 0.0
      %2166 = vmatprep.subr.mxu0 0.0
      %2167 = vmatpush1.msra.mxu0 0.0
      %2168 = vmatprep.subr.mxu0 0.0
      %2169 = vmatpush1.msra.mxu0 0.0
      %2170 = vmatprep.subr.mxu0 0.0
      %2171 = vmatpush1.msra.mxu0 0.0
      %2172 = vmatprep.subr.mxu0 0.0
      %2173 = vmatpush1.msra.mxu0 0.0
      %2174 = vmatprep.subr.mxu0 0.0
      %2175 = vmatpush1.msra.mxu0 0.0
      %2176 = vmatprep.subr.mxu0 0.0
      %2177 = vmatpush1.msra.mxu0 0.0
      %2178 = vmatprep.subr.mxu0 0.0
      %2179 = vmatpush1.msra.mxu0 0.0
      %2180 = vmatprep.subr.mxu0 0.0
      %2181 = vmatpush1.msra.mxu0 0.0
      %2182 = vmatprep.subr.mxu0 0.0
      %2183 = vmatpush1.msra.mxu0 0.0
      %2184 = vmatprep.subr.mxu0 0.0
      %2185 = vmatpush1.msra.mxu0 0.0
      %2186 = vmatprep.subr.mxu0 0.0
      %2187 = vmatpush1.msra.mxu0 0.0
      %2188 = vmatprep.subr.mxu0 0.0
      %2189 = vmatpush1.msra.mxu0 0.0
      %2190 = vmatprep.subr.mxu0 0.0
      %2191 = vmatpush1.msra.mxu0 0.0
      %2192 = vmatprep.subr.mxu0 0.0
      %2193 = vmatpush1.msra.mxu0 0.0
      %2194 = vmatprep.subr.mxu0 0.0
      %2195 = vmatpush1.msra.mxu0 0.0
      %2196 = vmatprep.subr.mxu0 0.0
      %2197 = vmatpush1.msra.mxu0 0.0
      %2198 = vmatprep.subr.mxu0 0.0
      %2199 = vmatpush1.msra.mxu0 0.0
      %2200 = vmatprep.subr.mxu0 0.0
      %2201 = vmatpush1.msra.mxu0 0.0
      %2202 = vmatprep.subr.mxu0 0.0
      %2203 = vmatpush1.msra.mxu0 0.0
      %2204 = vmatprep.subr.mxu0 0.0
      %2205 = vmatpush1.msra.mxu0 0.0
      %2206 = vmatprep.subr.mxu0 0.0
      %2207 = vmatpush1.msra.mxu0 0.0
      %2208 = vmatprep.subr.mxu0 0.0
      %2209 = vmatpush1.msra.mxu0 0.0
      %2210 = vmatprep.subr.mxu0 0.0
      %2211 = vmatpush1.msra.mxu0 0.0
      %2212 = vmatprep.mubr.f32.mxu0 0.0
      %2213 = vmatmul.mubr.f32.gmra.mrb[0].mxu0 %v2125
      %v2214 = vpop.f32.mrb[0].mxu0
      %v2215 = vadd.f32 0.0, %v2214
      %v2216 = vpop.f32.mrb[0].mxu0
      %2217 = vmatprep.mubr.f32.mxu0 0.0
      %2218 = vmatmul.mubr.f32.gmra.mrb[0].mxu0 %v2128
      %v2219 = vpop.f32.mrb[0].mxu0
      %v2220 = vadd.f32 0.0, %v2219
      %v2221 = vpop.f32.mrb[0].mxu0
      %2222 = vmatprep.mubr.f32.mxu0 0.0
      %2223 = vmatmul.mubr.f32.gmra.mrb[0].mxu0 %v2131
      %v2224 = vpop.f32.mrb[0].mxu0
      %v2225 = vadd.f32 0.0, %v2224
      %v2226 = vpop.f32.mrb[0].mxu0
      %2227 = vmatprep.mubr.f32.mxu0 0.0
      %2228 = vmatmul.mubr.f32.gmra.mrb[0].mxu0 %v2134
      %v2229 = vpop.f32.mrb[0].mxu0
      %v2230 = vadd.f32 0.0, %v2229
      %v2231 = vpop.f32.mrb[0].mxu0
      %2232 = vmatprep.mubr.f32.mxu0 0.0
      %2233 = vmatmul.mubr.f32.gmra.mrb[0].mxu0 %v2137
      %v2234 = vpop.f32.mrb[0].mxu0
      %v2235 = vadd.f32 0.0, %v2234
      %v2236 = vpop.f32.mrb[0].mxu0
      %2237 = vmatprep.mubr.f32.mxu0 0.0
      %2238 = vmatmul.mubr.f32.gmra.mrb[0].mxu0 %v2140
      %v2239 = vpop.f32.mrb[0].mxu0
      %v2240 = vadd.f32 0.0, %v2239
      %v2241 = vpop.f32.mrb[0].mxu0
      %2242 = vmatprep.mubr.f32.mxu0 0.0
      %2243 = vmatmul.mubr.f32.gmra.mrb[0].mxu0 %v2143
      %v2244 = vpop.f32.mrb[0].mxu0
      %v2245 = vadd.f32 0.0, %v2244
      %v2246 = vpop.f32.mrb[0].mxu0
      %2247 = vmatprep.mubr.f32.mxu0 0.0
      %2248 = vmatmul.mubr.f32.gmra.mrb[0].mxu0 %v2146
      %v2249 = vpop.f32.mrb[0].mxu0
      %v2250 = vadd.f32 0.0, %v2249
      %v2251 = vpop.f32.mrb[0].mxu0
      %2252 = vdwg.mxu0
      %v2254 = vsel %vm1041, %v2108, 0
      %v2257 = vsel %vm1041, %v2109, 0
      %v2260 = vsel %vm1041, %v2110, 0
      %v2263 = vsel %vm1041, %v2111, 0
      %v2266 = vsel %vm1041, %v2112, 0
      %v2269 = vsel %vm1041, %v2113, 0
      %v2272 = vsel %vm1041, %v2114, 0
      %v2275 = vsel %vm1041, %v2115, 0
      %2277 = vmatprep.subr.mxu0 0.0
      %2278 = vmatpush1.msra.mxu0 %v2036
      %2279 = vmatprep.subr.mxu0 0.0
      %2280 = vmatpush1.msra.mxu0 %v2037
      %2281 = vmatprep.subr.mxu0 0.0
      %2282 = vmatpush1.msra.mxu0 %v2038
      %2283 = vmatprep.subr.mxu0 0.0
      %2284 = vmatpush1.msra.mxu0 %v2039
      %2285 = vmatprep.subr.mxu0 0.0
      %2286 = vmatpush1.msra.mxu0 0.0
      %2287 = vmatprep.subr.mxu0 0.0
      %2288 = vmatpush1.msra.mxu0 0.0
      %2289 = vmatprep.subr.mxu0 0.0
      %2290 = vmatpush1.msra.mxu0 0.0
      %2291 = vmatprep.subr.mxu0 0.0
      %2292 = vmatpush1.msra.mxu0 0.0
      %2293 = vmatprep.subr.mxu0 0.0
      %2294 = vmatpush1.msra.mxu0 0.0
      %2295 = vmatprep.subr.mxu0 0.0
      %2296 = vmatpush1.msra.mxu0 0.0
      %2297 = vmatprep.subr.mxu0 0.0
      %2298 = vmatpush1.msra.mxu0 0.0
      %2299 = vmatprep.subr.mxu0 0.0
      %2300 = vmatpush1.msra.mxu0 0.0
      %2301 = vmatprep.subr.mxu0 0.0
      %2302 = vmatpush1.msra.mxu0 0.0
      %2303 = vmatprep.subr.mxu0 0.0
      %2304 = vmatpush1.msra.mxu0 0.0
      %2305 = vmatprep.subr.mxu0 0.0
      %2306 = vmatpush1.msra.mxu0 0.0
      %2307 = vmatprep.subr.mxu0 0.0
      %2308 = vmatpush1.msra.mxu0 0.0
      %2309 = vmatprep.subr.mxu0 0.0
      %2310 = vmatpush1.msra.mxu0 0.0
      %2311 = vmatprep.subr.mxu0 0.0
      %2312 = vmatpush1.msra.mxu0 0.0
      %2313 = vmatprep.subr.mxu0 0.0
      %2314 = vmatpush1.msra.mxu0 0.0
      %2315 = vmatprep.subr.mxu0 0.0
      %2316 = vmatpush1.msra.mxu0 0.0
      %2317 = vmatprep.subr.mxu0 0.0
      %2318 = vmatpush1.msra.mxu0 0.0
      %2319 = vmatprep.subr.mxu0 0.0
      %2320 = vmatpush1.msra.mxu0 0.0
      %2321 = vmatprep.subr.mxu0 0.0
      %2322 = vmatpush1.msra.mxu0 0.0
      %2323 = vmatprep.subr.mxu0 0.0
      %2324 = vmatpush1.msra.mxu0 0.0
      %2325 = vmatprep.subr.mxu0 0.0
      %2326 = vmatpush1.msra.mxu0 0.0
      %2327 = vmatprep.subr.mxu0 0.0
      %2328 = vmatpush1.msra.mxu0 0.0
      %2329 = vmatprep.subr.mxu0 0.0
      %2330 = vmatpush1.msra.mxu0 0.0
      %2331 = vmatprep.subr.mxu0 0.0
      %2332 = vmatpush1.msra.mxu0 0.0
      %2333 = vmatprep.subr.mxu0 0.0
      %2334 = vmatpush1.msra.mxu0 0.0
      %2335 = vmatprep.subr.mxu0 0.0
      %2336 = vmatpush1.msra.mxu0 0.0
      %2337 = vmatprep.subr.mxu0 0.0
      %2338 = vmatpush1.msra.mxu0 0.0
      %2339 = vmatprep.subr.mxu0 0.0
      %2340 = vmatpush1.msra.mxu0 0.0
      %2341 = vmatprep.mubr.f32.mxu0 0.0
      %2342 = vmatmul.mubr.f32.gmra.mrb[0].mxu0 %v2254
      %v2343 = vpop.f32.mrb[0].mxu0
      %v2344 = vadd.f32 %v2215, %v2343
      %v2345 = vpop.f32.mrb[0].mxu0
      %2346 = vmatprep.mubr.f32.mxu0 0.0
      %2347 = vmatmul.mubr.f32.gmra.mrb[0].mxu0 %v2257
      %v2348 = vpop.f32.mrb[0].mxu0
      %v2349 = vadd.f32 %v2220, %v2348
      %v2350 = vpop.f32.mrb[0].mxu0
      %2351 = vmatprep.mubr.f32.mxu0 0.0
      %2352 = vmatmul.mubr.f32.gmra.mrb[0].mxu0 %v2260
      %v2353 = vpop.f32.mrb[0].mxu0
      %v2354 = vadd.f32 %v2225, %v2353
      %v2355 = vpop.f32.mrb[0].mxu0
      %2356 = vmatprep.mubr.f32.mxu0 0.0
      %2357 = vmatmul.mubr.f32.gmra.mrb[0].mxu0 %v2263
      %v2358 = vpop.f32.mrb[0].mxu0
      %v2359 = vadd.f32 %v2230, %v2358
      %v2360 = vpop.f32.mrb[0].mxu0
      %2361 = vmatprep.mubr.f32.mxu0 0.0
      %2362 = vmatmul.mubr.f32.gmra.mrb[0].mxu0 %v2266
      %v2363 = vpop.f32.mrb[0].mxu0
      %v2364 = vadd.f32 %v2235, %v2363
      %v2365 = vpop.f32.mrb[0].mxu0
      %2366 = vmatprep.mubr.f32.mxu0 0.0
      %2367 = vmatmul.mubr.f32.gmra.mrb[0].mxu0 %v2269
      %v2368 = vpop.f32.mrb[0].mxu0
      %v2369 = vadd.f32 %v2240, %v2368
      %v2370 = vpop.f32.mrb[0].mxu0
      %2371 = vmatprep.mubr.f32.mxu0 0.0
      %2372 = vmatmul.mubr.f32.gmra.mrb[0].mxu0 %v2272
      %v2373 = vpop.f32.mrb[0].mxu0
      %v2374 = vadd.f32 %v2245, %v2373
      %v2375 = vpop.f32.mrb[0].mxu0
      %2376 = vmatprep.mubr.f32.mxu0 0.0
      %2377 = vmatmul.mubr.f32.gmra.mrb[0].mxu0 %v2275
      %v2378 = vpop.f32.mrb[0].mxu0
      %v2379 = vadd.f32 %v2250, %v2378
      %v2380 = vpop.f32.mrb[0].mxu0
      %2381 = vdwg.mxu0
      %2382 = vmatprep.subr.mxu0 0.0
      %2383 = vmatpush1.msra.mxu0 %v2076
      %2384 = vmatprep.subr.mxu0 0.0
      %2385 = vmatpush1.msra.mxu0 %v2077
      %2386 = vmatprep.subr.mxu0 0.0
      %2387 = vmatpush1.msra.mxu0 %v2078
      %2388 = vmatprep.subr.mxu0 0.0
      %2389 = vmatpush1.msra.mxu0 %v2079
      %2390 = vmatprep.subr.mxu0 0.0
      %2391 = vmatpush1.msra.mxu0 0.0
      %2392 = vmatprep.subr.mxu0 0.0
      %2393 = vmatpush1.msra.mxu0 0.0
      %2394 = vmatprep.subr.mxu0 0.0
      %2395 = vmatpush1.msra.mxu0 0.0
      %2396 = vmatprep.subr.mxu0 0.0
      %2397 = vmatpush1.msra.mxu0 0.0
      %2398 = vmatprep.subr.mxu0 0.0
      %2399 = vmatpush1.msra.mxu0 0.0
      %2400 = vmatprep.subr.mxu0 0.0
      %2401 = vmatpush1.msra.mxu0 0.0
      %2402 = vmatprep.subr.mxu0 0.0
      %2403 = vmatpush1.msra.mxu0 0.0
      %2404 = vmatprep.subr.mxu0 0.0
      %2405 = vmatpush1.msra.mxu0 0.0
      %2406 = vmatprep.subr.mxu0 0.0
      %2407 = vmatpush1.msra.mxu0 0.0
      %2408 = vmatprep.subr.mxu0 0.0
      %2409 = vmatpush1.msra.mxu0 0.0
      %2410 = vmatprep.subr.mxu0 0.0
      %2411 = vmatpush1.msra.mxu0 0.0
      %2412 = vmatprep.subr.mxu0 0.0
      %2413 = vmatpush1.msra.mxu0 0.0
      %2414 = vmatprep.subr.mxu0 0.0
      %2415 = vmatpush1.msra.mxu0 0.0
      %2416 = vmatprep.subr.mxu0 0.0
      %2417 = vmatpush1.msra.mxu0 0.0
      %2418 = vmatprep.subr.mxu0 0.0
      %2419 = vmatpush1.msra.mxu0 0.0
      %2420 = vmatprep.subr.mxu0 0.0
      %2421 = vmatpush1.msra.mxu0 0.0
      %2422 = vmatprep.subr.mxu0 0.0
      %2423 = vmatpush1.msra.mxu0 0.0
      %2424 = vmatprep.subr.mxu0 0.0
      %2425 = vmatpush1.msra.mxu0 0.0
      %2426 = vmatprep.subr.mxu0 0.0
      %2427 = vmatpush1.msra.mxu0 0.0
      %2428 = vmatprep.subr.mxu0 0.0
      %2429 = vmatpush1.msra.mxu0 0.0
      %2430 = vmatprep.subr.mxu0 0.0
      %2431 = vmatpush1.msra.mxu0 0.0
      %2432 = vmatprep.subr.mxu0 0.0
      %2433 = vmatpush1.msra.mxu0 0.0
      %2434 = vmatprep.subr.mxu0 0.0
      %2435 = vmatpush1.msra.mxu0 0.0
      %2436 = vmatprep.subr.mxu0 0.0
      %2437 = vmatpush1.msra.mxu0 0.0
      %2438 = vmatprep.subr.mxu0 0.0
      %2439 = vmatpush1.msra.mxu0 0.0
      %2440 = vmatprep.subr.mxu0 0.0
      %2441 = vmatpush1.msra.mxu0 0.0
      %2442 = vmatprep.subr.mxu0 0.0
      %2443 = vmatpush1.msra.mxu0 0.0
      %2444 = vmatprep.subr.mxu0 0.0
      %2445 = vmatpush1.msra.mxu0 0.0
      %2446 = vmatprep.mubr.f32.mxu0 0.0
      %2447 = vmatmul.mubr.f32.gmra.mrb[0].mxu0 %v2125
      %v2448 = vpop.f32.mrb[0].mxu0
      %v2449 = vadd.f32 0.0, %v2448
      %v2450 = vpop.f32.mrb[0].mxu0
      %2451 = vmatprep.mubr.f32.mxu0 0.0
      %2452 = vmatmul.mubr.f32.gmra.mrb[0].mxu0 %v2128
      %v2453 = vpop.f32.mrb[0].mxu0
      %v2454 = vadd.f32 0.0, %v2453
      %v2455 = vpop.f32.mrb[0].mxu0
      %2456 = vmatprep.mubr.f32.mxu0 0.0
      %2457 = vmatmul.mubr.f32.gmra.mrb[0].mxu0 %v2131
      %v2458 = vpop.f32.mrb[0].mxu0
      %v2459 = vadd.f32 0.0, %v2458
      %v2460 = vpop.f32.mrb[0].mxu0
      %2461 = vmatprep.mubr.f32.mxu0 0.0
      %2462 = vmatmul.mubr.f32.gmra.mrb[0].mxu0 %v2134
      %v2463 = vpop.f32.mrb[0].mxu0
      %v2464 = vadd.f32 0.0, %v2463
      %v2465 = vpop.f32.mrb[0].mxu0
      %2466 = vmatprep.mubr.f32.mxu0 0.0
      %2467 = vmatmul.mubr.f32.gmra.mrb[0].mxu0 %v2137
      %v2468 = vpop.f32.mrb[0].mxu0
      %v2469 = vadd.f32 0.0, %v2468
      %v2470 = vpop.f32.mrb[0].mxu0
      %2471 = vmatprep.mubr.f32.mxu0 0.0
      %2472 = vmatmul.mubr.f32.gmra.mrb[0].mxu0 %v2140
      %v2473 = vpop.f32.mrb[0].mxu0
      %v2474 = vadd.f32 0.0, %v2473
      %v2475 = vpop.f32.mrb[0].mxu0
      %2476 = vmatprep.mubr.f32.mxu0 0.0
      %2477 = vmatmul.mubr.f32.gmra.mrb[0].mxu0 %v2143
      %v2478 = vpop.f32.mrb[0].mxu0
      %v2479 = vadd.f32 0.0, %v2478
      %v2480 = vpop.f32.mrb[0].mxu0
      %2481 = vmatprep.mubr.f32.mxu0 0.0
      %2482 = vmatmul.mubr.f32.gmra.mrb[0].mxu0 %v2146
      %v2483 = vpop.f32.mrb[0].mxu0
      %v2484 = vadd.f32 0.0, %v2483
      %v2485 = vpop.f32.mrb[0].mxu0
      %2486 = vdwg.mxu0
      %2487 = vmatprep.subr.mxu0 0.0
      %2488 = vmatpush1.msra.mxu0 %v2072
      %2489 = vmatprep.subr.mxu0 0.0
      %2490 = vmatpush1.msra.mxu0 %v2073
      %2491 = vmatprep.subr.mxu0 0.0
      %2492 = vmatpush1.msra.mxu0 %v2074
      %2493 = vmatprep.subr.mxu0 0.0
      %2494 = vmatpush1.msra.mxu0 %v2075
      %2495 = vmatprep.subr.mxu0 0.0
      %2496 = vmatpush1.msra.mxu0 0.0
      %2497 = vmatprep.subr.mxu0 0.0
      %2498 = vmatpush1.msra.mxu0 0.0
      %2499 = vmatprep.subr.mxu0 0.0
      %2500 = vmatpush1.msra.mxu0 0.0
      %2501 = vmatprep.subr.mxu0 0.0
      %2502 = vmatpush1.msra.mxu0 0.0
      %2503 = vmatprep.subr.mxu0 0.0
      %2504 = vmatpush1.msra.mxu0 0.0
      %2505 = vmatprep.subr.mxu0 0.0
      %2506 = vmatpush1.msra.mxu0 0.0
      %2507 = vmatprep.subr.mxu0 0.0
      %2508 = vmatpush1.msra.mxu0 0.0
      %2509 = vmatprep.subr.mxu0 0.0
      %2510 = vmatpush1.msra.mxu0 0.0
      %2511 = vmatprep.subr.mxu0 0.0
      %2512 = vmatpush1.msra.mxu0 0.0
      %2513 = vmatprep.subr.mxu0 0.0
      %2514 = vmatpush1.msra.mxu0 0.0
      %2515 = vmatprep.subr.mxu0 0.0
      %2516 = vmatpush1.msra.mxu0 0.0
      %2517 = vmatprep.subr.mxu0 0.0
      %2518 = vmatpush1.msra.mxu0 0.0
      %2519 = vmatprep.subr.mxu0 0.0
      %2520 = vmatpush1.msra.mxu0 0.0
      %2521 = vmatprep.subr.mxu0 0.0
      %2522 = vmatpush1.msra.mxu0 0.0
      %2523 = vmatprep.subr.mxu0 0.0
      %2524 = vmatpush1.msra.mxu0 0.0
      %2525 = vmatprep.subr.mxu0 0.0
      %2526 = vmatpush1.msra.mxu0 0.0
      %2527 = vmatprep.subr.mxu0 0.0
      %2528 = vmatpush1.msra.mxu0 0.0
      %2529 = vmatprep.subr.mxu0 0.0
      %2530 = vmatpush1.msra.mxu0 0.0
      %2531 = vmatprep.subr.mxu0 0.0
      %2532 = vmatpush1.msra.mxu0 0.0
      %2533 = vmatprep.subr.mxu0 0.0
      %2534 = vmatpush1.msra.mxu0 0.0
      %2535 = vmatprep.subr.mxu0 0.0
      %2536 = vmatpush1.msra.mxu0 0.0
      %2537 = vmatprep.subr.mxu0 0.0
      %2538 = vmatpush1.msra.mxu0 0.0
      %2539 = vmatprep.subr.mxu0 0.0
      %2540 = vmatpush1.msra.mxu0 0.0
      %2541 = vmatprep.subr.mxu0 0.0
      %2542 = vmatpush1.msra.mxu0 0.0
      %2543 = vmatprep.subr.mxu0 0.0
      %2544 = vmatpush1.msra.mxu0 0.0
      %2545 = vmatprep.subr.mxu0 0.0
      %2546 = vmatpush1.msra.mxu0 0.0
      %2547 = vmatprep.subr.mxu0 0.0
      %2548 = vmatpush1.msra.mxu0 0.0
      %2549 = vmatprep.subr.mxu0 0.0
      %2550 = vmatpush1.msra.mxu0 0.0
      %2551 = vmatprep.mubr.f32.mxu0 0.0
      %2552 = vmatmul.mubr.f32.gmra.mrb[0].mxu0 %v2254
      %v2553 = vpop.f32.mrb[0].mxu0
      %v2554 = vadd.f32 %v2449, %v2553
      %v2555 = vpop.f32.mrb[0].mxu0
      %2556 = vmatprep.mubr.f32.mxu0 0.0
      %2557 = vmatmul.mubr.f32.gmra.mrb[0].mxu0 %v2257
      %v2558 = vpop.f32.mrb[0].mxu0
      %v2559 = vadd.f32 %v2454, %v2558
      %v2560 = vpop.f32.mrb[0].mxu0
      %2561 = vmatprep.mubr.f32.mxu0 0.0
      %2562 = vmatmul.mubr.f32.gmra.mrb[0].mxu0 %v2260
      %v2563 = vpop.f32.mrb[0].mxu0
      %v2564 = vadd.f32 %v2459, %v2563
      %v2565 = vpop.f32.mrb[0].mxu0
      %2566 = vmatprep.mubr.f32.mxu0 0.0
      %2567 = vmatmul.mubr.f32.gmra.mrb[0].mxu0 %v2263
      %v2568 = vpop.f32.mrb[0].mxu0
      %v2569 = vadd.f32 %v2464, %v2568
      %v2570 = vpop.f32.mrb[0].mxu0
      %2571 = vmatprep.mubr.f32.mxu0 0.0
      %2572 = vmatmul.mubr.f32.gmra.mrb[0].mxu0 %v2266
      %v2573 = vpop.f32.mrb[0].mxu0
      %v2574 = vadd.f32 %v2469, %v2573
      %v2575 = vpop.f32.mrb[0].mxu0
      %2576 = vmatprep.mubr.f32.mxu0 0.0
      %2577 = vmatmul.mubr.f32.gmra.mrb[0].mxu0 %v2269
      %v2578 = vpop.f32.mrb[0].mxu0
      %v2579 = vadd.f32 %v2474, %v2578
      %v2580 = vpop.f32.mrb[0].mxu0
      %2581 = vmatprep.mubr.f32.mxu0 0.0
      %2582 = vmatmul.mubr.f32.gmra.mrb[0].mxu0 %v2272
      %v2583 = vpop.f32.mrb[0].mxu0
      %v2584 = vadd.f32 %v2479, %v2583
      %v2585 = vpop.f32.mrb[0].mxu0
      %2586 = vmatprep.mubr.f32.mxu0 0.0
      %2587 = vmatmul.mubr.f32.gmra.mrb[0].mxu0 %v2275
      %v2588 = vpop.f32.mrb[0].mxu0
      %v2589 = vadd.f32 %v2484, %v2588
      %v2590 = vpop.f32.mrb[0].mxu0
      %2591 = vdwg.mxu0
      %v2592 = vld [vmem:[#allocation2 + $0x9] sm:$0xff]
      %v2593 = vld [vmem:[#allocation2 + $0x21] sm:$0xff]
      %v2594 = vld [vmem:[#allocation2 + $0x39] sm:$0xff]
      %v2595 = vld [vmem:[#allocation2 + $0x51] sm:$0xff]
      %v2596 = vld [vmem:[#allocation2 + $0x69] sm:$0xff]
      %v2597 = vld [vmem:[#allocation2 + $0x81] sm:$0xff]
      %v2598 = vld [vmem:[#allocation2 + $0x99] sm:$0xff]
      %v2599 = vld [vmem:[#allocation2 + $0xb1] sm:$0xff]
      %v2601 = vsel %vm1041, %v2592, 0
      %v2604 = vsel %vm1041, %v2593, 0
      %v2607 = vsel %vm1041, %v2594, 0
      %v2610 = vsel %vm1041, %v2595, 0
      %v2613 = vsel %vm1041, %v2596, 0
      %v2616 = vsel %vm1041, %v2597, 0
      %v2619 = vsel %vm1041, %v2598, 0
      %v2622 = vsel %vm1041, %v2599, 0
      %2624 = vmatprep.subr.mxu0 0.0
      %2625 = vmatpush1.msra.mxu0 %v2044
      %2626 = vmatprep.subr.mxu0 0.0
      %2627 = vmatpush1.msra.mxu0 %v2045
      %2628 = vmatprep.subr.mxu0 0.0
      %2629 = vmatpush1.msra.mxu0 %v2046
      %2630 = vmatprep.subr.mxu0 0.0
      %2631 = vmatpush1.msra.mxu0 %v2047
      %2632 = vmatprep.subr.mxu0 0.0
      %2633 = vmatpush1.msra.mxu0 0.0
      %2634 = vmatprep.subr.mxu0 0.0
      %2635 = vmatpush1.msra.mxu0 0.0
      %2636 = vmatprep.subr.mxu0 0.0
      %2637 = vmatpush1.msra.mxu0 0.0
      %2638 = vmatprep.subr.mxu0 0.0
      %2639 = vmatpush1.msra.mxu0 0.0
      %2640 = vmatprep.subr.mxu0 0.0
      %2641 = vmatpush1.msra.mxu0 0.0
      %2642 = vmatprep.subr.mxu0 0.0
      %2643 = vmatpush1.msra.mxu0 0.0
      %2644 = vmatprep.subr.mxu0 0.0
      %2645 = vmatpush1.msra.mxu0 0.0
      %2646 = vmatprep.subr.mxu0 0.0
      %2647 = vmatpush1.msra.mxu0 0.0
      %2648 = vmatprep.subr.mxu0 0.0
      %2649 = vmatpush1.msra.mxu0 0.0
      %2650 = vmatprep.subr.mxu0 0.0
      %2651 = vmatpush1.msra.mxu0 0.0
      %2652 = vmatprep.subr.mxu0 0.0
      %2653 = vmatpush1.msra.mxu0 0.0
      %2654 = vmatprep.subr.mxu0 0.0
      %2655 = vmatpush1.msra.mxu0 0.0
      %2656 = vmatprep.subr.mxu0 0.0
      %2657 = vmatpush1.msra.mxu0 0.0
      %2658 = vmatprep.subr.mxu0 0.0
      %2659 = vmatpush1.msra.mxu0 0.0
      %2660 = vmatprep.subr.mxu0 0.0
      %2661 = vmatpush1.msra.mxu0 0.0
      %2662 = vmatprep.subr.mxu0 0.0
      %2663 = vmatpush1.msra.mxu0 0.0
      %2664 = vmatprep.subr.mxu0 0.0
      %2665 = vmatpush1.msra.mxu0 0.0
      %2666 = vmatprep.subr.mxu0 0.0
      %2667 = vmatpush1.msra.mxu0 0.0
      %2668 = vmatprep.subr.mxu0 0.0
      %2669 = vmatpush1.msra.mxu0 0.0
      %2670 = vmatprep.subr.mxu0 0.0
      %2671 = vmatpush1.msra.mxu0 0.0
      %2672 = vmatprep.subr.mxu0 0.0
      %2673 = vmatpush1.msra.mxu0 0.0
      %2674 = vmatprep.subr.mxu0 0.0
      %2675 = vmatpush1.msra.mxu0 0.0
      %2676 = vmatprep.subr.mxu0 0.0
      %2677 = vmatpush1.msra.mxu0 0.0
      %2678 = vmatprep.subr.mxu0 0.0
      %2679 = vmatpush1.msra.mxu0 0.0
      %2680 = vmatprep.subr.mxu0 0.0
      %2681 = vmatpush1.msra.mxu0 0.0
      %2682 = vmatprep.subr.mxu0 0.0
      %2683 = vmatpush1.msra.mxu0 0.0
      %2684 = vmatprep.subr.mxu0 0.0
      %2685 = vmatpush1.msra.mxu0 0.0
      %2686 = vmatprep.subr.mxu0 0.0
      %2687 = vmatpush1.msra.mxu0 0.0
      %2688 = vmatprep.mubr.f32.mxu0 0.0
      %2689 = vmatmul.mubr.f32.gmra.mrb[0].mxu0 %v2601
      %v2690 = vpop.f32.mrb[0].mxu0
      %v2691 = vadd.f32 0.0, %v2690
      %v2692 = vpop.f32.mrb[0].mxu0
      %2693 = vmatprep.mubr.f32.mxu0 0.0
      %2694 = vmatmul.mubr.f32.gmra.mrb[0].mxu0 %v2604
      %v2695 = vpop.f32.mrb[0].mxu0
      %v2696 = vadd.f32 0.0, %v2695
      %v2697 = vpop.f32.mrb[0].mxu0
      %2698 = vmatprep.mubr.f32.mxu0 0.0
      %2699 = vmatmul.mubr.f32.gmra.mrb[0].mxu0 %v2607
      %v2700 = vpop.f32.mrb[0].mxu0
      %v2701 = vadd.f32 0.0, %v2700
      %v2702 = vpop.f32.mrb[0].mxu0
      %2703 = vmatprep.mubr.f32.mxu0 0.0
      %2704 = vmatmul.mubr.f32.gmra.mrb[0].mxu0 %v2610
      %v2705 = vpop.f32.mrb[0].mxu0
      %v2706 = vadd.f32 0.0, %v2705
      %v2707 = vpop.f32.mrb[0].mxu0
      %2708 = vmatprep.mubr.f32.mxu0 0.0
      %2709 = vmatmul.mubr.f32.gmra.mrb[0].mxu0 %v2613
      %v2710 = vpop.f32.mrb[0].mxu0
      %v2711 = vadd.f32 0.0, %v2710
      %v2712 = vpop.f32.mrb[0].mxu0
      %2713 = vmatprep.mubr.f32.mxu0 0.0
      %2714 = vmatmul.mubr.f32.gmra.mrb[0].mxu0 %v2616
      %v2715 = vpop.f32.mrb[0].mxu0
      %v2716 = vadd.f32 0.0, %v2715
      %v2717 = vpop.f32.mrb[0].mxu0
      %2718 = vmatprep.mubr.f32.mxu0 0.0
      %2719 = vmatmul.mubr.f32.gmra.mrb[0].mxu0 %v2619
      %v2720 = vpop.f32.mrb[0].mxu0
      %v2721 = vadd.f32 0.0, %v2720
      %v2722 = vpop.f32.mrb[0].mxu0
      %2723 = vmatprep.mubr.f32.mxu0 0.0
      %2724 = vmatmul.mubr.f32.gmra.mrb[0].mxu0 %v2622
      %v2725 = vpop.f32.mrb[0].mxu0
      %v2726 = vadd.f32 0.0, %v2725
      %v2727 = vpop.f32.mrb[0].mxu0
      %2728 = vdwg.mxu0
      %v2729 = vadd.f32 %v2344, %v2691
      %v2730 = vadd.f32 %v2349, %v2696
      %v2731 = vadd.f32 %v2354, %v2701
      %v2732 = vadd.f32 %v2359, %v2706
      %v2733 = vadd.f32 %v2364, %v2711
      %v2734 = vadd.f32 %v2369, %v2716
      %v2735 = vadd.f32 %v2374, %v2721
      %v2736 = vadd.f32 %v2379, %v2726
      %2737 = vmatprep.subr.mxu0 0.0
      %2738 = vmatpush1.msra.mxu0 %v2080
      %2739 = vmatprep.subr.mxu0 0.0
      %2740 = vmatpush1.msra.mxu0 %v2081
      %2741 = vmatprep.subr.mxu0 0.0
      %2742 = vmatpush1.msra.mxu0 %v2082
      %2743 = vmatprep.subr.mxu0 0.0
      %2744 = vmatpush1.msra.mxu0 %v2083
      %2745 = vmatprep.subr.mxu0 0.0
      %2746 = vmatpush1.msra.mxu0 0.0
      %2747 = vmatprep.subr.mxu0 0.0
      %2748 = vmatpush1.msra.mxu0 0.0
      %2749 = vmatprep.subr.mxu0 0.0
      %2750 = vmatpush1.msra.mxu0 0.0
      %2751 = vmatprep.subr.mxu0 0.0
      %2752 = vmatpush1.msra.mxu0 0.0
      %2753 = vmatprep.subr.mxu0 0.0
      %2754 = vmatpush1.msra.mxu0 0.0
      %2755 = vmatprep.subr.mxu0 0.0
      %2756 = vmatpush1.msra.mxu0 0.0
      %2757 = vmatprep.subr.mxu0 0.0
      %2758 = vmatpush1.msra.mxu0 0.0
      %2759 = vmatprep.subr.mxu0 0.0
      %2760 = vmatpush1.msra.mxu0 0.0
      %2761 = vmatprep.subr.mxu0 0.0
      %2762 = vmatpush1.msra.mxu0 0.0
      %2763 = vmatprep.subr.mxu0 0.0
      %2764 = vmatpush1.msra.mxu0 0.0
      %2765 = vmatprep.subr.mxu0 0.0
      %2766 = vmatpush1.msra.mxu0 0.0
      %2767 = vmatprep.subr.mxu0 0.0
      %2768 = vmatpush1.msra.mxu0 0.0
      %2769 = vmatprep.subr.mxu0 0.0
      %2770 = vmatpush1.msra.mxu0 0.0
      %2771 = vmatprep.subr.mxu0 0.0
      %2772 = vmatpush1.msra.mxu0 0.0
      %2773 = vmatprep.subr.mxu0 0.0
      %2774 = vmatpush1.msra.mxu0 0.0
      %2775 = vmatprep.subr.mxu0 0.0
      %2776 = vmatpush1.msra.mxu0 0.0
      %2777 = vmatprep.subr.mxu0 0.0
      %2778 = vmatpush1.msra.mxu0 0.0
      %2779 = vmatprep.subr.mxu0 0.0
      %2780 = vmatpush1.msra.mxu0 0.0
      %2781 = vmatprep.subr.mxu0 0.0
      %2782 = vmatpush1.msra.mxu0 0.0
      %2783 = vmatprep.subr.mxu0 0.0
      %2784 = vmatpush1.msra.mxu0 0.0
      %2785 = vmatprep.subr.mxu0 0.0
      %2786 = vmatpush1.msra.mxu0 0.0
      %2787 = vmatprep.subr.mxu0 0.0
      %2788 = vmatpush1.msra.mxu0 0.0
      %2789 = vmatprep.subr.mxu0 0.0
      %2790 = vmatpush1.msra.mxu0 0.0
      %2791 = vmatprep.subr.mxu0 0.0
      %2792 = vmatpush1.msra.mxu0 0.0
      %2793 = vmatprep.subr.mxu0 0.0
      %2794 = vmatpush1.msra.mxu0 0.0
      %2795 = vmatprep.subr.mxu0 0.0
      %2796 = vmatpush1.msra.mxu0 0.0
      %2797 = vmatprep.subr.mxu0 0.0
      %2798 = vmatpush1.msra.mxu0 0.0
      %2799 = vmatprep.subr.mxu0 0.0
      %2800 = vmatpush1.msra.mxu0 0.0
      %2801 = vmatprep.mubr.f32.mxu0 0.0
      %2802 = vmatmul.mubr.f32.gmra.mrb[0].mxu0 %v2601
      %v2803 = vpop.f32.mrb[0].mxu0
      %v2804 = vadd.f32 0.0, %v2803
      %v2805 = vpop.f32.mrb[0].mxu0
      %2806 = vmatprep.mubr.f32.mxu0 0.0
      %2807 = vmatmul.mubr.f32.gmra.mrb[0].mxu0 %v2604
      %v2808 = vpop.f32.mrb[0].mxu0
      %v2809 = vadd.f32 0.0, %v2808
      %v2810 = vpop.f32.mrb[0].mxu0
      %2811 = vmatprep.mubr.f32.mxu0 0.0
      %2812 = vmatmul.mubr.f32.gmra.mrb[0].mxu0 %v2607
      %v2813 = vpop.f32.mrb[0].mxu0
      %v2814 = vadd.f32 0.0, %v2813
      %v2815 = vpop.f32.mrb[0].mxu0
      %2816 = vmatprep.mubr.f32.mxu0 0.0
      %2817 = vmatmul.mubr.f32.gmra.mrb[0].mxu0 %v2610
      %v2818 = vpop.f32.mrb[0].mxu0
      %v2819 = vadd.f32 0.0, %v2818
      %v2820 = vpop.f32.mrb[0].mxu0
      %2821 = vmatprep.mubr.f32.mxu0 0.0
      %2822 = vmatmul.mubr.f32.gmra.mrb[0].mxu0 %v2613
      %v2823 = vpop.f32.mrb[0].mxu0
      %v2824 = vadd.f32 0.0, %v2823
      %v2825 = vpop.f32.mrb[0].mxu0
      %2826 = vmatprep.mubr.f32.mxu0 0.0
      %2827 = vmatmul.mubr.f32.gmra.mrb[0].mxu0 %v2616
      %v2828 = vpop.f32.mrb[0].mxu0
      %v2829 = vadd.f32 0.0, %v2828
      %v2830 = vpop.f32.mrb[0].mxu0
      %2831 = vmatprep.mubr.f32.mxu0 0.0
      %2832 = vmatmul.mubr.f32.gmra.mrb[0].mxu0 %v2619
      %v2833 = vpop.f32.mrb[0].mxu0
      %v2834 = vadd.f32 0.0, %v2833
      %v2835 = vpop.f32.mrb[0].mxu0
      %2836 = vmatprep.mubr.f32.mxu0 0.0
      %2837 = vmatmul.mubr.f32.gmra.mrb[0].mxu0 %v2622
      %v2838 = vpop.f32.mrb[0].mxu0
      %v2839 = vadd.f32 0.0, %v2838
      %v2840 = vpop.f32.mrb[0].mxu0
      %2841 = vdwg.mxu0
      %v2842 = vadd.f32 %v2554, %v2804
      %v2843 = vadd.f32 %v2559, %v2809
      %v2844 = vadd.f32 %v2564, %v2814
      %v2845 = vadd.f32 %v2569, %v2819
      %v2846 = vadd.f32 %v2574, %v2824
      %v2847 = vadd.f32 %v2579, %v2829
      %v2848 = vadd.f32 %v2584, %v2834
      %v2849 = vadd.f32 %v2589, %v2839
      %v2850 = vld [vmem:[%s1073 + $0x7] sm:$0xff]
      %v2851 = vld [vmem:[%s1073 + $0x1f] sm:$0xff]
      %v2852 = vld [vmem:[%s1073 + $0x37] sm:$0xff]
      %v2853 = vld [vmem:[%s1073 + $0x4f] sm:$0xff]
      %v2854 = vld [vmem:[%s1073 + $0x67] sm:$0xff]
      %v2855 = vld [vmem:[%s1073 + $0x7f] sm:$0xff]
      %v2856 = vld [vmem:[%s1073 + $0x97] sm:$0xff]
      %v2857 = vld [vmem:[%s1073 + $0xaf] sm:$0xff]
      %v2859 = vsel %vm1041, %v2850, 0
      %v2862 = vsel %vm1041, %v2851, 0
      %v2865 = vsel %vm1041, %v2852, 0
      %v2868 = vsel %vm1041, %v2853, 0
      %v2871 = vsel %vm1041, %v2854, 0
      %v2874 = vsel %vm1041, %v2855, 0
      %v2877 = vsel %vm1041, %v2856, 0
      %v2880 = vsel %vm1041, %v2857, 0
      %2882 = vmatprep.subr.mxu0 0.0
      %2883 = vmatpush1.msra.mxu0 %v2048
      %2884 = vmatprep.subr.mxu0 0.0
      %2885 = vmatpush1.msra.mxu0 %v2049
      %2886 = vmatprep.subr.mxu0 0.0
      %2887 = vmatpush1.msra.mxu0 %v2050
      %2888 = vmatprep.subr.mxu0 0.0
      %2889 = vmatpush1.msra.mxu0 %v2051
      %2890 = vmatprep.subr.mxu0 0.0
      %2891 = vmatpush1.msra.mxu0 0.0
      %2892 = vmatprep.subr.mxu0 0.0
      %2893 = vmatpush1.msra.mxu0 0.0
      %2894 = vmatprep.subr.mxu0 0.0
      %2895 = vmatpush1.msra.mxu0 0.0
      %2896 = vmatprep.subr.mxu0 0.0
      %2897 = vmatpush1.msra.mxu0 0.0
      %2898 = vmatprep.subr.mxu0 0.0
      %2899 = vmatpush1.msra.mxu0 0.0
      %2900 = vmatprep.subr.mxu0 0.0
      %2901 = vmatpush1.msra.mxu0 0.0
      %2902 = vmatprep.subr.mxu0 0.0
      %2903 = vmatpush1.msra.mxu0 0.0
      %2904 = vmatprep.subr.mxu0 0.0
      %2905 = vmatpush1.msra.mxu0 0.0
      %2906 = vmatprep.subr.mxu0 0.0
      %2907 = vmatpush1.msra.mxu0 0.0
      %2908 = vmatprep.subr.mxu0 0.0
      %2909 = vmatpush1.msra.mxu0 0.0
      %2910 = vmatprep.subr.mxu0 0.0
      %2911 = vmatpush1.msra.mxu0 0.0
      %2912 = vmatprep.subr.mxu0 0.0
      %2913 = vmatpush1.msra.mxu0 0.0
      %2914 = vmatprep.subr.mxu0 0.0
      %2915 = vmatpush1.msra.mxu0 0.0
      %2916 = vmatprep.subr.mxu0 0.0
      %2917 = vmatpush1.msra.mxu0 0.0
      %2918 = vmatprep.subr.mxu0 0.0
      %2919 = vmatpush1.msra.mxu0 0.0
      %2920 = vmatprep.subr.mxu0 0.0
      %2921 = vmatpush1.msra.mxu0 0.0
      %2922 = vmatprep.subr.mxu0 0.0
      %2923 = vmatpush1.msra.mxu0 0.0
      %2924 = vmatprep.subr.mxu0 0.0
      %2925 = vmatpush1.msra.mxu0 0.0
      %2926 = vmatprep.subr.mxu0 0.0
      %2927 = vmatpush1.msra.mxu0 0.0
      %2928 = vmatprep.subr.mxu0 0.0
      %2929 = vmatpush1.msra.mxu0 0.0
      %2930 = vmatprep.subr.mxu0 0.0
      %2931 = vmatpush1.msra.mxu0 0.0
      %2932 = vmatprep.subr.mxu0 0.0
      %2933 = vmatpush1.msra.mxu0 0.0
      %2934 = vmatprep.subr.mxu0 0.0
      %2935 = vmatpush1.msra.mxu0 0.0
      %2936 = vmatprep.subr.mxu0 0.0
      %2937 = vmatpush1.msra.mxu0 0.0
      %2938 = vmatprep.subr.mxu0 0.0
      %2939 = vmatpush1.msra.mxu0 0.0
      %2940 = vmatprep.subr.mxu0 0.0
      %2941 = vmatpush1.msra.mxu0 0.0
      %2942 = vmatprep.subr.mxu0 0.0
      %2943 = vmatpush1.msra.mxu0 0.0
      %2944 = vmatprep.subr.mxu0 0.0
      %2945 = vmatpush1.msra.mxu0 0.0
      %2946 = vmatprep.mubr.f32.mxu0 0.0
      %2947 = vmatmul.mubr.f32.gmra.mrb[0].mxu0 %v2859
      %v2948 = vpop.f32.mrb[0].mxu0
      %v2949 = vadd.f32 0.0, %v2948
      %v2950 = vpop.f32.mrb[0].mxu0
      %2951 = vmatprep.mubr.f32.mxu0 0.0
      %2952 = vmatmul.mubr.f32.gmra.mrb[0].mxu0 %v2862
      %v2953 = vpop.f32.mrb[0].mxu0
      %v2954 = vadd.f32 0.0, %v2953
      %v2955 = vpop.f32.mrb[0].mxu0
      %2956 = vmatprep.mubr.f32.mxu0 0.0
      %2957 = vmatmul.mubr.f32.gmra.mrb[0].mxu0 %v2865
      %v2958 = vpop.f32.mrb[0].mxu0
      %v2959 = vadd.f32 0.0, %v2958
      %v2960 = vpop.f32.mrb[0].mxu0
      %2961 = vmatprep.mubr.f32.mxu0 0.0
      %2962 = vmatmul.mubr.f32.gmra.mrb[0].mxu0 %v2868
      %v2963 = vpop.f32.mrb[0].mxu0
      %v2964 = vadd.f32 0.0, %v2963
      %v2965 = vpop.f32.mrb[0].mxu0
      %2966 = vmatprep.mubr.f32.mxu0 0.0
      %2967 = vmatmul.mubr.f32.gmra.mrb[0].mxu0 %v2871
      %v2968 = vpop.f32.mrb[0].mxu0
      %v2969 = vadd.f32 0.0, %v2968
      %v2970 = vpop.f32.mrb[0].mxu0
      %2971 = vmatprep.mubr.f32.mxu0 0.0
      %2972 = vmatmul.mubr.f32.gmra.mrb[0].mxu0 %v2874
      %v2973 = vpop.f32.mrb[0].mxu0
      %v2974 = vadd.f32 0.0, %v2973
      %v2975 = vpop.f32.mrb[0].mxu0
      %2976 = vmatprep.mubr.f32.mxu0 0.0
      %2977 = vmatmul.mubr.f32.gmra.mrb[0].mxu0 %v2877
      %v2978 = vpop.f32.mrb[0].mxu0
      %v2979 = vadd.f32 0.0, %v2978
      %v2980 = vpop.f32.mrb[0].mxu0
      %2981 = vmatprep.mubr.f32.mxu0 0.0
      %2982 = vmatmul.mubr.f32.gmra.mrb[0].mxu0 %v2880
      %v2983 = vpop.f32.mrb[0].mxu0
      %v2984 = vadd.f32 0.0, %v2983
      %v2985 = vpop.f32.mrb[0].mxu0
      %2986 = vdwg.mxu0
      %v2987 = vadd.f32 %v2729, %v2949
      %v2988 = vadd.f32 %v2730, %v2954
      %v2989 = vadd.f32 %v2731, %v2959
      %v2990 = vadd.f32 %v2732, %v2964
      %v2991 = vadd.f32 %v2733, %v2969
      %v2992 = vadd.f32 %v2734, %v2974
      %v2993 = vadd.f32 %v2735, %v2979
      %v2994 = vadd.f32 %v2736, %v2984
      %2995 = vmatprep.subr.mxu0 0.0
      %2996 = vmatpush1.msra.mxu0 %v2084
      %2997 = vmatprep.subr.mxu0 0.0
      %2998 = vmatpush1.msra.mxu0 %v2085
      %2999 = vmatprep.subr.mxu0 0.0
      %3000 = vmatpush1.msra.mxu0 %v2086
      %3001 = vmatprep.subr.mxu0 0.0
      %3002 = vmatpush1.msra.mxu0 %v2087
      %3003 = vmatprep.subr.mxu0 0.0
      %3004 = vmatpush1.msra.mxu0 0.0
      %3005 = vmatprep.subr.mxu0 0.0
      %3006 = vmatpush1.msra.mxu0 0.0
      %3007 = vmatprep.subr.mxu0 0.0
      %3008 = vmatpush1.msra.mxu0 0.0
      %3009 = vmatprep.subr.mxu0 0.0
      %3010 = vmatpush1.msra.mxu0 0.0
      %3011 = vmatprep.subr.mxu0 0.0
      %3012 = vmatpush1.msra.mxu0 0.0
      %3013 = vmatprep.subr.mxu0 0.0
      %3014 = vmatpush1.msra.mxu0 0.0
      %3015 = vmatprep.subr.mxu0 0.0
      %3016 = vmatpush1.msra.mxu0 0.0
      %3017 = vmatprep.subr.mxu0 0.0
      %3018 = vmatpush1.msra.mxu0 0.0
      %3019 = vmatprep.subr.mxu0 0.0
      %3020 = vmatpush1.msra.mxu0 0.0
      %3021 = vmatprep.subr.mxu0 0.0
      %3022 = vmatpush1.msra.mxu0 0.0
      %3023 = vmatprep.subr.mxu0 0.0
      %3024 = vmatpush1.msra.mxu0 0.0
      %3025 = vmatprep.subr.mxu0 0.0
      %3026 = vmatpush1.msra.mxu0 0.0
      %3027 = vmatprep.subr.mxu0 0.0
      %3028 = vmatpush1.msra.mxu0 0.0
      %3029 = vmatprep.subr.mxu0 0.0
      %3030 = vmatpush1.msra.mxu0 0.0
      %3031 = vmatprep.subr.mxu0 0.0
      %3032 = vmatpush1.msra.mxu0 0.0
      %3033 = vmatprep.subr.mxu0 0.0
      %3034 = vmatpush1.msra.mxu0 0.0
      %3035 = vmatprep.subr.mxu0 0.0
      %3036 = vmatpush1.msra.mxu0 0.0
      %3037 = vmatprep.subr.mxu0 0.0
      %3038 = vmatpush1.msra.mxu0 0.0
      %3039 = vmatprep.subr.mxu0 0.0
      %3040 = vmatpush1.msra.mxu0 0.0
      %3041 = vmatprep.subr.mxu0 0.0
      %3042 = vmatpush1.msra.mxu0 0.0
      %3043 = vmatprep.subr.mxu0 0.0
      %3044 = vmatpush1.msra.mxu0 0.0
      %3045 = vmatprep.subr.mxu0 0.0
      %3046 = vmatpush1.msra.mxu0 0.0
      %3047 = vmatprep.subr.mxu0 0.0
      %3048 = vmatpush1.msra.mxu0 0.0
      %3049 = vmatprep.subr.mxu0 0.0
      %3050 = vmatpush1.msra.mxu0 0.0
      %3051 = vmatprep.subr.mxu0 0.0
      %3052 = vmatpush1.msra.mxu0 0.0
      %3053 = vmatprep.subr.mxu0 0.0
      %3054 = vmatpush1.msra.mxu0 0.0
      %3055 = vmatprep.subr.mxu0 0.0
      %3056 = vmatpush1.msra.mxu0 0.0
      %3057 = vmatprep.subr.mxu0 0.0
      %3058 = vmatpush1.msra.mxu0 0.0
      %3059 = vmatprep.mubr.f32.mxu0 0.0
      %3060 = vmatmul.mubr.f32.gmra.mrb[0].mxu0 %v2859
      %v3061 = vpop.f32.mrb[0].mxu0
      %v3062 = vadd.f32 0.0, %v3061
      %v3063 = vpop.f32.mrb[0].mxu0
      %3064 = vmatprep.mubr.f32.mxu0 0.0
      %3065 = vmatmul.mubr.f32.gmra.mrb[0].mxu0 %v2862
      %v3066 = vpop.f32.mrb[0].mxu0
      %v3067 = vadd.f32 0.0, %v3066
      %v3068 = vpop.f32.mrb[0].mxu0
      %3069 = vmatprep.mubr.f32.mxu0 0.0
      %3070 = vmatmul.mubr.f32.gmra.mrb[0].mxu0 %v2865
      %v3071 = vpop.f32.mrb[0].mxu0
      %v3072 = vadd.f32 0.0, %v3071
      %v3073 = vpop.f32.mrb[0].mxu0
      %3074 = vmatprep.mubr.f32.mxu0 0.0
      %3075 = vmatmul.mubr.f32.gmra.mrb[0].mxu0 %v2868
      %v3076 = vpop.f32.mrb[0].mxu0
      %v3077 = vadd.f32 0.0, %v3076
      %v3078 = vpop.f32.mrb[0].mxu0
      %3079 = vmatprep.mubr.f32.mxu0 0.0
      %3080 = vmatmul.mubr.f32.gmra.mrb[0].mxu0 %v2871
      %v3081 = vpop.f32.mrb[0].mxu0
      %v3082 = vadd.f32 0.0, %v3081
      %v3083 = vpop.f32.mrb[0].mxu0
      %3084 = vmatprep.mubr.f32.mxu0 0.0
      %3085 = vmatmul.mubr.f32.gmra.mrb[0].mxu0 %v2874
      %v3086 = vpop.f32.mrb[0].mxu0
      %v3087 = vadd.f32 0.0, %v3086
      %v3088 = vpop.f32.mrb[0].mxu0
      %3089 = vmatprep.mubr.f32.mxu0 0.0
      %3090 = vmatmul.mubr.f32.gmra.mrb[0].mxu0 %v2877
      %v3091 = vpop.f32.mrb[0].mxu0
      %v3092 = vadd.f32 0.0, %v3091
      %v3093 = vpop.f32.mrb[0].mxu0
      %3094 = vmatprep.mubr.f32.mxu0 0.0
      %3095 = vmatmul.mubr.f32.gmra.mrb[0].mxu0 %v2880
      %v3096 = vpop.f32.mrb[0].mxu0
      %v3097 = vadd.f32 0.0, %v3096
      %v3098 = vpop.f32.mrb[0].mxu0
      %3099 = vdwg.mxu0
      %v3100 = vadd.f32 %v2842, %v3062
      %v3101 = vadd.f32 %v2843, %v3067
      %v3102 = vadd.f32 %v2844, %v3072
      %v3103 = vadd.f32 %v2845, %v3077
      %v3104 = vadd.f32 %v2846, %v3082
      %v3105 = vadd.f32 %v2847, %v3087
      %v3106 = vadd.f32 %v2848, %v3092
      %v3107 = vadd.f32 %v2849, %v3097
      %v3108 = vld [vmem:[%s1073 + $0x8] sm:$0xff]
      %v3109 = vld [vmem:[%s1073 + $0x20] sm:$0xff]
      %v3110 = vld [vmem:[%s1073 + $0x38] sm:$0xff]
      %v3111 = vld [vmem:[%s1073 + $0x50] sm:$0xff]
      %v3112 = vld [vmem:[%s1073 + $0x68] sm:$0xff]
      %v3113 = vld [vmem:[%s1073 + $0x80] sm:$0xff]
      %v3114 = vld [vmem:[%s1073 + $0x98] sm:$0xff]
      %v3115 = vld [vmem:[%s1073 + $0xb0] sm:$0xff]
      %v3117 = vsel %vm1041, %v3108, 0
      %v3120 = vsel %vm1041, %v3109, 0
      %v3123 = vsel %vm1041, %v3110, 0
      %v3126 = vsel %vm1041, %v3111, 0
      %v3129 = vsel %vm1041, %v3112, 0
      %v3132 = vsel %vm1041, %v3113, 0
      %v3135 = vsel %vm1041, %v3114, 0
      %v3138 = vsel %vm1041, %v3115, 0
      %3140 = vmatprep.subr.mxu0 0.0
      %3141 = vmatpush1.msra.mxu0 %v2052
      %3142 = vmatprep.subr.mxu0 0.0
      %3143 = vmatpush1.msra.mxu0 %v2053
      %3144 = vmatprep.subr.mxu0 0.0
      %3145 = vmatpush1.msra.mxu0 %v2054
      %3146 = vmatprep.subr.mxu0 0.0
      %3147 = vmatpush1.msra.mxu0 %v2055
      %3148 = vmatprep.subr.mxu0 0.0
      %3149 = vmatpush1.msra.mxu0 0.0
      %3150 = vmatprep.subr.mxu0 0.0
      %3151 = vmatpush1.msra.mxu0 0.0
      %3152 = vmatprep.subr.mxu0 0.0
      %3153 = vmatpush1.msra.mxu0 0.0
      %3154 = vmatprep.subr.mxu0 0.0
      %3155 = vmatpush1.msra.mxu0 0.0
      %3156 = vmatprep.subr.mxu0 0.0
      %3157 = vmatpush1.msra.mxu0 0.0
      %3158 = vmatprep.subr.mxu0 0.0
      %3159 = vmatpush1.msra.mxu0 0.0
      %3160 = vmatprep.subr.mxu0 0.0
      %3161 = vmatpush1.msra.mxu0 0.0
      %3162 = vmatprep.subr.mxu0 0.0
      %3163 = vmatpush1.msra.mxu0 0.0
      %3164 = vmatprep.subr.mxu0 0.0
      %3165 = vmatpush1.msra.mxu0 0.0
      %3166 = vmatprep.subr.mxu0 0.0
      %3167 = vmatpush1.msra.mxu0 0.0
      %3168 = vmatprep.subr.mxu0 0.0
      %3169 = vmatpush1.msra.mxu0 0.0
      %3170 = vmatprep.subr.mxu0 0.0
      %3171 = vmatpush1.msra.mxu0 0.0
      %3172 = vmatprep.subr.mxu0 0.0
      %3173 = vmatpush1.msra.mxu0 0.0
      %3174 = vmatprep.subr.mxu0 0.0
      %3175 = vmatpush1.msra.mxu0 0.0
      %3176 = vmatprep.subr.mxu0 0.0
      %3177 = vmatpush1.msra.mxu0 0.0
      %3178 = vmatprep.subr.mxu0 0.0
      %3179 = vmatpush1.msra.mxu0 0.0
      %3180 = vmatprep.subr.mxu0 0.0
      %3181 = vmatpush1.msra.mxu0 0.0
      %3182 = vmatprep.subr.mxu0 0.0
      %3183 = vmatpush1.msra.mxu0 0.0
      %3184 = vmatprep.subr.mxu0 0.0
      %3185 = vmatpush1.msra.mxu0 0.0
      %3186 = vmatprep.subr.mxu0 0.0
      %3187 = vmatpush1.msra.mxu0 0.0
      %3188 = vmatprep.subr.mxu0 0.0
      %3189 = vmatpush1.msra.mxu0 0.0
      %3190 = vmatprep.subr.mxu0 0.0
      %3191 = vmatpush1.msra.mxu0 0.0
      %3192 = vmatprep.subr.mxu0 0.0
      %3193 = vmatpush1.msra.mxu0 0.0
      %3194 = vmatprep.subr.mxu0 0.0
      %3195 = vmatpush1.msra.mxu0 0.0
      %3196 = vmatprep.subr.mxu0 0.0
      %3197 = vmatpush1.msra.mxu0 0.0
      %3198 = vmatprep.subr.mxu0 0.0
      %3199 = vmatpush1.msra.mxu0 0.0
      %3200 = vmatprep.subr.mxu0 0.0
      %3201 = vmatpush1.msra.mxu0 0.0
      %3202 = vmatprep.subr.mxu0 0.0
      %3203 = vmatpush1.msra.mxu0 0.0
      %3204 = vmatprep.mubr.f32.mxu0 0.0
      %3205 = vmatmul.mubr.f32.gmra.mrb[0].mxu0 %v3117
      %v3206 = vpop.f32.mrb[0].mxu0
      %v3207 = vadd.f32 0.0, %v3206
      %v3208 = vpop.f32.mrb[0].mxu0
      %3209 = vmatprep.mubr.f32.mxu0 0.0
      %3210 = vmatmul.mubr.f32.gmra.mrb[0].mxu0 %v3120
      %v3211 = vpop.f32.mrb[0].mxu0
      %v3212 = vadd.f32 0.0, %v3211
      %v3213 = vpop.f32.mrb[0].mxu0
      %3214 = vmatprep.mubr.f32.mxu0 0.0
      %3215 = vmatmul.mubr.f32.gmra.mrb[0].mxu0 %v3123
      %v3216 = vpop.f32.mrb[0].mxu0
      %v3217 = vadd.f32 0.0, %v3216
      %v3218 = vpop.f32.mrb[0].mxu0
      %3219 = vmatprep.mubr.f32.mxu0 0.0
      %3220 = vmatmul.mubr.f32.gmra.mrb[0].mxu0 %v3126
      %v3221 = vpop.f32.mrb[0].mxu0
      %v3222 = vadd.f32 0.0, %v3221
      %v3223 = vpop.f32.mrb[0].mxu0
      %3224 = vmatprep.mubr.f32.mxu0 0.0
      %3225 = vmatmul.mubr.f32.gmra.mrb[0].mxu0 %v3129
      %v3226 = vpop.f32.mrb[0].mxu0
      %v3227 = vadd.f32 0.0, %v3226
      %v3228 = vpop.f32.mrb[0].mxu0
      %3229 = vmatprep.mubr.f32.mxu0 0.0
      %3230 = vmatmul.mubr.f32.gmra.mrb[0].mxu0 %v3132
      %v3231 = vpop.f32.mrb[0].mxu0
      %v3232 = vadd.f32 0.0, %v3231
      %v3233 = vpop.f32.mrb[0].mxu0
      %3234 = vmatprep.mubr.f32.mxu0 0.0
      %3235 = vmatmul.mubr.f32.gmra.mrb[0].mxu0 %v3135
      %v3236 = vpop.f32.mrb[0].mxu0
      %v3237 = vadd.f32 0.0, %v3236
      %v3238 = vpop.f32.mrb[0].mxu0
      %3239 = vmatprep.mubr.f32.mxu0 0.0
      %3240 = vmatmul.mubr.f32.gmra.mrb[0].mxu0 %v3138
      %v3241 = vpop.f32.mrb[0].mxu0
      %v3242 = vadd.f32 0.0, %v3241
      %v3243 = vpop.f32.mrb[0].mxu0
      %3244 = vdwg.mxu0
      %v3245 = vadd.f32 %v2987, %v3207
      %v3246 = vadd.f32 %v2988, %v3212
      %v3247 = vadd.f32 %v2989, %v3217
      %v3248 = vadd.f32 %v2990, %v3222
      %v3249 = vadd.f32 %v2991, %v3227
      %v3250 = vadd.f32 %v2992, %v3232
      %v3251 = vadd.f32 %v2993, %v3237
      %v3252 = vadd.f32 %v2994, %v3242
      %3253 = vmatprep.subr.mxu0 0.0
      %3254 = vmatpush1.msra.mxu0 %v2088
      %3255 = vmatprep.subr.mxu0 0.0
      %3256 = vmatpush1.msra.mxu0 %v2089
      %3257 = vmatprep.subr.mxu0 0.0
      %3258 = vmatpush1.msra.mxu0 %v2090
      %3259 = vmatprep.subr.mxu0 0.0
      %3260 = vmatpush1.msra.mxu0 %v2091
      %3261 = vmatprep.subr.mxu0 0.0
      %3262 = vmatpush1.msra.mxu0 0.0
      %3263 = vmatprep.subr.mxu0 0.0
      %3264 = vmatpush1.msra.mxu0 0.0
      %3265 = vmatprep.subr.mxu0 0.0
      %3266 = vmatpush1.msra.mxu0 0.0
      %3267 = vmatprep.subr.mxu0 0.0
      %3268 = vmatpush1.msra.mxu0 0.0
      %3269 = vmatprep.subr.mxu0 0.0
      %3270 = vmatpush1.msra.mxu0 0.0
      %3271 = vmatprep.subr.mxu0 0.0
      %3272 = vmatpush1.msra.mxu0 0.0
      %3273 = vmatprep.subr.mxu0 0.0
      %3274 = vmatpush1.msra.mxu0 0.0
      %3275 = vmatprep.subr.mxu0 0.0
      %3276 = vmatpush1.msra.mxu0 0.0
      %3277 = vmatprep.subr.mxu0 0.0
      %3278 = vmatpush1.msra.mxu0 0.0
      %3279 = vmatprep.subr.mxu0 0.0
      %3280 = vmatpush1.msra.mxu0 0.0
      %3281 = vmatprep.subr.mxu0 0.0
      %3282 = vmatpush1.msra.mxu0 0.0
      %3283 = vmatprep.subr.mxu0 0.0
      %3284 = vmatpush1.msra.mxu0 0.0
      %3285 = vmatprep.subr.mxu0 0.0
      %3286 = vmatpush1.msra.mxu0 0.0
      %3287 = vmatprep.subr.mxu0 0.0
      %3288 = vmatpush1.msra.mxu0 0.0
      %3289 = vmatprep.subr.mxu0 0.0
      %3290 = vmatpush1.msra.mxu0 0.0
      %3291 = vmatprep.subr.mxu0 0.0
      %3292 = vmatpush1.msra.mxu0 0.0
      %3293 = vmatprep.subr.mxu0 0.0
      %3294 = vmatpush1.msra.mxu0 0.0
      %3295 = vmatprep.subr.mxu0 0.0
      %3296 = vmatpush1.msra.mxu0 0.0
      %3297 = vmatprep.subr.mxu0 0.0
      %3298 = vmatpush1.msra.mxu0 0.0
      %3299 = vmatprep.subr.mxu0 0.0
      %3300 = vmatpush1.msra.mxu0 0.0
      %3301 = vmatprep.subr.mxu0 0.0
      %3302 = vmatpush1.msra.mxu0 0.0
      %3303 = vmatprep.subr.mxu0 0.0
      %3304 = vmatpush1.msra.mxu0 0.0
      %3305 = vmatprep.subr.mxu0 0.0
      %3306 = vmatpush1.msra.mxu0 0.0
      %3307 = vmatprep.subr.mxu0 0.0
      %3308 = vmatpush1.msra.mxu0 0.0
      %3309 = vmatprep.subr.mxu0 0.0
      %3310 = vmatpush1.msra.mxu0 0.0
      %3311 = vmatprep.subr.mxu0 0.0
      %3312 = vmatpush1.msra.mxu0 0.0
      %3313 = vmatprep.subr.mxu0 0.0
      %3314 = vmatpush1.msra.mxu0 0.0
      %3315 = vmatprep.subr.mxu0 0.0
      %3316 = vmatpush1.msra.mxu0 0.0
      %3317 = vmatprep.mubr.f32.mxu0 0.0
      %3318 = vmatmul.mubr.f32.gmra.mrb[0].mxu0 %v3117
      %v3319 = vpop.f32.mrb[0].mxu0
      %v3320 = vadd.f32 0.0, %v3319
      %v3321 = vpop.f32.mrb[0].mxu0
      %3322 = vmatprep.mubr.f32.mxu0 0.0
      %3323 = vmatmul.mubr.f32.gmra.mrb[0].mxu0 %v3120
      %v3324 = vpop.f32.mrb[0].mxu0
      %v3325 = vadd.f32 0.0, %v3324
      %v3326 = vpop.f32.mrb[0].mxu0
      %3327 = vmatprep.mubr.f32.mxu0 0.0
      %3328 = vmatmul.mubr.f32.gmra.mrb[0].mxu0 %v3123
      %v3329 = vpop.f32.mrb[0].mxu0
      %v3330 = vadd.f32 0.0, %v3329
      %v3331 = vpop.f32.mrb[0].mxu0
      %3332 = vmatprep.mubr.f32.mxu0 0.0
      %3333 = vmatmul.mubr.f32.gmra.mrb[0].mxu0 %v3126
      %v3334 = vpop.f32.mrb[0].mxu0
      %v3335 = vadd.f32 0.0, %v3334
      %v3336 = vpop.f32.mrb[0].mxu0
      %3337 = vmatprep.mubr.f32.mxu0 0.0
      %3338 = vmatmul.mubr.f32.gmra.mrb[0].mxu0 %v3129
      %v3339 = vpop.f32.mrb[0].mxu0
      %v3340 = vadd.f32 0.0, %v3339
      %v3341 = vpop.f32.mrb[0].mxu0
      %3342 = vmatprep.mubr.f32.mxu0 0.0
      %3343 = vmatmul.mubr.f32.gmra.mrb[0].mxu0 %v3132
      %v3344 = vpop.f32.mrb[0].mxu0
      %v3345 = vadd.f32 0.0, %v3344
      %v3346 = vpop.f32.mrb[0].mxu0
      %3347 = vmatprep.mubr.f32.mxu0 0.0
      %3348 = vmatmul.mubr.f32.gmra.mrb[0].mxu0 %v3135
      %v3349 = vpop.f32.mrb[0].mxu0
      %v3350 = vadd.f32 0.0, %v3349
      %v3351 = vpop.f32.mrb[0].mxu0
      %3352 = vmatprep.mubr.f32.mxu0 0.0
      %3353 = vmatmul.mubr.f32.gmra.mrb[0].mxu0 %v3138
      %v3354 = vpop.f32.mrb[0].mxu0
      %v3355 = vadd.f32 0.0, %v3354
      %v3356 = vpop.f32.mrb[0].mxu0
      %3357 = vdwg.mxu0
      %v3358 = vadd.f32 %v3100, %v3320
      %v3359 = vadd.f32 %v3101, %v3325
      %v3360 = vadd.f32 %v3102, %v3330
      %v3361 = vadd.f32 %v3103, %v3335
      %v3362 = vadd.f32 %v3104, %v3340
      %v3363 = vadd.f32 %v3105, %v3345
      %v3364 = vadd.f32 %v3106, %v3350
      %v3365 = vadd.f32 %v3107, %v3355
      %v3366 = vld [vmem:[%s1073 + $0x9] sm:$0xff]
      %v3367 = vld [vmem:[%s1073 + $0x21] sm:$0xff]
      %v3368 = vld [vmem:[%s1073 + $0x39] sm:$0xff]
      %v3369 = vld [vmem:[%s1073 + $0x51] sm:$0xff]
      %v3370 = vld [vmem:[%s1073 + $0x69] sm:$0xff]
      %v3371 = vld [vmem:[%s1073 + $0x81] sm:$0xff]
      %v3372 = vld [vmem:[%s1073 + $0x99] sm:$0xff]
      %v3373 = vld [vmem:[%s1073 + $0xb1] sm:$0xff]
      %v3375 = vsel %vm1041, %v3366, 0
      %v3378 = vsel %vm1041, %v3367, 0
      %v3381 = vsel %vm1041, %v3368, 0
      %v3384 = vsel %vm1041, %v3369, 0
      %v3387 = vsel %vm1041, %v3370, 0
      %v3390 = vsel %vm1041, %v3371, 0
      %v3393 = vsel %vm1041, %v3372, 0
      %v3396 = vsel %vm1041, %v3373, 0
      %3398 = vmatprep.subr.mxu0 0.0
      %3399 = vmatpush1.msra.mxu0 %v2056
      %3400 = vmatprep.subr.mxu0 0.0
      %3401 = vmatpush1.msra.mxu0 %v2057
      %3402 = vmatprep.subr.mxu0 0.0
      %3403 = vmatpush1.msra.mxu0 %v2058
      %3404 = vmatprep.subr.mxu0 0.0
      %3405 = vmatpush1.msra.mxu0 %v2059
      %3406 = vmatprep.subr.mxu0 0.0
      %3407 = vmatpush1.msra.mxu0 0.0
      %3408 = vmatprep.subr.mxu0 0.0
      %3409 = vmatpush1.msra.mxu0 0.0
      %3410 = vmatprep.subr.mxu0 0.0
      %3411 = vmatpush1.msra.mxu0 0.0
      %3412 = vmatprep.subr.mxu0 0.0
      %3413 = vmatpush1.msra.mxu0 0.0
      %3414 = vmatprep.subr.mxu0 0.0
      %3415 = vmatpush1.msra.mxu0 0.0
      %3416 = vmatprep.subr.mxu0 0.0
      %3417 = vmatpush1.msra.mxu0 0.0
      %3418 = vmatprep.subr.mxu0 0.0
      %3419 = vmatpush1.msra.mxu0 0.0
      %3420 = vmatprep.subr.mxu0 0.0
      %3421 = vmatpush1.msra.mxu0 0.0
      %3422 = vmatprep.subr.mxu0 0.0
      %3423 = vmatpush1.msra.mxu0 0.0
      %3424 = vmatprep.subr.mxu0 0.0
      %3425 = vmatpush1.msra.mxu0 0.0
      %3426 = vmatprep.subr.mxu0 0.0
      %3427 = vmatpush1.msra.mxu0 0.0
      %3428 = vmatprep.subr.mxu0 0.0
      %3429 = vmatpush1.msra.mxu0 0.0
      %3430 = vmatprep.subr.mxu0 0.0
      %3431 = vmatpush1.msra.mxu0 0.0
      %3432 = vmatprep.subr.mxu0 0.0
      %3433 = vmatpush1.msra.mxu0 0.0
      %3434 = vmatprep.subr.mxu0 0.0
      %3435 = vmatpush1.msra.mxu0 0.0
      %3436 = vmatprep.subr.mxu0 0.0
      %3437 = vmatpush1.msra.mxu0 0.0
      %3438 = vmatprep.subr.mxu0 0.0
      %3439 = vmatpush1.msra.mxu0 0.0
      %3440 = vmatprep.subr.mxu0 0.0
      %3441 = vmatpush1.msra.mxu0 0.0
      %3442 = vmatprep.subr.mxu0 0.0
      %3443 = vmatpush1.msra.mxu0 0.0
      %3444 = vmatprep.subr.mxu0 0.0
      %3445 = vmatpush1.msra.mxu0 0.0
      %3446 = vmatprep.subr.mxu0 0.0
      %3447 = vmatpush1.msra.mxu0 0.0
      %3448 = vmatprep.subr.mxu0 0.0
      %3449 = vmatpush1.msra.mxu0 0.0
      %3450 = vmatprep.subr.mxu0 0.0
      %3451 = vmatpush1.msra.mxu0 0.0
      %3452 = vmatprep.subr.mxu0 0.0
      %3453 = vmatpush1.msra.mxu0 0.0
      %3454 = vmatprep.subr.mxu0 0.0
      %3455 = vmatpush1.msra.mxu0 0.0
      %3456 = vmatprep.subr.mxu0 0.0
      %3457 = vmatpush1.msra.mxu0 0.0
      %3458 = vmatprep.subr.mxu0 0.0
      %3459 = vmatpush1.msra.mxu0 0.0
      %3460 = vmatprep.subr.mxu0 0.0
      %3461 = vmatpush1.msra.mxu0 0.0
      %3462 = vmatprep.mubr.f32.mxu0 0.0
      %3463 = vmatmul.mubr.f32.gmra.mrb[0].mxu0 %v3375
      %v3464 = vpop.f32.mrb[0].mxu0
      %v3465 = vadd.f32 0.0, %v3464
      %v3466 = vpop.f32.mrb[0].mxu0
      %3467 = vmatprep.mubr.f32.mxu0 0.0
      %3468 = vmatmul.mubr.f32.gmra.mrb[0].mxu0 %v3378
      %v3469 = vpop.f32.mrb[0].mxu0
      %v3470 = vadd.f32 0.0, %v3469
      %v3471 = vpop.f32.mrb[0].mxu0
      %3472 = vmatprep.mubr.f32.mxu0 0.0
      %3473 = vmatmul.mubr.f32.gmra.mrb[0].mxu0 %v3381
      %v3474 = vpop.f32.mrb[0].mxu0
      %v3475 = vadd.f32 0.0, %v3474
      %v3476 = vpop.f32.mrb[0].mxu0
      %3477 = vmatprep.mubr.f32.mxu0 0.0
      %3478 = vmatmul.mubr.f32.gmra.mrb[0].mxu0 %v3384
      %v3479 = vpop.f32.mrb[0].mxu0
      %v3480 = vadd.f32 0.0, %v3479
      %v3481 = vpop.f32.mrb[0].mxu0
      %3482 = vmatprep.mubr.f32.mxu0 0.0
      %3483 = vmatmul.mubr.f32.gmra.mrb[0].mxu0 %v3387
      %v3484 = vpop.f32.mrb[0].mxu0
      %v3485 = vadd.f32 0.0, %v3484
      %v3486 = vpop.f32.mrb[0].mxu0
      %3487 = vmatprep.mubr.f32.mxu0 0.0
      %3488 = vmatmul.mubr.f32.gmra.mrb[0].mxu0 %v3390
      %v3489 = vpop.f32.mrb[0].mxu0
      %v3490 = vadd.f32 0.0, %v3489
      %v3491 = vpop.f32.mrb[0].mxu0
      %3492 = vmatprep.mubr.f32.mxu0 0.0
      %3493 = vmatmul.mubr.f32.gmra.mrb[0].mxu0 %v3393
      %v3494 = vpop.f32.mrb[0].mxu0
      %v3495 = vadd.f32 0.0, %v3494
      %v3496 = vpop.f32.mrb[0].mxu0
      %3497 = vmatprep.mubr.f32.mxu0 0.0
      %3498 = vmatmul.mubr.f32.gmra.mrb[0].mxu0 %v3396
      %v3499 = vpop.f32.mrb[0].mxu0
      %v3500 = vadd.f32 0.0, %v3499
      %v3501 = vpop.f32.mrb[0].mxu0
      %3502 = vdwg.mxu0
      %v3503 = vadd.f32 %v3245, %v3465
      %v3504 = vadd.f32 %v3246, %v3470
      %v3505 = vadd.f32 %v3247, %v3475
      %v3506 = vadd.f32 %v3248, %v3480
      %v3507 = vadd.f32 %v3249, %v3485
      %v3508 = vadd.f32 %v3250, %v3490
      %v3509 = vadd.f32 %v3251, %v3495
      %v3510 = vadd.f32 %v3252, %v3500
      %3511 = vmatprep.subr.mxu0 0.0
      %3512 = vmatpush1.msra.mxu0 %v2092
      %3513 = vmatprep.subr.mxu0 0.0
      %3514 = vmatpush1.msra.mxu0 %v2093
      %3515 = vmatprep.subr.mxu0 0.0
      %3516 = vmatpush1.msra.mxu0 %v2094
      %3517 = vmatprep.subr.mxu0 0.0
      %3518 = vmatpush1.msra.mxu0 %v2095
      %3519 = vmatprep.subr.mxu0 0.0
      %3520 = vmatpush1.msra.mxu0 0.0
      %3521 = vmatprep.subr.mxu0 0.0
      %3522 = vmatpush1.msra.mxu0 0.0
      %3523 = vmatprep.subr.mxu0 0.0
      %3524 = vmatpush1.msra.mxu0 0.0
      %3525 = vmatprep.subr.mxu0 0.0
      %3526 = vmatpush1.msra.mxu0 0.0
      %3527 = vmatprep.subr.mxu0 0.0
      %3528 = vmatpush1.msra.mxu0 0.0
      %3529 = vmatprep.subr.mxu0 0.0
      %3530 = vmatpush1.msra.mxu0 0.0
      %3531 = vmatprep.subr.mxu0 0.0
      %3532 = vmatpush1.msra.mxu0 0.0
      %3533 = vmatprep.subr.mxu0 0.0
      %3534 = vmatpush1.msra.mxu0 0.0
      %3535 = vmatprep.subr.mxu0 0.0
      %3536 = vmatpush1.msra.mxu0 0.0
      %3537 = vmatprep.subr.mxu0 0.0
      %3538 = vmatpush1.msra.mxu0 0.0
      %3539 = vmatprep.subr.mxu0 0.0
      %3540 = vmatpush1.msra.mxu0 0.0
      %3541 = vmatprep.subr.mxu0 0.0
      %3542 = vmatpush1.msra.mxu0 0.0
      %3543 = vmatprep.subr.mxu0 0.0
      %3544 = vmatpush1.msra.mxu0 0.0
      %3545 = vmatprep.subr.mxu0 0.0
      %3546 = vmatpush1.msra.mxu0 0.0
      %3547 = vmatprep.subr.mxu0 0.0
      %3548 = vmatpush1.msra.mxu0 0.0
      %3549 = vmatprep.subr.mxu0 0.0
      %3550 = vmatpush1.msra.mxu0 0.0
      %3551 = vmatprep.subr.mxu0 0.0
      %3552 = vmatpush1.msra.mxu0 0.0
      %3553 = vmatprep.subr.mxu0 0.0
      %3554 = vmatpush1.msra.mxu0 0.0
      %3555 = vmatprep.subr.mxu0 0.0
      %3556 = vmatpush1.msra.mxu0 0.0
      %3557 = vmatprep.subr.mxu0 0.0
      %3558 = vmatpush1.msra.mxu0 0.0
      %3559 = vmatprep.subr.mxu0 0.0
      %3560 = vmatpush1.msra.mxu0 0.0
      %3561 = vmatprep.subr.mxu0 0.0
      %3562 = vmatpush1.msra.mxu0 0.0
      %3563 = vmatprep.subr.mxu0 0.0
      %3564 = vmatpush1.msra.mxu0 0.0
      %3565 = vmatprep.subr.mxu0 0.0
      %3566 = vmatpush1.msra.mxu0 0.0
      %3567 = vmatprep.subr.mxu0 0.0
      %3568 = vmatpush1.msra.mxu0 0.0
      %3569 = vmatprep.subr.mxu0 0.0
      %3570 = vmatpush1.msra.mxu0 0.0
      %3571 = vmatprep.subr.mxu0 0.0
      %3572 = vmatpush1.msra.mxu0 0.0
      %3573 = vmatprep.subr.mxu0 0.0
      %3574 = vmatpush1.msra.mxu0 0.0
      %3575 = vmatprep.mubr.f32.mxu0 0.0
      %3576 = vmatmul.mubr.f32.gmra.mrb[0].mxu0 %v3375
      %v3577 = vpop.f32.mrb[0].mxu0
      %v3578 = vadd.f32 0.0, %v3577
      %v3579 = vpop.f32.mrb[0].mxu0
      %3580 = vmatprep.mubr.f32.mxu0 0.0
      %3581 = vmatmul.mubr.f32.gmra.mrb[0].mxu0 %v3378
      %v3582 = vpop.f32.mrb[0].mxu0
      %v3583 = vadd.f32 0.0, %v3582
      %v3584 = vpop.f32.mrb[0].mxu0
      %3585 = vmatprep.mubr.f32.mxu0 0.0
      %3586 = vmatmul.mubr.f32.gmra.mrb[0].mxu0 %v3381
      %v3587 = vpop.f32.mrb[0].mxu0
      %v3588 = vadd.f32 0.0, %v3587
      %v3589 = vpop.f32.mrb[0].mxu0
      %3590 = vmatprep.mubr.f32.mxu0 0.0
      %3591 = vmatmul.mubr.f32.gmra.mrb[0].mxu0 %v3384
      %v3592 = vpop.f32.mrb[0].mxu0
      %v3593 = vadd.f32 0.0, %v3592
      %v3594 = vpop.f32.mrb[0].mxu0
      %3595 = vmatprep.mubr.f32.mxu0 0.0
      %3596 = vmatmul.mubr.f32.gmra.mrb[0].mxu0 %v3387
      %v3597 = vpop.f32.mrb[0].mxu0
      %v3598 = vadd.f32 0.0, %v3597
      %v3599 = vpop.f32.mrb[0].mxu0
      %3600 = vmatprep.mubr.f32.mxu0 0.0
      %3601 = vmatmul.mubr.f32.gmra.mrb[0].mxu0 %v3390
      %v3602 = vpop.f32.mrb[0].mxu0
      %v3603 = vadd.f32 0.0, %v3602
      %v3604 = vpop.f32.mrb[0].mxu0
      %3605 = vmatprep.mubr.f32.mxu0 0.0
      %3606 = vmatmul.mubr.f32.gmra.mrb[0].mxu0 %v3393
      %v3607 = vpop.f32.mrb[0].mxu0
      %v3608 = vadd.f32 0.0, %v3607
      %v3609 = vpop.f32.mrb[0].mxu0
      %3610 = vmatprep.mubr.f32.mxu0 0.0
      %3611 = vmatmul.mubr.f32.gmra.mrb[0].mxu0 %v3396
      %v3612 = vpop.f32.mrb[0].mxu0
      %v3613 = vadd.f32 0.0, %v3612
      %v3614 = vpop.f32.mrb[0].mxu0
      %3615 = vdwg.mxu0
      %v3616 = vadd.f32 %v3358, %v3578
      %v3617 = vadd.f32 %v3359, %v3583
      %v3618 = vadd.f32 %v3360, %v3588
      %v3619 = vadd.f32 %v3361, %v3593
      %v3620 = vadd.f32 %v3362, %v3598
      %v3621 = vadd.f32 %v3363, %v3603
      %v3622 = vadd.f32 %v3364, %v3608
      %v3623 = vadd.f32 %v3365, %v3613
      %v3624 = vld [vmem:[%s1250 + $0x7] sm:$0xff]
      %v3625 = vld [vmem:[%s1250 + $0x1f] sm:$0xff]
      %v3626 = vld [vmem:[%s1250 + $0x37] sm:$0xff]
      %v3627 = vld [vmem:[%s1250 + $0x4f] sm:$0xff]
      %v3628 = vld [vmem:[%s1250 + $0x67] sm:$0xff]
      %v3629 = vld [vmem:[%s1250 + $0x7f] sm:$0xff]
      %v3630 = vld [vmem:[%s1250 + $0x97] sm:$0xff]
      %v3631 = vld [vmem:[%s1250 + $0xaf] sm:$0xff]
      %v3633 = vsel %vm1041, %v3624, 0
      %v3636 = vsel %vm1041, %v3625, 0
      %v3639 = vsel %vm1041, %v3626, 0
      %v3642 = vsel %vm1041, %v3627, 0
      %v3645 = vsel %vm1041, %v3628, 0
      %v3648 = vsel %vm1041, %v3629, 0
      %v3651 = vsel %vm1041, %v3630, 0
      %v3654 = vsel %vm1041, %v3631, 0
      %3656 = vmatprep.subr.mxu0 0.0
      %3657 = vmatpush1.msra.mxu0 %v2060
      %3658 = vmatprep.subr.mxu0 0.0
      %3659 = vmatpush1.msra.mxu0 %v2061
      %3660 = vmatprep.subr.mxu0 0.0
      %3661 = vmatpush1.msra.mxu0 %v2062
      %3662 = vmatprep.subr.mxu0 0.0
      %3663 = vmatpush1.msra.mxu0 %v2063
      %3664 = vmatprep.subr.mxu0 0.0
      %3665 = vmatpush1.msra.mxu0 0.0
      %3666 = vmatprep.subr.mxu0 0.0
      %3667 = vmatpush1.msra.mxu0 0.0
      %3668 = vmatprep.subr.mxu0 0.0
      %3669 = vmatpush1.msra.mxu0 0.0
      %3670 = vmatprep.subr.mxu0 0.0
      %3671 = vmatpush1.msra.mxu0 0.0
      %3672 = vmatprep.subr.mxu0 0.0
      %3673 = vmatpush1.msra.mxu0 0.0
      %3674 = vmatprep.subr.mxu0 0.0
      %3675 = vmatpush1.msra.mxu0 0.0
      %3676 = vmatprep.subr.mxu0 0.0
      %3677 = vmatpush1.msra.mxu0 0.0
      %3678 = vmatprep.subr.mxu0 0.0
      %3679 = vmatpush1.msra.mxu0 0.0
      %3680 = vmatprep.subr.mxu0 0.0
      %3681 = vmatpush1.msra.mxu0 0.0
      %3682 = vmatprep.subr.mxu0 0.0
      %3683 = vmatpush1.msra.mxu0 0.0
      %3684 = vmatprep.subr.mxu0 0.0
      %3685 = vmatpush1.msra.mxu0 0.0
      %3686 = vmatprep.subr.mxu0 0.0
      %3687 = vmatpush1.msra.mxu0 0.0
      %3688 = vmatprep.subr.mxu0 0.0
      %3689 = vmatpush1.msra.mxu0 0.0
      %3690 = vmatprep.subr.mxu0 0.0
      %3691 = vmatpush1.msra.mxu0 0.0
      %3692 = vmatprep.subr.mxu0 0.0
      %3693 = vmatpush1.msra.mxu0 0.0
      %3694 = vmatprep.subr.mxu0 0.0
      %3695 = vmatpush1.msra.mxu0 0.0
      %3696 = vmatprep.subr.mxu0 0.0
      %3697 = vmatpush1.msra.mxu0 0.0
      %3698 = vmatprep.subr.mxu0 0.0
      %3699 = vmatpush1.msra.mxu0 0.0
      %3700 = vmatprep.subr.mxu0 0.0
      %3701 = vmatpush1.msra.mxu0 0.0
      %3702 = vmatprep.subr.mxu0 0.0
      %3703 = vmatpush1.msra.mxu0 0.0
      %3704 = vmatprep.subr.mxu0 0.0
      %3705 = vmatpush1.msra.mxu0 0.0
      %3706 = vmatprep.subr.mxu0 0.0
      %3707 = vmatpush1.msra.mxu0 0.0
      %3708 = vmatprep.subr.mxu0 0.0
      %3709 = vmatpush1.msra.mxu0 0.0
      %3710 = vmatprep.subr.mxu0 0.0
      %3711 = vmatpush1.msra.mxu0 0.0
      %3712 = vmatprep.subr.mxu0 0.0
      %3713 = vmatpush1.msra.mxu0 0.0
      %3714 = vmatprep.subr.mxu0 0.0
      %3715 = vmatpush1.msra.mxu0 0.0
      %3716 = vmatprep.subr.mxu0 0.0
      %3717 = vmatpush1.msra.mxu0 0.0
      %3718 = vmatprep.subr.mxu0 0.0
      %3719 = vmatpush1.msra.mxu0 0.0
      %3720 = vmatprep.mubr.f32.mxu0 0.0
      %3721 = vmatmul.mubr.f32.gmra.mrb[0].mxu0 %v3633
      %v3722 = vpop.f32.mrb[0].mxu0
      %v3723 = vadd.f32 0.0, %v3722
      %v3724 = vpop.f32.mrb[0].mxu0
      %3725 = vmatprep.mubr.f32.mxu0 0.0
      %3726 = vmatmul.mubr.f32.gmra.mrb[0].mxu0 %v3636
      %v3727 = vpop.f32.mrb[0].mxu0
      %v3728 = vadd.f32 0.0, %v3727
      %v3729 = vpop.f32.mrb[0].mxu0
      %3730 = vmatprep.mubr.f32.mxu0 0.0
      %3731 = vmatmul.mubr.f32.gmra.mrb[0].mxu0 %v3639
      %v3732 = vpop.f32.mrb[0].mxu0
      %v3733 = vadd.f32 0.0, %v3732
      %v3734 = vpop.f32.mrb[0].mxu0
      %3735 = vmatprep.mubr.f32.mxu0 0.0
      %3736 = vmatmul.mubr.f32.gmra.mrb[0].mxu0 %v3642
      %v3737 = vpop.f32.mrb[0].mxu0
      %v3738 = vadd.f32 0.0, %v3737
      %v3739 = vpop.f32.mrb[0].mxu0
      %3740 = vmatprep.mubr.f32.mxu0 0.0
      %3741 = vmatmul.mubr.f32.gmra.mrb[0].mxu0 %v3645
      %v3742 = vpop.f32.mrb[0].mxu0
      %v3743 = vadd.f32 0.0, %v3742
      %v3744 = vpop.f32.mrb[0].mxu0
      %3745 = vmatprep.mubr.f32.mxu0 0.0
      %3746 = vmatmul.mubr.f32.gmra.mrb[0].mxu0 %v3648
      %v3747 = vpop.f32.mrb[0].mxu0
      %v3748 = vadd.f32 0.0, %v3747
      %v3749 = vpop.f32.mrb[0].mxu0
      %3750 = vmatprep.mubr.f32.mxu0 0.0
      %3751 = vmatmul.mubr.f32.gmra.mrb[0].mxu0 %v3651
      %v3752 = vpop.f32.mrb[0].mxu0
      %v3753 = vadd.f32 0.0, %v3752
      %v3754 = vpop.f32.mrb[0].mxu0
      %3755 = vmatprep.mubr.f32.mxu0 0.0
      %3756 = vmatmul.mubr.f32.gmra.mrb[0].mxu0 %v3654
      %v3757 = vpop.f32.mrb[0].mxu0
      %v3758 = vadd.f32 0.0, %v3757
      %v3759 = vpop.f32.mrb[0].mxu0
      %3760 = vdwg.mxu0
      %v3761 = vadd.f32 %v3503, %v3723
      %v3762 = vadd.f32 %v3504, %v3728
      %v3763 = vadd.f32 %v3505, %v3733
      %v3764 = vadd.f32 %v3506, %v3738
      %v3765 = vadd.f32 %v3507, %v3743
      %v3766 = vadd.f32 %v3508, %v3748
      %v3767 = vadd.f32 %v3509, %v3753
      %v3768 = vadd.f32 %v3510, %v3758
      %3769 = vmatprep.subr.mxu0 0.0
      %3770 = vmatpush1.msra.mxu0 %v2096
      %3771 = vmatprep.subr.mxu0 0.0
      %3772 = vmatpush1.msra.mxu0 %v2097
      %3773 = vmatprep.subr.mxu0 0.0
      %3774 = vmatpush1.msra.mxu0 %v2098
      %3775 = vmatprep.subr.mxu0 0.0
      %3776 = vmatpush1.msra.mxu0 %v2099
      %3777 = vmatprep.subr.mxu0 0.0
      %3778 = vmatpush1.msra.mxu0 0.0
      %3779 = vmatprep.subr.mxu0 0.0
      %3780 = vmatpush1.msra.mxu0 0.0
      %3781 = vmatprep.subr.mxu0 0.0
      %3782 = vmatpush1.msra.mxu0 0.0
      %3783 = vmatprep.subr.mxu0 0.0
      %3784 = vmatpush1.msra.mxu0 0.0
      %3785 = vmatprep.subr.mxu0 0.0
      %3786 = vmatpush1.msra.mxu0 0.0
      %3787 = vmatprep.subr.mxu0 0.0
      %3788 = vmatpush1.msra.mxu0 0.0
      %3789 = vmatprep.subr.mxu0 0.0
      %3790 = vmatpush1.msra.mxu0 0.0
      %3791 = vmatprep.subr.mxu0 0.0
      %3792 = vmatpush1.msra.mxu0 0.0
      %3793 = vmatprep.subr.mxu0 0.0
      %3794 = vmatpush1.msra.mxu0 0.0
      %3795 = vmatprep.subr.mxu0 0.0
      %3796 = vmatpush1.msra.mxu0 0.0
      %3797 = vmatprep.subr.mxu0 0.0
      %3798 = vmatpush1.msra.mxu0 0.0
      %3799 = vmatprep.subr.mxu0 0.0
      %3800 = vmatpush1.msra.mxu0 0.0
      %3801 = vmatprep.subr.mxu0 0.0
      %3802 = vmatpush1.msra.mxu0 0.0
      %3803 = vmatprep.subr.mxu0 0.0
      %3804 = vmatpush1.msra.mxu0 0.0
      %3805 = vmatprep.subr.mxu0 0.0
      %3806 = vmatpush1.msra.mxu0 0.0
      %3807 = vmatprep.subr.mxu0 0.0
      %3808 = vmatpush1.msra.mxu0 0.0
      %3809 = vmatprep.subr.mxu0 0.0
      %3810 = vmatpush1.msra.mxu0 0.0
      %3811 = vmatprep.subr.mxu0 0.0
      %3812 = vmatpush1.msra.mxu0 0.0
      %3813 = vmatprep.subr.mxu0 0.0
      %3814 = vmatpush1.msra.mxu0 0.0
      %3815 = vmatprep.subr.mxu0 0.0
      %3816 = vmatpush1.msra.mxu0 0.0
      %3817 = vmatprep.subr.mxu0 0.0
      %3818 = vmatpush1.msra.mxu0 0.0
      %3819 = vmatprep.subr.mxu0 0.0
      %3820 = vmatpush1.msra.mxu0 0.0
      %3821 = vmatprep.subr.mxu0 0.0
      %3822 = vmatpush1.msra.mxu0 0.0
      %3823 = vmatprep.subr.mxu0 0.0
      %3824 = vmatpush1.msra.mxu0 0.0
      %3825 = vmatprep.subr.mxu0 0.0
      %3826 = vmatpush1.msra.mxu0 0.0
      %3827 = vmatprep.subr.mxu0 0.0
      %3828 = vmatpush1.msra.mxu0 0.0
      %3829 = vmatprep.subr.mxu0 0.0
      %3830 = vmatpush1.msra.mxu0 0.0
      %3831 = vmatprep.subr.mxu0 0.0
      %3832 = vmatpush1.msra.mxu0 0.0
      %3833 = vmatprep.mubr.f32.mxu0 0.0
      %3834 = vmatmul.mubr.f32.gmra.mrb[0].mxu0 %v3633
      %v3835 = vpop.f32.mrb[0].mxu0
      %v3836 = vadd.f32 0.0, %v3835
      %v3837 = vpop.f32.mrb[0].mxu0
      %3838 = vmatprep.mubr.f32.mxu0 0.0
      %3839 = vmatmul.mubr.f32.gmra.mrb[0].mxu0 %v3636
      %v3840 = vpop.f32.mrb[0].mxu0
      %v3841 = vadd.f32 0.0, %v3840
      %v3842 = vpop.f32.mrb[0].mxu0
      %3843 = vmatprep.mubr.f32.mxu0 0.0
      %3844 = vmatmul.mubr.f32.gmra.mrb[0].mxu0 %v3639
      %v3845 = vpop.f32.mrb[0].mxu0
      %v3846 = vadd.f32 0.0, %v3845
      %v3847 = vpop.f32.mrb[0].mxu0
      %3848 = vmatprep.mubr.f32.mxu0 0.0
      %3849 = vmatmul.mubr.f32.gmra.mrb[0].mxu0 %v3642
      %v3850 = vpop.f32.mrb[0].mxu0
      %v3851 = vadd.f32 0.0, %v3850
      %v3852 = vpop.f32.mrb[0].mxu0
      %3853 = vmatprep.mubr.f32.mxu0 0.0
      %3854 = vmatmul.mubr.f32.gmra.mrb[0].mxu0 %v3645
      %v3855 = vpop.f32.mrb[0].mxu0
      %v3856 = vadd.f32 0.0, %v3855
      %v3857 = vpop.f32.mrb[0].mxu0
      %3858 = vmatprep.mubr.f32.mxu0 0.0
      %3859 = vmatmul.mubr.f32.gmra.mrb[0].mxu0 %v3648
      %v3860 = vpop.f32.mrb[0].mxu0
      %v3861 = vadd.f32 0.0, %v3860
      %v3862 = vpop.f32.mrb[0].mxu0
      %3863 = vmatprep.mubr.f32.mxu0 0.0
      %3864 = vmatmul.mubr.f32.gmra.mrb[0].mxu0 %v3651
      %v3865 = vpop.f32.mrb[0].mxu0
      %v3866 = vadd.f32 0.0, %v3865
      %v3867 = vpop.f32.mrb[0].mxu0
      %3868 = vmatprep.mubr.f32.mxu0 0.0
      %3869 = vmatmul.mubr.f32.gmra.mrb[0].mxu0 %v3654
      %v3870 = vpop.f32.mrb[0].mxu0
      %v3871 = vadd.f32 0.0, %v3870
      %v3872 = vpop.f32.mrb[0].mxu0
      %3873 = vdwg.mxu0
      %v3874 = vadd.f32 %v3616, %v3836
      %v3875 = vadd.f32 %v3617, %v3841
      %v3876 = vadd.f32 %v3618, %v3846
      %v3877 = vadd.f32 %v3619, %v3851
      %v3878 = vadd.f32 %v3620, %v3856
      %v3879 = vadd.f32 %v3621, %v3861
      %v3880 = vadd.f32 %v3622, %v3866
      %v3881 = vadd.f32 %v3623, %v3871
      %v3882 = vld [vmem:[%s1250 + $0x8] sm:$0xff]
      %v3883 = vld [vmem:[%s1250 + $0x20] sm:$0xff]
      %v3884 = vld [vmem:[%s1250 + $0x38] sm:$0xff]
      %v3885 = vld [vmem:[%s1250 + $0x50] sm:$0xff]
      %v3886 = vld [vmem:[%s1250 + $0x68] sm:$0xff]
      %v3887 = vld [vmem:[%s1250 + $0x80] sm:$0xff]
      %v3888 = vld [vmem:[%s1250 + $0x98] sm:$0xff]
      %v3889 = vld [vmem:[%s1250 + $0xb0] sm:$0xff]
      %v3891 = vsel %vm1041, %v3882, 0
      %v3894 = vsel %vm1041, %v3883, 0
      %v3897 = vsel %vm1041, %v3884, 0
      %v3900 = vsel %vm1041, %v3885, 0
      %v3903 = vsel %vm1041, %v3886, 0
      %v3906 = vsel %vm1041, %v3887, 0
      %v3909 = vsel %vm1041, %v3888, 0
      %v3912 = vsel %vm1041, %v3889, 0
      %3914 = vmatprep.subr.mxu0 0.0
      %3915 = vmatpush1.msra.mxu0 %v2064
      %3916 = vmatprep.subr.mxu0 0.0
      %3917 = vmatpush1.msra.mxu0 %v2065
      %3918 = vmatprep.subr.mxu0 0.0
      %3919 = vmatpush1.msra.mxu0 %v2066
      %3920 = vmatprep.subr.mxu0 0.0
      %3921 = vmatpush1.msra.mxu0 %v2067
      %3922 = vmatprep.subr.mxu0 0.0
      %3923 = vmatpush1.msra.mxu0 0.0
      %3924 = vmatprep.subr.mxu0 0.0
      %3925 = vmatpush1.msra.mxu0 0.0
      %3926 = vmatprep.subr.mxu0 0.0
      %3927 = vmatpush1.msra.mxu0 0.0
      %3928 = vmatprep.subr.mxu0 0.0
      %3929 = vmatpush1.msra.mxu0 0.0
      %3930 = vmatprep.subr.mxu0 0.0
      %3931 = vmatpush1.msra.mxu0 0.0
      %3932 = vmatprep.subr.mxu0 0.0
      %3933 = vmatpush1.msra.mxu0 0.0
      %3934 = vmatprep.subr.mxu0 0.0
      %3935 = vmatpush1.msra.mxu0 0.0
      %3936 = vmatprep.subr.mxu0 0.0
      %3937 = vmatpush1.msra.mxu0 0.0
      %3938 = vmatprep.subr.mxu0 0.0
      %3939 = vmatpush1.msra.mxu0 0.0
      %3940 = vmatprep.subr.mxu0 0.0
      %3941 = vmatpush1.msra.mxu0 0.0
      %3942 = vmatprep.subr.mxu0 0.0
      %3943 = vmatpush1.msra.mxu0 0.0
      %3944 = vmatprep.subr.mxu0 0.0
      %3945 = vmatpush1.msra.mxu0 0.0
      %3946 = vmatprep.subr.mxu0 0.0
      %3947 = vmatpush1.msra.mxu0 0.0
      %3948 = vmatprep.subr.mxu0 0.0
      %3949 = vmatpush1.msra.mxu0 0.0
      %3950 = vmatprep.subr.mxu0 0.0
      %3951 = vmatpush1.msra.mxu0 0.0
      %3952 = vmatprep.subr.mxu0 0.0
      %3953 = vmatpush1.msra.mxu0 0.0
      %3954 = vmatprep.subr.mxu0 0.0
      %3955 = vmatpush1.msra.mxu0 0.0
      %3956 = vmatprep.subr.mxu0 0.0
      %3957 = vmatpush1.msra.mxu0 0.0
      %3958 = vmatprep.subr.mxu0 0.0
      %3959 = vmatpush1.msra.mxu0 0.0
      %3960 = vmatprep.subr.mxu0 0.0
      %3961 = vmatpush1.msra.mxu0 0.0
      %3962 = vmatprep.subr.mxu0 0.0
      %3963 = vmatpush1.msra.mxu0 0.0
      %3964 = vmatprep.subr.mxu0 0.0
      %3965 = vmatpush1.msra.mxu0 0.0
      %3966 = vmatprep.subr.mxu0 0.0
      %3967 = vmatpush1.msra.mxu0 0.0
      %3968 = vmatprep.subr.mxu0 0.0
      %3969 = vmatpush1.msra.mxu0 0.0
      %3970 = vmatprep.subr.mxu0 0.0
      %3971 = vmatpush1.msra.mxu0 0.0
      %3972 = vmatprep.subr.mxu0 0.0
      %3973 = vmatpush1.msra.mxu0 0.0
      %3974 = vmatprep.subr.mxu0 0.0
      %3975 = vmatpush1.msra.mxu0 0.0
      %3976 = vmatprep.subr.mxu0 0.0
      %3977 = vmatpush1.msra.mxu0 0.0
      %3978 = vmatprep.mubr.f32.mxu0 0.0
      %3979 = vmatmul.mubr.f32.gmra.mrb[0].mxu0 %v3891
      %v3980 = vpop.f32.mrb[0].mxu0
      %v3981 = vadd.f32 0.0, %v3980
      %v3982 = vpop.f32.mrb[0].mxu0
      %3983 = vmatprep.mubr.f32.mxu0 0.0
      %3984 = vmatmul.mubr.f32.gmra.mrb[0].mxu0 %v3894
      %v3985 = vpop.f32.mrb[0].mxu0
      %v3986 = vadd.f32 0.0, %v3985
      %v3987 = vpop.f32.mrb[0].mxu0
      %3988 = vmatprep.mubr.f32.mxu0 0.0
      %3989 = vmatmul.mubr.f32.gmra.mrb[0].mxu0 %v3897
      %v3990 = vpop.f32.mrb[0].mxu0
      %v3991 = vadd.f32 0.0, %v3990
      %v3992 = vpop.f32.mrb[0].mxu0
      %3993 = vmatprep.mubr.f32.mxu0 0.0
      %3994 = vmatmul.mubr.f32.gmra.mrb[0].mxu0 %v3900
      %v3995 = vpop.f32.mrb[0].mxu0
      %v3996 = vadd.f32 0.0, %v3995
      %v3997 = vpop.f32.mrb[0].mxu0
      %3998 = vmatprep.mubr.f32.mxu0 0.0
      %3999 = vmatmul.mubr.f32.gmra.mrb[0].mxu0 %v3903
      %v4000 = vpop.f32.mrb[0].mxu0
      %v4001 = vadd.f32 0.0, %v4000
      %v4002 = vpop.f32.mrb[0].mxu0
      %4003 = vmatprep.mubr.f32.mxu0 0.0
      %4004 = vmatmul.mubr.f32.gmra.mrb[0].mxu0 %v3906
      %v4005 = vpop.f32.mrb[0].mxu0
      %v4006 = vadd.f32 0.0, %v4005
      %v4007 = vpop.f32.mrb[0].mxu0
      %4008 = vmatprep.mubr.f32.mxu0 0.0
      %4009 = vmatmul.mubr.f32.gmra.mrb[0].mxu0 %v3909
      %v4010 = vpop.f32.mrb[0].mxu0
      %v4011 = vadd.f32 0.0, %v4010
      %v4012 = vpop.f32.mrb[0].mxu0
      %4013 = vmatprep.mubr.f32.mxu0 0.0
      %4014 = vmatmul.mubr.f32.gmra.mrb[0].mxu0 %v3912
      %v4015 = vpop.f32.mrb[0].mxu0
      %v4016 = vadd.f32 0.0, %v4015
      %v4017 = vpop.f32.mrb[0].mxu0
      %4018 = vdwg.mxu0
      %v4019 = vadd.f32 %v3761, %v3981
      %v4020 = vadd.f32 %v3762, %v3986
      %v4021 = vadd.f32 %v3763, %v3991
      %v4022 = vadd.f32 %v3764, %v3996
      %v4023 = vadd.f32 %v3765, %v4001
      %v4024 = vadd.f32 %v3766, %v4006
      %v4025 = vadd.f32 %v3767, %v4011
      %v4026 = vadd.f32 %v3768, %v4016
      %4027 = vmatprep.subr.mxu0 0.0
      %4028 = vmatpush1.msra.mxu0 %v2100
      %4029 = vmatprep.subr.mxu0 0.0
      %4030 = vmatpush1.msra.mxu0 %v2101
      %4031 = vmatprep.subr.mxu0 0.0
      %4032 = vmatpush1.msra.mxu0 %v2102
      %4033 = vmatprep.subr.mxu0 0.0
      %4034 = vmatpush1.msra.mxu0 %v2103
      %4035 = vmatprep.subr.mxu0 0.0
      %4036 = vmatpush1.msra.mxu0 0.0
      %4037 = vmatprep.subr.mxu0 0.0
      %4038 = vmatpush1.msra.mxu0 0.0
      %4039 = vmatprep.subr.mxu0 0.0
      %4040 = vmatpush1.msra.mxu0 0.0
      %4041 = vmatprep.subr.mxu0 0.0
      %4042 = vmatpush1.msra.mxu0 0.0
      %4043 = vmatprep.subr.mxu0 0.0
      %4044 = vmatpush1.msra.mxu0 0.0
      %4045 = vmatprep.subr.mxu0 0.0
      %4046 = vmatpush1.msra.mxu0 0.0
      %4047 = vmatprep.subr.mxu0 0.0
      %4048 = vmatpush1.msra.mxu0 0.0
      %4049 = vmatprep.subr.mxu0 0.0
      %4050 = vmatpush1.msra.mxu0 0.0
      %4051 = vmatprep.subr.mxu0 0.0
      %4052 = vmatpush1.msra.mxu0 0.0
      %4053 = vmatprep.subr.mxu0 0.0
      %4054 = vmatpush1.msra.mxu0 0.0
      %4055 = vmatprep.subr.mxu0 0.0
      %4056 = vmatpush1.msra.mxu0 0.0
      %4057 = vmatprep.subr.mxu0 0.0
      %4058 = vmatpush1.msra.mxu0 0.0
      %4059 = vmatprep.subr.mxu0 0.0
      %4060 = vmatpush1.msra.mxu0 0.0
      %4061 = vmatprep.subr.mxu0 0.0
      %4062 = vmatpush1.msra.mxu0 0.0
      %4063 = vmatprep.subr.mxu0 0.0
      %4064 = vmatpush1.msra.mxu0 0.0
      %4065 = vmatprep.subr.mxu0 0.0
      %4066 = vmatpush1.msra.mxu0 0.0
      %4067 = vmatprep.subr.mxu0 0.0
      %4068 = vmatpush1.msra.mxu0 0.0
      %4069 = vmatprep.subr.mxu0 0.0
      %4070 = vmatpush1.msra.mxu0 0.0
      %4071 = vmatprep.subr.mxu0 0.0
      %4072 = vmatpush1.msra.mxu0 0.0
      %4073 = vmatprep.subr.mxu0 0.0
      %4074 = vmatpush1.msra.mxu0 0.0
      %4075 = vmatprep.subr.mxu0 0.0
      %4076 = vmatpush1.msra.mxu0 0.0
      %4077 = vmatprep.subr.mxu0 0.0
      %4078 = vmatpush1.msra.mxu0 0.0
      %4079 = vmatprep.subr.mxu0 0.0
      %4080 = vmatpush1.msra.mxu0 0.0
      %4081 = vmatprep.subr.mxu0 0.0
      %4082 = vmatpush1.msra.mxu0 0.0
      %4083 = vmatprep.subr.mxu0 0.0
      %4084 = vmatpush1.msra.mxu0 0.0
      %4085 = vmatprep.subr.mxu0 0.0
      %4086 = vmatpush1.msra.mxu0 0.0
      %4087 = vmatprep.subr.mxu0 0.0
      %4088 = vmatpush1.msra.mxu0 0.0
      %4089 = vmatprep.subr.mxu0 0.0
      %4090 = vmatpush1.msra.mxu0 0.0
      %4091 = vmatprep.mubr.f32.mxu0 0.0
      %4092 = vmatmul.mubr.f32.gmra.mrb[0].mxu0 %v3891
      %v4093 = vpop.f32.mrb[0].mxu0
      %v4094 = vadd.f32 0.0, %v4093
      %v4095 = vpop.f32.mrb[0].mxu0
      %4096 = vmatprep.mubr.f32.mxu0 0.0
      %4097 = vmatmul.mubr.f32.gmra.mrb[0].mxu0 %v3894
      %v4098 = vpop.f32.mrb[0].mxu0
      %v4099 = vadd.f32 0.0, %v4098
      %v4100 = vpop.f32.mrb[0].mxu0
      %4101 = vmatprep.mubr.f32.mxu0 0.0
      %4102 = vmatmul.mubr.f32.gmra.mrb[0].mxu0 %v3897
      %v4103 = vpop.f32.mrb[0].mxu0
      %v4104 = vadd.f32 0.0, %v4103
      %v4105 = vpop.f32.mrb[0].mxu0
      %4106 = vmatprep.mubr.f32.mxu0 0.0
      %4107 = vmatmul.mubr.f32.gmra.mrb[0].mxu0 %v3900
      %v4108 = vpop.f32.mrb[0].mxu0
      %v4109 = vadd.f32 0.0, %v4108
      %v4110 = vpop.f32.mrb[0].mxu0
      %4111 = vmatprep.mubr.f32.mxu0 0.0
      %4112 = vmatmul.mubr.f32.gmra.mrb[0].mxu0 %v3903
      %v4113 = vpop.f32.mrb[0].mxu0
      %v4114 = vadd.f32 0.0, %v4113
      %v4115 = vpop.f32.mrb[0].mxu0
      %4116 = vmatprep.mubr.f32.mxu0 0.0
      %4117 = vmatmul.mubr.f32.gmra.mrb[0].mxu0 %v3906
      %v4118 = vpop.f32.mrb[0].mxu0
      %v4119 = vadd.f32 0.0, %v4118
      %v4120 = vpop.f32.mrb[0].mxu0
      %4121 = vmatprep.mubr.f32.mxu0 0.0
      %4122 = vmatmul.mubr.f32.gmra.mrb[0].mxu0 %v3909
      %v4123 = vpop.f32.mrb[0].mxu0
      %v4124 = vadd.f32 0.0, %v4123
      %v4125 = vpop.f32.mrb[0].mxu0
      %4126 = vmatprep.mubr.f32.mxu0 0.0
      %4127 = vmatmul.mubr.f32.gmra.mrb[0].mxu0 %v3912
      %v4128 = vpop.f32.mrb[0].mxu0
      %v4129 = vadd.f32 0.0, %v4128
      %v4130 = vpop.f32.mrb[0].mxu0
      %4131 = vdwg.mxu0
      %v4132 = vadd.f32 %v3874, %v4094
      %v4133 = vadd.f32 %v3875, %v4099
      %v4134 = vadd.f32 %v3876, %v4104
      %v4135 = vadd.f32 %v3877, %v4109
      %v4136 = vadd.f32 %v3878, %v4114
      %v4137 = vadd.f32 %v3879, %v4119
      %v4138 = vadd.f32 %v3880, %v4124
      %v4139 = vadd.f32 %v3881, %v4129
      %v4140 = vld [vmem:[%s1250 + $0x9] sm:$0xff]
      %v4141 = vld [vmem:[%s1250 + $0x21] sm:$0xff]
      %v4142 = vld [vmem:[%s1250 + $0x39] sm:$0xff]
      %v4143 = vld [vmem:[%s1250 + $0x51] sm:$0xff]
      %v4144 = vld [vmem:[%s1250 + $0x69] sm:$0xff]
      %v4145 = vld [vmem:[%s1250 + $0x81] sm:$0xff]
      %v4146 = vld [vmem:[%s1250 + $0x99] sm:$0xff]
      %v4147 = vld [vmem:[%s1250 + $0xb1] sm:$0xff]
      %v4149 = vsel %vm1041, %v4140, 0
      %v4152 = vsel %vm1041, %v4141, 0
      %v4155 = vsel %vm1041, %v4142, 0
      %v4158 = vsel %vm1041, %v4143, 0
      %v4161 = vsel %vm1041, %v4144, 0
      %v4164 = vsel %vm1041, %v4145, 0
      %v4167 = vsel %vm1041, %v4146, 0
      %v4170 = vsel %vm1041, %v4147, 0
      %4172 = vmatprep.subr.mxu0 0.0
      %4173 = vmatpush1.msra.mxu0 %v2068
      %4174 = vmatprep.subr.mxu0 0.0
      %4175 = vmatpush1.msra.mxu0 %v2069
      %4176 = vmatprep.subr.mxu0 0.0
      %4177 = vmatpush1.msra.mxu0 %v2070
      %4178 = vmatprep.subr.mxu0 0.0
      %4179 = vmatpush1.msra.mxu0 %v2071
      %4180 = vmatprep.subr.mxu0 0.0
      %4181 = vmatpush1.msra.mxu0 0.0
      %4182 = vmatprep.subr.mxu0 0.0
      %4183 = vmatpush1.msra.mxu0 0.0
      %4184 = vmatprep.subr.mxu0 0.0
      %4185 = vmatpush1.msra.mxu0 0.0
      %4186 = vmatprep.subr.mxu0 0.0
      %4187 = vmatpush1.msra.mxu0 0.0
      %4188 = vmatprep.subr.mxu0 0.0
      %4189 = vmatpush1.msra.mxu0 0.0
      %4190 = vmatprep.subr.mxu0 0.0
      %4191 = vmatpush1.msra.mxu0 0.0
      %4192 = vmatprep.subr.mxu0 0.0
      %4193 = vmatpush1.msra.mxu0 0.0
      %4194 = vmatprep.subr.mxu0 0.0
      %4195 = vmatpush1.msra.mxu0 0.0
      %4196 = vmatprep.subr.mxu0 0.0
      %4197 = vmatpush1.msra.mxu0 0.0
      %4198 = vmatprep.subr.mxu0 0.0
      %4199 = vmatpush1.msra.mxu0 0.0
      %4200 = vmatprep.subr.mxu0 0.0
      %4201 = vmatpush1.msra.mxu0 0.0
      %4202 = vmatprep.subr.mxu0 0.0
      %4203 = vmatpush1.msra.mxu0 0.0
      %4204 = vmatprep.subr.mxu0 0.0
      %4205 = vmatpush1.msra.mxu0 0.0
      %4206 = vmatprep.subr.mxu0 0.0
      %4207 = vmatpush1.msra.mxu0 0.0
      %4208 = vmatprep.subr.mxu0 0.0
      %4209 = vmatpush1.msra.mxu0 0.0
      %4210 = vmatprep.subr.mxu0 0.0
      %4211 = vmatpush1.msra.mxu0 0.0
      %4212 = vmatprep.subr.mxu0 0.0
      %4213 = vmatpush1.msra.mxu0 0.0
      %4214 = vmatprep.subr.mxu0 0.0
      %4215 = vmatpush1.msra.mxu0 0.0
      %4216 = vmatprep.subr.mxu0 0.0
      %4217 = vmatpush1.msra.mxu0 0.0
      %4218 = vmatprep.subr.mxu0 0.0
      %4219 = vmatpush1.msra.mxu0 0.0
      %4220 = vmatprep.subr.mxu0 0.0
      %4221 = vmatpush1.msra.mxu0 0.0
      %4222 = vmatprep.subr.mxu0 0.0
      %4223 = vmatpush1.msra.mxu0 0.0
      %4224 = vmatprep.subr.mxu0 0.0
      %4225 = vmatpush1.msra.mxu0 0.0
      %4226 = vmatprep.subr.mxu0 0.0
      %4227 = vmatpush1.msra.mxu0 0.0
      %4228 = vmatprep.subr.mxu0 0.0
      %4229 = vmatpush1.msra.mxu0 0.0
      %4230 = vmatprep.subr.mxu0 0.0
      %4231 = vmatpush1.msra.mxu0 0.0
      %4232 = vmatprep.subr.mxu0 0.0
      %4233 = vmatpush1.msra.mxu0 0.0
      %4234 = vmatprep.subr.mxu0 0.0
      %4235 = vmatpush1.msra.mxu0 0.0
      %4236 = vmatprep.mubr.f32.mxu0 0.0
      %4237 = vmatmul.mubr.f32.gmra.mrb[0].mxu0 %v4149
      %v4238 = vpop.f32.mrb[0].mxu0
      %v4239 = vadd.f32 0.0, %v4238
      %v4240 = vpop.f32.mrb[0].mxu0
      %4241 = vmatprep.mubr.f32.mxu0 0.0
      %4242 = vmatmul.mubr.f32.gmra.mrb[0].mxu0 %v4152
      %v4243 = vpop.f32.mrb[0].mxu0
      %v4244 = vadd.f32 0.0, %v4243
      %v4245 = vpop.f32.mrb[0].mxu0
      %4246 = vmatprep.mubr.f32.mxu0 0.0
      %4247 = vmatmul.mubr.f32.gmra.mrb[0].mxu0 %v4155
      %v4248 = vpop.f32.mrb[0].mxu0
      %v4249 = vadd.f32 0.0, %v4248
      %v4250 = vpop.f32.mrb[0].mxu0
      %4251 = vmatprep.mubr.f32.mxu0 0.0
      %4252 = vmatmul.mubr.f32.gmra.mrb[0].mxu0 %v4158
      %v4253 = vpop.f32.mrb[0].mxu0
      %v4254 = vadd.f32 0.0, %v4253
      %v4255 = vpop.f32.mrb[0].mxu0
      %4256 = vmatprep.mubr.f32.mxu0 0.0
      %4257 = vmatmul.mubr.f32.gmra.mrb[0].mxu0 %v4161
      %v4258 = vpop.f32.mrb[0].mxu0
      %v4259 = vadd.f32 0.0, %v4258
      %v4260 = vpop.f32.mrb[0].mxu0
      %4261 = vmatprep.mubr.f32.mxu0 0.0
      %4262 = vmatmul.mubr.f32.gmra.mrb[0].mxu0 %v4164
      %v4263 = vpop.f32.mrb[0].mxu0
      %v4264 = vadd.f32 0.0, %v4263
      %v4265 = vpop.f32.mrb[0].mxu0
      %4266 = vmatprep.mubr.f32.mxu0 0.0
      %4267 = vmatmul.mubr.f32.gmra.mrb[0].mxu0 %v4167
      %v4268 = vpop.f32.mrb[0].mxu0
      %v4269 = vadd.f32 0.0, %v4268
      %v4270 = vpop.f32.mrb[0].mxu0
      %4271 = vmatprep.mubr.f32.mxu0 0.0
      %4272 = vmatmul.mubr.f32.gmra.mrb[0].mxu0 %v4170
      %v4273 = vpop.f32.mrb[0].mxu0
      %v4274 = vadd.f32 0.0, %v4273
      %v4275 = vpop.f32.mrb[0].mxu0
      %4276 = vdwg.mxu0
      %v4277 = vadd.f32 %v4019, %v4239
      %v4278 = vadd.f32 %v4020, %v4244
      %v4279 = vadd.f32 %v4021, %v4249
      %v4280 = vadd.f32 %v4022, %v4254
      %v4281 = vadd.f32 %v4023, %v4259
      %v4282 = vadd.f32 %v4024, %v4264
      %v4283 = vadd.f32 %v4025, %v4269
      %v4284 = vadd.f32 %v4026, %v4274
      %4285 = vmatprep.subr.mxu0 0.0
      %4286 = vmatpush1.msra.mxu0 %v2104
      %4287 = vmatprep.subr.mxu0 0.0
      %4288 = vmatpush1.msra.mxu0 %v2105
      %4289 = vmatprep.subr.mxu0 0.0
      %4290 = vmatpush1.msra.mxu0 %v2106
      %4291 = vmatprep.subr.mxu0 0.0
      %4292 = vmatpush1.msra.mxu0 %v2107
      %4293 = vmatprep.subr.mxu0 0.0
      %4294 = vmatpush1.msra.mxu0 0.0
      %4295 = vmatprep.subr.mxu0 0.0
      %4296 = vmatpush1.msra.mxu0 0.0
      %4297 = vmatprep.subr.mxu0 0.0
      %4298 = vmatpush1.msra.mxu0 0.0
      %4299 = vmatprep.subr.mxu0 0.0
      %4300 = vmatpush1.msra.mxu0 0.0
      %4301 = vmatprep.subr.mxu0 0.0
      %4302 = vmatpush1.msra.mxu0 0.0
      %4303 = vmatprep.subr.mxu0 0.0
      %4304 = vmatpush1.msra.mxu0 0.0
      %4305 = vmatprep.subr.mxu0 0.0
      %4306 = vmatpush1.msra.mxu0 0.0
      %4307 = vmatprep.subr.mxu0 0.0
      %4308 = vmatpush1.msra.mxu0 0.0
      %4309 = vmatprep.subr.mxu0 0.0
      %4310 = vmatpush1.msra.mxu0 0.0
      %4311 = vmatprep.subr.mxu0 0.0
      %4312 = vmatpush1.msra.mxu0 0.0
      %4313 = vmatprep.subr.mxu0 0.0
      %4314 = vmatpush1.msra.mxu0 0.0
      %4315 = vmatprep.subr.mxu0 0.0
      %4316 = vmatpush1.msra.mxu0 0.0
      %4317 = vmatprep.subr.mxu0 0.0
      %4318 = vmatpush1.msra.mxu0 0.0
      %4319 = vmatprep.subr.mxu0 0.0
      %4320 = vmatpush1.msra.mxu0 0.0
      %4321 = vmatprep.subr.mxu0 0.0
      %4322 = vmatpush1.msra.mxu0 0.0
      %4323 = vmatprep.subr.mxu0 0.0
      %4324 = vmatpush1.msra.mxu0 0.0
      %4325 = vmatprep.subr.mxu0 0.0
      %4326 = vmatpush1.msra.mxu0 0.0
      %4327 = vmatprep.subr.mxu0 0.0
      %4328 = vmatpush1.msra.mxu0 0.0
      %4329 = vmatprep.subr.mxu0 0.0
      %4330 = vmatpush1.msra.mxu0 0.0
      %4331 = vmatprep.subr.mxu0 0.0
      %4332 = vmatpush1.msra.mxu0 0.0
      %4333 = vmatprep.subr.mxu0 0.0
      %4334 = vmatpush1.msra.mxu0 0.0
      %4335 = vmatprep.subr.mxu0 0.0
      %4336 = vmatpush1.msra.mxu0 0.0
      %4337 = vmatprep.subr.mxu0 0.0
      %4338 = vmatpush1.msra.mxu0 0.0
      %4339 = vmatprep.subr.mxu0 0.0
      %4340 = vmatpush1.msra.mxu0 0.0
      %4341 = vmatprep.subr.mxu0 0.0
      %4342 = vmatpush1.msra.mxu0 0.0
      %4343 = vmatprep.subr.mxu0 0.0
      %4344 = vmatpush1.msra.mxu0 0.0
      %4345 = vmatprep.subr.mxu0 0.0
      %4346 = vmatpush1.msra.mxu0 0.0
      %4347 = vmatprep.subr.mxu0 0.0
      %4348 = vmatpush1.msra.mxu0 0.0
      %4349 = vmatprep.mubr.f32.mxu0 0.0
      %4350 = vmatmul.mubr.f32.gmra.mrb[0].mxu0 %v4149
      %v4351 = vpop.f32.mrb[0].mxu0
      %v4352 = vadd.f32 0.0, %v4351
      %v4353 = vpop.f32.mrb[0].mxu0
      %4354 = vmatprep.mubr.f32.mxu0 0.0
      %4355 = vmatmul.mubr.f32.gmra.mrb[0].mxu0 %v4152
      %v4356 = vpop.f32.mrb[0].mxu0
      %v4357 = vadd.f32 0.0, %v4356
      %v4358 = vpop.f32.mrb[0].mxu0
      %4359 = vmatprep.mubr.f32.mxu0 0.0
      %4360 = vmatmul.mubr.f32.gmra.mrb[0].mxu0 %v4155
      %v4361 = vpop.f32.mrb[0].mxu0
      %v4362 = vadd.f32 0.0, %v4361
      %v4363 = vpop.f32.mrb[0].mxu0
      %4364 = vmatprep.mubr.f32.mxu0 0.0
      %4365 = vmatmul.mubr.f32.gmra.mrb[0].mxu0 %v4158
      %v4366 = vpop.f32.mrb[0].mxu0
      %v4367 = vadd.f32 0.0, %v4366
      %v4368 = vpop.f32.mrb[0].mxu0
      %4369 = vmatprep.mubr.f32.mxu0 0.0
      %4370 = vmatmul.mubr.f32.gmra.mrb[0].mxu0 %v4161
      %v4371 = vpop.f32.mrb[0].mxu0
      %v4372 = vadd.f32 0.0, %v4371
      %v4373 = vpop.f32.mrb[0].mxu0
      %4374 = vmatprep.mubr.f32.mxu0 0.0
      %4375 = vmatmul.mubr.f32.gmra.mrb[0].mxu0 %v4164
      %v4376 = vpop.f32.mrb[0].mxu0
      %v4377 = vadd.f32 0.0, %v4376
      %v4378 = vpop.f32.mrb[0].mxu0
      %4379 = vmatprep.mubr.f32.mxu0 0.0
      %4380 = vmatmul.mubr.f32.gmra.mrb[0].mxu0 %v4167
      %v4381 = vpop.f32.mrb[0].mxu0
      %v4382 = vadd.f32 0.0, %v4381
      %v4383 = vpop.f32.mrb[0].mxu0
      %4384 = vmatprep.mubr.f32.mxu0 0.0
      %4385 = vmatmul.mubr.f32.gmra.mrb[0].mxu0 %v4170
      %v4386 = vpop.f32.mrb[0].mxu0
      %v4387 = vadd.f32 0.0, %v4386
      %v4388 = vpop.f32.mrb[0].mxu0
      %4389 = vdwg.mxu0
      %v4390 = vadd.f32 %v4132, %v4352
      %v4391 = vadd.f32 %v4133, %v4357
      %v4392 = vadd.f32 %v4134, %v4362
      %v4393 = vadd.f32 %v4135, %v4367
      %v4394 = vadd.f32 %v4136, %v4372
      %v4395 = vadd.f32 %v4137, %v4377
      %v4396 = vadd.f32 %v4138, %v4382
      %v4397 = vadd.f32 %v4139, %v4387
      %v4398 = vld [vmem:[#allocation3] sm:$0x1]
      %v4400 = vlaneseq
      %v4401 = vshrl.u32 %v4400, 7
      %v4402 = vsub.s32 0, %v4401
      %v4403 = vrot.slane %v4398, %v4402
      %v4405 = vadd.f32 %v4277, %v4403
      %v4406 = vadd.f32 %v4278, %v4403
      %v4407 = vadd.f32 %v4279, %v4403
      %v4408 = vadd.f32 %v4280, %v4403
      %v4409 = vadd.f32 %v4281, %v4403
      %v4410 = vadd.f32 %v4282, %v4403
      %v4411 = vadd.f32 %v4283, %v4403
      %v4412 = vadd.f32 %v4284, %v4403
      %v4413 = vld [vmem:[#allocation4] sm:$0x1]
      %v4415 = vlaneseq
      %v4416 = vshrl.u32 %v4415, 7
      %v4417 = vsub.s32 0, %v4416
      %v4418 = vrot.slane %v4413, %v4417
      %v4420 = vadd.f32 %v4390, %v4418
      %v4421 = vadd.f32 %v4391, %v4418
      %v4422 = vadd.f32 %v4392, %v4418
      %v4423 = vadd.f32 %v4393, %v4418
      %v4424 = vadd.f32 %v4394, %v4418
      %v4425 = vadd.f32 %v4395, %v4418
      %v4426 = vadd.f32 %v4396, %v4418
      %v4427 = vadd.f32 %v4397, %v4418
      %v4428 = vld [vmem:[%s4] sm:$0xff]
      %v4429 = vld [vmem:[%s4 + $0x8] sm:$0xff]
      %v4430 = vld [vmem:[%s4 + $0x10] sm:$0xff]
      %v4431 = vld [vmem:[%s4 + $0x18] sm:$0xff]
      %v4432 = vld [vmem:[%s4 + $0x20] sm:$0xff]
      %v4433 = vld [vmem:[%s4 + $0x28] sm:$0xff]
      %v4434 = vld [vmem:[%s4 + $0x30] sm:$0xff]
      %v4435 = vld [vmem:[%s4 + $0x38] sm:$0xff]
      %v4436 = vld [vmem:[%s4 + $0x40] sm:$0xff]
      %v4437 = vld [vmem:[%s4 + $0x48] sm:$0xff]
      %v4438 = vld [vmem:[%s4 + $0x50] sm:$0xff]
      %v4439 = vld [vmem:[%s4 + $0x58] sm:$0xff]
      %v4440 = vld [vmem:[%s4 + $0x60] sm:$0xff]
      %v4441 = vld [vmem:[%s4 + $0x68] sm:$0xff]
      %v4442 = vld [vmem:[%s4 + $0x70] sm:$0xff]
      %v4443 = vld [vmem:[%s4 + $0x78] sm:$0xff]
      %v4444 = vld [vmem:[%s4 + $0x80] sm:$0xff]
      %v4445 = vld [vmem:[%s4 + $0x88] sm:$0xff]
      %v4446 = vld [vmem:[%s4 + $0x90] sm:$0xff]
      %v4447 = vld [vmem:[%s4 + $0x98] sm:$0xff]
      %v4448 = vld [vmem:[%s4 + $0xa0] sm:$0xff]
      %v4449 = vld [vmem:[%s4 + $0xa8] sm:$0xff]
      %v4450 = vld [vmem:[%s4 + $0xb0] sm:$0xff]
      %v4451 = vld [vmem:[%s4 + $0xb8] sm:$0xff]
      %v4452 = vld [vmem:[%s4 + $0xc0] sm:$0xff]
      %v4453 = vld [vmem:[%s4 + $0xc8] sm:$0xff]
      %v4454 = vld [vmem:[%s4 + $0xd0] sm:$0xff]
      %v4455 = vld [vmem:[%s4 + $0xd8] sm:$0xff]
      %v4456 = vld [vmem:[%s4 + $0xe0] sm:$0xff]
      %v4457 = vld [vmem:[%s4 + $0xe8] sm:$0xff]
      %v4458 = vld [vmem:[%s4 + $0xf0] sm:$0xff]
      %v4459 = vld [vmem:[%s4 + $0xf8] sm:$0xff]
      %vm4460 = vcmask 523264
      %v4462 = vsel %vm4460, %v4428, 0
      %v4465 = vsel %vm4460, %v4429, 0
      %v4468 = vsel %vm4460, %v4430, 0
      %v4471 = vsel %vm4460, %v4431, 0
      %v4474 = vsel %vm4460, %v4432, 0
      %v4477 = vsel %vm4460, %v4433, 0
      %v4480 = vsel %vm4460, %v4434, 0
      %v4483 = vsel %vm4460, %v4435, 0
      %v4486 = vsel %vm4460, %v4436, 0
      %v4489 = vsel %vm4460, %v4437, 0
      %v4492 = vsel %vm4460, %v4438, 0
      %v4495 = vsel %vm4460, %v4439, 0
      %v4498 = vsel %vm4460, %v4440, 0
      %v4501 = vsel %vm4460, %v4441, 0
      %v4504 = vsel %vm4460, %v4442, 0
      %v4507 = vsel %vm4460, %v4443, 0
      %v4510 = vsel %vm4460, %v4444, 0
      %v4513 = vsel %vm4460, %v4445, 0
      %v4516 = vsel %vm4460, %v4446, 0
      %v4519 = vsel %vm4460, %v4447, 0
      %v4522 = vsel %vm4460, %v4448, 0
      %v4525 = vsel %vm4460, %v4449, 0
      %v4528 = vsel %vm4460, %v4450, 0
      %v4531 = vsel %vm4460, %v4451, 0
      %v4534 = vsel %vm4460, %v4452, 0
      %v4537 = vsel %vm4460, %v4453, 0
      %v4540 = vsel %vm4460, %v4454, 0
      %v4543 = vsel %vm4460, %v4455, 0
      %v4546 = vsel %vm4460, %v4456, 0
      %v4549 = vsel %vm4460, %v4457, 0
      %v4552 = vsel %vm4460, %v4458, 0
      %v4555 = vsel %vm4460, %v4459, 0
      %4557 = vmatprep.subr.mxu0 0.0
      %4558 = vmatpush1.msra.mxu0 %v4405
      %4559 = vmatprep.subr.mxu0 0.0
      %4560 = vmatpush1.msra.mxu0 %v4406
      %4561 = vmatprep.subr.mxu0 0.0
      %4562 = vmatpush1.msra.mxu0 %v4407
      %4563 = vmatprep.subr.mxu0 0.0
      %4564 = vmatpush1.msra.mxu0 %v4408
      %4565 = vmatprep.subr.mxu0 0.0
      %4566 = vmatpush1.msra.mxu0 %v4409
      %4567 = vmatprep.subr.mxu0 0.0
      %4568 = vmatpush1.msra.mxu0 %v4410
      %4569 = vmatprep.subr.mxu0 0.0
      %4570 = vmatpush1.msra.mxu0 %v4411
      %4571 = vmatprep.subr.mxu0 0.0
      %4572 = vmatpush1.msra.mxu0 %v4412
      %4573 = vmatprep.subr.mxu0 0.0
      %4574 = vmatpush1.msra.mxu0 0.0
      %4575 = vmatprep.subr.mxu0 0.0
      %4576 = vmatpush1.msra.mxu0 0.0
      %4577 = vmatprep.subr.mxu0 0.0
      %4578 = vmatpush1.msra.mxu0 0.0
      %4579 = vmatprep.subr.mxu0 0.0
      %4580 = vmatpush1.msra.mxu0 0.0
      %4581 = vmatprep.subr.mxu0 0.0
      %4582 = vmatpush1.msra.mxu0 0.0
      %4583 = vmatprep.subr.mxu0 0.0
      %4584 = vmatpush1.msra.mxu0 0.0
      %4585 = vmatprep.subr.mxu0 0.0
      %4586 = vmatpush1.msra.mxu0 0.0
      %4587 = vmatprep.subr.mxu0 0.0
      %4588 = vmatpush1.msra.mxu0 0.0
      %4589 = vmatprep.subr.mxu0 0.0
      %4590 = vmatpush1.msra.mxu0 0.0
      %4591 = vmatprep.subr.mxu0 0.0
      %4592 = vmatpush1.msra.mxu0 0.0
      %4593 = vmatprep.subr.mxu0 0.0
      %4594 = vmatpush1.msra.mxu0 0.0
      %4595 = vmatprep.subr.mxu0 0.0
      %4596 = vmatpush1.msra.mxu0 0.0
      %4597 = vmatprep.subr.mxu0 0.0
      %4598 = vmatpush1.msra.mxu0 0.0
      %4599 = vmatprep.subr.mxu0 0.0
      %4600 = vmatpush1.msra.mxu0 0.0
      %4601 = vmatprep.subr.mxu0 0.0
      %4602 = vmatpush1.msra.mxu0 0.0
      %4603 = vmatprep.subr.mxu0 0.0
      %4604 = vmatpush1.msra.mxu0 0.0
      %4605 = vmatprep.subr.mxu0 0.0
      %4606 = vmatpush1.msra.mxu0 0.0
      %4607 = vmatprep.subr.mxu0 0.0
      %4608 = vmatpush1.msra.mxu0 0.0
      %4609 = vmatprep.subr.mxu0 0.0
      %4610 = vmatpush1.msra.mxu0 0.0
      %4611 = vmatprep.subr.mxu0 0.0
      %4612 = vmatpush1.msra.mxu0 0.0
      %4613 = vmatprep.subr.mxu0 0.0
      %4614 = vmatpush1.msra.mxu0 0.0
      %4615 = vmatprep.subr.mxu0 0.0
      %4616 = vmatpush1.msra.mxu0 0.0
      %4617 = vmatprep.subr.mxu0 0.0
      %4618 = vmatpush1.msra.mxu0 0.0
      %4619 = vmatprep.subr.mxu0 0.0
      %4620 = vmatpush1.msra.mxu0 0.0
      %4621 = vmatprep.mubr.f32.mxu0 0.0
      %4622 = vmatmul.mubr.f32.gmra.mrb[0].mxu0 %v4462
      %v4623 = vpop.f32.mrb[0].mxu0
      %v4624 = vadd.f32 0.0, %v4623
      %v4625 = vpop.f32.mrb[0].mxu0
      %4626 = vmatprep.mubr.f32.mxu0 0.0
      %4627 = vmatmul.mubr.f32.gmra.mrb[0].mxu0 %v4465
      %v4628 = vpop.f32.mrb[0].mxu0
      %v4629 = vadd.f32 0.0, %v4628
      %v4630 = vpop.f32.mrb[0].mxu0
      %4631 = vmatprep.mubr.f32.mxu0 0.0
      %4632 = vmatmul.mubr.f32.gmra.mrb[0].mxu0 %v4468
      %v4633 = vpop.f32.mrb[0].mxu0
      %v4634 = vadd.f32 0.0, %v4633
      %v4635 = vpop.f32.mrb[0].mxu0
      %4636 = vmatprep.mubr.f32.mxu0 0.0
      %4637 = vmatmul.mubr.f32.gmra.mrb[0].mxu0 %v4471
      %v4638 = vpop.f32.mrb[0].mxu0
      %v4639 = vadd.f32 0.0, %v4638
      %v4640 = vpop.f32.mrb[0].mxu0
      %4641 = vmatprep.mubr.f32.mxu0 0.0
      %4642 = vmatmul.mubr.f32.gmra.mrb[0].mxu0 %v4474
      %v4643 = vpop.f32.mrb[0].mxu0
      %v4644 = vadd.f32 0.0, %v4643
      %v4645 = vpop.f32.mrb[0].mxu0
      %4646 = vmatprep.mubr.f32.mxu0 0.0
      %4647 = vmatmul.mubr.f32.gmra.mrb[0].mxu0 %v4477
      %v4648 = vpop.f32.mrb[0].mxu0
      %v4649 = vadd.f32 0.0, %v4648
      %v4650 = vpop.f32.mrb[0].mxu0
      %4651 = vmatprep.mubr.f32.mxu0 0.0
      %4652 = vmatmul.mubr.f32.gmra.mrb[0].mxu0 %v4480
      %v4653 = vpop.f32.mrb[0].mxu0
      %v4654 = vadd.f32 0.0, %v4653
      %v4655 = vpop.f32.mrb[0].mxu0
      %4656 = vmatprep.mubr.f32.mxu0 0.0
      %4657 = vmatmul.mubr.f32.gmra.mrb[0].mxu0 %v4483
      %v4658 = vpop.f32.mrb[0].mxu0
      %v4659 = vadd.f32 0.0, %v4658
      %v4660 = vpop.f32.mrb[0].mxu0
      %4661 = vmatprep.mubr.f32.mxu0 0.0
      %4662 = vmatmul.mubr.f32.gmra.mrb[0].mxu0 %v4486
      %v4663 = vpop.f32.mrb[0].mxu0
      %v4664 = vadd.f32 0.0, %v4663
      %v4665 = vpop.f32.mrb[0].mxu0
      %4666 = vmatprep.mubr.f32.mxu0 0.0
      %4667 = vmatmul.mubr.f32.gmra.mrb[0].mxu0 %v4489
      %v4668 = vpop.f32.mrb[0].mxu0
      %v4669 = vadd.f32 0.0, %v4668
      %v4670 = vpop.f32.mrb[0].mxu0
      %4671 = vmatprep.mubr.f32.mxu0 0.0
      %4672 = vmatmul.mubr.f32.gmra.mrb[0].mxu0 %v4492
      %v4673 = vpop.f32.mrb[0].mxu0
      %v4674 = vadd.f32 0.0, %v4673
      %v4675 = vpop.f32.mrb[0].mxu0
      %4676 = vmatprep.mubr.f32.mxu0 0.0
      %4677 = vmatmul.mubr.f32.gmra.mrb[0].mxu0 %v4495
      %v4678 = vpop.f32.mrb[0].mxu0
      %v4679 = vadd.f32 0.0, %v4678
      %v4680 = vpop.f32.mrb[0].mxu0
      %4681 = vmatprep.mubr.f32.mxu0 0.0
      %4682 = vmatmul.mubr.f32.gmra.mrb[0].mxu0 %v4498
      %v4683 = vpop.f32.mrb[0].mxu0
      %v4684 = vadd.f32 0.0, %v4683
      %v4685 = vpop.f32.mrb[0].mxu0
      %4686 = vmatprep.mubr.f32.mxu0 0.0
      %4687 = vmatmul.mubr.f32.gmra.mrb[0].mxu0 %v4501
      %v4688 = vpop.f32.mrb[0].mxu0
      %v4689 = vadd.f32 0.0, %v4688
      %v4690 = vpop.f32.mrb[0].mxu0
      %4691 = vmatprep.mubr.f32.mxu0 0.0
      %4692 = vmatmul.mubr.f32.gmra.mrb[0].mxu0 %v4504
      %v4693 = vpop.f32.mrb[0].mxu0
      %v4694 = vadd.f32 0.0, %v4693
      %v4695 = vpop.f32.mrb[0].mxu0
      %4696 = vmatprep.mubr.f32.mxu0 0.0
      %4697 = vmatmul.mubr.f32.gmra.mrb[0].mxu0 %v4507
      %v4698 = vpop.f32.mrb[0].mxu0
      %v4699 = vadd.f32 0.0, %v4698
      %v4700 = vpop.f32.mrb[0].mxu0
      %4701 = vmatprep.mubr.f32.mxu0 0.0
      %4702 = vmatmul.mubr.f32.gmra.mrb[0].mxu0 %v4510
      %v4703 = vpop.f32.mrb[0].mxu0
      %v4704 = vadd.f32 0.0, %v4703
      %v4705 = vpop.f32.mrb[0].mxu0
      %4706 = vmatprep.mubr.f32.mxu0 0.0
      %4707 = vmatmul.mubr.f32.gmra.mrb[0].mxu0 %v4513
      %v4708 = vpop.f32.mrb[0].mxu0
      %v4709 = vadd.f32 0.0, %v4708
      %v4710 = vpop.f32.mrb[0].mxu0
      %4711 = vmatprep.mubr.f32.mxu0 0.0
      %4712 = vmatmul.mubr.f32.gmra.mrb[0].mxu0 %v4516
      %v4713 = vpop.f32.mrb[0].mxu0
      %v4714 = vadd.f32 0.0, %v4713
      %v4715 = vpop.f32.mrb[0].mxu0
      %4716 = vmatprep.mubr.f32.mxu0 0.0
      %4717 = vmatmul.mubr.f32.gmra.mrb[0].mxu0 %v4519
      %v4718 = vpop.f32.mrb[0].mxu0
      %v4719 = vadd.f32 0.0, %v4718
      %v4720 = vpop.f32.mrb[0].mxu0
      %4721 = vmatprep.mubr.f32.mxu0 0.0
      %4722 = vmatmul.mubr.f32.gmra.mrb[0].mxu0 %v4522
      %v4723 = vpop.f32.mrb[0].mxu0
      %v4724 = vadd.f32 0.0, %v4723
      %v4725 = vpop.f32.mrb[0].mxu0
      %4726 = vmatprep.mubr.f32.mxu0 0.0
      %4727 = vmatmul.mubr.f32.gmra.mrb[0].mxu0 %v4525
      %v4728 = vpop.f32.mrb[0].mxu0
      %v4729 = vadd.f32 0.0, %v4728
      %v4730 = vpop.f32.mrb[0].mxu0
      %4731 = vmatprep.mubr.f32.mxu0 0.0
      %4732 = vmatmul.mubr.f32.gmra.mrb[0].mxu0 %v4528
      %v4733 = vpop.f32.mrb[0].mxu0
      %v4734 = vadd.f32 0.0, %v4733
      %v4735 = vpop.f32.mrb[0].mxu0
      %4736 = vmatprep.mubr.f32.mxu0 0.0
      %4737 = vmatmul.mubr.f32.gmra.mrb[0].mxu0 %v4531
      %v4738 = vpop.f32.mrb[0].mxu0
      %v4739 = vadd.f32 0.0, %v4738
      %v4740 = vpop.f32.mrb[0].mxu0
      %4741 = vmatprep.mubr.f32.mxu0 0.0
      %4742 = vmatmul.mubr.f32.gmra.mrb[0].mxu0 %v4534
      %v4743 = vpop.f32.mrb[0].mxu0
      %v4744 = vadd.f32 0.0, %v4743
      %v4745 = vpop.f32.mrb[0].mxu0
      %4746 = vmatprep.mubr.f32.mxu0 0.0
      %4747 = vmatmul.mubr.f32.gmra.mrb[0].mxu0 %v4537
      %v4748 = vpop.f32.mrb[0].mxu0
      %v4749 = vadd.f32 0.0, %v4748
      %v4750 = vpop.f32.mrb[0].mxu0
      %4751 = vmatprep.mubr.f32.mxu0 0.0
      %4752 = vmatmul.mubr.f32.gmra.mrb[0].mxu0 %v4540
      %v4753 = vpop.f32.mrb[0].mxu0
      %v4754 = vadd.f32 0.0, %v4753
      %v4755 = vpop.f32.mrb[0].mxu0
      %4756 = vmatprep.mubr.f32.mxu0 0.0
      %4757 = vmatmul.mubr.f32.gmra.mrb[0].mxu0 %v4543
      %v4758 = vpop.f32.mrb[0].mxu0
      %v4759 = vadd.f32 0.0, %v4758
      %v4760 = vpop.f32.mrb[0].mxu0
      %4761 = vmatprep.mubr.f32.mxu0 0.0
      %4762 = vmatmul.mubr.f32.gmra.mrb[0].mxu0 %v4546
      %v4763 = vpop.f32.mrb[0].mxu0
      %v4764 = vadd.f32 0.0, %v4763
      %v4765 = vpop.f32.mrb[0].mxu0
      %4766 = vmatprep.mubr.f32.mxu0 0.0
      %4767 = vmatmul.mubr.f32.gmra.mrb[0].mxu0 %v4549
      %v4768 = vpop.f32.mrb[0].mxu0
      %v4769 = vadd.f32 0.0, %v4768
      %v4770 = vpop.f32.mrb[0].mxu0
      %4771 = vmatprep.mubr.f32.mxu0 0.0
      %4772 = vmatmul.mubr.f32.gmra.mrb[0].mxu0 %v4552
      %v4773 = vpop.f32.mrb[0].mxu0
      %v4774 = vadd.f32 0.0, %v4773
      %v4775 = vpop.f32.mrb[0].mxu0
      %4776 = vmatprep.mubr.f32.mxu0 0.0
      %4777 = vmatmul.mubr.f32.gmra.mrb[0].mxu0 %v4555
      %v4778 = vpop.f32.mrb[0].mxu0
      %v4779 = vadd.f32 0.0, %v4778
      %v4780 = vpop.f32.mrb[0].mxu0
      %4781 = vdwg.mxu0
      %4782 = vmatprep.subr.mxu0 0.0
      %4783 = vmatpush1.msra.mxu0 %v4420
      %4784 = vmatprep.subr.mxu0 0.0
      %4785 = vmatpush1.msra.mxu0 %v4421
      %4786 = vmatprep.subr.mxu0 0.0
      %4787 = vmatpush1.msra.mxu0 %v4422
      %4788 = vmatprep.subr.mxu0 0.0
      %4789 = vmatpush1.msra.mxu0 %v4423
      %4790 = vmatprep.subr.mxu0 0.0
      %4791 = vmatpush1.msra.mxu0 %v4424
      %4792 = vmatprep.subr.mxu0 0.0
      %4793 = vmatpush1.msra.mxu0 %v4425
      %4794 = vmatprep.subr.mxu0 0.0
      %4795 = vmatpush1.msra.mxu0 %v4426
      %4796 = vmatprep.subr.mxu0 0.0
      %4797 = vmatpush1.msra.mxu0 %v4427
      %4798 = vmatprep.subr.mxu0 0.0
      %4799 = vmatpush1.msra.mxu0 0.0
      %4800 = vmatprep.subr.mxu0 0.0
      %4801 = vmatpush1.msra.mxu0 0.0
      %4802 = vmatprep.subr.mxu0 0.0
      %4803 = vmatpush1.msra.mxu0 0.0
      %4804 = vmatprep.subr.mxu0 0.0
      %4805 = vmatpush1.msra.mxu0 0.0
      %4806 = vmatprep.subr.mxu0 0.0
      %4807 = vmatpush1.msra.mxu0 0.0
      %4808 = vmatprep.subr.mxu0 0.0
      %4809 = vmatpush1.msra.mxu0 0.0
      %4810 = vmatprep.subr.mxu0 0.0
      %4811 = vmatpush1.msra.mxu0 0.0
      %4812 = vmatprep.subr.mxu0 0.0
      %4813 = vmatpush1.msra.mxu0 0.0
      %4814 = vmatprep.subr.mxu0 0.0
      %4815 = vmatpush1.msra.mxu0 0.0
      %4816 = vmatprep.subr.mxu0 0.0
      %4817 = vmatpush1.msra.mxu0 0.0
      %4818 = vmatprep.subr.mxu0 0.0
      %4819 = vmatpush1.msra.mxu0 0.0
      %4820 = vmatprep.subr.mxu0 0.0
      %4821 = vmatpush1.msra.mxu0 0.0
      %4822 = vmatprep.subr.mxu0 0.0
      %4823 = vmatpush1.msra.mxu0 0.0
      %4824 = vmatprep.subr.mxu0 0.0
      %4825 = vmatpush1.msra.mxu0 0.0
      %4826 = vmatprep.subr.mxu0 0.0
      %4827 = vmatpush1.msra.mxu0 0.0
      %4828 = vmatprep.subr.mxu0 0.0
      %4829 = vmatpush1.msra.mxu0 0.0
      %4830 = vmatprep.subr.mxu0 0.0
      %4831 = vmatpush1.msra.mxu0 0.0
      %4832 = vmatprep.subr.mxu0 0.0
      %4833 = vmatpush1.msra.mxu0 0.0
      %4834 = vmatprep.subr.mxu0 0.0
      %4835 = vmatpush1.msra.mxu0 0.0
      %4836 = vmatprep.subr.mxu0 0.0
      %4837 = vmatpush1.msra.mxu0 0.0
      %4838 = vmatprep.subr.mxu0 0.0
      %4839 = vmatpush1.msra.mxu0 0.0
      %4840 = vmatprep.subr.mxu0 0.0
      %4841 = vmatpush1.msra.mxu0 0.0
      %4842 = vmatprep.subr.mxu0 0.0
      %4843 = vmatpush1.msra.mxu0 0.0
      %4844 = vmatprep.subr.mxu0 0.0
      %4845 = vmatpush1.msra.mxu0 0.0
      %4846 = vmatprep.mubr.f32.mxu0 0.0
      %4847 = vmatmul.mubr.f32.gmra.mrb[0].mxu0 %v4462
      %v4848 = vpop.f32.mrb[0].mxu0
      %v4849 = vadd.f32 0.0, %v4848
      %v4850 = vpop.f32.mrb[0].mxu0
      %4851 = vmatprep.mubr.f32.mxu0 0.0
      %4852 = vmatmul.mubr.f32.gmra.mrb[0].mxu0 %v4465
      %v4853 = vpop.f32.mrb[0].mxu0
      %v4854 = vadd.f32 0.0, %v4853
      %v4855 = vpop.f32.mrb[0].mxu0
      %4856 = vmatprep.mubr.f32.mxu0 0.0
      %4857 = vmatmul.mubr.f32.gmra.mrb[0].mxu0 %v4468
      %v4858 = vpop.f32.mrb[0].mxu0
      %v4859 = vadd.f32 0.0, %v4858
      %v4860 = vpop.f32.mrb[0].mxu0
      %4861 = vmatprep.mubr.f32.mxu0 0.0
      %4862 = vmatmul.mubr.f32.gmra.mrb[0].mxu0 %v4471
      %v4863 = vpop.f32.mrb[0].mxu0
      %v4864 = vadd.f32 0.0, %v4863
      %v4865 = vpop.f32.mrb[0].mxu0
      %4866 = vmatprep.mubr.f32.mxu0 0.0
      %4867 = vmatmul.mubr.f32.gmra.mrb[0].mxu0 %v4474
      %v4868 = vpop.f32.mrb[0].mxu0
      %v4869 = vadd.f32 0.0, %v4868
      %v4870 = vpop.f32.mrb[0].mxu0
      %4871 = vmatprep.mubr.f32.mxu0 0.0
      %4872 = vmatmul.mubr.f32.gmra.mrb[0].mxu0 %v4477
      %v4873 = vpop.f32.mrb[0].mxu0
      %v4874 = vadd.f32 0.0, %v4873
      %v4875 = vpop.f32.mrb[0].mxu0
      %4876 = vmatprep.mubr.f32.mxu0 0.0
      %4877 = vmatmul.mubr.f32.gmra.mrb[0].mxu0 %v4480
      %v4878 = vpop.f32.mrb[0].mxu0
      %v4879 = vadd.f32 0.0, %v4878
      %v4880 = vpop.f32.mrb[0].mxu0
      %4881 = vmatprep.mubr.f32.mxu0 0.0
      %4882 = vmatmul.mubr.f32.gmra.mrb[0].mxu0 %v4483
      %v4883 = vpop.f32.mrb[0].mxu0
      %v4884 = vadd.f32 0.0, %v4883
      %v4885 = vpop.f32.mrb[0].mxu0
      %4886 = vmatprep.mubr.f32.mxu0 0.0
      %4887 = vmatmul.mubr.f32.gmra.mrb[0].mxu0 %v4486
      %v4888 = vpop.f32.mrb[0].mxu0
      %v4889 = vadd.f32 0.0, %v4888
      %v4890 = vpop.f32.mrb[0].mxu0
      %4891 = vmatprep.mubr.f32.mxu0 0.0
      %4892 = vmatmul.mubr.f32.gmra.mrb[0].mxu0 %v4489
      %v4893 = vpop.f32.mrb[0].mxu0
      %v4894 = vadd.f32 0.0, %v4893
      %v4895 = vpop.f32.mrb[0].mxu0
      %4896 = vmatprep.mubr.f32.mxu0 0.0
      %4897 = vmatmul.mubr.f32.gmra.mrb[0].mxu0 %v4492
      %v4898 = vpop.f32.mrb[0].mxu0
      %v4899 = vadd.f32 0.0, %v4898
      %v4900 = vpop.f32.mrb[0].mxu0
      %4901 = vmatprep.mubr.f32.mxu0 0.0
      %4902 = vmatmul.mubr.f32.gmra.mrb[0].mxu0 %v4495
      %v4903 = vpop.f32.mrb[0].mxu0
      %v4904 = vadd.f32 0.0, %v4903
      %v4905 = vpop.f32.mrb[0].mxu0
      %4906 = vmatprep.mubr.f32.mxu0 0.0
      %4907 = vmatmul.mubr.f32.gmra.mrb[0].mxu0 %v4498
      %v4908 = vpop.f32.mrb[0].mxu0
      %v4909 = vadd.f32 0.0, %v4908
      %v4910 = vpop.f32.mrb[0].mxu0
      %4911 = vmatprep.mubr.f32.mxu0 0.0
      %4912 = vmatmul.mubr.f32.gmra.mrb[0].mxu0 %v4501
      %v4913 = vpop.f32.mrb[0].mxu0
      %v4914 = vadd.f32 0.0, %v4913
      %v4915 = vpop.f32.mrb[0].mxu0
      %4916 = vmatprep.mubr.f32.mxu0 0.0
      %4917 = vmatmul.mubr.f32.gmra.mrb[0].mxu0 %v4504
      %v4918 = vpop.f32.mrb[0].mxu0
      %v4919 = vadd.f32 0.0, %v4918
      %v4920 = vpop.f32.mrb[0].mxu0
      %4921 = vmatprep.mubr.f32.mxu0 0.0
      %4922 = vmatmul.mubr.f32.gmra.mrb[0].mxu0 %v4507
      %v4923 = vpop.f32.mrb[0].mxu0
      %v4924 = vadd.f32 0.0, %v4923
      %v4925 = vpop.f32.mrb[0].mxu0
      %4926 = vmatprep.mubr.f32.mxu0 0.0
      %4927 = vmatmul.mubr.f32.gmra.mrb[0].mxu0 %v4510
      %v4928 = vpop.f32.mrb[0].mxu0
      %v4929 = vadd.f32 0.0, %v4928
      %v4930 = vpop.f32.mrb[0].mxu0
      %4931 = vmatprep.mubr.f32.mxu0 0.0
      %4932 = vmatmul.mubr.f32.gmra.mrb[0].mxu0 %v4513
      %v4933 = vpop.f32.mrb[0].mxu0
      %v4934 = vadd.f32 0.0, %v4933
      %v4935 = vpop.f32.mrb[0].mxu0
      %4936 = vmatprep.mubr.f32.mxu0 0.0
      %4937 = vmatmul.mubr.f32.gmra.mrb[0].mxu0 %v4516
      %v4938 = vpop.f32.mrb[0].mxu0
      %v4939 = vadd.f32 0.0, %v4938
      %v4940 = vpop.f32.mrb[0].mxu0
      %4941 = vmatprep.mubr.f32.mxu0 0.0
      %4942 = vmatmul.mubr.f32.gmra.mrb[0].mxu0 %v4519
      %v4943 = vpop.f32.mrb[0].mxu0
      %v4944 = vadd.f32 0.0, %v4943
      %v4945 = vpop.f32.mrb[0].mxu0
      %4946 = vmatprep.mubr.f32.mxu0 0.0
      %4947 = vmatmul.mubr.f32.gmra.mrb[0].mxu0 %v4522
      %v4948 = vpop.f32.mrb[0].mxu0
      %v4949 = vadd.f32 0.0, %v4948
      %v4950 = vpop.f32.mrb[0].mxu0
      %4951 = vmatprep.mubr.f32.mxu0 0.0
      %4952 = vmatmul.mubr.f32.gmra.mrb[0].mxu0 %v4525
      %v4953 = vpop.f32.mrb[0].mxu0
      %v4954 = vadd.f32 0.0, %v4953
      %v4955 = vpop.f32.mrb[0].mxu0
      %4956 = vmatprep.mubr.f32.mxu0 0.0
      %4957 = vmatmul.mubr.f32.gmra.mrb[0].mxu0 %v4528
      %v4958 = vpop.f32.mrb[0].mxu0
      %v4959 = vadd.f32 0.0, %v4958
      %v4960 = vpop.f32.mrb[0].mxu0
      %4961 = vmatprep.mubr.f32.mxu0 0.0
      %4962 = vmatmul.mubr.f32.gmra.mrb[0].mxu0 %v4531
      %v4963 = vpop.f32.mrb[0].mxu0
      %v4964 = vadd.f32 0.0, %v4963
      %v4965 = vpop.f32.mrb[0].mxu0
      %4966 = vmatprep.mubr.f32.mxu0 0.0
      %4967 = vmatmul.mubr.f32.gmra.mrb[0].mxu0 %v4534
      %v4968 = vpop.f32.mrb[0].mxu0
      %v4969 = vadd.f32 0.0, %v4968
      %v4970 = vpop.f32.mrb[0].mxu0
      %4971 = vmatprep.mubr.f32.mxu0 0.0
      %4972 = vmatmul.mubr.f32.gmra.mrb[0].mxu0 %v4537
      %v4973 = vpop.f32.mrb[0].mxu0
      %v4974 = vadd.f32 0.0, %v4973
      %v4975 = vpop.f32.mrb[0].mxu0
      %4976 = vmatprep.mubr.f32.mxu0 0.0
      %4977 = vmatmul.mubr.f32.gmra.mrb[0].mxu0 %v4540
      %v4978 = vpop.f32.mrb[0].mxu0
      %v4979 = vadd.f32 0.0, %v4978
      %v4980 = vpop.f32.mrb[0].mxu0
      %4981 = vmatprep.mubr.f32.mxu0 0.0
      %4982 = vmatmul.mubr.f32.gmra.mrb[0].mxu0 %v4543
      %v4983 = vpop.f32.mrb[0].mxu0
      %v4984 = vadd.f32 0.0, %v4983
      %v4985 = vpop.f32.mrb[0].mxu0
      %4986 = vmatprep.mubr.f32.mxu0 0.0
      %4987 = vmatmul.mubr.f32.gmra.mrb[0].mxu0 %v4546
      %v4988 = vpop.f32.mrb[0].mxu0
      %v4989 = vadd.f32 0.0, %v4988
      %v4990 = vpop.f32.mrb[0].mxu0
      %4991 = vmatprep.mubr.f32.mxu0 0.0
      %4992 = vmatmul.mubr.f32.gmra.mrb[0].mxu0 %v4549
      %v4993 = vpop.f32.mrb[0].mxu0
      %v4994 = vadd.f32 0.0, %v4993
      %v4995 = vpop.f32.mrb[0].mxu0
      %4996 = vmatprep.mubr.f32.mxu0 0.0
      %4997 = vmatmul.mubr.f32.gmra.mrb[0].mxu0 %v4552
      %v4998 = vpop.f32.mrb[0].mxu0
      %v4999 = vadd.f32 0.0, %v4998
      %v5000 = vpop.f32.mrb[0].mxu0
      %5001 = vmatprep.mubr.f32.mxu0 0.0
      %5002 = vmatmul.mubr.f32.gmra.mrb[0].mxu0 %v4555
      %v5003 = vpop.f32.mrb[0].mxu0
      %v5004 = vadd.f32 0.0, %v5003
      %v5005 = vpop.f32.mrb[0].mxu0
      %5006 = vdwg.mxu0
      %v5007 = vxor.u32 %v4849, 2147483648
      %v5008 = vxor.u32 %v4854, 2147483648
      %v5009 = vxor.u32 %v4859, 2147483648
      %v5010 = vxor.u32 %v4864, 2147483648
      %v5011 = vxor.u32 %v4869, 2147483648
      %v5012 = vxor.u32 %v4874, 2147483648
      %v5013 = vxor.u32 %v4879, 2147483648
      %v5014 = vxor.u32 %v4884, 2147483648
      %v5015 = vxor.u32 %v4889, 2147483648
      %v5016 = vxor.u32 %v4894, 2147483648
      %v5017 = vxor.u32 %v4899, 2147483648
      %v5018 = vxor.u32 %v4904, 2147483648
      %v5019 = vxor.u32 %v4909, 2147483648
      %v5020 = vxor.u32 %v4914, 2147483648
      %v5021 = vxor.u32 %v4919, 2147483648
      %v5022 = vxor.u32 %v4924, 2147483648
      %v5023 = vxor.u32 %v4929, 2147483648
      %v5024 = vxor.u32 %v4934, 2147483648
      %v5025 = vxor.u32 %v4939, 2147483648
      %v5026 = vxor.u32 %v4944, 2147483648
      %v5027 = vxor.u32 %v4949, 2147483648
      %v5028 = vxor.u32 %v4954, 2147483648
      %v5029 = vxor.u32 %v4959, 2147483648
      %v5030 = vxor.u32 %v4964, 2147483648
      %v5031 = vxor.u32 %v4969, 2147483648
      %v5032 = vxor.u32 %v4974, 2147483648
      %v5033 = vxor.u32 %v4979, 2147483648
      %v5034 = vxor.u32 %v4984, 2147483648
      %v5035 = vxor.u32 %v4989, 2147483648
      %v5036 = vxor.u32 %v4994, 2147483648
      %v5037 = vxor.u32 %v4999, 2147483648
      %v5038 = vxor.u32 %v5004, 2147483648
      %v5039 = vmul.f32 %v5007, 1.442695
      %v5040 = vpow.pop %v5039
      %v5041 = vmul.f32 %v5008, 1.442695
      %v5042 = vpow.pop %v5041
      %v5043 = vmul.f32 %v5009, 1.442695
      %v5044 = vpow.pop %v5043
      %v5045 = vmul.f32 %v5010, 1.442695
      %v5046 = vpow.pop %v5045
      %v5047 = vmul.f32 %v5011, 1.442695
      %v5048 = vpow.pop %v5047
      %v5049 = vmul.f32 %v5012, 1.442695
      %v5050 = vpow.pop %v5049
      %v5051 = vmul.f32 %v5013, 1.442695
      %v5052 = vpow.pop %v5051
      %v5053 = vmul.f32 %v5014, 1.442695
      %v5054 = vpow.pop %v5053
      %v5055 = vmul.f32 %v5015, 1.442695
      %v5056 = vpow.pop %v5055
      %v5057 = vmul.f32 %v5016, 1.442695
      %v5058 = vpow.pop %v5057
      %v5059 = vmul.f32 %v5017, 1.442695
      %v5060 = vpow.pop %v5059
      %v5061 = vmul.f32 %v5018, 1.442695
      %v5062 = vpow.pop %v5061
      %v5063 = vmul.f32 %v5019, 1.442695
      %v5064 = vpow.pop %v5063
      %v5065 = vmul.f32 %v5020, 1.442695
      %v5066 = vpow.pop %v5065
      %v5067 = vmul.f32 %v5021, 1.442695
      %v5068 = vpow.pop %v5067
      %v5069 = vmul.f32 %v5022, 1.442695
      %v5070 = vpow.pop %v5069
      %v5071 = vmul.f32 %v5023, 1.442695
      %v5072 = vpow.pop %v5071
      %v5073 = vmul.f32 %v5024, 1.442695
      %v5074 = vpow.pop %v5073
      %v5075 = vmul.f32 %v5025, 1.442695
      %v5076 = vpow.pop %v5075
      %v5077 = vmul.f32 %v5026, 1.442695
      %v5078 = vpow.pop %v5077
      %v5079 = vmul.f32 %v5027, 1.442695
      %v5080 = vpow.pop %v5079
      %v5081 = vmul.f32 %v5028, 1.442695
      %v5082 = vpow.pop %v5081
      %v5083 = vmul.f32 %v5029, 1.442695
      %v5084 = vpow.pop %v5083
      %v5085 = vmul.f32 %v5030, 1.442695
      %v5086 = vpow.pop %v5085
      %v5087 = vmul.f32 %v5031, 1.442695
      %v5088 = vpow.pop %v5087
      %v5089 = vmul.f32 %v5032, 1.442695
      %v5090 = vpow.pop %v5089
      %v5091 = vmul.f32 %v5033, 1.442695
      %v5092 = vpow.pop %v5091
      %v5093 = vmul.f32 %v5034, 1.442695
      %v5094 = vpow.pop %v5093
      %v5095 = vmul.f32 %v5035, 1.442695
      %v5096 = vpow.pop %v5095
      %v5097 = vmul.f32 %v5036, 1.442695
      %v5098 = vpow.pop %v5097
      %v5099 = vmul.f32 %v5037, 1.442695
      %v5100 = vpow.pop %v5099
      %v5101 = vmul.f32 %v5038, 1.442695
      %v5102 = vpow.pop %v5101
      %v5103 = vadd.f32 %v5040, 1.0
      %v5104 = vadd.f32 %v5042, 1.0
      %v5105 = vadd.f32 %v5044, 1.0
      %v5106 = vadd.f32 %v5046, 1.0
      %v5107 = vadd.f32 %v5048, 1.0
      %v5108 = vadd.f32 %v5050, 1.0
      %v5109 = vadd.f32 %v5052, 1.0
      %v5110 = vadd.f32 %v5054, 1.0
      %v5111 = vadd.f32 %v5056, 1.0
      %v5112 = vadd.f32 %v5058, 1.0
      %v5113 = vadd.f32 %v5060, 1.0
      %v5114 = vadd.f32 %v5062, 1.0
      %v5115 = vadd.f32 %v5064, 1.0
      %v5116 = vadd.f32 %v5066, 1.0
      %v5117 = vadd.f32 %v5068, 1.0
      %v5118 = vadd.f32 %v5070, 1.0
      %v5119 = vadd.f32 %v5072, 1.0
      %v5120 = vadd.f32 %v5074, 1.0
      %v5121 = vadd.f32 %v5076, 1.0
      %v5122 = vadd.f32 %v5078, 1.0
      %v5123 = vadd.f32 %v5080, 1.0
      %v5124 = vadd.f32 %v5082, 1.0
      %v5125 = vadd.f32 %v5084, 1.0
      %v5126 = vadd.f32 %v5086, 1.0
      %v5127 = vadd.f32 %v5088, 1.0
      %v5128 = vadd.f32 %v5090, 1.0
      %v5129 = vadd.f32 %v5092, 1.0
      %v5130 = vadd.f32 %v5094, 1.0
      %v5131 = vadd.f32 %v5096, 1.0
      %v5132 = vadd.f32 %v5098, 1.0
      %v5133 = vadd.f32 %v5100, 1.0
      %v5134 = vadd.f32 %v5102, 1.0
      %v5135 = vrcp.pop %v5103
      %v5136 = vmul.f32 1.0, %v5135
      %v5137 = vrcp.pop %v5104
      %v5138 = vmul.f32 1.0, %v5137
      %v5139 = vrcp.pop %v5105
      %v5140 = vmul.f32 1.0, %v5139
      %v5141 = vrcp.pop %v5106
      %v5142 = vmul.f32 1.0, %v5141
      %v5143 = vrcp.pop %v5107
      %v5144 = vmul.f32 1.0, %v5143
      %v5145 = vrcp.pop %v5108
      %v5146 = vmul.f32 1.0, %v5145
      %v5147 = vrcp.pop %v5109
      %v5148 = vmul.f32 1.0, %v5147
      %v5149 = vrcp.pop %v5110
      %v5150 = vmul.f32 1.0, %v5149
      %v5151 = vrcp.pop %v5111
      %v5152 = vmul.f32 1.0, %v5151
      %v5153 = vrcp.pop %v5112
      %v5154 = vmul.f32 1.0, %v5153
      %v5155 = vrcp.pop %v5113
      %v5156 = vmul.f32 1.0, %v5155
      %v5157 = vrcp.pop %v5114
      %v5158 = vmul.f32 1.0, %v5157
      %v5159 = vrcp.pop %v5115
      %v5160 = vmul.f32 1.0, %v5159
      %v5161 = vrcp.pop %v5116
      %v5162 = vmul.f32 1.0, %v5161
      %v5163 = vrcp.pop %v5117
      %v5164 = vmul.f32 1.0, %v5163
      %v5165 = vrcp.pop %v5118
      %v5166 = vmul.f32 1.0, %v5165
      %v5167 = vrcp.pop %v5119
      %v5168 = vmul.f32 1.0, %v5167
      %v5169 = vrcp.pop %v5120
      %v5170 = vmul.f32 1.0, %v5169
      %v5171 = vrcp.pop %v5121
      %v5172 = vmul.f32 1.0, %v5171
      %v5173 = vrcp.pop %v5122
      %v5174 = vmul.f32 1.0, %v5173
      %v5175 = vrcp.pop %v5123
      %v5176 = vmul.f32 1.0, %v5175
      %v5177 = vrcp.pop %v5124
      %v5178 = vmul.f32 1.0, %v5177
      %v5179 = vrcp.pop %v5125
      %v5180 = vmul.f32 1.0, %v5179
      %v5181 = vrcp.pop %v5126
      %v5182 = vmul.f32 1.0, %v5181
      %v5183 = vrcp.pop %v5127
      %v5184 = vmul.f32 1.0, %v5183
      %v5185 = vrcp.pop %v5128
      %v5186 = vmul.f32 1.0, %v5185
      %v5187 = vrcp.pop %v5129
      %v5188 = vmul.f32 1.0, %v5187
      %v5189 = vrcp.pop %v5130
      %v5190 = vmul.f32 1.0, %v5189
      %v5191 = vrcp.pop %v5131
      %v5192 = vmul.f32 1.0, %v5191
      %v5193 = vrcp.pop %v5132
      %v5194 = vmul.f32 1.0, %v5193
      %v5195 = vrcp.pop %v5133
      %v5196 = vmul.f32 1.0, %v5195
      %v5197 = vrcp.pop %v5134
      %v5198 = vmul.f32 1.0, %v5197
      %v5199 = vmul.f32 %v4624, %v5136
      %v5200 = vmul.f32 %v4629, %v5138
      %v5201 = vmul.f32 %v4634, %v5140
      %v5202 = vmul.f32 %v4639, %v5142
      %v5203 = vmul.f32 %v4644, %v5144
      %v5204 = vmul.f32 %v4649, %v5146
      %v5205 = vmul.f32 %v4654, %v5148
      %v5206 = vmul.f32 %v4659, %v5150
      %v5207 = vmul.f32 %v4664, %v5152
      %v5208 = vmul.f32 %v4669, %v5154
      %v5209 = vmul.f32 %v4674, %v5156
      %v5210 = vmul.f32 %v4679, %v5158
      %v5211 = vmul.f32 %v4684, %v5160
      %v5212 = vmul.f32 %v4689, %v5162
      %v5213 = vmul.f32 %v4694, %v5164
      %v5214 = vmul.f32 %v4699, %v5166
      %v5215 = vmul.f32 %v4704, %v5168
      %v5216 = vmul.f32 %v4709, %v5170
      %v5217 = vmul.f32 %v4714, %v5172
      %v5218 = vmul.f32 %v4719, %v5174
      %v5219 = vmul.f32 %v4724, %v5176
      %v5220 = vmul.f32 %v4729, %v5178
      %v5221 = vmul.f32 %v4734, %v5180
      %v5222 = vmul.f32 %v4739, %v5182
      %v5223 = vmul.f32 %v4744, %v5184
      %v5224 = vmul.f32 %v4749, %v5186
      %v5225 = vmul.f32 %v4754, %v5188
      %v5226 = vmul.f32 %v4759, %v5190
      %v5227 = vmul.f32 %v4764, %v5192
      %v5228 = vmul.f32 %v4769, %v5194
      %v5229 = vmul.f32 %v4774, %v5196
      %v5230 = vmul.f32 %v4779, %v5198
      %v5231 = vld [vmem:[%s757] sm:$0xff]
      %v5232 = vld [vmem:[%s757 + $0x8] sm:$0xff]
      %v5233 = vld [vmem:[%s757 + $0x10] sm:$0xff]
      %v5234 = vld [vmem:[%s757 + $0x18] sm:$0xff]
      %v5235 = vld [vmem:[%s757 + $0x20] sm:$0xff]
      %v5236 = vld [vmem:[%s757 + $0x28] sm:$0xff]
      %v5237 = vld [vmem:[%s757 + $0x30] sm:$0xff]
      %v5238 = vld [vmem:[%s757 + $0x38] sm:$0xff]
      %v5239 = vld [vmem:[%s757 + $0x40] sm:$0xff]
      %v5240 = vld [vmem:[%s757 + $0x48] sm:$0xff]
      %v5241 = vld [vmem:[%s757 + $0x50] sm:$0xff]
      %v5242 = vld [vmem:[%s757 + $0x58] sm:$0xff]
      %v5243 = vld [vmem:[%s757 + $0x60] sm:$0xff]
      %v5244 = vld [vmem:[%s757 + $0x68] sm:$0xff]
      %v5245 = vld [vmem:[%s757 + $0x70] sm:$0xff]
      %v5246 = vld [vmem:[%s757 + $0x78] sm:$0xff]
      %v5247 = vld [vmem:[%s757 + $0x80] sm:$0xff]
      %v5248 = vld [vmem:[%s757 + $0x88] sm:$0xff]
      %v5249 = vld [vmem:[%s757 + $0x90] sm:$0xff]
      %v5250 = vld [vmem:[%s757 + $0x98] sm:$0xff]
      %v5251 = vld [vmem:[%s757 + $0xa0] sm:$0xff]
      %v5252 = vld [vmem:[%s757 + $0xa8] sm:$0xff]
      %v5253 = vld [vmem:[%s757 + $0xb0] sm:$0xff]
      %v5254 = vld [vmem:[%s757 + $0xb8] sm:$0xff]
      %v5255 = vld [vmem:[%s757 + $0xc0] sm:$0xff]
      %v5256 = vld [vmem:[%s757 + $0xc8] sm:$0xff]
      %v5257 = vld [vmem:[%s757 + $0xd0] sm:$0xff]
      %v5258 = vld [vmem:[%s757 + $0xd8] sm:$0xff]
      %v5259 = vld [vmem:[%s757 + $0xe0] sm:$0xff]
      %v5260 = vld [vmem:[%s757 + $0xe8] sm:$0xff]
      %v5261 = vld [vmem:[%s757 + $0xf0] sm:$0xff]
      %v5262 = vld [vmem:[%s757 + $0xf8] sm:$0xff]
      %v5263 = vsub.f32 1.0, %v5136
      %v5264 = vsub.f32 1.0, %v5138
      %v5265 = vsub.f32 1.0, %v5140
      %v5266 = vsub.f32 1.0, %v5142
      %v5267 = vsub.f32 1.0, %v5144
      %v5268 = vsub.f32 1.0, %v5146
      %v5269 = vsub.f32 1.0, %v5148
      %v5270 = vsub.f32 1.0, %v5150
      %v5271 = vsub.f32 1.0, %v5152
      %v5272 = vsub.f32 1.0, %v5154
      %v5273 = vsub.f32 1.0, %v5156
      %v5274 = vsub.f32 1.0, %v5158
      %v5275 = vsub.f32 1.0, %v5160
      %v5276 = vsub.f32 1.0, %v5162
      %v5277 = vsub.f32 1.0, %v5164
      %v5278 = vsub.f32 1.0, %v5166
      %v5279 = vsub.f32 1.0, %v5168
      %v5280 = vsub.f32 1.0, %v5170
      %v5281 = vsub.f32 1.0, %v5172
      %v5282 = vsub.f32 1.0, %v5174
      %v5283 = vsub.f32 1.0, %v5176
      %v5284 = vsub.f32 1.0, %v5178
      %v5285 = vsub.f32 1.0, %v5180
      %v5286 = vsub.f32 1.0, %v5182
      %v5287 = vsub.f32 1.0, %v5184
      %v5288 = vsub.f32 1.0, %v5186
      %v5289 = vsub.f32 1.0, %v5188
      %v5290 = vsub.f32 1.0, %v5190
      %v5291 = vsub.f32 1.0, %v5192
      %v5292 = vsub.f32 1.0, %v5194
      %v5293 = vsub.f32 1.0, %v5196
      %v5294 = vsub.f32 1.0, %v5198
      %v5295 = vmul.f32 %v5231, %v5263
      %v5296 = vmul.f32 %v5232, %v5264
      %v5297 = vmul.f32 %v5233, %v5265
      %v5298 = vmul.f32 %v5234, %v5266
      %v5299 = vmul.f32 %v5235, %v5267
      %v5300 = vmul.f32 %v5236, %v5268
      %v5301 = vmul.f32 %v5237, %v5269
      %v5302 = vmul.f32 %v5238, %v5270
      %v5303 = vmul.f32 %v5239, %v5271
      %v5304 = vmul.f32 %v5240, %v5272
      %v5305 = vmul.f32 %v5241, %v5273
      %v5306 = vmul.f32 %v5242, %v5274
      %v5307 = vmul.f32 %v5243, %v5275
      %v5308 = vmul.f32 %v5244, %v5276
      %v5309 = vmul.f32 %v5245, %v5277
      %v5310 = vmul.f32 %v5246, %v5278
      %v5311 = vmul.f32 %v5247, %v5279
      %v5312 = vmul.f32 %v5248, %v5280
      %v5313 = vmul.f32 %v5249, %v5281
      %v5314 = vmul.f32 %v5250, %v5282
      %v5315 = vmul.f32 %v5251, %v5283
      %v5316 = vmul.f32 %v5252, %v5284
      %v5317 = vmul.f32 %v5253, %v5285
      %v5318 = vmul.f32 %v5254, %v5286
      %v5319 = vmul.f32 %v5255, %v5287
      %v5320 = vmul.f32 %v5256, %v5288
      %v5321 = vmul.f32 %v5257, %v5289
      %v5322 = vmul.f32 %v5258, %v5290
      %v5323 = vmul.f32 %v5259, %v5291
      %v5324 = vmul.f32 %v5260, %v5292
      %v5325 = vmul.f32 %v5261, %v5293
      %v5326 = vmul.f32 %v5262, %v5294
      %v5327 = vadd.f32 %v5199, %v5295
      %v5328 = vadd.f32 %v5200, %v5296
      %v5329 = vadd.f32 %v5201, %v5297
      %v5330 = vadd.f32 %v5202, %v5298
      %v5331 = vadd.f32 %v5203, %v5299
      %v5332 = vadd.f32 %v5204, %v5300
      %v5333 = vadd.f32 %v5205, %v5301
      %v5334 = vadd.f32 %v5206, %v5302
      %v5335 = vadd.f32 %v5207, %v5303
      %v5336 = vadd.f32 %v5208, %v5304
      %v5337 = vadd.f32 %v5209, %v5305
      %v5338 = vadd.f32 %v5210, %v5306
      %v5339 = vadd.f32 %v5211, %v5307
      %v5340 = vadd.f32 %v5212, %v5308
      %v5341 = vadd.f32 %v5213, %v5309
      %v5342 = vadd.f32 %v5214, %v5310
      %v5343 = vadd.f32 %v5215, %v5311
      %v5344 = vadd.f32 %v5216, %v5312
      %v5345 = vadd.f32 %v5217, %v5313
      %v5346 = vadd.f32 %v5218, %v5314
      %v5347 = vadd.f32 %v5219, %v5315
      %v5348 = vadd.f32 %v5220, %v5316
      %v5349 = vadd.f32 %v5221, %v5317
      %v5350 = vadd.f32 %v5222, %v5318
      %v5351 = vadd.f32 %v5223, %v5319
      %v5352 = vadd.f32 %v5224, %v5320
      %v5353 = vadd.f32 %v5225, %v5321
      %v5354 = vadd.f32 %v5226, %v5322
      %v5355 = vadd.f32 %v5227, %v5323
      %v5356 = vadd.f32 %v5228, %v5324
      %v5357 = vadd.f32 %v5229, %v5325
      %v5358 = vadd.f32 %v5230, %v5326
      %vm5359 = vcmask 7168
      %5360 = vst.msk [vmem:[%s762] sm:$0xff] %vm5359, %v5327
      %5361 = vst.msk [vmem:[%s762 + $0x8] sm:$0xff] %vm5359, %v5328
      %5362 = vst.msk [vmem:[%s762 + $0x10] sm:$0xff] %vm5359, %v5329
      %5363 = vst.msk [vmem:[%s762 + $0x18] sm:$0xff] %vm5359, %v5330
      %5364 = vst.msk [vmem:[%s762 + $0x20] sm:$0xff] %vm5359, %v5331
      %5365 = vst.msk [vmem:[%s762 + $0x28] sm:$0xff] %vm5359, %v5332
      %5366 = vst.msk [vmem:[%s762 + $0x30] sm:$0xff] %vm5359, %v5333
      %5367 = vst.msk [vmem:[%s762 + $0x38] sm:$0xff] %vm5359, %v5334
      %5368 = vst.msk [vmem:[%s762 + $0x40] sm:$0xff] %vm5359, %v5335
      %5369 = vst.msk [vmem:[%s762 + $0x48] sm:$0xff] %vm5359, %v5336
      %5370 = vst.msk [vmem:[%s762 + $0x50] sm:$0xff] %vm5359, %v5337
      %5371 = vst.msk [vmem:[%s762 + $0x58] sm:$0xff] %vm5359, %v5338
      %5372 = vst.msk [vmem:[%s762 + $0x60] sm:$0xff] %vm5359, %v5339
      %5373 = vst.msk [vmem:[%s762 + $0x68] sm:$0xff] %vm5359, %v5340
      %5374 = vst.msk [vmem:[%s762 + $0x70] sm:$0xff] %vm5359, %v5341
      %5375 = vst.msk [vmem:[%s762 + $0x78] sm:$0xff] %vm5359, %v5342
      %5376 = vst.msk [vmem:[%s762 + $0x80] sm:$0xff] %vm5359, %v5343
      %5377 = vst.msk [vmem:[%s762 + $0x88] sm:$0xff] %vm5359, %v5344
      %5378 = vst.msk [vmem:[%s762 + $0x90] sm:$0xff] %vm5359, %v5345
      %5379 = vst.msk [vmem:[%s762 + $0x98] sm:$0xff] %vm5359, %v5346
      %5380 = vst.msk [vmem:[%s762 + $0xa0] sm:$0xff] %vm5359, %v5347
      %5381 = vst.msk [vmem:[%s762 + $0xa8] sm:$0xff] %vm5359, %v5348
      %5382 = vst.msk [vmem:[%s762 + $0xb0] sm:$0xff] %vm5359, %v5349
      %5383 = vst.msk [vmem:[%s762 + $0xb8] sm:$0xff] %vm5359, %v5350
      %5384 = vst.msk [vmem:[%s762 + $0xc0] sm:$0xff] %vm5359, %v5351
      %5385 = vst.msk [vmem:[%s762 + $0xc8] sm:$0xff] %vm5359, %v5352
      %5386 = vst.msk [vmem:[%s762 + $0xd0] sm:$0xff] %vm5359, %v5353
      %5387 = vst.msk [vmem:[%s762 + $0xd8] sm:$0xff] %vm5359, %v5354
      %5388 = vst.msk [vmem:[%s762 + $0xe0] sm:$0xff] %vm5359, %v5355
      %5389 = vst.msk [vmem:[%s762 + $0xe8] sm:$0xff] %vm5359, %v5356
      %5390 = vst.msk [vmem:[%s762 + $0xf0] sm:$0xff] %vm5359, %v5357
      %5391 = vst.msk [vmem:[%s762 + $0xf8] sm:$0xff] %vm5359, %v5358
      %5392 = vst.msk [vmem:[%s767] sm:$0xff] %vm5359, %v4849
      %5393 = vst.msk [vmem:[%s767 + $0x8] sm:$0xff] %vm5359, %v4854
      %5394 = vst.msk [vmem:[%s767 + $0x10] sm:$0xff] %vm5359, %v4859
      %5395 = vst.msk [vmem:[%s767 + $0x18] sm:$0xff] %vm5359, %v4864
      %5396 = vst.msk [vmem:[%s767 + $0x20] sm:$0xff] %vm5359, %v4869
      %5397 = vst.msk [vmem:[%s767 + $0x28] sm:$0xff] %vm5359, %v4874
      %5398 = vst.msk [vmem:[%s767 + $0x30] sm:$0xff] %vm5359, %v4879
      %5399 = vst.msk [vmem:[%s767 + $0x38] sm:$0xff] %vm5359, %v4884
      %5400 = vst.msk [vmem:[%s767 + $0x40] sm:$0xff] %vm5359, %v4889
      %5401 = vst.msk [vmem:[%s767 + $0x48] sm:$0xff] %vm5359, %v4894
      %5402 = vst.msk [vmem:[%s767 + $0x50] sm:$0xff] %vm5359, %v4899
      %5403 = vst.msk [vmem:[%s767 + $0x58] sm:$0xff] %vm5359, %v4904
      %5404 = vst.msk [vmem:[%s767 + $0x60] sm:$0xff] %vm5359, %v4909
      %5405 = vst.msk [vmem:[%s767 + $0x68] sm:$0xff] %vm5359, %v4914
      %5406 = vst.msk [vmem:[%s767 + $0x70] sm:$0xff] %vm5359, %v4919
      %5407 = vst.msk [vmem:[%s767 + $0x78] sm:$0xff] %vm5359, %v4924
      %5408 = vst.msk [vmem:[%s767 + $0x80] sm:$0xff] %vm5359, %v4929
      %5409 = vst.msk [vmem:[%s767 + $0x88] sm:$0xff] %vm5359, %v4934
      %5410 = vst.msk [vmem:[%s767 + $0x90] sm:$0xff] %vm5359, %v4939
      %5411 = vst.msk [vmem:[%s767 + $0x98] sm:$0xff] %vm5359, %v4944
      %5412 = vst.msk [vmem:[%s767 + $0xa0] sm:$0xff] %vm5359, %v4949
      %5413 = vst.msk [vmem:[%s767 + $0xa8] sm:$0xff] %vm5359, %v4954
      %5414 = vst.msk [vmem:[%s767 + $0xb0] sm:$0xff] %vm5359, %v4959
      %5415 = vst.msk [vmem:[%s767 + $0xb8] sm:$0xff] %vm5359, %v4964
      %5416 = vst.msk [vmem:[%s767 + $0xc0] sm:$0xff] %vm5359, %v4969
      %5417 = vst.msk [vmem:[%s767 + $0xc8] sm:$0xff] %vm5359, %v4974
      %5418 = vst.msk [vmem:[%s767 + $0xd0] sm:$0xff] %vm5359, %v4979
      %5419 = vst.msk [vmem:[%s767 + $0xd8] sm:$0xff] %vm5359, %v4984
      %5420 = vst.msk [vmem:[%s767 + $0xe0] sm:$0xff] %vm5359, %v4989
      %5421 = vst.msk [vmem:[%s767 + $0xe8] sm:$0xff] %vm5359, %v4994
      %5422 = vst.msk [vmem:[%s767 + $0xf0] sm:$0xff] %vm5359, %v4999
      %5423 = vst.msk [vmem:[%s767 + $0xf8] sm:$0xff] %vm5359, %v5004
      %p5424 = scmp.lt.s32.totalorder %s39, 1
      %s5425 = scalar_select %p5424, %s39, 1
      %s5426 = smul.addr %s5425, 32
      %s5427 = smul.addr %s5426, 8
      %s5428 = scalar_lea.vmem %s22, %s5427
      %p5429 = scmp.lt.s32.totalorder %s39, 1
      %s5430 = scalar_select %p5429, %s39, 1
      %s5431 = smul.addr %s5430, 32
      %s5432 = smul.addr %s5431, 8
      %s5433 = scalar_lea.vmem %s23, %s5432
      // Predicated region
      $region109: #{refine_layer_forward.3} parent=107 // pred_check
        %p5434 = pneg %p534
      $region110: #{refine_layer_forward.3} parent=107 // pred_check_branch
        %5436 = sbr.rel (%p5434) target = $region112
      $region111: #{refine_layer_forward.3} parent=107 // pred_region
        _
      $region112: #{refine_layer_forward.3} parent=107 // pred_fallthru
        _
      // Predicated region
      $region113: #{refine_layer_forward.3} parent=107 // pred_check
        %p5437 = pneg %p560
      $region114: #{refine_layer_forward.3} parent=107 // pred_check_branch
        %5439 = sbr.rel (%p5437) target = $region116
      $region115: #{refine_layer_forward.3} parent=107 // pred_region
        _
      $region116: #{refine_layer_forward.3} parent=107 // pred_fallthru
        _
    $region108: #{refine_layer_forward.3} parent=5 // pred_fallthru
      _
    %p5440 = scmp.le.s32.totalorder 2, %s34
    // Predicated region
    $region117: #{refine_layer_forward.3} parent=5 // pred_check
      %p5441 = pneg %p5440
    $region118: #{refine_layer_forward.3} parent=5 // pred_check_branch
      %5443 = sbr.rel (%p5441) target = $region120
    $region119: #{refine_layer_forward.3} parent=5 // pred_region
      %s5444 = ssub.s32 %s34, 2
      // Predicated region
      $region121: #{refine_layer_forward.3} parent=119 // pred_check
        %p5445 = pneg %p540
      $region122: #{refine_layer_forward.3} parent=119 // pred_check_branch
        %5447 = sbr.rel (%p5445) target = $region124
      $region123: #{refine_layer_forward.3} parent=119 // pred_region
        %p5448 = scmp.lt.s32.totalorder %s40, 1
        %s5449 = scalar_select %p5448, %s40, 1
        %s5450 = smul.addr %s5449, 32
        %s5451 = smul.addr %s5450, 8
        %s5452 = scalar_lea.vmem %s22, %s5451
      $region124: #{refine_layer_forward.3} parent=119 // pred_fallthru
        _
      // Predicated region
      $region125: #{refine_layer_forward.3} parent=119 // pred_check
        %p5453 = pneg %p566
      $region126: #{refine_layer_forward.3} parent=119 // pred_check_branch
        %5455 = sbr.rel (%p5453) target = $region128
      $region127: #{refine_layer_forward.3} parent=119 // pred_region
        %p5456 = scmp.lt.s32.totalorder %s40, 1
        %s5457 = scalar_select %p5456, %s40, 1
        %s5458 = smul.addr %s5457, 32
        %s5459 = smul.addr %s5458, 8
        %s5460 = scalar_lea.vmem %s23, %s5459
      $region128: #{refine_layer_forward.3} parent=119 // pred_fallthru
        _
    $region120: #{refine_layer_forward.3} parent=5 // pred_fallthru
      _
  $region6: #{refine_layer_forward.3} parent=0 // loop_footer
    %s38 = sadd.s32 1, %s34
  $region7: #{refine_layer_forward.3} parent=0 // loop_footer_branch
    %33 = sbr.rel target = $region3
  $region8: #{refine_layer_forward.3} parent=0 // loop_exit
    _

</llo_original>
